<compile_context>
chip_gen: v5e
topology: v5e:2x2
jax: 0.10.0
libtpu: 0.0.40
codegen_flags: <defaults>
</compile_context>

<pallas_src>
import jax
import jax.numpy as jnp
from jax.experimental import pallas as pl
from jax.experimental.pallas import tpu as pltpu


def _round_up(x, m):
    return ((x + m - 1) // m) * m


def aencoder_kernel(x_ref, w1_ref, b1_ref, w2_ref, b2_ref, w3_ref, b3_ref,
                    wmu_ref, bmu_ref, out_ref):
    # Fused MLP: weights sit fully in VMEM (constant index_map, single buffered);
    # the batch dimension is tiled by the 1-D grid.
    def layer(h, w_ref, b_ref):
        acc = jnp.dot(h, w_ref[...], preferred_element_type=jnp.float32)
        return jnp.maximum(acc + b_ref[...], 0.0).astype(jnp.bfloat16)

    # f32 -> bf16 cast of the input tile is free VPU filler under an MXU-bound body.
    h = x_ref[...].astype(jnp.bfloat16)                 # (tile_b, D) bf16
    h = layer(h, w1_ref, b1_ref)
    h = layer(h, w2_ref, b2_ref)
    h = layer(h, w3_ref, b3_ref)
    # mu head: hid padded to exactly 128 lanes (don't pad beyond; at real dims
    # most of the head MACs are already padding — accepted cost).
    mu = jnp.dot(h, wmu_ref[...], preferred_element_type=jnp.float32) + bmu_ref[...]
    out_ref[...] = mu.astype(out_ref.dtype)


def _tpu_generation():
    """Return (vmem_capacity_bytes, tensorcores_per_chip) with safe fallbacks."""
    kind = ""
    try:
        kind = jax.devices()[0].device_kind.lower()
    except Exception:
        pass
    num_cores = 2 if "v7" in kind else 1
    vmem_bytes = None
    try:
        vmem_bytes = int(pltpu.get_tpu_info().vmem_capacity_bytes)
    except Exception:
        vmem_bytes = None
    if vmem_bytes is None:
        vmem_bytes = 64 * 1024 * 1024 if num_cores == 2 else 128 * 1024 * 1024
    if vmem_bytes <= 80 * 1024 * 1024:          # v7x: 64 MiB VMEM per TC, 2 TCs
        num_cores = max(num_cores, 2)
    return vmem_bytes, num_cores


def aencoder_forward(x, params, *, tile_b=None, lane=128):
    """Fused AEncoder forward.

    x: (B, input_dim) float32.
    params: [(W, b)] * 4 with W=(in, out), b=(1, out) (3 encoder layers + mu head).
    Returns mu: (B, hid_dim) float32.
    """
    assert len(params) == 4, "AEncoder: 3 encoder layers + mu head expected"
    x = x.astype(jnp.float32)
    B, D = x.shape
    feat = [w.shape[1] for (w, _) in params]            # [i0, i1, i2, hid]
    hid = feat[-1]
    pfeat = [_round_up(d, lane) for d in feat]          # lane-pad hidden/out dims

    vmem_cap, num_cores = _tpu_generation()

    # ---- per-generation batch tile selection --------------------------------
    if tile_b is None:
        want_tiles = 2 * num_cores                      # >= 2 grid steps per TC
        tile_b = min(512, max(128, _round_up(-(-B // want_tiles), 128)))

        def _foot(t):                                   # per-step IO + activations
            return 2 * t * D * 4 + 2 * t * pfeat[-1] * 4 + 3 * t * max(pfeat) * 4

        while tile_b > 128 and _foot(tile_b) > vmem_cap // 2:
            tile_b //= 2
    Bp = _round_up(B, tile_b)                           # cheap batch padding only
    xp = x if Bp == B else jnp.pad(x, ((0, Bp - B), (0, 0)))

    # ---- one-time weight layout (lane-pad feature dims; W1's K stays at D) ---
    in_dims = [D] + feat[:-1]
    pin_dims = [D] + pfeat[:-1]
    flat_weights = []
    for li, (w, b) in enumerate(params):
        din, dout = in_dims[li], feat[li]
        pin, pout = pin_dims[li], pfeat[li]
        wp = jnp.zeros((pin, pout), jnp.bfloat16).at[:din, :dout].set(
            w.astype(jnp.bfloat16))
        bp = jnp.zeros((1, pout), jnp.float32).at[:, :dout].set(
            b.reshape(1, dout).astype(jnp.float32))
        # Zero weight/bias padding + ReLU(0) = 0 => padding never leaks.
        flat_weights += [wp, bp]

    wbytes = sum(int(a.size) * a.dtype.itemsize for a in flat_weights)

    def build_and_run(single_buffer_weights):
        def resident(a):
            nd = a.ndim
            kwargs = ({"pipeline_mode": pl.Buffered(1)}
                      if single_buffer_weights else {})
            # Constant index_map -> same VMEM block reused across all grid steps.
            return pl.BlockSpec(a.shape, lambda *_, _nd=nd: (0,) * _nd, **kwargs)

        in_specs = [pl.BlockSpec((tile_b, D), lambda i: (i, 0))]   # x: f32, K unpadded
        in_specs += [resident(a) for a in flat_weights]

        # ---- generation-aware VMEM budget ------------------------------------
        wmult = 1 if single_buffer_weights else 2
        est = (wmult * wbytes
               + 2 * tile_b * D * 4                    # x tile (f32, double-buffered)
               + 2 * tile_b * pfeat[-1] * 4            # out tile (f32, double-buffered)
               + 3 * tile_b * max(pfeat) * 4)          # f32/bf16 intermediates headroom
        cap = (52 * 1024 * 1024 if vmem_cap <= 80 * 1024 * 1024   # v7x
               else 100 * 1024 * 1024)                             # v5e / v6e
        vmem_limit = int(min(max(int(1.5 * est), 32 * 1024 * 1024), cap))

        return pl.pallas_call(
            aencoder_kernel,
            out_shape=jax.ShapeDtypeStruct((Bp, pfeat[-1]), jnp.float32),
            grid_spec=pltpu.PrefetchScalarGridSpec(
                num_scalar_prefetch=0,
                grid=(Bp // tile_b,),
                in_specs=in_specs,
                out_specs=pl.BlockSpec((tile_b, pfeat[-1]), lambda i: (i, 0)),
            ),
            compiler_params=pltpu.CompilerParams(
                dimension_semantics=("parallel",),      # megacore-shard batch tiles
                vmem_limit_bytes=vmem_limit,
            ),
        )(xp, *flat_weights)

    try:
        out_p = build_and_run(True)
        out_p.block_until_ready()
    except Exception:
        # Older jax without Buffered(1) support: fall back to default buffering.
        out_p = build_and_run(False)

    return out_p[:B, :hid]


def init_params(key, input_dim, inter_dims, hid_dim, dtype=jnp.float32):
    """Deterministic synthetic init (PyTorch-Linear-like uniform fan-in scaling)."""
    dims = [input_dim] + list(inter_dims) + [hid_dim]
    params = []
    for d_in, d_out in zip(dims[:-1], dims[1:]):
        key, kw, kb = jax.random.split(key, 3)
        bound = 1.0 / jnp.sqrt(float(d_in))
        w = jax.random.uniform(kw, (d_in, d_out), dtype, -bound, bound)
        b = jax.random.uniform(kb, (1, d_out), dtype, -bound, bound)
        params.append((w, b))
    return params


def aencoder_reference(x, params):
    """Pure-JAX f32 reference of the PyTorch forward."""
    h = x
    for (w, b) in params[:-1]:
        h = jnp.maximum(h @ w + b, 0.0)
    wmu, bmu = params[-1]
    return h @ wmu + bmu


if __name__ == "__main__":
    # Shapes consistent with AEncoder(input_dim, [500,500,2000], hid_dim=10),
    # scaled down but exercising all layout paths:
    #   batch=500     -> padded to a tile multiple; tile_b auto-picked per chip
    #                    (>= 2 grid steps per TensorCore on v7x).
    #   input_dim=100 -> deliberately NOT 128-aligned; K stays unpadded, x is
    #                    read as f32 and cast in-kernel (no wrapper round trip).
    #   hid_dim=10    -> mu head padded to 128 lanes (unmasked stores), sliced off.
    batch = 500
    input_dim = 100
    inter_dims = [256, 256, 512]     # scaled-down analogue of [500, 500, 2000]
    hid_dim = 10                     # module default

    key = jax.random.PRNGKey(0)
    kx, kp = jax.random.split(key)
    x = jax.random.normal(kx, (batch, input_dim), jnp.float32)
    params = init_params(kp, input_dim, inter_dims, hid_dim)

    mu = aencoder_forward(x, params)          # tile_b auto-selected per generation
    mu = jax.block_until_ready(mu)

    mu_ref = aencoder_reference(x, params)
    assert mu.shape == (batch, hid_dim)
    # bf16 matmul inputs with f32 accumulation => ~1e-2-level relative error vs
    # the pure-f32 reference; compare with a normalized max-error metric.
    err = float(jnp.max(jnp.abs(mu - mu_ref)) /
                (jnp.max(jnp.abs(mu_ref)) + 1e-6))
    assert err < 5e-2, f"mismatch vs JAX reference: rel-max-err={err:.3e}"

    print("KERNEL_OK")
</pallas_src>

<mosaic_0001>
module attributes {stable_mosaic.version = 11 : i64} {
  func.func @aencoder_kernel(%arg0: i32, %arg1: memref<256x100xf32, #tpu.memory_space<vmem>>, %arg2: memref<100x256xbf16, #tpu.memory_space<vmem>>, %arg3: memref<1x256xf32, #tpu.memory_space<vmem>>, %arg4: memref<256x256xbf16, #tpu.memory_space<vmem>>, %arg5: memref<1x256xf32, #tpu.memory_space<vmem>>, %arg6: memref<256x512xbf16, #tpu.memory_space<vmem>>, %arg7: memref<1x512xf32, #tpu.memory_space<vmem>>, %arg8: memref<512x128xbf16, #tpu.memory_space<vmem>>, %arg9: memref<1x128xf32, #tpu.memory_space<vmem>>, %arg10: memref<256x128xf32, #tpu.memory_space<vmem>>) attributes {dimension_semantics = [#tpu.dimension_semantics<parallel>], iteration_bounds = array<i64: 2>, scalar_prefetch = 0 : i64, scratch_operands = 0 : i64, tpu.core_type = #tpu.core_type<tc>, window_params = [{transform_indices = @transform_0, window_bounds = array<i64: 256, 100>}, {pipeline_mode = #tpu.pipeline_mode<synchronous>, transform_indices = @transform_1, window_bounds = array<i64: 100, 256>}, {pipeline_mode = #tpu.pipeline_mode<synchronous>, transform_indices = @transform_2, window_bounds = array<i64: 1, 256>}, {pipeline_mode = #tpu.pipeline_mode<synchronous>, transform_indices = @transform_3, window_bounds = array<i64: 256, 256>}, {pipeline_mode = #tpu.pipeline_mode<synchronous>, transform_indices = @transform_4, window_bounds = array<i64: 1, 256>}, {pipeline_mode = #tpu.pipeline_mode<synchronous>, transform_indices = @transform_5, window_bounds = array<i64: 256, 512>}, {pipeline_mode = #tpu.pipeline_mode<synchronous>, transform_indices = @transform_6, window_bounds = array<i64: 1, 512>}, {pipeline_mode = #tpu.pipeline_mode<synchronous>, transform_indices = @transform_7, window_bounds = array<i64: 512, 128>}, {pipeline_mode = #tpu.pipeline_mode<synchronous>, transform_indices = @transform_8, window_bounds = array<i64: 1, 128>}, {transform_indices = @transform_9, window_bounds = array<i64: 256, 128>}]} {
    %c0 = arith.constant 0 : index
    %c0_0 = arith.constant 0 : index
    %0 = vector.load %arg1[%c0, %c0_0] : memref<256x100xf32, #tpu.memory_space<vmem>>, vector<256x100xf32>
    %1 = arith.truncf %0 : vector<256x100xf32> to vector<256x100xbf16>
    %c0_1 = arith.constant 0 : index
    %c0_2 = arith.constant 0 : index
    %2 = vector.load %arg2[%c0_1, %c0_2] : memref<100x256xbf16, #tpu.memory_space<vmem>>, vector<100x256xbf16>
    %cst = arith.constant dense<0.000000e+00> : vector<256x256xf32>
    %3 = tpu.matmul %1, %2, %cst {dimension_numbers = #tpu.dot_dimension_numbers<[1], [0], [0], [1], [0, 0, 1, 1], [], []>} : vector<256x100xbf16>, vector<100x256xbf16>, vector<256x256xf32> -> vector<256x256xf32>
    %c0_3 = arith.constant 0 : index
    %c0_4 = arith.constant 0 : index
    %4 = vector.load %arg3[%c0_3, %c0_4] : memref<1x256xf32, #tpu.memory_space<vmem>>, vector<1x256xf32>
    %5 = vector.broadcast %4 : vector<1x256xf32> to vector<256x256xf32>
    %6 = arith.addf %3, %5 : vector<256x256xf32>
    %cst_5 = arith.constant 0.000000e+00 : f32
    %7 = vector.broadcast %cst_5 : f32 to vector<256x256xf32>
    %8 = arith.maximumf %6, %7 : vector<256x256xf32>
    %9 = arith.truncf %8 : vector<256x256xf32> to vector<256x256xbf16>
    %c0_6 = arith.constant 0 : index
    %c0_7 = arith.constant 0 : index
    %10 = vector.load %arg4[%c0_6, %c0_7] : memref<256x256xbf16, #tpu.memory_space<vmem>>, vector<256x256xbf16>
    %cst_8 = arith.constant dense<0.000000e+00> : vector<256x256xf32>
    %11 = tpu.matmul %9, %10, %cst_8 {dimension_numbers = #tpu.dot_dimension_numbers<[1], [0], [0], [1], [0, 0, 1, 1], [], []>} : vector<256x256xbf16>, vector<256x256xbf16>, vector<256x256xf32> -> vector<256x256xf32>
    %c0_9 = arith.constant 0 : index
    %c0_10 = arith.constant 0 : index
    %12 = vector.load %arg5[%c0_9, %c0_10] : memref<1x256xf32, #tpu.memory_space<vmem>>, vector<1x256xf32>
    %13 = vector.broadcast %12 : vector<1x256xf32> to vector<256x256xf32>
    %14 = arith.addf %11, %13 : vector<256x256xf32>
    %cst_11 = arith.constant 0.000000e+00 : f32
    %15 = vector.broadcast %cst_11 : f32 to vector<256x256xf32>
    %16 = arith.maximumf %14, %15 : vector<256x256xf32>
    %17 = arith.truncf %16 : vector<256x256xf32> to vector<256x256xbf16>
    %c0_12 = arith.constant 0 : index
    %c0_13 = arith.constant 0 : index
    %18 = vector.load %arg6[%c0_12, %c0_13] : memref<256x512xbf16, #tpu.memory_space<vmem>>, vector<256x512xbf16>
    %cst_14 = arith.constant dense<0.000000e+00> : vector<256x512xf32>
    %19 = tpu.matmul %17, %18, %cst_14 {dimension_numbers = #tpu.dot_dimension_numbers<[1], [0], [0], [1], [0, 0, 1, 1], [], []>} : vector<256x256xbf16>, vector<256x512xbf16>, vector<256x512xf32> -> vector<256x512xf32>
    %c0_15 = arith.constant 0 : index
    %c0_16 = arith.constant 0 : index
    %20 = vector.load %arg7[%c0_15, %c0_16] : memref<1x512xf32, #tpu.memory_space<vmem>>, vector<1x512xf32>
    %21 = vector.broadcast %20 : vector<1x512xf32> to vector<256x512xf32>
    %22 = arith.addf %19, %21 : vector<256x512xf32>
    %cst_17 = arith.constant 0.000000e+00 : f32
    %23 = vector.broadcast %cst_17 : f32 to vector<256x512xf32>
    %24 = arith.maximumf %22, %23 : vector<256x512xf32>
    %25 = arith.truncf %24 : vector<256x512xf32> to vector<256x512xbf16>
    %c0_18 = arith.constant 0 : index
    %c0_19 = arith.constant 0 : index
    %26 = vector.load %arg8[%c0_18, %c0_19] : memref<512x128xbf16, #tpu.memory_space<vmem>>, vector<512x128xbf16>
    %cst_20 = arith.constant dense<0.000000e+00> : vector<256x128xf32>
    %27 = tpu.matmul %25, %26, %cst_20 {dimension_numbers = #tpu.dot_dimension_numbers<[1], [0], [0], [1], [0, 0, 1, 1], [], []>} : vector<256x512xbf16>, vector<512x128xbf16>, vector<256x128xf32> -> vector<256x128xf32>
    %c0_21 = arith.constant 0 : index
    %c0_22 = arith.constant 0 : index
    %28 = vector.load %arg9[%c0_21, %c0_22] : memref<1x128xf32, #tpu.memory_space<vmem>>, vector<1x128xf32>
    %29 = vector.broadcast %28 : vector<1x128xf32> to vector<256x128xf32>
    %30 = arith.addf %27, %29 : vector<256x128xf32>
    %c0_23 = arith.constant 0 : index
    %c0_24 = arith.constant 0 : index
    %31 = vector.load %arg10[%c0_23, %c0_24] : memref<256x128xf32, #tpu.memory_space<vmem>>, vector<256x128xf32>
    tpu.vector_store %arg10[%c0_23, %c0_24], %30 {strides = array<i32>} : memref<256x128xf32, #tpu.memory_space<vmem>>, vector<256x128xf32>,
    return
  }
  func.func @transform_0(%arg0: i32) -> (i32, i32) {
    %c0_i32 = arith.constant 0 : i32
    %c0_i32_0 = arith.constant 0 : i32
    return %arg0, %c0_i32 : i32, i32
  }
  func.func @transform_1(%arg0: i32) -> (i32, i32) {
    %c0_i32 = arith.constant 0 : i32
    %c0_i32_0 = arith.constant 0 : i32
    %c0_i32_1 = arith.constant 0 : i32
    return %c0_i32, %c0_i32_0 : i32, i32
  }
  func.func @transform_2(%arg0: i32) -> (i32, i32) {
    %c0_i32 = arith.constant 0 : i32
    %c0_i32_0 = arith.constant 0 : i32
    %c0_i32_1 = arith.constant 0 : i32
    return %c0_i32, %c0_i32_0 : i32, i32
  }
  func.func @transform_3(%arg0: i32) -> (i32, i32) {
    %c0_i32 = arith.constant 0 : i32
    %c0_i32_0 = arith.constant 0 : i32
    %c0_i32_1 = arith.constant 0 : i32
    return %c0_i32, %c0_i32_0 : i32, i32
  }
  func.func @transform_4(%arg0: i32) -> (i32, i32) {
    %c0_i32 = arith.constant 0 : i32
    %c0_i32_0 = arith.constant 0 : i32
    %c0_i32_1 = arith.constant 0 : i32
    return %c0_i32, %c0_i32_0 : i32, i32
  }
  func.func @transform_5(%arg0: i32) -> (i32, i32) {
    %c0_i32 = arith.constant 0 : i32
    %c0_i32_0 = arith.constant 0 : i32
    %c0_i32_1 = arith.constant 0 : i32
    return %c0_i32, %c0_i32_0 : i32, i32
  }
  func.func @transform_6(%arg0: i32) -> (i32, i32) {
    %c0_i32 = arith.constant 0 : i32
    %c0_i32_0 = arith.constant 0 : i32
    %c0_i32_1 = arith.constant 0 : i32
    return %c0_i32, %c0_i32_0 : i32, i32
  }
  func.func @transform_7(%arg0: i32) -> (i32, i32) {
    %c0_i32 = arith.constant 0 : i32
    %c0_i32_0 = arith.constant 0 : i32
    %c0_i32_1 = arith.constant 0 : i32
    return %c0_i32, %c0_i32_0 : i32, i32
  }
  func.func @transform_8(%arg0: i32) -> (i32, i32) {
    %c0_i32 = arith.constant 0 : i32
    %c0_i32_0 = arith.constant 0 : i32
    %c0_i32_1 = arith.constant 0 : i32
    return %c0_i32, %c0_i32_0 : i32, i32
  }
  func.func @transform_9(%arg0: i32) -> (i32, i32) {
    %c0_i32 = arith.constant 0 : i32
    %c0_i32_0 = arith.constant 0 : i32
    return %arg0, %c0_i32 : i32, i32
  }
}

module attributes {stable_mosaic.version = 11 : i64} {
  func.func @aencoder_kernel(%arg0: i32, %arg1: memref<256x100xf32, #tpu.memory_space<vmem>>, %arg2: memref<100x256xbf16, #tpu.memory_space<vmem>>, %arg3: memref<1x256xf32, #tpu.memory_space<vmem>>, %arg4: memref<256x256xbf16, #tpu.memory_space<vmem>>, %arg5: memref<1x256xf32, #tpu.memory_space<vmem>>, %arg6: memref<256x512xbf16, #tpu.memory_space<vmem>>, %arg7: memref<1x512xf32, #tpu.memory_space<vmem>>, %arg8: memref<512x128xbf16, #tpu.memory_space<vmem>>, %arg9: memref<1x128xf32, #tpu.memory_space<vmem>>, %arg10: memref<256x128xf32, #tpu.memory_space<vmem>>) attributes {dimension_semantics = [#tpu.dimension_semantics<parallel>], iteration_bounds = array<i64: 2>, scalar_prefetch = 0 : i64, scratch_operands = 0 : i64, tpu.core_type = #tpu.core_type<tc>, window_params = [{transform_indices = @transform_0, window_bounds = array<i64: 256, 100>}, {pipeline_mode = #tpu.pipeline_mode<synchronous>, transform_indices = @transform_1, window_bounds = array<i64: 100, 256>}, {pipeline_mode = #tpu.pipeline_mode<synchronous>, transform_indices = @transform_2, window_bounds = array<i64: 1, 256>}, {pipeline_mode = #tpu.pipeline_mode<synchronous>, transform_indices = @transform_3, window_bounds = array<i64: 256, 256>}, {pipeline_mode = #tpu.pipeline_mode<synchronous>, transform_indices = @transform_4, window_bounds = array<i64: 1, 256>}, {pipeline_mode = #tpu.pipeline_mode<synchronous>, transform_indices = @transform_5, window_bounds = array<i64: 256, 512>}, {pipeline_mode = #tpu.pipeline_mode<synchronous>, transform_indices = @transform_6, window_bounds = array<i64: 1, 512>}, {pipeline_mode = #tpu.pipeline_mode<synchronous>, transform_indices = @transform_7, window_bounds = array<i64: 512, 128>}, {pipeline_mode = #tpu.pipeline_mode<synchronous>, transform_indices = @transform_8, window_bounds = array<i64: 1, 128>}, {transform_indices = @transform_9, window_bounds = array<i64: 256, 128>}]} {
    %c0 = arith.constant 0 : index
    %c0_0 = arith.constant 0 : index
    %0 = vector.load %arg1[%c0, %c0_0] : memref<256x100xf32, #tpu.memory_space<vmem>>, vector<256x100xf32>
    %1 = arith.truncf %0 : vector<256x100xf32> to vector<256x100xbf16>
    %c0_1 = arith.constant 0 : index
    %c0_2 = arith.constant 0 : index
    %2 = vector.load %arg2[%c0_1, %c0_2] : memref<100x256xbf16, #tpu.memory_space<vmem>>, vector<100x256xbf16>
    %cst = arith.constant dense<0.000000e+00> : vector<256x256xf32>
    %3 = tpu.matmul %1, %2, %cst {dimension_numbers = #tpu.dot_dimension_numbers<[1], [0], [0], [1], [0, 0, 1, 1], [], []>} : vector<256x100xbf16>, vector<100x256xbf16>, vector<256x256xf32> -> vector<256x256xf32>
    %c0_3 = arith.constant 0 : index
    %c0_4 = arith.constant 0 : index
    %4 = vector.load %arg3[%c0_3, %c0_4] : memref<1x256xf32, #tpu.memory_space<vmem>>, vector<1x256xf32>
    %5 = vector.broadcast %4 : vector<1x256xf32> to vector<256x256xf32>
    %6 = arith.addf %3, %5 : vector<256x256xf32>
    %cst_5 = arith.constant 0.000000e+00 : f32
    %7 = vector.broadcast %cst_5 : f32 to vector<256x256xf32>
    %8 = arith.maximumf %6, %7 : vector<256x256xf32>
    %9 = arith.truncf %8 : vector<256x256xf32> to vector<256x256xbf16>
    %c0_6 = arith.constant 0 : index
    %c0_7 = arith.constant 0 : index
    %10 = vector.load %arg4[%c0_6, %c0_7] : memref<256x256xbf16, #tpu.memory_space<vmem>>, vector<256x256xbf16>
    %cst_8 = arith.constant dense<0.000000e+00> : vector<256x256xf32>
    %11 = tpu.matmul %9, %10, %cst_8 {dimension_numbers = #tpu.dot_dimension_numbers<[1], [0], [0], [1], [0, 0, 1, 1], [], []>} : vector<256x256xbf16>, vector<256x256xbf16>, vector<256x256xf32> -> vector<256x256xf32>
    %c0_9 = arith.constant 0 : index
    %c0_10 = arith.constant 0 : index
    %12 = vector.load %arg5[%c0_9, %c0_10] : memref<1x256xf32, #tpu.memory_space<vmem>>, vector<1x256xf32>
    %13 = vector.broadcast %12 : vector<1x256xf32> to vector<256x256xf32>
    %14 = arith.addf %11, %13 : vector<256x256xf32>
    %cst_11 = arith.constant 0.000000e+00 : f32
    %15 = vector.broadcast %cst_11 : f32 to vector<256x256xf32>
    %16 = arith.maximumf %14, %15 : vector<256x256xf32>
    %17 = arith.truncf %16 : vector<256x256xf32> to vector<256x256xbf16>
    %c0_12 = arith.constant 0 : index
    %c0_13 = arith.constant 0 : index
    %18 = vector.load %arg6[%c0_12, %c0_13] : memref<256x512xbf16, #tpu.memory_space<vmem>>, vector<256x512xbf16>
    %cst_14 = arith.constant dense<0.000000e+00> : vector<256x512xf32>
    %19 = tpu.matmul %17, %18, %cst_14 {dimension_numbers = #tpu.dot_dimension_numbers<[1], [0], [0], [1], [0, 0, 1, 1], [], []>} : vector<256x256xbf16>, vector<256x512xbf16>, vector<256x512xf32> -> vector<256x512xf32>
    %c0_15 = arith.constant 0 : index
    %c0_16 = arith.constant 0 : index
    %20 = vector.load %arg7[%c0_15, %c0_16] : memref<1x512xf32, #tpu.memory_space<vmem>>, vector<1x512xf32>
    %21 = vector.broadcast %20 : vector<1x512xf32> to vector<256x512xf32>
    %22 = arith.addf %19, %21 : vector<256x512xf32>
    %cst_17 = arith.constant 0.000000e+00 : f32
    %23 = vector.broadcast %cst_17 : f32 to vector<256x512xf32>
    %24 = arith.maximumf %22, %23 : vector<256x512xf32>
    %25 = arith.truncf %24 : vector<256x512xf32> to vector<256x512xbf16>
    %c0_18 = arith.constant 0 : index
    %c0_19 = arith.constant 0 : index
    %26 = vector.load %arg8[%c0_18, %c0_19] : memref<512x128xbf16, #tpu.memory_space<vmem>>, vector<512x128xbf16>
    %cst_20 = arith.constant dense<0.000000e+00> : vector<256x128xf32>
    %27 = tpu.matmul %25, %26, %cst_20 {dimension_numbers = #tpu.dot_dimension_numbers<[1], [0], [0], [1], [0, 0, 1, 1], [], []>} : vector<256x512xbf16>, vector<512x128xbf16>, vector<256x128xf32> -> vector<256x128xf32>
    %c0_21 = arith.constant 0 : index
    %c0_22 = arith.constant 0 : index
    %28 = vector.load %arg9[%c0_21, %c0_22] : memref<1x128xf32, #tpu.memory_space<vmem>>, vector<1x128xf32>
    %29 = vector.broadcast %28 : vector<1x128xf32> to vector<256x128xf32>
    %30 = arith.addf %27, %29 : vector<256x128xf32>
    %c0_23 = arith.constant 0 : index
    %c0_24 = arith.constant 0 : index
    %31 = vector.load %arg10[%c0_23, %c0_24] : memref<256x128xf32, #tpu.memory_space<vmem>>, vector<256x128xf32>
    tpu.vector_store %arg10[%c0_23, %c0_24], %30 {strides = array<i32>} : memref<256x128xf32, #tpu.memory_space<vmem>>, vector<256x128xf32>,
    return
  }
  func.func @transform_0(%arg0: i32) -> (i32, i32) {
    %c0_i32 = arith.constant 0 : i32
    %c0_i32_0 = arith.constant 0 : i32
    return %arg0, %c0_i32 : i32, i32
  }
  func.func @transform_1(%arg0: i32) -> (i32, i32) {
    %c0_i32 = arith.constant 0 : i32
    %c0_i32_0 = arith.constant 0 : i32
    %c0_i32_1 = arith.constant 0 : i32
    return %c0_i32, %c0_i32_0 : i32, i32
  }
  func.func @transform_2(%arg0: i32) -> (i32, i32) {
    %c0_i32 = arith.constant 0 : i32
    %c0_i32_0 = arith.constant 0 : i32
    %c0_i32_1 = arith.constant 0 : i32
    return %c0_i32, %c0_i32_0 : i32, i32
  }
  func.func @transform_3(%arg0: i32) -> (i32, i32) {
    %c0_i32 = arith.constant 0 : i32
    %c0_i32_0 = arith.constant 0 : i32
    %c0_i32_1 = arith.constant 0 : i32
    return %c0_i32, %c0_i32_0 : i32, i32
  }
  func.func @transform_4(%arg0: i32) -> (i32, i32) {
    %c0_i32 = arith.constant 0 : i32
    %c0_i32_0 = arith.constant 0 : i32
    %c0_i32_1 = arith.constant 0 : i32
    return %c0_i32, %c0_i32_0 : i32, i32
  }
  func.func @transform_5(%arg0: i32) -> (i32, i32) {
    %c0_i32 = arith.constant 0 : i32
    %c0_i32_0 = arith.constant 0 : i32
    %c0_i32_1 = arith.constant 0 : i32
    return %c0_i32, %c0_i32_0 : i32, i32
  }
  func.func @transform_6(%arg0: i32) -> (i32, i32) {
    %c0_i32 = arith.constant 0 : i32
    %c0_i32_0 = arith.constant 0 : i32
    %c0_i32_1 = arith.constant 0 : i32
    return %c0_i32, %c0_i32_0 : i32, i32
  }
  func.func @transform_7(%arg0: i32) -> (i32, i32) {
    %c0_i32 = arith.constant 0 : i32
    %c0_i32_0 = arith.constant 0 : i32
    %c0_i32_1 = arith.constant 0 : i32
    return %c0_i32, %c0_i32_0 : i32, i32
  }
  func.func @transform_8(%arg0: i32) -> (i32, i32) {
    %c0_i32 = arith.constant 0 : i32
    %c0_i32_0 = arith.constant 0 : i32
    %c0_i32_1 = arith.constant 0 : i32
    return %c0_i32, %c0_i32_0 : i32, i32
  }
  func.func @transform_9(%arg0: i32) -> (i32, i32) {
    %c0_i32 = arith.constant 0 : i32
    %c0_i32_0 = arith.constant 0 : i32
    return %arg0, %c0_i32 : i32, i32
  }
}

</mosaic_0001>

<llo_original>
// kernel: tpu_custom_call.1
$region0: #{tpu_custom_call.1}
  #allocation0 [shape = 'u32[]', space=smem, size = 0x4, offset = 0x4, fixed_abs, tag = 'smem constant byte address 0x4 - core index']
  #allocation1 [shape = 'u32[72,128]{1,0:T(1,128)}', space=vmem, size = 0x9000, scoped, tag = 'internal scratch']
  %s0 = inlined_call_operand.vmem [shape: f32[512,100], index: 0, kind: input, shape index: {}]
  %s1 = inlined_call_operand.vmem [shape: bf16[100,256], index: 1, kind: input, shape index: {}]
  %s2 = inlined_call_operand.vmem [shape: f32[1,256], index: 2, kind: input, shape index: {}]
  %s3 = inlined_call_operand.vmem [shape: bf16[256,256], index: 3, kind: input, shape index: {}]
  %s4 = inlined_call_operand.vmem [shape: f32[1,256], index: 4, kind: input, shape index: {}]
  %s5 = inlined_call_operand.vmem [shape: bf16[256,512], index: 5, kind: input, shape index: {}]
  %s6 = inlined_call_operand.vmem [shape: f32[1,512], index: 6, kind: input, shape index: {}]
  %s7 = inlined_call_operand.hbm [shape: bf16[512,128], index: 7, kind: input, shape index: {}]
  %s8 = inlined_call_operand.vmem [shape: f32[1,128], index: 8, kind: input, shape index: {}]
  %s9 = inlined_call_operand.hbm [shape: f32[512,128], index: 9, kind: output, shape index: {}]
  %s10 = sld [smem:[#allocation0]]
  $region73: #{tpu_custom_call.1} parent=0
    _
  %s12 = ssub.s32 1, %s10
  %s13 = scalar_select 0, %s12, %s10
  $region1: #{tpu_custom_call.1} parent=0
    #allocation2 [shape = 'u8[131072]{0}', space=vmem, size = 0x20000, scoped, tag = 'input window, operand 7, single buffered']
    #allocation3 [shape = 's32[2]{0}', space=sflag, size = 0x8, scoped, tag = 'scoped memory for tpu_custom_call.1']
    #allocation4 [shape = 's32[2]{0}', space=sflag, size = 0x8, scoped, tag = 'scoped memory for tpu_custom_call.1']
    #allocation5 [shape = 'u8[262144]{0}', space=vmem, size = 0x40000, scoped, tag = 'output window, operand 0']
    %14 = vsyncpa [#allocation3], 0
    %15 = vsyncpa [#allocation4], 0
    %s16 = scalar_lea.sflag [#allocation4], 1
    %17 = vsyncpa %s16, 0
    loop: start=0, step=1, limit=4
    $region2: #{tpu_custom_call.1} parent=1 // loop_pre_header
      _
    $region3: #{tpu_custom_call.1} parent=1 // loop_header
      %s19 = sphi 0, %s23
      %p20 = scmp.ge.s32.totalorder %s19, 4
      %s29 = sphi 0, %s31
      %s32 = sphi 0, %s29
      %s33 = sphi 0, %s32
      %s49 = sphi 0, %s33
      %s53 = sphi 0, %s53
      %s55 = sphi 0, %s53
      %s56 = sphi 0, %s55
      %s70 = sphi 0, %s56
      %s74 = sphi 0, %s74
      %s76 = sphi 0, %s74
      %s77 = sphi 0, %s76
      %s91 = sphi 0, %s77
      %s95 = sphi 0, %s95
      %s97 = sphi 0, %s95
      %s98 = sphi 0, %s97
      %s112 = sphi 0, %s98
      %s116 = sphi 0, %s116
      %s118 = sphi 0, %s116
      %s119 = sphi 0, %s118
      %s133 = sphi 0, %s119
      %s137 = sphi 0, %s137
      %s139 = sphi 0, %s137
      %s140 = sphi 0, %s139
      %s154 = sphi 0, %s140
      %s158 = sphi 0, %s158
      %s160 = sphi 0, %s158
      %s161 = sphi 0, %s160
      %s175 = sphi 0, %s161
      %s179 = sphi 0, %s179
      %s181 = sphi 0, %s179
      %s182 = sphi 0, %s181
      %s196 = sphi 0, %s182
      %s200 = sphi 0, %s200
      %s202 = sphi 0, %s200
      %s203 = sphi 0, %s202
      %s217 = sphi 0, %s203
      %s223 = sphi 0, %s225
      %s226 = sphi 0, %s223
      %s227 = sphi 0, %s226
      %s243 = sphi 0, %s227
    $region4: #{tpu_custom_call.1} parent=1 // loop_header_branch
      %22 = sbr.rel (%p20) target = $region8
    $region5: #{tpu_custom_call.1} parent=1 // loop_body
      %s24 = ssub.s32 %s19, 1
      %s25 = ssub.s32 %s19, 2
      %s26 = sadd.s32 %s19, 1
      %s27 = ssub.s32 %s19, %s26
      %p28 = scmp.eq.s32.totalorder %s27, 0
      %s30 = sadd.s32 %s29, 1
      %s31 = scalar_select %p28, %s29, %s30
      %p34 = pneg %p28
      %p35 = scmp.eq.s32.totalorder %s19, 1
      %p36 = por %p34, %p35
      %p37 = scmp.ne.s32.totalorder %s29, %s32
      %p38 = scmp.eq.s32.totalorder %s19, 0
      %p39 = por %p37, %p38
      %p40 = scmp.ne.s32.totalorder %s29, %s32
      %p41 = scmp.eq.s32.totalorder %s24, 1
      %p42 = por %p40, %p41
      %p43 = scmp.ne.s32.totalorder %s32, %s33
      %p44 = scmp.eq.s32.totalorder %s24, 0
      %p45 = por %p43, %p44
      %p46 = scmp.ne.s32.totalorder %s32, %s33
      %p47 = scmp.eq.s32.totalorder %s25, 1
      %p48 = por %p46, %p47
      %p50 = scmp.ne.s32.totalorder %s33, %s49
      %p51 = scmp.eq.s32.totalorder %s25, 0
      %p52 = por %p50, %p51
      %s54 = sadd.s32 %s53, 1
      %p57 = scmp.eq.s32.totalorder %s19, 1
      %p58 = scmp.ne.s32.totalorder %s53, %s55
      %p59 = scmp.eq.s32.totalorder %s19, 0
      %p60 = por %p58, %p59
      %p61 = scmp.ne.s32.totalorder %s53, %s55
      %p62 = scmp.eq.s32.totalorder %s24, 1
      %p63 = por %p61, %p62
      %p64 = scmp.ne.s32.totalorder %s55, %s56
      %p65 = scmp.eq.s32.totalorder %s24, 0
      %p66 = por %p64, %p65
      %p67 = scmp.ne.s32.totalorder %s55, %s56
      %p68 = scmp.eq.s32.totalorder %s25, 1
      %p69 = por %p67, %p68
      %p71 = scmp.ne.s32.totalorder %s56, %s70
      %p72 = scmp.eq.s32.totalorder %s25, 0
      %p73 = por %p71, %p72
      %s75 = sadd.s32 %s74, 1
      %p78 = scmp.eq.s32.totalorder %s19, 1
      %p79 = scmp.ne.s32.totalorder %s74, %s76
      %p80 = scmp.eq.s32.totalorder %s19, 0
      %p81 = por %p79, %p80
      %p82 = scmp.ne.s32.totalorder %s74, %s76
      %p83 = scmp.eq.s32.totalorder %s24, 1
      %p84 = por %p82, %p83
      %p85 = scmp.ne.s32.totalorder %s76, %s77
      %p86 = scmp.eq.s32.totalorder %s24, 0
      %p87 = por %p85, %p86
      %p88 = scmp.ne.s32.totalorder %s76, %s77
      %p89 = scmp.eq.s32.totalorder %s25, 1
      %p90 = por %p88, %p89
      %p92 = scmp.ne.s32.totalorder %s77, %s91
      %p93 = scmp.eq.s32.totalorder %s25, 0
      %p94 = por %p92, %p93
      %s96 = sadd.s32 %s95, 1
      %p99 = scmp.eq.s32.totalorder %s19, 1
      %p100 = scmp.ne.s32.totalorder %s95, %s97
      %p101 = scmp.eq.s32.totalorder %s19, 0
      %p102 = por %p100, %p101
      %p103 = scmp.ne.s32.totalorder %s95, %s97
      %p104 = scmp.eq.s32.totalorder %s24, 1
      %p105 = por %p103, %p104
      %p106 = scmp.ne.s32.totalorder %s97, %s98
      %p107 = scmp.eq.s32.totalorder %s24, 0
      %p108 = por %p106, %p107
      %p109 = scmp.ne.s32.totalorder %s97, %s98
      %p110 = scmp.eq.s32.totalorder %s25, 1
      %p111 = por %p109, %p110
      %p113 = scmp.ne.s32.totalorder %s98, %s112
      %p114 = scmp.eq.s32.totalorder %s25, 0
      %p115 = por %p113, %p114
      %s117 = sadd.s32 %s116, 1
      %p120 = scmp.eq.s32.totalorder %s19, 1
      %p121 = scmp.ne.s32.totalorder %s116, %s118
      %p122 = scmp.eq.s32.totalorder %s19, 0
      %p123 = por %p121, %p122
      %p124 = scmp.ne.s32.totalorder %s116, %s118
      %p125 = scmp.eq.s32.totalorder %s24, 1
      %p126 = por %p124, %p125
      %p127 = scmp.ne.s32.totalorder %s118, %s119
      %p128 = scmp.eq.s32.totalorder %s24, 0
      %p129 = por %p127, %p128
      %p130 = scmp.ne.s32.totalorder %s118, %s119
      %p131 = scmp.eq.s32.totalorder %s25, 1
      %p132 = por %p130, %p131
      %p134 = scmp.ne.s32.totalorder %s119, %s133
      %p135 = scmp.eq.s32.totalorder %s25, 0
      %p136 = por %p134, %p135
      %s138 = sadd.s32 %s137, 1
      %p141 = scmp.eq.s32.totalorder %s19, 1
      %p142 = scmp.ne.s32.totalorder %s137, %s139
      %p143 = scmp.eq.s32.totalorder %s19, 0
      %p144 = por %p142, %p143
      %p145 = scmp.ne.s32.totalorder %s137, %s139
      %p146 = scmp.eq.s32.totalorder %s24, 1
      %p147 = por %p145, %p146
      %p148 = scmp.ne.s32.totalorder %s139, %s140
      %p149 = scmp.eq.s32.totalorder %s24, 0
      %p150 = por %p148, %p149
      %p151 = scmp.ne.s32.totalorder %s139, %s140
      %p152 = scmp.eq.s32.totalorder %s25, 1
      %p153 = por %p151, %p152
      %p155 = scmp.ne.s32.totalorder %s140, %s154
      %p156 = scmp.eq.s32.totalorder %s25, 0
      %p157 = por %p155, %p156
      %s159 = sadd.s32 %s158, 1
      %p162 = scmp.eq.s32.totalorder %s19, 1
      %p163 = scmp.ne.s32.totalorder %s158, %s160
      %p164 = scmp.eq.s32.totalorder %s19, 0
      %p165 = por %p163, %p164
      %p166 = scmp.ne.s32.totalorder %s158, %s160
      %p167 = scmp.eq.s32.totalorder %s24, 1
      %p168 = por %p166, %p167
      %p169 = scmp.ne.s32.totalorder %s160, %s161
      %p170 = scmp.eq.s32.totalorder %s24, 0
      %p171 = por %p169, %p170
      %p172 = scmp.ne.s32.totalorder %s160, %s161
      %p173 = scmp.eq.s32.totalorder %s25, 1
      %p174 = por %p172, %p173
      %p176 = scmp.ne.s32.totalorder %s161, %s175
      %p177 = scmp.eq.s32.totalorder %s25, 0
      %p178 = por %p176, %p177
      %s180 = sadd.s32 %s179, 1
      %p183 = scmp.eq.s32.totalorder %s19, 1
      %p184 = scmp.ne.s32.totalorder %s179, %s181
      %p185 = scmp.eq.s32.totalorder %s19, 0
      %p186 = por %p184, %p185
      %p187 = scmp.ne.s32.totalorder %s179, %s181
      %p188 = scmp.eq.s32.totalorder %s24, 1
      %p189 = por %p187, %p188
      %p190 = scmp.ne.s32.totalorder %s181, %s182
      %p191 = scmp.eq.s32.totalorder %s24, 0
      %p192 = por %p190, %p191
      %p193 = scmp.ne.s32.totalorder %s181, %s182
      %p194 = scmp.eq.s32.totalorder %s25, 1
      %p195 = por %p193, %p194
      %p197 = scmp.ne.s32.totalorder %s182, %s196
      %p198 = scmp.eq.s32.totalorder %s25, 0
      %p199 = por %p197, %p198
      %s201 = sadd.s32 %s200, 1
      %p204 = scmp.eq.s32.totalorder %s19, 1
      %p205 = scmp.ne.s32.totalorder %s200, %s202
      %p206 = scmp.eq.s32.totalorder %s19, 0
      %p207 = por %p205, %p206
      %p208 = scmp.ne.s32.totalorder %s200, %s202
      %p209 = scmp.eq.s32.totalorder %s24, 1
      %p210 = por %p208, %p209
      %p211 = scmp.ne.s32.totalorder %s202, %s203
      %p212 = scmp.eq.s32.totalorder %s24, 0
      %p213 = por %p211, %p212
      %p214 = scmp.ne.s32.totalorder %s202, %s203
      %p215 = scmp.eq.s32.totalorder %s25, 1
      %p216 = por %p214, %p215
      %p218 = scmp.ne.s32.totalorder %s203, %s217
      %p219 = scmp.eq.s32.totalorder %s25, 0
      %p220 = por %p218, %p219
      %s221 = ssub.s32 %s19, %s26
      %p222 = scmp.eq.s32.totalorder %s221, 0
      %s224 = sadd.s32 %s223, 1
      %s225 = scalar_select %p222, %s223, %s224
      %p228 = pneg %p222
      %p229 = scmp.eq.s32.totalorder %s19, 1
      %p230 = por %p228, %p229
      %p231 = scmp.ne.s32.totalorder %s223, %s226
      %p232 = scmp.eq.s32.totalorder %s19, 0
      %p233 = por %p231, %p232
      %p234 = scmp.ne.s32.totalorder %s223, %s226
      %p235 = scmp.eq.s32.totalorder %s24, 1
      %p236 = por %p234, %p235
      %p237 = scmp.ne.s32.totalorder %s226, %s227
      %p238 = scmp.eq.s32.totalorder %s24, 0
      %p239 = por %p237, %p238
      %p240 = scmp.ne.s32.totalorder %s226, %s227
      %p241 = scmp.eq.s32.totalorder %s25, 1
      %p242 = por %p240, %p241
      %p244 = scmp.ne.s32.totalorder %s227, %s243
      %p245 = scmp.eq.s32.totalorder %s25, 0
      %p246 = por %p244, %p245
      %p247 = scmp.le.s32.totalorder 1, %s19
      %p248 = scmp.lt.s32.totalorder %s19, 3
      %p249 = pnand %p247, %p248
      %p250 = pneg %p249
      // Predicated region
      $region9: #{tpu_custom_call.1} parent=5 // pred_check
        _
      $region10: #{tpu_custom_call.1} parent=5 // pred_check_branch
        %252 = sbr.rel (%p249) target = $region12
      $region11: #{tpu_custom_call.1} parent=5 // pred_region
        %s253 = ssub.s32 %s19, 1
        // Predicated region
        $region13: #{tpu_custom_call.1} parent=11 // pred_check
          %p254 = pneg %p66
        $region14: #{tpu_custom_call.1} parent=11 // pred_check_branch
          %256 = sbr.rel (%p254) target = $region16
        $region15: #{tpu_custom_call.1} parent=11 // pred_region
          _
        $region16: #{tpu_custom_call.1} parent=11 // pred_fallthru
          _
        // Predicated region
        $region17: #{tpu_custom_call.1} parent=11 // pred_check
          %p257 = pneg %p87
        $region18: #{tpu_custom_call.1} parent=11 // pred_check_branch
          %259 = sbr.rel (%p257) target = $region20
        $region19: #{tpu_custom_call.1} parent=11 // pred_region
          _
        $region20: #{tpu_custom_call.1} parent=11 // pred_fallthru
          _
        // Predicated region
        $region21: #{tpu_custom_call.1} parent=11 // pred_check
          %p260 = pneg %p108
        $region22: #{tpu_custom_call.1} parent=11 // pred_check_branch
          %262 = sbr.rel (%p260) target = $region24
        $region23: #{tpu_custom_call.1} parent=11 // pred_region
          _
        $region24: #{tpu_custom_call.1} parent=11 // pred_fallthru
          _
        // Predicated region
        $region25: #{tpu_custom_call.1} parent=11 // pred_check
          %p263 = pneg %p129
        $region26: #{tpu_custom_call.1} parent=11 // pred_check_branch
          %265 = sbr.rel (%p263) target = $region28
        $region27: #{tpu_custom_call.1} parent=11 // pred_region
          _
        $region28: #{tpu_custom_call.1} parent=11 // pred_fallthru
          _
        // Predicated region
        $region29: #{tpu_custom_call.1} parent=11 // pred_check
          %p266 = pneg %p150
        $region30: #{tpu_custom_call.1} parent=11 // pred_check_branch
          %268 = sbr.rel (%p266) target = $region32
        $region31: #{tpu_custom_call.1} parent=11 // pred_region
          _
        $region32: #{tpu_custom_call.1} parent=11 // pred_fallthru
          _
        // Predicated region
        $region33: #{tpu_custom_call.1} parent=11 // pred_check
          %p269 = pneg %p171
        $region34: #{tpu_custom_call.1} parent=11 // pred_check_branch
          %271 = sbr.rel (%p269) target = $region36
        $region35: #{tpu_custom_call.1} parent=11 // pred_region
          _
        $region36: #{tpu_custom_call.1} parent=11 // pred_fallthru
          _
        // Predicated region
        $region37: #{tpu_custom_call.1} parent=11 // pred_check
          %p272 = pneg %p192
        $region38: #{tpu_custom_call.1} parent=11 // pred_check_branch
          %274 = sbr.rel (%p272) target = $region40
        $region39: #{tpu_custom_call.1} parent=11 // pred_region
          %276 = vsyncadd [#allocation3], 0
          %s277 = sshll.u32 %s7, 4
          %s278 = int_to_ptr.hbm [resolvable:$true] %s277
          %s279 = sshll.u32 [#allocation2], 4
          %s280 = int_to_ptr.vmem [resolvable:$true] %s279
          %285 = dma.hbm_to_vmem [thread:$0]  %s278, 4096, %s280, [#allocation3], 64, 64, 4
        $region40: #{tpu_custom_call.1} parent=11 // pred_fallthru
          _
        // Predicated region
        $region41: #{tpu_custom_call.1} parent=11 // pred_check
          %p286 = pneg %p213
        $region42: #{tpu_custom_call.1} parent=11 // pred_check_branch
          %288 = sbr.rel (%p286) target = $region44
        $region43: #{tpu_custom_call.1} parent=11 // pred_region
          _
        $region44: #{tpu_custom_call.1} parent=11 // pred_fallthru
          _
      $region12: #{tpu_custom_call.1} parent=5 // pred_fallthru
        _
      %p289 = scmp.lt.s32.totalorder %s19, 2
      // Predicated region
      $region45: #{tpu_custom_call.1} parent=5 // pred_check
        %p290 = pneg %p289
      $region46: #{tpu_custom_call.1} parent=5 // pred_check_branch
        %292 = sbr.rel (%p290) target = $region48
      $region47: #{tpu_custom_call.1} parent=5 // pred_region
        // Predicated region
        $region49: #{tpu_custom_call.1} parent=47 // pred_check
          %p293 = pneg %p39
        $region50: #{tpu_custom_call.1} parent=47 // pred_check_branch
          %295 = sbr.rel (%p293) target = $region52
        $region51: #{tpu_custom_call.1} parent=47 // pred_region
          %s296 = smul.u32 32, %s19
          %p297 = scmp.lt.s32.totalorder %s296, 63
          %s298 = scalar_select %p297, %s296, 63
          %s299 = smul.addr %s298, 8
          %s300 = scalar_lea.vmem %s0, %s299
          %s301 = smul.u32 32, %s19
        $region52: #{tpu_custom_call.1} parent=47 // pred_fallthru
          _
      $region48: #{tpu_custom_call.1} parent=5 // pred_fallthru
        _
      %p302 = scmp.le.s32.totalorder 1, %s19
      %p303 = scmp.lt.s32.totalorder %s19, 3
      %p304 = pnand %p302, %p303
      %p305 = pneg %p304
      // Predicated region
      $region53: #{tpu_custom_call.1} parent=5 // pred_check
        _
      $region54: #{tpu_custom_call.1} parent=5 // pred_check_branch
        %307 = sbr.rel (%p304) target = $region56
      $region55: #{tpu_custom_call.1} parent=5 // pred_region
        %s308 = ssub.s32 %s19, 1
        // Predicated region
        $region57: #{tpu_custom_call.1} parent=55 // pred_check
          %p309 = pneg %p192
        $region58: #{tpu_custom_call.1} parent=55 // pred_check_branch
          %311 = sbr.rel (%p309) target = $region60
        $region59: #{tpu_custom_call.1} parent=55 // pred_region
          %313 = dma.done [#allocation3], 4096
        $region60: #{tpu_custom_call.1} parent=55 // pred_fallthru
          _
        %s314 = smul.u32 32, %s24
        %p315 = scmp.lt.s32.totalorder %s314, 63
        %s316 = scalar_select %p315, %s314, 63
        %s317 = smul.addr %s316, 8
        %s318 = scalar_lea.vmem %s0, %s317
        %p319 = pneg %p45
        %p320 = pneg %p42
        %p321 = pneg %p66
        %p322 = pneg %p63
        %p323 = pneg %p87
        %p324 = pneg %p84
        %p325 = pneg %p108
        %p326 = pneg %p105
        %p327 = pneg %p129
        %p328 = pneg %p126
        %p329 = pneg %p150
        %p330 = pneg %p147
        %p331 = pneg %p171
        %p332 = pneg %p168
        %p333 = pneg %p192
        %p334 = pneg %p189
        %p335 = pneg %p213
        %p336 = pneg %p210
        %p337 = pneg %p239
        %p338 = pneg %p236
        %s339 = sand.u32 %s226, 1
        %s340 = scalar_lea.sflag [#allocation4], %s339
        %s341 = sand.u32 %s226, 1
        %s342 = smul.addr %s341, 256
        %s343 = scalar_lea.vmem [#allocation5], %s342
        %s344 = smul.u32 32, %s24
        %p345 = scmp.lt.s32.totalorder %s344, 63
        %s346 = scalar_select %p345, %s344, 63
        %s347 = smul.addr %s346, 8
        %s348 = scalar_lea.vmem %s0, %s347
        %s349 = smul.u32 32, %s24
        %s350 = smul.u32 32, %s24
        %v352 = vld [vmem:[%s348] sm:$0xff]
        %v353 = vld [vmem:[%s348 + $0x8] sm:$0xff]
        %v354 = vld [vmem:[%s348 + $0x10] sm:$0xff]
        %v355 = vld [vmem:[%s348 + $0x18] sm:$0xff]
        %v356 = vld [vmem:[%s348 + $0x20] sm:$0xff]
        %v357 = vld [vmem:[%s348 + $0x28] sm:$0xff]
        %v358 = vld [vmem:[%s348 + $0x30] sm:$0xff]
        %v359 = vld [vmem:[%s348 + $0x38] sm:$0xff]
        %v360 = vld [vmem:[%s348 + $0x40] sm:$0xff]
        %v361 = vld [vmem:[%s348 + $0x48] sm:$0xff]
        %v362 = vld [vmem:[%s348 + $0x50] sm:$0xff]
        %v363 = vld [vmem:[%s348 + $0x58] sm:$0xff]
        %v364 = vld [vmem:[%s348 + $0x60] sm:$0xff]
        %v365 = vld [vmem:[%s348 + $0x68] sm:$0xff]
        %v366 = vld [vmem:[%s348 + $0x70] sm:$0xff]
        %v367 = vld [vmem:[%s348 + $0x78] sm:$0xff]
        %v368 = vld [vmem:[%s348 + $0x80] sm:$0xff]
        %v369 = vld [vmem:[%s348 + $0x88] sm:$0xff]
        %v370 = vld [vmem:[%s348 + $0x90] sm:$0xff]
        %v371 = vld [vmem:[%s348 + $0x98] sm:$0xff]
        %v372 = vld [vmem:[%s348 + $0xa0] sm:$0xff]
        %v373 = vld [vmem:[%s348 + $0xa8] sm:$0xff]
        %v374 = vld [vmem:[%s348 + $0xb0] sm:$0xff]
        %v375 = vld [vmem:[%s348 + $0xb8] sm:$0xff]
        %v376 = vld [vmem:[%s348 + $0xc0] sm:$0xff]
        %v377 = vld [vmem:[%s348 + $0xc8] sm:$0xff]
        %v378 = vld [vmem:[%s348 + $0xd0] sm:$0xff]
        %v379 = vld [vmem:[%s348 + $0xd8] sm:$0xff]
        %v380 = vld [vmem:[%s348 + $0xe0] sm:$0xff]
        %v381 = vld [vmem:[%s348 + $0xe8] sm:$0xff]
        %v382 = vld [vmem:[%s348 + $0xf0] sm:$0xff]
        %v383 = vld [vmem:[%s348 + $0xf8] sm:$0xff]
        %v384 = vpack.c.bf16 %v353, %v352
        %v385 = vpack.c.bf16 %v355, %v354
        %v386 = vpack.c.bf16 %v357, %v356
        %v387 = vpack.c.bf16 %v359, %v358
        %v388 = vpack.c.bf16 %v361, %v360
        %v389 = vpack.c.bf16 %v363, %v362
        %v390 = vpack.c.bf16 %v365, %v364
        %v391 = vpack.c.bf16 %v367, %v366
        %v392 = vpack.c.bf16 %v369, %v368
        %v393 = vpack.c.bf16 %v371, %v370
        %v394 = vpack.c.bf16 %v373, %v372
        %v395 = vpack.c.bf16 %v375, %v374
        %v396 = vpack.c.bf16 %v377, %v376
        %v397 = vpack.c.bf16 %v379, %v378
        %v398 = vpack.c.bf16 %v381, %v380
        %v399 = vpack.c.bf16 %v383, %v382
        %v400 = vld [vmem:[%s1] sm:$0xff]
        %v401 = vld [vmem:[%s1 + $0x8] sm:$0xff]
        %v402 = vld [vmem:[%s1 + $0x10] sm:$0xff]
        %v403 = vld [vmem:[%s1 + $0x18] sm:$0xff]
        %v404 = vld [vmem:[%s1 + $0x20] sm:$0xff]
        %v405 = vld [vmem:[%s1 + $0x28] sm:$0xff]
        %v406 = vld [vmem:[%s1 + $0x30] sm:$0xff]
        %v407 = vld [vmem:[%s1 + $0x38] sm:$0xff]
        %v408 = vld [vmem:[%s1 + $0x40] sm:$0xff]
        %v409 = vld [vmem:[%s1 + $0x48] sm:$0xff]
        %v410 = vld [vmem:[%s1 + $0x50] sm:$0xff]
        %v411 = vld [vmem:[%s1 + $0x58] sm:$0xff]
        %v412 = vld [vmem:[%s1 + $0x60] sm:$0x33]
        %v413 = vld [vmem:[%s2] sm:$0x3]
        %v415 = vperm.slane %v413, 0
        %v416 = vperm.slane %v413, 1
        %v432 = vunpack.c.l.b16 %v400
        %v433 = vunpack.c.h.b16 %v400
        %v434 = vunpack.c.l.b16 %v401
        %v435 = vunpack.c.h.b16 %v401
        %v436 = vunpack.c.l.b16 %v402
        %v437 = vunpack.c.h.b16 %v402
        %v438 = vunpack.c.l.b16 %v403
        %v439 = vunpack.c.h.b16 %v403
        %v440 = vunpack.c.l.b16 %v404
        %v441 = vunpack.c.h.b16 %v404
        %v442 = vunpack.c.l.b16 %v405
        %v443 = vunpack.c.h.b16 %v405
        %v444 = vunpack.c.l.b16 %v406
        %v445 = vunpack.c.h.b16 %v406
        %v446 = vunpack.c.l.b16 %v407
        %v447 = vunpack.c.h.b16 %v407
        %v448 = vunpack.c.l.b16 %v408
        %v449 = vunpack.c.h.b16 %v408
        %v450 = vunpack.c.l.b16 %v409
        %v451 = vunpack.c.h.b16 %v409
        %v452 = vunpack.c.l.b16 %v410
        %v453 = vunpack.c.h.b16 %v410
        %v454 = vunpack.c.l.b16 %v411
        %v455 = vunpack.c.h.b16 %v411
        %v456 = vunpack.c.l.b16 %v412
        %v457 = vunpack.c.h.b16 %v412
        %v458 = vpack.c.b16 %v434, %v432
        %v459 = vpack.c.b16 %v435, %v433
        %v460 = vpack.c.b16 %v438, %v436
        %v461 = vpack.c.b16 %v439, %v437
        %v462 = vpack.c.b16 %v442, %v440
        %v463 = vpack.c.b16 %v443, %v441
        %v464 = vpack.c.b16 %v446, %v444
        %v465 = vpack.c.b16 %v447, %v445
        %v466 = vpack.c.b16 %v450, %v448
        %v467 = vpack.c.b16 %v451, %v449
        %v468 = vpack.c.b16 %v454, %v452
        %v469 = vpack.c.b16 %v455, %v453
        %v470 = vpack.c.b16 %v456, %v456
        %v471 = vpack.c.b16 %v457, %v457
        %vm484 = vcmask 818176
        %v486 = vsel %vm484, %v384, 0
        %v489 = vsel %vm484, %v385, 0
        %v492 = vsel %vm484, %v386, 0
        %v495 = vsel %vm484, %v387, 0
        %v498 = vsel %vm484, %v388, 0
        %v501 = vsel %vm484, %v389, 0
        %v504 = vsel %vm484, %v390, 0
        %v507 = vsel %vm484, %v391, 0
        %v510 = vsel %vm484, %v392, 0
        %v513 = vsel %vm484, %v393, 0
        %v516 = vsel %vm484, %v394, 0
        %v519 = vsel %vm484, %v395, 0
        %v522 = vsel %vm484, %v396, 0
        %v525 = vsel %vm484, %v397, 0
        %v528 = vsel %vm484, %v398, 0
        %v531 = vsel %vm484, %v399, 0
        %vm533 = vcmask 1041408
        %v535 = vsel %vm533, %v470, 0
        %v538 = vsel %vm533, %v471, 0
        %540 = vmatpush.bf16.msra.mxu0 0
        %541 = vmatpush.bf16.msra.mxu0 %v535
        %542 = vmatpush.bf16.msra.mxu0 %v468
        %543 = vmatpush.bf16.msra.mxu0 %v466
        %544 = vmatpush.bf16.msra.mxu0 %v464
        %545 = vmatpush.bf16.msra.mxu0 %v462
        %546 = vmatpush.bf16.msra.mxu0 %v460
        %547 = vmatpush.bf16.msra.mxu0 %v458
        %548 = vmatmul.bf16.gmra.mxu0 %v486
        %v549 = vpop.f32.mrf.mxu0
        %v550 = vadd.f32 %v415, %v549
        %v551 = vpop.f32.mrf.mxu0
        %v552 = vadd.f32 %v415, %v551
        %553 = vmatmul.bf16.gmra.mxu0 %v489
        %v554 = vpop.f32.mrf.mxu0
        %v555 = vadd.f32 %v415, %v554
        %v556 = vpop.f32.mrf.mxu0
        %v557 = vadd.f32 %v415, %v556
        %558 = vmatmul.bf16.gmra.mxu0 %v492
        %v559 = vpop.f32.mrf.mxu0
        %v560 = vadd.f32 %v415, %v559
        %v561 = vpop.f32.mrf.mxu0
        %v562 = vadd.f32 %v415, %v561
        %563 = vmatmul.bf16.gmra.mxu0 %v495
        %v564 = vpop.f32.mrf.mxu0
        %v565 = vadd.f32 %v415, %v564
        %v566 = vpop.f32.mrf.mxu0
        %v567 = vadd.f32 %v415, %v566
        %568 = vmatmul.bf16.gmra.mxu0 %v498
        %v569 = vpop.f32.mrf.mxu0
        %v570 = vadd.f32 %v415, %v569
        %v571 = vpop.f32.mrf.mxu0
        %v572 = vadd.f32 %v415, %v571
        %573 = vmatmul.bf16.gmra.mxu0 %v501
        %v574 = vpop.f32.mrf.mxu0
        %v575 = vadd.f32 %v415, %v574
        %v576 = vpop.f32.mrf.mxu0
        %v577 = vadd.f32 %v415, %v576
        %578 = vmatmul.bf16.gmra.mxu0 %v504
        %v579 = vpop.f32.mrf.mxu0
        %v580 = vadd.f32 %v415, %v579
        %v581 = vpop.f32.mrf.mxu0
        %v582 = vadd.f32 %v415, %v581
        %583 = vmatmul.bf16.gmra.mxu0 %v507
        %v584 = vpop.f32.mrf.mxu0
        %v585 = vadd.f32 %v415, %v584
        %v586 = vpop.f32.mrf.mxu0
        %v587 = vadd.f32 %v415, %v586
        %588 = vmatmul.bf16.gmra.mxu0 %v510
        %v589 = vpop.f32.mrf.mxu0
        %v590 = vadd.f32 %v415, %v589
        %v591 = vpop.f32.mrf.mxu0
        %v592 = vadd.f32 %v415, %v591
        %593 = vmatmul.bf16.gmra.mxu0 %v513
        %v594 = vpop.f32.mrf.mxu0
        %v595 = vadd.f32 %v415, %v594
        %v596 = vpop.f32.mrf.mxu0
        %v597 = vadd.f32 %v415, %v596
        %598 = vmatmul.bf16.gmra.mxu0 %v516
        %v599 = vpop.f32.mrf.mxu0
        %v600 = vadd.f32 %v415, %v599
        %v601 = vpop.f32.mrf.mxu0
        %v602 = vadd.f32 %v415, %v601
        %603 = vmatmul.bf16.gmra.mxu0 %v519
        %v604 = vpop.f32.mrf.mxu0
        %v605 = vadd.f32 %v415, %v604
        %v606 = vpop.f32.mrf.mxu0
        %v607 = vadd.f32 %v415, %v606
        %608 = vmatmul.bf16.gmra.mxu0 %v522
        %v609 = vpop.f32.mrf.mxu0
        %v610 = vadd.f32 %v415, %v609
        %v611 = vpop.f32.mrf.mxu0
        %v612 = vadd.f32 %v415, %v611
        %613 = vmatmul.bf16.gmra.mxu0 %v525
        %v614 = vpop.f32.mrf.mxu0
        %v615 = vadd.f32 %v415, %v614
        %v616 = vpop.f32.mrf.mxu0
        %v617 = vadd.f32 %v415, %v616
        %618 = vmatmul.bf16.gmra.mxu0 %v528
        %v619 = vpop.f32.mrf.mxu0
        %v620 = vadd.f32 %v415, %v619
        %v621 = vpop.f32.mrf.mxu0
        %v622 = vadd.f32 %v415, %v621
        %623 = vmatmul.bf16.gmra.mxu0 %v531
        %v624 = vpop.f32.mrf.mxu0
        %v625 = vadd.f32 %v415, %v624
        %v626 = vpop.f32.mrf.mxu0
        %v627 = vadd.f32 %v415, %v626
        %628 = vdwg.mxu0
        %629 = vmatpush.bf16.msra.mxu0 0
        %630 = vmatpush.bf16.msra.mxu0 %v538
        %631 = vmatpush.bf16.msra.mxu0 %v469
        %632 = vmatpush.bf16.msra.mxu0 %v467
        %633 = vmatpush.bf16.msra.mxu0 %v465
        %634 = vmatpush.bf16.msra.mxu0 %v463
        %635 = vmatpush.bf16.msra.mxu0 %v461
        %636 = vmatpush.bf16.msra.mxu0 %v459
        %637 = vmatmul.bf16.gmra.mxu0 %v486
        %v638 = vpop.f32.mrf.mxu0
        %v639 = vadd.f32 %v416, %v638
        %v640 = vpop.f32.mrf.mxu0
        %v641 = vadd.f32 %v416, %v640
        %642 = vmatmul.bf16.gmra.mxu0 %v489
        %v643 = vpop.f32.mrf.mxu0
        %v644 = vadd.f32 %v416, %v643
        %v645 = vpop.f32.mrf.mxu0
        %v646 = vadd.f32 %v416, %v645
        %647 = vmatmul.bf16.gmra.mxu0 %v492
        %v648 = vpop.f32.mrf.mxu0
        %v649 = vadd.f32 %v416, %v648
        %v650 = vpop.f32.mrf.mxu0
        %v651 = vadd.f32 %v416, %v650
        %652 = vmatmul.bf16.gmra.mxu0 %v495
        %v653 = vpop.f32.mrf.mxu0
        %v654 = vadd.f32 %v416, %v653
        %v655 = vpop.f32.mrf.mxu0
        %v656 = vadd.f32 %v416, %v655
        %657 = vmatmul.bf16.gmra.mxu0 %v498
        %v658 = vpop.f32.mrf.mxu0
        %v659 = vadd.f32 %v416, %v658
        %v660 = vpop.f32.mrf.mxu0
        %v661 = vadd.f32 %v416, %v660
        %662 = vmatmul.bf16.gmra.mxu0 %v501
        %v663 = vpop.f32.mrf.mxu0
        %v664 = vadd.f32 %v416, %v663
        %v665 = vpop.f32.mrf.mxu0
        %v666 = vadd.f32 %v416, %v665
        %667 = vmatmul.bf16.gmra.mxu0 %v504
        %v668 = vpop.f32.mrf.mxu0
        %v669 = vadd.f32 %v416, %v668
        %v670 = vpop.f32.mrf.mxu0
        %v671 = vadd.f32 %v416, %v670
        %672 = vmatmul.bf16.gmra.mxu0 %v507
        %v673 = vpop.f32.mrf.mxu0
        %v674 = vadd.f32 %v416, %v673
        %v675 = vpop.f32.mrf.mxu0
        %v676 = vadd.f32 %v416, %v675
        %677 = vmatmul.bf16.gmra.mxu0 %v510
        %v678 = vpop.f32.mrf.mxu0
        %v679 = vadd.f32 %v416, %v678
        %v680 = vpop.f32.mrf.mxu0
        %v681 = vadd.f32 %v416, %v680
        %682 = vmatmul.bf16.gmra.mxu0 %v513
        %v683 = vpop.f32.mrf.mxu0
        %v684 = vadd.f32 %v416, %v683
        %v685 = vpop.f32.mrf.mxu0
        %v686 = vadd.f32 %v416, %v685
        %687 = vmatmul.bf16.gmra.mxu0 %v516
        %v688 = vpop.f32.mrf.mxu0
        %v689 = vadd.f32 %v416, %v688
        %v690 = vpop.f32.mrf.mxu0
        %v691 = vadd.f32 %v416, %v690
        %692 = vmatmul.bf16.gmra.mxu0 %v519
        %v693 = vpop.f32.mrf.mxu0
        %v694 = vadd.f32 %v416, %v693
        %v695 = vpop.f32.mrf.mxu0
        %v696 = vadd.f32 %v416, %v695
        %697 = vmatmul.bf16.gmra.mxu0 %v522
        %v698 = vpop.f32.mrf.mxu0
        %v699 = vadd.f32 %v416, %v698
        %v700 = vpop.f32.mrf.mxu0
        %v701 = vadd.f32 %v416, %v700
        %702 = vmatmul.bf16.gmra.mxu0 %v525
        %v703 = vpop.f32.mrf.mxu0
        %v704 = vadd.f32 %v416, %v703
        %v705 = vpop.f32.mrf.mxu0
        %v706 = vadd.f32 %v416, %v705
        %707 = vmatmul.bf16.gmra.mxu0 %v528
        %v708 = vpop.f32.mrf.mxu0
        %v709 = vadd.f32 %v416, %v708
        %v710 = vpop.f32.mrf.mxu0
        %v711 = vadd.f32 %v416, %v710
        %712 = vmatmul.bf16.gmra.mxu0 %v531
        %v713 = vpop.f32.mrf.mxu0
        %v714 = vadd.f32 %v416, %v713
        %v715 = vpop.f32.mrf.mxu0
        %v716 = vadd.f32 %v416, %v715
        %717 = vdwg.mxu0
        %v718 = vmax.f32 %v550, 0.0
        %v719 = vmax.f32 %v639, 0.0
        %v720 = vmax.f32 %v552, 0.0
        %v721 = vmax.f32 %v641, 0.0
        %v722 = vmax.f32 %v555, 0.0
        %v723 = vmax.f32 %v644, 0.0
        %v724 = vmax.f32 %v557, 0.0
        %v725 = vmax.f32 %v646, 0.0
        %v726 = vmax.f32 %v560, 0.0
        %v727 = vmax.f32 %v649, 0.0
        %v728 = vmax.f32 %v562, 0.0
        %v729 = vmax.f32 %v651, 0.0
        %v730 = vmax.f32 %v565, 0.0
        %v731 = vmax.f32 %v654, 0.0
        %v732 = vmax.f32 %v567, 0.0
        %v733 = vmax.f32 %v656, 0.0
        %v734 = vmax.f32 %v570, 0.0
        %v735 = vmax.f32 %v659, 0.0
        %v736 = vmax.f32 %v572, 0.0
        %v737 = vmax.f32 %v661, 0.0
        %v738 = vmax.f32 %v575, 0.0
        %v739 = vmax.f32 %v664, 0.0
        %v740 = vmax.f32 %v577, 0.0
        %v741 = vmax.f32 %v666, 0.0
        %v742 = vmax.f32 %v580, 0.0
        %v743 = vmax.f32 %v669, 0.0
        %v744 = vmax.f32 %v582, 0.0
        %v745 = vmax.f32 %v671, 0.0
        %v746 = vmax.f32 %v585, 0.0
        %v747 = vmax.f32 %v674, 0.0
        %v748 = vmax.f32 %v587, 0.0
        %v749 = vmax.f32 %v676, 0.0
        %v750 = vmax.f32 %v590, 0.0
        %v751 = vmax.f32 %v679, 0.0
        %v752 = vmax.f32 %v592, 0.0
        %v753 = vmax.f32 %v681, 0.0
        %v754 = vmax.f32 %v595, 0.0
        %v755 = vmax.f32 %v684, 0.0
        %v756 = vmax.f32 %v597, 0.0
        %v757 = vmax.f32 %v686, 0.0
        %v758 = vmax.f32 %v600, 0.0
        %v759 = vmax.f32 %v689, 0.0
        %v760 = vmax.f32 %v602, 0.0
        %v761 = vmax.f32 %v691, 0.0
        %v762 = vmax.f32 %v605, 0.0
        %v763 = vmax.f32 %v694, 0.0
        %v764 = vmax.f32 %v607, 0.0
        %v765 = vmax.f32 %v696, 0.0
        %v766 = vmax.f32 %v610, 0.0
        %v767 = vmax.f32 %v699, 0.0
        %v768 = vmax.f32 %v612, 0.0
        %v769 = vmax.f32 %v701, 0.0
        %v770 = vmax.f32 %v615, 0.0
        %v771 = vmax.f32 %v704, 0.0
        %v772 = vmax.f32 %v617, 0.0
        %v773 = vmax.f32 %v706, 0.0
        %v774 = vmax.f32 %v620, 0.0
        %v775 = vmax.f32 %v709, 0.0
        %v776 = vmax.f32 %v622, 0.0
        %v777 = vmax.f32 %v711, 0.0
        %v778 = vmax.f32 %v625, 0.0
        %v779 = vmax.f32 %v714, 0.0
        %v780 = vmax.f32 %v627, 0.0
        %v781 = vmax.f32 %v716, 0.0
        %v782 = vpack.c.bf16 %v720, %v718
        %v783 = vpack.c.bf16 %v721, %v719
        %v784 = vpack.c.bf16 %v724, %v722
        %v785 = vpack.c.bf16 %v725, %v723
        %v786 = vpack.c.bf16 %v728, %v726
        %v787 = vpack.c.bf16 %v729, %v727
        %v788 = vpack.c.bf16 %v732, %v730
        %v789 = vpack.c.bf16 %v733, %v731
        %v790 = vpack.c.bf16 %v736, %v734
        %v791 = vpack.c.bf16 %v737, %v735
        %v792 = vpack.c.bf16 %v740, %v738
        %v793 = vpack.c.bf16 %v741, %v739
        %v794 = vpack.c.bf16 %v744, %v742
        %v795 = vpack.c.bf16 %v745, %v743
        %v796 = vpack.c.bf16 %v748, %v746
        %v797 = vpack.c.bf16 %v749, %v747
        %v798 = vpack.c.bf16 %v752, %v750
        %v799 = vpack.c.bf16 %v753, %v751
        %v800 = vpack.c.bf16 %v756, %v754
        %v801 = vpack.c.bf16 %v757, %v755
        %v802 = vpack.c.bf16 %v760, %v758
        %v803 = vpack.c.bf16 %v761, %v759
        %v804 = vpack.c.bf16 %v764, %v762
        %v805 = vpack.c.bf16 %v765, %v763
        %v806 = vpack.c.bf16 %v768, %v766
        %v807 = vpack.c.bf16 %v769, %v767
        %v808 = vpack.c.bf16 %v772, %v770
        %v809 = vpack.c.bf16 %v773, %v771
        %v810 = vpack.c.bf16 %v776, %v774
        %v811 = vpack.c.bf16 %v777, %v775
        %v812 = vpack.c.bf16 %v780, %v778
        %v813 = vpack.c.bf16 %v781, %v779
        %v814 = vld [vmem:[%s3] sm:$0xff]
        %v815 = vld [vmem:[%s3 + $0x8] sm:$0xff]
        %v816 = vld [vmem:[%s3 + $0x10] sm:$0xff]
        %v817 = vld [vmem:[%s3 + $0x18] sm:$0xff]
        %v818 = vld [vmem:[%s3 + $0x20] sm:$0xff]
        %v819 = vld [vmem:[%s3 + $0x28] sm:$0xff]
        %v820 = vld [vmem:[%s3 + $0x30] sm:$0xff]
        %v821 = vld [vmem:[%s3 + $0x38] sm:$0xff]
        %v822 = vld [vmem:[%s3 + $0x40] sm:$0xff]
        %v823 = vld [vmem:[%s3 + $0x48] sm:$0xff]
        %v824 = vld [vmem:[%s3 + $0x50] sm:$0xff]
        %v825 = vld [vmem:[%s3 + $0x58] sm:$0xff]
        %v826 = vld [vmem:[%s3 + $0x60] sm:$0xff]
        %v827 = vld [vmem:[%s3 + $0x68] sm:$0xff]
        %v828 = vld [vmem:[%s3 + $0x70] sm:$0xff]
        %v829 = vld [vmem:[%s3 + $0x78] sm:$0xff]
        %v830 = vld [vmem:[%s3 + $0x80] sm:$0xff]
        %v831 = vld [vmem:[%s3 + $0x88] sm:$0xff]
        %v832 = vld [vmem:[%s3 + $0x90] sm:$0xff]
        %v833 = vld [vmem:[%s3 + $0x98] sm:$0xff]
        %v834 = vld [vmem:[%s3 + $0xa0] sm:$0xff]
        %v835 = vld [vmem:[%s3 + $0xa8] sm:$0xff]
        %v836 = vld [vmem:[%s3 + $0xb0] sm:$0xff]
        %v837 = vld [vmem:[%s3 + $0xb8] sm:$0xff]
        %v838 = vld [vmem:[%s3 + $0xc0] sm:$0xff]
        %v839 = vld [vmem:[%s3 + $0xc8] sm:$0xff]
        %v840 = vld [vmem:[%s3 + $0xd0] sm:$0xff]
        %v841 = vld [vmem:[%s3 + $0xd8] sm:$0xff]
        %v842 = vld [vmem:[%s3 + $0xe0] sm:$0xff]
        %v843 = vld [vmem:[%s3 + $0xe8] sm:$0xff]
        %v844 = vld [vmem:[%s3 + $0xf0] sm:$0xff]
        %v845 = vld [vmem:[%s3 + $0xf8] sm:$0xff]
        %v846 = vld [vmem:[%s4] sm:$0x3]
        %v848 = vperm.slane %v846, 0
        %v849 = vperm.slane %v846, 1
        %v884 = vunpack.c.l.b16 %v814
        %v885 = vunpack.c.h.b16 %v814
        %v886 = vunpack.c.l.b16 %v815
        %v887 = vunpack.c.h.b16 %v815
        %v888 = vunpack.c.l.b16 %v816
        %v889 = vunpack.c.h.b16 %v816
        %v890 = vunpack.c.l.b16 %v817
        %v891 = vunpack.c.h.b16 %v817
        %v892 = vunpack.c.l.b16 %v818
        %v893 = vunpack.c.h.b16 %v818
        %v894 = vunpack.c.l.b16 %v819
        %v895 = vunpack.c.h.b16 %v819
        %v896 = vunpack.c.l.b16 %v820
        %v897 = vunpack.c.h.b16 %v820
        %v898 = vunpack.c.l.b16 %v821
        %v899 = vunpack.c.h.b16 %v821
        %v900 = vunpack.c.l.b16 %v822
        %v901 = vunpack.c.h.b16 %v822
        %v902 = vunpack.c.l.b16 %v823
        %v903 = vunpack.c.h.b16 %v823
        %v904 = vunpack.c.l.b16 %v824
        %v905 = vunpack.c.h.b16 %v824
        %v906 = vunpack.c.l.b16 %v825
        %v907 = vunpack.c.h.b16 %v825
        %v908 = vunpack.c.l.b16 %v826
        %v909 = vunpack.c.h.b16 %v826
        %v910 = vunpack.c.l.b16 %v827
        %v911 = vunpack.c.h.b16 %v827
        %v912 = vunpack.c.l.b16 %v828
        %v913 = vunpack.c.h.b16 %v828
        %v914 = vunpack.c.l.b16 %v829
        %v915 = vunpack.c.h.b16 %v829
        %v916 = vunpack.c.l.b16 %v830
        %v917 = vunpack.c.h.b16 %v830
        %v918 = vunpack.c.l.b16 %v831
        %v919 = vunpack.c.h.b16 %v831
        %v920 = vunpack.c.l.b16 %v832
        %v921 = vunpack.c.h.b16 %v832
        %v922 = vunpack.c.l.b16 %v833
        %v923 = vunpack.c.h.b16 %v833
        %v924 = vunpack.c.l.b16 %v834
        %v925 = vunpack.c.h.b16 %v834
        %v926 = vunpack.c.l.b16 %v835
        %v927 = vunpack.c.h.b16 %v835
        %v928 = vunpack.c.l.b16 %v836
        %v929 = vunpack.c.h.b16 %v836
        %v930 = vunpack.c.l.b16 %v837
        %v931 = vunpack.c.h.b16 %v837
        %v932 = vunpack.c.l.b16 %v838
        %v933 = vunpack.c.h.b16 %v838
        %v934 = vunpack.c.l.b16 %v839
        %v935 = vunpack.c.h.b16 %v839
        %v936 = vunpack.c.l.b16 %v840
        %v937 = vunpack.c.h.b16 %v840
        %v938 = vunpack.c.l.b16 %v841
        %v939 = vunpack.c.h.b16 %v841
        %v940 = vunpack.c.l.b16 %v842
        %v941 = vunpack.c.h.b16 %v842
        %v942 = vunpack.c.l.b16 %v843
        %v943 = vunpack.c.h.b16 %v843
        %v944 = vunpack.c.l.b16 %v844
        %v945 = vunpack.c.h.b16 %v844
        %v946 = vunpack.c.l.b16 %v845
        %v947 = vunpack.c.h.b16 %v845
        %v948 = vpack.c.b16 %v886, %v884
        %v949 = vpack.c.b16 %v887, %v885
        %v950 = vpack.c.b16 %v890, %v888
        %v951 = vpack.c.b16 %v891, %v889
        %v952 = vpack.c.b16 %v894, %v892
        %v953 = vpack.c.b16 %v895, %v893
        %v954 = vpack.c.b16 %v898, %v896
        %v955 = vpack.c.b16 %v899, %v897
        %v956 = vpack.c.b16 %v902, %v900
        %v957 = vpack.c.b16 %v903, %v901
        %v958 = vpack.c.b16 %v906, %v904
        %v959 = vpack.c.b16 %v907, %v905
        %v960 = vpack.c.b16 %v910, %v908
        %v961 = vpack.c.b16 %v911, %v909
        %v962 = vpack.c.b16 %v914, %v912
        %v963 = vpack.c.b16 %v915, %v913
        %v964 = vpack.c.b16 %v918, %v916
        %v965 = vpack.c.b16 %v919, %v917
        %v966 = vpack.c.b16 %v922, %v920
        %v967 = vpack.c.b16 %v923, %v921
        %v968 = vpack.c.b16 %v926, %v924
        %v969 = vpack.c.b16 %v927, %v925
        %v970 = vpack.c.b16 %v930, %v928
        %v971 = vpack.c.b16 %v931, %v929
        %v972 = vpack.c.b16 %v934, %v932
        %v973 = vpack.c.b16 %v935, %v933
        %v974 = vpack.c.b16 %v938, %v936
        %v975 = vpack.c.b16 %v939, %v937
        %v976 = vpack.c.b16 %v942, %v940
        %v977 = vpack.c.b16 %v943, %v941
        %v978 = vpack.c.b16 %v946, %v944
        %v979 = vpack.c.b16 %v947, %v945
        %1012 = vmatpush.bf16.msra.mxu0 %v962
        %1013 = vmatpush.bf16.msra.mxu0 %v960
        %1014 = vmatpush.bf16.msra.mxu0 %v958
        %1015 = vmatpush.bf16.msra.mxu0 %v956
        %1016 = vmatpush.bf16.msra.mxu0 %v954
        %1017 = vmatpush.bf16.msra.mxu0 %v952
        %1018 = vmatpush.bf16.msra.mxu0 %v950
        %1019 = vmatpush.bf16.msra.mxu0 %v948
        %1020 = vmatmul.bf16.gmra.mxu0 %v782
        %v1021 = vpop.f32.mrf.mxu0
        %v1022 = vadd.f32 %v848, %v1021
        %v1023 = vpop.f32.mrf.mxu0
        %v1024 = vadd.f32 %v848, %v1023
        %1025 = vmatmul.bf16.gmra.mxu0 %v784
        %v1026 = vpop.f32.mrf.mxu0
        %v1027 = vadd.f32 %v848, %v1026
        %v1028 = vpop.f32.mrf.mxu0
        %v1029 = vadd.f32 %v848, %v1028
        %1030 = vmatmul.bf16.gmra.mxu0 %v786
        %v1031 = vpop.f32.mrf.mxu0
        %v1032 = vadd.f32 %v848, %v1031
        %v1033 = vpop.f32.mrf.mxu0
        %v1034 = vadd.f32 %v848, %v1033
        %1035 = vmatmul.bf16.gmra.mxu0 %v788
        %v1036 = vpop.f32.mrf.mxu0
        %v1037 = vadd.f32 %v848, %v1036
        %v1038 = vpop.f32.mrf.mxu0
        %v1039 = vadd.f32 %v848, %v1038
        %1040 = vmatmul.bf16.gmra.mxu0 %v790
        %v1041 = vpop.f32.mrf.mxu0
        %v1042 = vadd.f32 %v848, %v1041
        %v1043 = vpop.f32.mrf.mxu0
        %v1044 = vadd.f32 %v848, %v1043
        %1045 = vmatmul.bf16.gmra.mxu0 %v792
        %v1046 = vpop.f32.mrf.mxu0
        %v1047 = vadd.f32 %v848, %v1046
        %v1048 = vpop.f32.mrf.mxu0
        %v1049 = vadd.f32 %v848, %v1048
        %1050 = vmatmul.bf16.gmra.mxu0 %v794
        %v1051 = vpop.f32.mrf.mxu0
        %v1052 = vadd.f32 %v848, %v1051
        %v1053 = vpop.f32.mrf.mxu0
        %v1054 = vadd.f32 %v848, %v1053
        %1055 = vmatmul.bf16.gmra.mxu0 %v796
        %v1056 = vpop.f32.mrf.mxu0
        %v1057 = vadd.f32 %v848, %v1056
        %v1058 = vpop.f32.mrf.mxu0
        %v1059 = vadd.f32 %v848, %v1058
        %1060 = vmatmul.bf16.gmra.mxu0 %v798
        %v1061 = vpop.f32.mrf.mxu0
        %v1062 = vadd.f32 %v848, %v1061
        %v1063 = vpop.f32.mrf.mxu0
        %v1064 = vadd.f32 %v848, %v1063
        %1065 = vmatmul.bf16.gmra.mxu0 %v800
        %v1066 = vpop.f32.mrf.mxu0
        %v1067 = vadd.f32 %v848, %v1066
        %v1068 = vpop.f32.mrf.mxu0
        %v1069 = vadd.f32 %v848, %v1068
        %1070 = vmatmul.bf16.gmra.mxu0 %v802
        %v1071 = vpop.f32.mrf.mxu0
        %v1072 = vadd.f32 %v848, %v1071
        %v1073 = vpop.f32.mrf.mxu0
        %v1074 = vadd.f32 %v848, %v1073
        %1075 = vmatmul.bf16.gmra.mxu0 %v804
        %v1076 = vpop.f32.mrf.mxu0
        %v1077 = vadd.f32 %v848, %v1076
        %v1078 = vpop.f32.mrf.mxu0
        %v1079 = vadd.f32 %v848, %v1078
        %1080 = vmatmul.bf16.gmra.mxu0 %v806
        %v1081 = vpop.f32.mrf.mxu0
        %v1082 = vadd.f32 %v848, %v1081
        %v1083 = vpop.f32.mrf.mxu0
        %v1084 = vadd.f32 %v848, %v1083
        %1085 = vmatmul.bf16.gmra.mxu0 %v808
        %v1086 = vpop.f32.mrf.mxu0
        %v1087 = vadd.f32 %v848, %v1086
        %v1088 = vpop.f32.mrf.mxu0
        %v1089 = vadd.f32 %v848, %v1088
        %1090 = vmatmul.bf16.gmra.mxu0 %v810
        %v1091 = vpop.f32.mrf.mxu0
        %v1092 = vadd.f32 %v848, %v1091
        %v1093 = vpop.f32.mrf.mxu0
        %v1094 = vadd.f32 %v848, %v1093
        %1095 = vmatmul.bf16.gmra.mxu0 %v812
        %v1096 = vpop.f32.mrf.mxu0
        %v1097 = vadd.f32 %v848, %v1096
        %v1098 = vpop.f32.mrf.mxu0
        %v1099 = vadd.f32 %v848, %v1098
        %1100 = vdwg.mxu0
        %1101 = vmatpush.bf16.msra.mxu0 %v978
        %1102 = vmatpush.bf16.msra.mxu0 %v976
        %1103 = vmatpush.bf16.msra.mxu0 %v974
        %1104 = vmatpush.bf16.msra.mxu0 %v972
        %1105 = vmatpush.bf16.msra.mxu0 %v970
        %1106 = vmatpush.bf16.msra.mxu0 %v968
        %1107 = vmatpush.bf16.msra.mxu0 %v966
        %1108 = vmatpush.bf16.msra.mxu0 %v964
        %1109 = vmatmul.bf16.gmra.mxu0 %v783
        %v1110 = vpop.f32.mrf.mxu0
        %v1111 = vadd.f32 %v1022, %v1110
        %v1112 = vpop.f32.mrf.mxu0
        %v1113 = vadd.f32 %v1024, %v1112
        %1114 = vmatmul.bf16.gmra.mxu0 %v785
        %v1115 = vpop.f32.mrf.mxu0
        %v1116 = vadd.f32 %v1027, %v1115
        %v1117 = vpop.f32.mrf.mxu0
        %v1118 = vadd.f32 %v1029, %v1117
        %1119 = vmatmul.bf16.gmra.mxu0 %v787
        %v1120 = vpop.f32.mrf.mxu0
        %v1121 = vadd.f32 %v1032, %v1120
        %v1122 = vpop.f32.mrf.mxu0
        %v1123 = vadd.f32 %v1034, %v1122
        %1124 = vmatmul.bf16.gmra.mxu0 %v789
        %v1125 = vpop.f32.mrf.mxu0
        %v1126 = vadd.f32 %v1037, %v1125
        %v1127 = vpop.f32.mrf.mxu0
        %v1128 = vadd.f32 %v1039, %v1127
        %1129 = vmatmul.bf16.gmra.mxu0 %v791
        %v1130 = vpop.f32.mrf.mxu0
        %v1131 = vadd.f32 %v1042, %v1130
        %v1132 = vpop.f32.mrf.mxu0
        %v1133 = vadd.f32 %v1044, %v1132
        %1134 = vmatmul.bf16.gmra.mxu0 %v793
        %v1135 = vpop.f32.mrf.mxu0
        %v1136 = vadd.f32 %v1047, %v1135
        %v1137 = vpop.f32.mrf.mxu0
        %v1138 = vadd.f32 %v1049, %v1137
        %1139 = vmatmul.bf16.gmra.mxu0 %v795
        %v1140 = vpop.f32.mrf.mxu0
        %v1141 = vadd.f32 %v1052, %v1140
        %v1142 = vpop.f32.mrf.mxu0
        %v1143 = vadd.f32 %v1054, %v1142
        %1144 = vmatmul.bf16.gmra.mxu0 %v797
        %v1145 = vpop.f32.mrf.mxu0
        %v1146 = vadd.f32 %v1057, %v1145
        %v1147 = vpop.f32.mrf.mxu0
        %v1148 = vadd.f32 %v1059, %v1147
        %1149 = vmatmul.bf16.gmra.mxu0 %v799
        %v1150 = vpop.f32.mrf.mxu0
        %v1151 = vadd.f32 %v1062, %v1150
        %v1152 = vpop.f32.mrf.mxu0
        %v1153 = vadd.f32 %v1064, %v1152
        %1154 = vmatmul.bf16.gmra.mxu0 %v801
        %v1155 = vpop.f32.mrf.mxu0
        %v1156 = vadd.f32 %v1067, %v1155
        %v1157 = vpop.f32.mrf.mxu0
        %v1158 = vadd.f32 %v1069, %v1157
        %1159 = vmatmul.bf16.gmra.mxu0 %v803
        %v1160 = vpop.f32.mrf.mxu0
        %v1161 = vadd.f32 %v1072, %v1160
        %v1162 = vpop.f32.mrf.mxu0
        %v1163 = vadd.f32 %v1074, %v1162
        %1164 = vmatmul.bf16.gmra.mxu0 %v805
        %v1165 = vpop.f32.mrf.mxu0
        %v1166 = vadd.f32 %v1077, %v1165
        %v1167 = vpop.f32.mrf.mxu0
        %v1168 = vadd.f32 %v1079, %v1167
        %1169 = vmatmul.bf16.gmra.mxu0 %v807
        %v1170 = vpop.f32.mrf.mxu0
        %v1171 = vadd.f32 %v1082, %v1170
        %v1172 = vpop.f32.mrf.mxu0
        %v1173 = vadd.f32 %v1084, %v1172
        %1174 = vmatmul.bf16.gmra.mxu0 %v809
        %v1175 = vpop.f32.mrf.mxu0
        %v1176 = vadd.f32 %v1087, %v1175
        %v1177 = vpop.f32.mrf.mxu0
        %v1178 = vadd.f32 %v1089, %v1177
        %1179 = vmatmul.bf16.gmra.mxu0 %v811
        %v1180 = vpop.f32.mrf.mxu0
        %v1181 = vadd.f32 %v1092, %v1180
        %v1182 = vpop.f32.mrf.mxu0
        %v1183 = vadd.f32 %v1094, %v1182
        %1184 = vmatmul.bf16.gmra.mxu0 %v813
        %v1185 = vpop.f32.mrf.mxu0
        %v1186 = vadd.f32 %v1097, %v1185
        %v1187 = vpop.f32.mrf.mxu0
        %v1188 = vadd.f32 %v1099, %v1187
        %1189 = vdwg.mxu0
        %1190 = vmatpush.bf16.msra.mxu0 %v963
        %1191 = vmatpush.bf16.msra.mxu0 %v961
        %1192 = vmatpush.bf16.msra.mxu0 %v959
        %1193 = vmatpush.bf16.msra.mxu0 %v957
        %1194 = vmatpush.bf16.msra.mxu0 %v955
        %1195 = vmatpush.bf16.msra.mxu0 %v953
        %1196 = vmatpush.bf16.msra.mxu0 %v951
        %1197 = vmatpush.bf16.msra.mxu0 %v949
        %1198 = vmatmul.bf16.gmra.mxu0 %v782
        %v1199 = vpop.f32.mrf.mxu0
        %v1200 = vadd.f32 %v849, %v1199
        %v1201 = vpop.f32.mrf.mxu0
        %v1202 = vadd.f32 %v849, %v1201
        %1203 = vmatmul.bf16.gmra.mxu0 %v784
        %v1204 = vpop.f32.mrf.mxu0
        %v1205 = vadd.f32 %v849, %v1204
        %v1206 = vpop.f32.mrf.mxu0
        %v1207 = vadd.f32 %v849, %v1206
        %1208 = vmatmul.bf16.gmra.mxu0 %v786
        %v1209 = vpop.f32.mrf.mxu0
        %v1210 = vadd.f32 %v849, %v1209
        %v1211 = vpop.f32.mrf.mxu0
        %v1212 = vadd.f32 %v849, %v1211
        %1213 = vmatmul.bf16.gmra.mxu0 %v788
        %v1214 = vpop.f32.mrf.mxu0
        %v1215 = vadd.f32 %v849, %v1214
        %v1216 = vpop.f32.mrf.mxu0
        %v1217 = vadd.f32 %v849, %v1216
        %1218 = vmatmul.bf16.gmra.mxu0 %v790
        %v1219 = vpop.f32.mrf.mxu0
        %v1220 = vadd.f32 %v849, %v1219
        %v1221 = vpop.f32.mrf.mxu0
        %v1222 = vadd.f32 %v849, %v1221
        %1223 = vmatmul.bf16.gmra.mxu0 %v792
        %v1224 = vpop.f32.mrf.mxu0
        %v1225 = vadd.f32 %v849, %v1224
        %v1226 = vpop.f32.mrf.mxu0
        %v1227 = vadd.f32 %v849, %v1226
        %1228 = vmatmul.bf16.gmra.mxu0 %v794
        %v1229 = vpop.f32.mrf.mxu0
        %v1230 = vadd.f32 %v849, %v1229
        %v1231 = vpop.f32.mrf.mxu0
        %v1232 = vadd.f32 %v849, %v1231
        %1233 = vmatmul.bf16.gmra.mxu0 %v796
        %v1234 = vpop.f32.mrf.mxu0
        %v1235 = vadd.f32 %v849, %v1234
        %v1236 = vpop.f32.mrf.mxu0
        %v1237 = vadd.f32 %v849, %v1236
        %1238 = vmatmul.bf16.gmra.mxu0 %v798
        %v1239 = vpop.f32.mrf.mxu0
        %v1240 = vadd.f32 %v849, %v1239
        %v1241 = vpop.f32.mrf.mxu0
        %v1242 = vadd.f32 %v849, %v1241
        %1243 = vmatmul.bf16.gmra.mxu0 %v800
        %v1244 = vpop.f32.mrf.mxu0
        %v1245 = vadd.f32 %v849, %v1244
        %v1246 = vpop.f32.mrf.mxu0
        %v1247 = vadd.f32 %v849, %v1246
        %1248 = vmatmul.bf16.gmra.mxu0 %v802
        %v1249 = vpop.f32.mrf.mxu0
        %v1250 = vadd.f32 %v849, %v1249
        %v1251 = vpop.f32.mrf.mxu0
        %v1252 = vadd.f32 %v849, %v1251
        %1253 = vmatmul.bf16.gmra.mxu0 %v804
        %v1254 = vpop.f32.mrf.mxu0
        %v1255 = vadd.f32 %v849, %v1254
        %v1256 = vpop.f32.mrf.mxu0
        %v1257 = vadd.f32 %v849, %v1256
        %1258 = vmatmul.bf16.gmra.mxu0 %v806
        %v1259 = vpop.f32.mrf.mxu0
        %v1260 = vadd.f32 %v849, %v1259
        %v1261 = vpop.f32.mrf.mxu0
        %v1262 = vadd.f32 %v849, %v1261
        %1263 = vmatmul.bf16.gmra.mxu0 %v808
        %v1264 = vpop.f32.mrf.mxu0
        %v1265 = vadd.f32 %v849, %v1264
        %v1266 = vpop.f32.mrf.mxu0
        %v1267 = vadd.f32 %v849, %v1266
        %1268 = vmatmul.bf16.gmra.mxu0 %v810
        %v1269 = vpop.f32.mrf.mxu0
        %v1270 = vadd.f32 %v849, %v1269
        %v1271 = vpop.f32.mrf.mxu0
        %v1272 = vadd.f32 %v849, %v1271
        %1273 = vmatmul.bf16.gmra.mxu0 %v812
        %v1274 = vpop.f32.mrf.mxu0
        %v1275 = vadd.f32 %v849, %v1274
        %v1276 = vpop.f32.mrf.mxu0
        %v1277 = vadd.f32 %v849, %v1276
        %1278 = vdwg.mxu0
        %1279 = vmatpush.bf16.msra.mxu0 %v979
        %1280 = vmatpush.bf16.msra.mxu0 %v977
        %1281 = vmatpush.bf16.msra.mxu0 %v975
        %1282 = vmatpush.bf16.msra.mxu0 %v973
        %1283 = vmatpush.bf16.msra.mxu0 %v971
        %1284 = vmatpush.bf16.msra.mxu0 %v969
        %1285 = vmatpush.bf16.msra.mxu0 %v967
        %1286 = vmatpush.bf16.msra.mxu0 %v965
        %1287 = vmatmul.bf16.gmra.mxu0 %v783
        %v1288 = vpop.f32.mrf.mxu0
        %v1289 = vadd.f32 %v1200, %v1288
        %v1290 = vpop.f32.mrf.mxu0
        %v1291 = vadd.f32 %v1202, %v1290
        %1292 = vmatmul.bf16.gmra.mxu0 %v785
        %v1293 = vpop.f32.mrf.mxu0
        %v1294 = vadd.f32 %v1205, %v1293
        %v1295 = vpop.f32.mrf.mxu0
        %v1296 = vadd.f32 %v1207, %v1295
        %1297 = vmatmul.bf16.gmra.mxu0 %v787
        %v1298 = vpop.f32.mrf.mxu0
        %v1299 = vadd.f32 %v1210, %v1298
        %v1300 = vpop.f32.mrf.mxu0
        %v1301 = vadd.f32 %v1212, %v1300
        %1302 = vmatmul.bf16.gmra.mxu0 %v789
        %v1303 = vpop.f32.mrf.mxu0
        %v1304 = vadd.f32 %v1215, %v1303
        %v1305 = vpop.f32.mrf.mxu0
        %v1306 = vadd.f32 %v1217, %v1305
        %1307 = vmatmul.bf16.gmra.mxu0 %v791
        %v1308 = vpop.f32.mrf.mxu0
        %v1309 = vadd.f32 %v1220, %v1308
        %v1310 = vpop.f32.mrf.mxu0
        %v1311 = vadd.f32 %v1222, %v1310
        %1312 = vmatmul.bf16.gmra.mxu0 %v793
        %v1313 = vpop.f32.mrf.mxu0
        %v1314 = vadd.f32 %v1225, %v1313
        %v1315 = vpop.f32.mrf.mxu0
        %v1316 = vadd.f32 %v1227, %v1315
        %1317 = vmatmul.bf16.gmra.mxu0 %v795
        %v1318 = vpop.f32.mrf.mxu0
        %v1319 = vadd.f32 %v1230, %v1318
        %v1320 = vpop.f32.mrf.mxu0
        %v1321 = vadd.f32 %v1232, %v1320
        %1322 = vmatmul.bf16.gmra.mxu0 %v797
        %v1323 = vpop.f32.mrf.mxu0
        %v1324 = vadd.f32 %v1235, %v1323
        %v1325 = vpop.f32.mrf.mxu0
        %v1326 = vadd.f32 %v1237, %v1325
        %1327 = vmatmul.bf16.gmra.mxu0 %v799
        %v1328 = vpop.f32.mrf.mxu0
        %v1329 = vadd.f32 %v1240, %v1328
        %v1330 = vpop.f32.mrf.mxu0
        %v1331 = vadd.f32 %v1242, %v1330
        %1332 = vmatmul.bf16.gmra.mxu0 %v801
        %v1333 = vpop.f32.mrf.mxu0
        %v1334 = vadd.f32 %v1245, %v1333
        %v1335 = vpop.f32.mrf.mxu0
        %v1336 = vadd.f32 %v1247, %v1335
        %1337 = vmatmul.bf16.gmra.mxu0 %v803
        %v1338 = vpop.f32.mrf.mxu0
        %v1339 = vadd.f32 %v1250, %v1338
        %v1340 = vpop.f32.mrf.mxu0
        %v1341 = vadd.f32 %v1252, %v1340
        %1342 = vmatmul.bf16.gmra.mxu0 %v805
        %v1343 = vpop.f32.mrf.mxu0
        %v1344 = vadd.f32 %v1255, %v1343
        %v1345 = vpop.f32.mrf.mxu0
        %v1346 = vadd.f32 %v1257, %v1345
        %1347 = vmatmul.bf16.gmra.mxu0 %v807
        %v1348 = vpop.f32.mrf.mxu0
        %v1349 = vadd.f32 %v1260, %v1348
        %v1350 = vpop.f32.mrf.mxu0
        %v1351 = vadd.f32 %v1262, %v1350
        %1352 = vmatmul.bf16.gmra.mxu0 %v809
        %v1353 = vpop.f32.mrf.mxu0
        %v1354 = vadd.f32 %v1265, %v1353
        %v1355 = vpop.f32.mrf.mxu0
        %v1356 = vadd.f32 %v1267, %v1355
        %1357 = vmatmul.bf16.gmra.mxu0 %v811
        %v1358 = vpop.f32.mrf.mxu0
        %v1359 = vadd.f32 %v1270, %v1358
        %v1360 = vpop.f32.mrf.mxu0
        %v1361 = vadd.f32 %v1272, %v1360
        %1362 = vmatmul.bf16.gmra.mxu0 %v813
        %v1363 = vpop.f32.mrf.mxu0
        %v1364 = vadd.f32 %v1275, %v1363
        %v1365 = vpop.f32.mrf.mxu0
        %v1366 = vadd.f32 %v1277, %v1365
        %1367 = vdwg.mxu0
        %v1368 = vmax.f32 %v1111, 0.0
        %v1369 = vmax.f32 %v1289, 0.0
        %v1370 = vmax.f32 %v1113, 0.0
        %v1371 = vmax.f32 %v1291, 0.0
        %v1372 = vmax.f32 %v1116, 0.0
        %v1373 = vmax.f32 %v1294, 0.0
        %v1374 = vmax.f32 %v1118, 0.0
        %v1375 = vmax.f32 %v1296, 0.0
        %v1376 = vmax.f32 %v1121, 0.0
        %v1377 = vmax.f32 %v1299, 0.0
        %v1378 = vmax.f32 %v1123, 0.0
        %v1379 = vmax.f32 %v1301, 0.0
        %v1380 = vmax.f32 %v1126, 0.0
        %v1381 = vmax.f32 %v1304, 0.0
        %v1382 = vmax.f32 %v1128, 0.0
        %v1383 = vmax.f32 %v1306, 0.0
        %v1384 = vmax.f32 %v1131, 0.0
        %v1385 = vmax.f32 %v1309, 0.0
        %v1386 = vmax.f32 %v1133, 0.0
        %v1387 = vmax.f32 %v1311, 0.0
        %v1388 = vmax.f32 %v1136, 0.0
        %v1389 = vmax.f32 %v1314, 0.0
        %v1390 = vmax.f32 %v1138, 0.0
        %v1391 = vmax.f32 %v1316, 0.0
        %v1392 = vmax.f32 %v1141, 0.0
        %v1393 = vmax.f32 %v1319, 0.0
        %v1394 = vmax.f32 %v1143, 0.0
        %v1395 = vmax.f32 %v1321, 0.0
        %v1396 = vmax.f32 %v1146, 0.0
        %v1397 = vmax.f32 %v1324, 0.0
        %v1398 = vmax.f32 %v1148, 0.0
        %v1399 = vmax.f32 %v1326, 0.0
        %v1400 = vmax.f32 %v1151, 0.0
        %v1401 = vmax.f32 %v1329, 0.0
        %v1402 = vmax.f32 %v1153, 0.0
        %v1403 = vmax.f32 %v1331, 0.0
        %v1404 = vmax.f32 %v1156, 0.0
        %v1405 = vmax.f32 %v1334, 0.0
        %v1406 = vmax.f32 %v1158, 0.0
        %v1407 = vmax.f32 %v1336, 0.0
        %v1408 = vmax.f32 %v1161, 0.0
        %v1409 = vmax.f32 %v1339, 0.0
        %v1410 = vmax.f32 %v1163, 0.0
        %v1411 = vmax.f32 %v1341, 0.0
        %v1412 = vmax.f32 %v1166, 0.0
        %v1413 = vmax.f32 %v1344, 0.0
        %v1414 = vmax.f32 %v1168, 0.0
        %v1415 = vmax.f32 %v1346, 0.0
        %v1416 = vmax.f32 %v1171, 0.0
        %v1417 = vmax.f32 %v1349, 0.0
        %v1418 = vmax.f32 %v1173, 0.0
        %v1419 = vmax.f32 %v1351, 0.0
        %v1420 = vmax.f32 %v1176, 0.0
        %v1421 = vmax.f32 %v1354, 0.0
        %v1422 = vmax.f32 %v1178, 0.0
        %v1423 = vmax.f32 %v1356, 0.0
        %v1424 = vmax.f32 %v1181, 0.0
        %v1425 = vmax.f32 %v1359, 0.0
        %v1426 = vmax.f32 %v1183, 0.0
        %v1427 = vmax.f32 %v1361, 0.0
        %v1428 = vmax.f32 %v1186, 0.0
        %v1429 = vmax.f32 %v1364, 0.0
        %v1430 = vmax.f32 %v1188, 0.0
        %v1431 = vmax.f32 %v1366, 0.0
        %v1432 = vpack.c.bf16 %v1370, %v1368
        %v1433 = vpack.c.bf16 %v1371, %v1369
        %v1434 = vpack.c.bf16 %v1374, %v1372
        %v1435 = vpack.c.bf16 %v1375, %v1373
        %v1436 = vpack.c.bf16 %v1378, %v1376
        %v1437 = vpack.c.bf16 %v1379, %v1377
        %v1438 = vpack.c.bf16 %v1382, %v1380
        %v1439 = vpack.c.bf16 %v1383, %v1381
        %v1440 = vpack.c.bf16 %v1386, %v1384
        %v1441 = vpack.c.bf16 %v1387, %v1385
        %v1442 = vpack.c.bf16 %v1390, %v1388
        %v1443 = vpack.c.bf16 %v1391, %v1389
        %v1444 = vpack.c.bf16 %v1394, %v1392
        %v1445 = vpack.c.bf16 %v1395, %v1393
        %v1446 = vpack.c.bf16 %v1398, %v1396
        %v1447 = vpack.c.bf16 %v1399, %v1397
        %v1448 = vpack.c.bf16 %v1402, %v1400
        %v1449 = vpack.c.bf16 %v1403, %v1401
        %v1450 = vpack.c.bf16 %v1406, %v1404
        %v1451 = vpack.c.bf16 %v1407, %v1405
        %v1452 = vpack.c.bf16 %v1410, %v1408
        %v1453 = vpack.c.bf16 %v1411, %v1409
        %v1454 = vpack.c.bf16 %v1414, %v1412
        %v1455 = vpack.c.bf16 %v1415, %v1413
        %v1456 = vpack.c.bf16 %v1418, %v1416
        %v1457 = vpack.c.bf16 %v1419, %v1417
        %v1458 = vpack.c.bf16 %v1422, %v1420
        %v1459 = vpack.c.bf16 %v1423, %v1421
        %v1460 = vpack.c.bf16 %v1426, %v1424
        %v1461 = vpack.c.bf16 %v1427, %v1425
        %v1462 = vpack.c.bf16 %v1430, %v1428
        %v1463 = vpack.c.bf16 %v1431, %v1429
        %v1464 = vld [vmem:[%s5] sm:$0xff]
        %v1465 = vld [vmem:[%s5 + $0x8] sm:$0xff]
        %v1466 = vld [vmem:[%s5 + $0x10] sm:$0xff]
        %v1467 = vld [vmem:[%s5 + $0x18] sm:$0xff]
        %v1468 = vld [vmem:[%s5 + $0x20] sm:$0xff]
        %v1469 = vld [vmem:[%s5 + $0x28] sm:$0xff]
        %v1470 = vld [vmem:[%s5 + $0x30] sm:$0xff]
        %v1471 = vld [vmem:[%s5 + $0x38] sm:$0xff]
        %v1472 = vld [vmem:[%s5 + $0x40] sm:$0xff]
        %v1473 = vld [vmem:[%s5 + $0x48] sm:$0xff]
        %v1474 = vld [vmem:[%s5 + $0x50] sm:$0xff]
        %v1475 = vld [vmem:[%s5 + $0x58] sm:$0xff]
        %v1476 = vld [vmem:[%s5 + $0x60] sm:$0xff]
        %v1477 = vld [vmem:[%s5 + $0x68] sm:$0xff]
        %v1478 = vld [vmem:[%s5 + $0x70] sm:$0xff]
        %v1479 = vld [vmem:[%s5 + $0x78] sm:$0xff]
        %v1480 = vld [vmem:[%s5 + $0x80] sm:$0xff]
        %v1481 = vld [vmem:[%s5 + $0x88] sm:$0xff]
        %v1482 = vld [vmem:[%s5 + $0x90] sm:$0xff]
        %v1483 = vld [vmem:[%s5 + $0x98] sm:$0xff]
        %v1484 = vld [vmem:[%s5 + $0xa0] sm:$0xff]
        %v1485 = vld [vmem:[%s5 + $0xa8] sm:$0xff]
        %v1486 = vld [vmem:[%s5 + $0xb0] sm:$0xff]
        %v1487 = vld [vmem:[%s5 + $0xb8] sm:$0xff]
        %v1488 = vld [vmem:[%s5 + $0xc0] sm:$0xff]
        %v1489 = vld [vmem:[%s5 + $0xc8] sm:$0xff]
        %v1490 = vld [vmem:[%s5 + $0xd0] sm:$0xff]
        %v1491 = vld [vmem:[%s5 + $0xd8] sm:$0xff]
        %v1492 = vld [vmem:[%s5 + $0xe0] sm:$0xff]
        %v1493 = vld [vmem:[%s5 + $0xe8] sm:$0xff]
        %v1494 = vld [vmem:[%s5 + $0xf0] sm:$0xff]
        %v1495 = vld [vmem:[%s5 + $0xf8] sm:$0xff]
        %v1496 = vld [vmem:[%s5 + $0x100] sm:$0xff]
        %v1497 = vld [vmem:[%s5 + $0x108] sm:$0xff]
        %v1498 = vld [vmem:[%s5 + $0x110] sm:$0xff]
        %v1499 = vld [vmem:[%s5 + $0x118] sm:$0xff]
        %v1500 = vld [vmem:[%s5 + $0x120] sm:$0xff]
        %v1501 = vld [vmem:[%s5 + $0x128] sm:$0xff]
        %v1502 = vld [vmem:[%s5 + $0x130] sm:$0xff]
        %v1503 = vld [vmem:[%s5 + $0x138] sm:$0xff]
        %v1504 = vld [vmem:[%s5 + $0x140] sm:$0xff]
        %v1505 = vld [vmem:[%s5 + $0x148] sm:$0xff]
        %v1506 = vld [vmem:[%s5 + $0x150] sm:$0xff]
        %v1507 = vld [vmem:[%s5 + $0x158] sm:$0xff]
        %v1508 = vld [vmem:[%s5 + $0x160] sm:$0xff]
        %v1509 = vld [vmem:[%s5 + $0x168] sm:$0xff]
        %v1510 = vld [vmem:[%s5 + $0x170] sm:$0xff]
        %v1511 = vld [vmem:[%s5 + $0x178] sm:$0xff]
        %v1512 = vld [vmem:[%s5 + $0x180] sm:$0xff]
        %v1513 = vld [vmem:[%s5 + $0x188] sm:$0xff]
        %v1514 = vld [vmem:[%s5 + $0x190] sm:$0xff]
        %v1515 = vld [vmem:[%s5 + $0x198] sm:$0xff]
        %v1516 = vld [vmem:[%s5 + $0x1a0] sm:$0xff]
        %v1517 = vld [vmem:[%s5 + $0x1a8] sm:$0xff]
        %v1518 = vld [vmem:[%s5 + $0x1b0] sm:$0xff]
        %v1519 = vld [vmem:[%s5 + $0x1b8] sm:$0xff]
        %v1520 = vld [vmem:[%s5 + $0x1c0] sm:$0xff]
        %v1521 = vld [vmem:[%s5 + $0x1c8] sm:$0xff]
        %v1522 = vld [vmem:[%s5 + $0x1d0] sm:$0xff]
        %v1523 = vld [vmem:[%s5 + $0x1d8] sm:$0xff]
        %v1524 = vld [vmem:[%s5 + $0x1e0] sm:$0xff]
        %v1525 = vld [vmem:[%s5 + $0x1e8] sm:$0xff]
        %v1526 = vld [vmem:[%s5 + $0x1f0] sm:$0xff]
        %v1527 = vld [vmem:[%s5 + $0x1f8] sm:$0xff]
        %v1528 = vld [vmem:[%s6] sm:$0xf]
        %v1530 = vperm.slane %v1528, 0
        %v1531 = vperm.slane %v1528, 1
        %v1532 = vperm.slane %v1528, 2
        %v1533 = vperm.slane %v1528, 3
        %v1602 = vunpack.c.l.b16 %v1464
        %v1603 = vunpack.c.h.b16 %v1464
        %v1604 = vunpack.c.l.b16 %v1465
        %v1605 = vunpack.c.h.b16 %v1465
        %v1606 = vunpack.c.l.b16 %v1466
        %v1607 = vunpack.c.h.b16 %v1466
        %v1608 = vunpack.c.l.b16 %v1467
        %v1609 = vunpack.c.h.b16 %v1467
        %v1610 = vunpack.c.l.b16 %v1468
        %v1611 = vunpack.c.h.b16 %v1468
        %v1612 = vunpack.c.l.b16 %v1469
        %v1613 = vunpack.c.h.b16 %v1469
        %v1614 = vunpack.c.l.b16 %v1470
        %v1615 = vunpack.c.h.b16 %v1470
        %v1616 = vunpack.c.l.b16 %v1471
        %v1617 = vunpack.c.h.b16 %v1471
        %v1618 = vunpack.c.l.b16 %v1472
        %v1619 = vunpack.c.h.b16 %v1472
        %v1620 = vunpack.c.l.b16 %v1473
        %v1621 = vunpack.c.h.b16 %v1473
        %v1622 = vunpack.c.l.b16 %v1474
        %v1623 = vunpack.c.h.b16 %v1474
        %v1624 = vunpack.c.l.b16 %v1475
        %v1625 = vunpack.c.h.b16 %v1475
        %v1626 = vunpack.c.l.b16 %v1476
        %v1627 = vunpack.c.h.b16 %v1476
        %v1628 = vunpack.c.l.b16 %v1477
        %v1629 = vunpack.c.h.b16 %v1477
        %v1630 = vunpack.c.l.b16 %v1478
        %v1631 = vunpack.c.h.b16 %v1478
        %v1632 = vunpack.c.l.b16 %v1479
        %v1633 = vunpack.c.h.b16 %v1479
        %v1634 = vunpack.c.l.b16 %v1480
        %v1635 = vunpack.c.h.b16 %v1480
        %v1636 = vunpack.c.l.b16 %v1481
        %v1637 = vunpack.c.h.b16 %v1481
        %v1638 = vunpack.c.l.b16 %v1482
        %v1639 = vunpack.c.h.b16 %v1482
        %v1640 = vunpack.c.l.b16 %v1483
        %v1641 = vunpack.c.h.b16 %v1483
        %v1642 = vunpack.c.l.b16 %v1484
        %v1643 = vunpack.c.h.b16 %v1484
        %v1644 = vunpack.c.l.b16 %v1485
        %v1645 = vunpack.c.h.b16 %v1485
        %v1646 = vunpack.c.l.b16 %v1486
        %v1647 = vunpack.c.h.b16 %v1486
        %v1648 = vunpack.c.l.b16 %v1487
        %v1649 = vunpack.c.h.b16 %v1487
        %v1650 = vunpack.c.l.b16 %v1488
        %v1651 = vunpack.c.h.b16 %v1488
        %v1652 = vunpack.c.l.b16 %v1489
        %v1653 = vunpack.c.h.b16 %v1489
        %v1654 = vunpack.c.l.b16 %v1490
        %v1655 = vunpack.c.h.b16 %v1490
        %v1656 = vunpack.c.l.b16 %v1491
        %v1657 = vunpack.c.h.b16 %v1491
        %v1658 = vunpack.c.l.b16 %v1492
        %v1659 = vunpack.c.h.b16 %v1492
        %v1660 = vunpack.c.l.b16 %v1493
        %v1661 = vunpack.c.h.b16 %v1493
        %v1662 = vunpack.c.l.b16 %v1494
        %v1663 = vunpack.c.h.b16 %v1494
        %v1664 = vunpack.c.l.b16 %v1495
        %v1665 = vunpack.c.h.b16 %v1495
        %v1666 = vunpack.c.l.b16 %v1496
        %v1667 = vunpack.c.h.b16 %v1496
        %v1668 = vunpack.c.l.b16 %v1497
        %v1669 = vunpack.c.h.b16 %v1497
        %v1670 = vunpack.c.l.b16 %v1498
        %v1671 = vunpack.c.h.b16 %v1498
        %v1672 = vunpack.c.l.b16 %v1499
        %v1673 = vunpack.c.h.b16 %v1499
        %v1674 = vunpack.c.l.b16 %v1500
        %v1675 = vunpack.c.h.b16 %v1500
        %v1676 = vunpack.c.l.b16 %v1501
        %v1677 = vunpack.c.h.b16 %v1501
        %v1678 = vunpack.c.l.b16 %v1502
        %v1679 = vunpack.c.h.b16 %v1502
        %v1680 = vunpack.c.l.b16 %v1503
        %v1681 = vunpack.c.h.b16 %v1503
        %v1682 = vunpack.c.l.b16 %v1504
        %v1683 = vunpack.c.h.b16 %v1504
        %v1684 = vunpack.c.l.b16 %v1505
        %v1685 = vunpack.c.h.b16 %v1505
        %v1686 = vunpack.c.l.b16 %v1506
        %v1687 = vunpack.c.h.b16 %v1506
        %v1688 = vunpack.c.l.b16 %v1507
        %v1689 = vunpack.c.h.b16 %v1507
        %v1690 = vunpack.c.l.b16 %v1508
        %v1691 = vunpack.c.h.b16 %v1508
        %v1692 = vunpack.c.l.b16 %v1509
        %v1693 = vunpack.c.h.b16 %v1509
        %v1694 = vunpack.c.l.b16 %v1510
        %v1695 = vunpack.c.h.b16 %v1510
        %v1696 = vunpack.c.l.b16 %v1511
        %v1697 = vunpack.c.h.b16 %v1511
        %v1698 = vunpack.c.l.b16 %v1512
        %v1699 = vunpack.c.h.b16 %v1512
        %v1700 = vunpack.c.l.b16 %v1513
        %v1701 = vunpack.c.h.b16 %v1513
        %v1702 = vunpack.c.l.b16 %v1514
        %v1703 = vunpack.c.h.b16 %v1514
        %v1704 = vunpack.c.l.b16 %v1515
        %v1705 = vunpack.c.h.b16 %v1515
        %v1706 = vunpack.c.l.b16 %v1516
        %v1707 = vunpack.c.h.b16 %v1516
        %v1708 = vunpack.c.l.b16 %v1517
        %v1709 = vunpack.c.h.b16 %v1517
        %v1710 = vunpack.c.l.b16 %v1518
        %v1711 = vunpack.c.h.b16 %v1518
        %v1712 = vunpack.c.l.b16 %v1519
        %v1713 = vunpack.c.h.b16 %v1519
        %v1714 = vunpack.c.l.b16 %v1520
        %v1715 = vunpack.c.h.b16 %v1520
        %v1716 = vunpack.c.l.b16 %v1521
        %v1717 = vunpack.c.h.b16 %v1521
        %v1718 = vunpack.c.l.b16 %v1522
        %v1719 = vunpack.c.h.b16 %v1522
        %v1720 = vunpack.c.l.b16 %v1523
        %v1721 = vunpack.c.h.b16 %v1523
        %v1722 = vunpack.c.l.b16 %v1524
        %v1723 = vunpack.c.h.b16 %v1524
        %v1724 = vunpack.c.l.b16 %v1525
        %v1725 = vunpack.c.h.b16 %v1525
        %v1726 = vunpack.c.l.b16 %v1526
        %v1727 = vunpack.c.h.b16 %v1526
        %v1728 = vunpack.c.l.b16 %v1527
        %v1729 = vunpack.c.h.b16 %v1527
        %v1730 = vpack.c.b16 %v1606, %v1602
        %v1731 = vpack.c.b16 %v1607, %v1603
        %v1732 = vpack.c.b16 %v1608, %v1604
        %v1733 = vpack.c.b16 %v1609, %v1605
        %v1734 = vpack.c.b16 %v1614, %v1610
        %v1735 = vpack.c.b16 %v1615, %v1611
        %v1736 = vpack.c.b16 %v1616, %v1612
        %v1737 = vpack.c.b16 %v1617, %v1613
        %v1738 = vpack.c.b16 %v1622, %v1618
        %v1739 = vpack.c.b16 %v1623, %v1619
        %v1740 = vpack.c.b16 %v1624, %v1620
        %v1741 = vpack.c.b16 %v1625, %v1621
        %v1742 = vpack.c.b16 %v1630, %v1626
        %v1743 = vpack.c.b16 %v1631, %v1627
        %v1744 = vpack.c.b16 %v1632, %v1628
        %v1745 = vpack.c.b16 %v1633, %v1629
        %v1746 = vpack.c.b16 %v1638, %v1634
        %v1747 = vpack.c.b16 %v1639, %v1635
        %v1748 = vpack.c.b16 %v1640, %v1636
        %v1749 = vpack.c.b16 %v1641, %v1637
        %v1750 = vpack.c.b16 %v1646, %v1642
        %v1751 = vpack.c.b16 %v1647, %v1643
        %v1752 = vpack.c.b16 %v1648, %v1644
        %v1753 = vpack.c.b16 %v1649, %v1645
        %v1754 = vpack.c.b16 %v1654, %v1650
        %v1755 = vpack.c.b16 %v1655, %v1651
        %v1756 = vpack.c.b16 %v1656, %v1652
        %v1757 = vpack.c.b16 %v1657, %v1653
        %v1758 = vpack.c.b16 %v1662, %v1658
        %v1759 = vpack.c.b16 %v1663, %v1659
        %v1760 = vpack.c.b16 %v1664, %v1660
        %v1761 = vpack.c.b16 %v1665, %v1661
        %v1762 = vpack.c.b16 %v1670, %v1666
        %v1763 = vpack.c.b16 %v1671, %v1667
        %v1764 = vpack.c.b16 %v1672, %v1668
        %v1765 = vpack.c.b16 %v1673, %v1669
        %v1766 = vpack.c.b16 %v1678, %v1674
        %v1767 = vpack.c.b16 %v1679, %v1675
        %v1768 = vpack.c.b16 %v1680, %v1676
        %v1769 = vpack.c.b16 %v1681, %v1677
        %v1770 = vpack.c.b16 %v1686, %v1682
        %v1771 = vpack.c.b16 %v1687, %v1683
        %v1772 = vpack.c.b16 %v1688, %v1684
        %v1773 = vpack.c.b16 %v1689, %v1685
        %v1774 = vpack.c.b16 %v1694, %v1690
        %v1775 = vpack.c.b16 %v1695, %v1691
        %v1776 = vpack.c.b16 %v1696, %v1692
        %v1777 = vpack.c.b16 %v1697, %v1693
        %v1778 = vpack.c.b16 %v1702, %v1698
        %v1779 = vpack.c.b16 %v1703, %v1699
        %v1780 = vpack.c.b16 %v1704, %v1700
        %v1781 = vpack.c.b16 %v1705, %v1701
        %v1782 = vpack.c.b16 %v1710, %v1706
        %v1783 = vpack.c.b16 %v1711, %v1707
        %v1784 = vpack.c.b16 %v1712, %v1708
        %v1785 = vpack.c.b16 %v1713, %v1709
        %v1786 = vpack.c.b16 %v1718, %v1714
        %v1787 = vpack.c.b16 %v1719, %v1715
        %v1788 = vpack.c.b16 %v1720, %v1716
        %v1789 = vpack.c.b16 %v1721, %v1717
        %v1790 = vpack.c.b16 %v1726, %v1722
        %v1791 = vpack.c.b16 %v1727, %v1723
        %v1792 = vpack.c.b16 %v1728, %v1724
        %v1793 = vpack.c.b16 %v1729, %v1725
        %1858 = vmatpush.bf16.msra.mxu0 %v1758
        %1859 = vmatpush.bf16.msra.mxu0 %v1754
        %1860 = vmatpush.bf16.msra.mxu0 %v1750
        %1861 = vmatpush.bf16.msra.mxu0 %v1746
        %1862 = vmatpush.bf16.msra.mxu0 %v1742
        %1863 = vmatpush.bf16.msra.mxu0 %v1738
        %1864 = vmatpush.bf16.msra.mxu0 %v1734
        %1865 = vmatpush.bf16.msra.mxu0 %v1730
        %1866 = vmatmul.bf16.gmra.mxu0 %v1432
        %v1867 = vpop.f32.mrf.mxu0
        %v1868 = vadd.f32 %v1530, %v1867
        %v1869 = vpop.f32.mrf.mxu0
        %v1870 = vadd.f32 %v1530, %v1869
        %1871 = vmatmul.bf16.gmra.mxu0 %v1434
        %v1872 = vpop.f32.mrf.mxu0
        %v1873 = vadd.f32 %v1530, %v1872
        %v1874 = vpop.f32.mrf.mxu0
        %v1875 = vadd.f32 %v1530, %v1874
        %1876 = vmatmul.bf16.gmra.mxu0 %v1436
        %v1877 = vpop.f32.mrf.mxu0
        %v1878 = vadd.f32 %v1530, %v1877
        %v1879 = vpop.f32.mrf.mxu0
        %v1880 = vadd.f32 %v1530, %v1879
        %1881 = vmatmul.bf16.gmra.mxu0 %v1438
        %v1882 = vpop.f32.mrf.mxu0
        %v1883 = vadd.f32 %v1530, %v1882
        %v1884 = vpop.f32.mrf.mxu0
        %v1885 = vadd.f32 %v1530, %v1884
        %1886 = vmatmul.bf16.gmra.mxu0 %v1440
        %v1887 = vpop.f32.mrf.mxu0
        %v1888 = vadd.f32 %v1530, %v1887
        %v1889 = vpop.f32.mrf.mxu0
        %v1890 = vadd.f32 %v1530, %v1889
        %1891 = vmatmul.bf16.gmra.mxu0 %v1442
        %v1892 = vpop.f32.mrf.mxu0
        %v1893 = vadd.f32 %v1530, %v1892
        %v1894 = vpop.f32.mrf.mxu0
        %v1895 = vadd.f32 %v1530, %v1894
        %1896 = vmatmul.bf16.gmra.mxu0 %v1444
        %v1897 = vpop.f32.mrf.mxu0
        %v1898 = vadd.f32 %v1530, %v1897
        %v1899 = vpop.f32.mrf.mxu0
        %v1900 = vadd.f32 %v1530, %v1899
        %1901 = vmatmul.bf16.gmra.mxu0 %v1446
        %v1902 = vpop.f32.mrf.mxu0
        %v1903 = vadd.f32 %v1530, %v1902
        %v1904 = vpop.f32.mrf.mxu0
        %v1905 = vadd.f32 %v1530, %v1904
        %1906 = vmatmul.bf16.gmra.mxu0 %v1448
        %v1907 = vpop.f32.mrf.mxu0
        %v1908 = vadd.f32 %v1530, %v1907
        %v1909 = vpop.f32.mrf.mxu0
        %v1910 = vadd.f32 %v1530, %v1909
        %1911 = vmatmul.bf16.gmra.mxu0 %v1450
        %v1912 = vpop.f32.mrf.mxu0
        %v1913 = vadd.f32 %v1530, %v1912
        %v1914 = vpop.f32.mrf.mxu0
        %v1915 = vadd.f32 %v1530, %v1914
        %1916 = vmatmul.bf16.gmra.mxu0 %v1452
        %v1917 = vpop.f32.mrf.mxu0
        %v1918 = vadd.f32 %v1530, %v1917
        %v1919 = vpop.f32.mrf.mxu0
        %v1920 = vadd.f32 %v1530, %v1919
        %1921 = vmatmul.bf16.gmra.mxu0 %v1454
        %v1922 = vpop.f32.mrf.mxu0
        %v1923 = vadd.f32 %v1530, %v1922
        %v1924 = vpop.f32.mrf.mxu0
        %v1925 = vadd.f32 %v1530, %v1924
        %1926 = vmatmul.bf16.gmra.mxu0 %v1456
        %v1927 = vpop.f32.mrf.mxu0
        %v1928 = vadd.f32 %v1530, %v1927
        %v1929 = vpop.f32.mrf.mxu0
        %v1930 = vadd.f32 %v1530, %v1929
        %1931 = vmatmul.bf16.gmra.mxu0 %v1458
        %v1932 = vpop.f32.mrf.mxu0
        %v1933 = vadd.f32 %v1530, %v1932
        %v1934 = vpop.f32.mrf.mxu0
        %v1935 = vadd.f32 %v1530, %v1934
        %1936 = vmatmul.bf16.gmra.mxu0 %v1460
        %v1937 = vpop.f32.mrf.mxu0
        %v1938 = vadd.f32 %v1530, %v1937
        %v1939 = vpop.f32.mrf.mxu0
        %v1940 = vadd.f32 %v1530, %v1939
        %1941 = vmatmul.bf16.gmra.mxu0 %v1462
        %v1942 = vpop.f32.mrf.mxu0
        %v1943 = vadd.f32 %v1530, %v1942
        %v1944 = vpop.f32.mrf.mxu0
        %v1945 = vadd.f32 %v1530, %v1944
        %1946 = vdwg.mxu0
        %1947 = vmatpush.bf16.msra.mxu0 %v1790
        %1948 = vmatpush.bf16.msra.mxu0 %v1786
        %1949 = vmatpush.bf16.msra.mxu0 %v1782
        %1950 = vmatpush.bf16.msra.mxu0 %v1778
        %1951 = vmatpush.bf16.msra.mxu0 %v1774
        %1952 = vmatpush.bf16.msra.mxu0 %v1770
        %1953 = vmatpush.bf16.msra.mxu0 %v1766
        %1954 = vmatpush.bf16.msra.mxu0 %v1762
        %1955 = vmatmul.bf16.gmra.mxu0 %v1433
        %v1956 = vpop.f32.mrf.mxu0
        %v1957 = vadd.f32 %v1868, %v1956
        %v1958 = vpop.f32.mrf.mxu0
        %v1959 = vadd.f32 %v1870, %v1958
        %1960 = vmatmul.bf16.gmra.mxu0 %v1435
        %v1961 = vpop.f32.mrf.mxu0
        %v1962 = vadd.f32 %v1873, %v1961
        %v1963 = vpop.f32.mrf.mxu0
        %v1964 = vadd.f32 %v1875, %v1963
        %1965 = vmatmul.bf16.gmra.mxu0 %v1437
        %v1966 = vpop.f32.mrf.mxu0
        %v1967 = vadd.f32 %v1878, %v1966
        %v1968 = vpop.f32.mrf.mxu0
        %v1969 = vadd.f32 %v1880, %v1968
        %1970 = vmatmul.bf16.gmra.mxu0 %v1439
        %v1971 = vpop.f32.mrf.mxu0
        %v1972 = vadd.f32 %v1883, %v1971
        %v1973 = vpop.f32.mrf.mxu0
        %v1974 = vadd.f32 %v1885, %v1973
        %1975 = vmatmul.bf16.gmra.mxu0 %v1441
        %v1976 = vpop.f32.mrf.mxu0
        %v1977 = vadd.f32 %v1888, %v1976
        %v1978 = vpop.f32.mrf.mxu0
        %v1979 = vadd.f32 %v1890, %v1978
        %1980 = vmatmul.bf16.gmra.mxu0 %v1443
        %v1981 = vpop.f32.mrf.mxu0
        %v1982 = vadd.f32 %v1893, %v1981
        %v1983 = vpop.f32.mrf.mxu0
        %v1984 = vadd.f32 %v1895, %v1983
        %1985 = vmatmul.bf16.gmra.mxu0 %v1445
        %v1986 = vpop.f32.mrf.mxu0
        %v1987 = vadd.f32 %v1898, %v1986
        %v1988 = vpop.f32.mrf.mxu0
        %v1989 = vadd.f32 %v1900, %v1988
        %1990 = vmatmul.bf16.gmra.mxu0 %v1447
        %v1991 = vpop.f32.mrf.mxu0
        %v1992 = vadd.f32 %v1903, %v1991
        %v1993 = vpop.f32.mrf.mxu0
        %v1994 = vadd.f32 %v1905, %v1993
        %1995 = vmatmul.bf16.gmra.mxu0 %v1449
        %v1996 = vpop.f32.mrf.mxu0
        %v1997 = vadd.f32 %v1908, %v1996
        %v1998 = vpop.f32.mrf.mxu0
        %v1999 = vadd.f32 %v1910, %v1998
        %2000 = vmatmul.bf16.gmra.mxu0 %v1451
        %v2001 = vpop.f32.mrf.mxu0
        %v2002 = vadd.f32 %v1913, %v2001
        %v2003 = vpop.f32.mrf.mxu0
        %v2004 = vadd.f32 %v1915, %v2003
        %2005 = vmatmul.bf16.gmra.mxu0 %v1453
        %v2006 = vpop.f32.mrf.mxu0
        %v2007 = vadd.f32 %v1918, %v2006
        %v2008 = vpop.f32.mrf.mxu0
        %v2009 = vadd.f32 %v1920, %v2008
        %2010 = vmatmul.bf16.gmra.mxu0 %v1455
        %v2011 = vpop.f32.mrf.mxu0
        %v2012 = vadd.f32 %v1923, %v2011
        %v2013 = vpop.f32.mrf.mxu0
        %v2014 = vadd.f32 %v1925, %v2013
        %2015 = vmatmul.bf16.gmra.mxu0 %v1457
        %v2016 = vpop.f32.mrf.mxu0
        %v2017 = vadd.f32 %v1928, %v2016
        %v2018 = vpop.f32.mrf.mxu0
        %v2019 = vadd.f32 %v1930, %v2018
        %2020 = vmatmul.bf16.gmra.mxu0 %v1459
        %v2021 = vpop.f32.mrf.mxu0
        %v2022 = vadd.f32 %v1933, %v2021
        %v2023 = vpop.f32.mrf.mxu0
        %v2024 = vadd.f32 %v1935, %v2023
        %2025 = vmatmul.bf16.gmra.mxu0 %v1461
        %v2026 = vpop.f32.mrf.mxu0
        %v2027 = vadd.f32 %v1938, %v2026
        %v2028 = vpop.f32.mrf.mxu0
        %v2029 = vadd.f32 %v1940, %v2028
        %2030 = vmatmul.bf16.gmra.mxu0 %v1463
        %v2031 = vpop.f32.mrf.mxu0
        %v2032 = vadd.f32 %v1943, %v2031
        %v2033 = vpop.f32.mrf.mxu0
        %v2034 = vadd.f32 %v1945, %v2033
        %2035 = vdwg.mxu0
        %2036 = vmatpush.bf16.msra.mxu0 %v1759
        %2037 = vmatpush.bf16.msra.mxu0 %v1755
        %2038 = vmatpush.bf16.msra.mxu0 %v1751
        %2039 = vmatpush.bf16.msra.mxu0 %v1747
        %2040 = vmatpush.bf16.msra.mxu0 %v1743
        %2041 = vmatpush.bf16.msra.mxu0 %v1739
        %2042 = vmatpush.bf16.msra.mxu0 %v1735
        %2043 = vmatpush.bf16.msra.mxu0 %v1731
        %2044 = vmatmul.bf16.gmra.mxu0 %v1432
        %v2045 = vpop.f32.mrf.mxu0
        %v2046 = vadd.f32 %v1531, %v2045
        %v2047 = vpop.f32.mrf.mxu0
        %v2048 = vadd.f32 %v1531, %v2047
        %2049 = vmatmul.bf16.gmra.mxu0 %v1434
        %v2050 = vpop.f32.mrf.mxu0
        %v2051 = vadd.f32 %v1531, %v2050
        %v2052 = vpop.f32.mrf.mxu0
        %v2053 = vadd.f32 %v1531, %v2052
        %2054 = vmatmul.bf16.gmra.mxu0 %v1436
        %v2055 = vpop.f32.mrf.mxu0
        %v2056 = vadd.f32 %v1531, %v2055
        %v2057 = vpop.f32.mrf.mxu0
        %v2058 = vadd.f32 %v1531, %v2057
        %2059 = vmatmul.bf16.gmra.mxu0 %v1438
        %v2060 = vpop.f32.mrf.mxu0
        %v2061 = vadd.f32 %v1531, %v2060
        %v2062 = vpop.f32.mrf.mxu0
        %v2063 = vadd.f32 %v1531, %v2062
        %2064 = vmatmul.bf16.gmra.mxu0 %v1440
        %v2065 = vpop.f32.mrf.mxu0
        %v2066 = vadd.f32 %v1531, %v2065
        %v2067 = vpop.f32.mrf.mxu0
        %v2068 = vadd.f32 %v1531, %v2067
        %2069 = vmatmul.bf16.gmra.mxu0 %v1442
        %v2070 = vpop.f32.mrf.mxu0
        %v2071 = vadd.f32 %v1531, %v2070
        %v2072 = vpop.f32.mrf.mxu0
        %v2073 = vadd.f32 %v1531, %v2072
        %2074 = vmatmul.bf16.gmra.mxu0 %v1444
        %v2075 = vpop.f32.mrf.mxu0
        %v2076 = vadd.f32 %v1531, %v2075
        %v2077 = vpop.f32.mrf.mxu0
        %v2078 = vadd.f32 %v1531, %v2077
        %2079 = vmatmul.bf16.gmra.mxu0 %v1446
        %v2080 = vpop.f32.mrf.mxu0
        %v2081 = vadd.f32 %v1531, %v2080
        %v2082 = vpop.f32.mrf.mxu0
        %v2083 = vadd.f32 %v1531, %v2082
        %2084 = vmatmul.bf16.gmra.mxu0 %v1448
        %v2085 = vpop.f32.mrf.mxu0
        %v2086 = vadd.f32 %v1531, %v2085
        %v2087 = vpop.f32.mrf.mxu0
        %v2088 = vadd.f32 %v1531, %v2087
        %2089 = vmatmul.bf16.gmra.mxu0 %v1450
        %v2090 = vpop.f32.mrf.mxu0
        %v2091 = vadd.f32 %v1531, %v2090
        %v2092 = vpop.f32.mrf.mxu0
        %v2093 = vadd.f32 %v1531, %v2092
        %2094 = vmatmul.bf16.gmra.mxu0 %v1452
        %v2095 = vpop.f32.mrf.mxu0
        %v2096 = vadd.f32 %v1531, %v2095
        %v2097 = vpop.f32.mrf.mxu0
        %v2098 = vadd.f32 %v1531, %v2097
        %2099 = vmatmul.bf16.gmra.mxu0 %v1454
        %v2100 = vpop.f32.mrf.mxu0
        %v2101 = vadd.f32 %v1531, %v2100
        %v2102 = vpop.f32.mrf.mxu0
        %v2103 = vadd.f32 %v1531, %v2102
        %2104 = vmatmul.bf16.gmra.mxu0 %v1456
        %v2105 = vpop.f32.mrf.mxu0
        %v2106 = vadd.f32 %v1531, %v2105
        %v2107 = vpop.f32.mrf.mxu0
        %v2108 = vadd.f32 %v1531, %v2107
        %2109 = vmatmul.bf16.gmra.mxu0 %v1458
        %v2110 = vpop.f32.mrf.mxu0
        %v2111 = vadd.f32 %v1531, %v2110
        %v2112 = vpop.f32.mrf.mxu0
        %v2113 = vadd.f32 %v1531, %v2112
        %2114 = vmatmul.bf16.gmra.mxu0 %v1460
        %v2115 = vpop.f32.mrf.mxu0
        %v2116 = vadd.f32 %v1531, %v2115
        %v2117 = vpop.f32.mrf.mxu0
        %v2118 = vadd.f32 %v1531, %v2117
        %2119 = vmatmul.bf16.gmra.mxu0 %v1462
        %v2120 = vpop.f32.mrf.mxu0
        %v2121 = vadd.f32 %v1531, %v2120
        %v2122 = vpop.f32.mrf.mxu0
        %v2123 = vadd.f32 %v1531, %v2122
        %2124 = vdwg.mxu0
        %2125 = vmatpush.bf16.msra.mxu0 %v1791
        %2126 = vmatpush.bf16.msra.mxu0 %v1787
        %2127 = vmatpush.bf16.msra.mxu0 %v1783
        %2128 = vmatpush.bf16.msra.mxu0 %v1779
        %2129 = vmatpush.bf16.msra.mxu0 %v1775
        %2130 = vmatpush.bf16.msra.mxu0 %v1771
        %2131 = vmatpush.bf16.msra.mxu0 %v1767
        %2132 = vmatpush.bf16.msra.mxu0 %v1763
        %2133 = vmatmul.bf16.gmra.mxu0 %v1433
        %v2134 = vpop.f32.mrf.mxu0
        %v2135 = vadd.f32 %v2046, %v2134
        %v2136 = vpop.f32.mrf.mxu0
        %v2137 = vadd.f32 %v2048, %v2136
        %2138 = vmatmul.bf16.gmra.mxu0 %v1435
        %v2139 = vpop.f32.mrf.mxu0
        %v2140 = vadd.f32 %v2051, %v2139
        %v2141 = vpop.f32.mrf.mxu0
        %v2142 = vadd.f32 %v2053, %v2141
        %2143 = vmatmul.bf16.gmra.mxu0 %v1437
        %v2144 = vpop.f32.mrf.mxu0
        %v2145 = vadd.f32 %v2056, %v2144
        %v2146 = vpop.f32.mrf.mxu0
        %v2147 = vadd.f32 %v2058, %v2146
        %2148 = vmatmul.bf16.gmra.mxu0 %v1439
        %v2149 = vpop.f32.mrf.mxu0
        %v2150 = vadd.f32 %v2061, %v2149
        %v2151 = vpop.f32.mrf.mxu0
        %v2152 = vadd.f32 %v2063, %v2151
        %2153 = vmatmul.bf16.gmra.mxu0 %v1441
        %v2154 = vpop.f32.mrf.mxu0
        %v2155 = vadd.f32 %v2066, %v2154
        %v2156 = vpop.f32.mrf.mxu0
        %v2157 = vadd.f32 %v2068, %v2156
        %2158 = vmatmul.bf16.gmra.mxu0 %v1443
        %v2159 = vpop.f32.mrf.mxu0
        %v2160 = vadd.f32 %v2071, %v2159
        %v2161 = vpop.f32.mrf.mxu0
        %v2162 = vadd.f32 %v2073, %v2161
        %2163 = vmatmul.bf16.gmra.mxu0 %v1445
        %v2164 = vpop.f32.mrf.mxu0
        %v2165 = vadd.f32 %v2076, %v2164
        %v2166 = vpop.f32.mrf.mxu0
        %v2167 = vadd.f32 %v2078, %v2166
        %2168 = vmatmul.bf16.gmra.mxu0 %v1447
        %v2169 = vpop.f32.mrf.mxu0
        %v2170 = vadd.f32 %v2081, %v2169
        %v2171 = vpop.f32.mrf.mxu0
        %v2172 = vadd.f32 %v2083, %v2171
        %2173 = vmatmul.bf16.gmra.mxu0 %v1449
        %v2174 = vpop.f32.mrf.mxu0
        %v2175 = vadd.f32 %v2086, %v2174
        %v2176 = vpop.f32.mrf.mxu0
        %v2177 = vadd.f32 %v2088, %v2176
        %2178 = vmatmul.bf16.gmra.mxu0 %v1451
        %v2179 = vpop.f32.mrf.mxu0
        %v2180 = vadd.f32 %v2091, %v2179
        %v2181 = vpop.f32.mrf.mxu0
        %v2182 = vadd.f32 %v2093, %v2181
        %2183 = vmatmul.bf16.gmra.mxu0 %v1453
        %v2184 = vpop.f32.mrf.mxu0
        %v2185 = vadd.f32 %v2096, %v2184
        %v2186 = vpop.f32.mrf.mxu0
        %v2187 = vadd.f32 %v2098, %v2186
        %2188 = vmatmul.bf16.gmra.mxu0 %v1455
        %v2189 = vpop.f32.mrf.mxu0
        %v2190 = vadd.f32 %v2101, %v2189
        %v2191 = vpop.f32.mrf.mxu0
        %v2192 = vadd.f32 %v2103, %v2191
        %2193 = vmatmul.bf16.gmra.mxu0 %v1457
        %v2194 = vpop.f32.mrf.mxu0
        %v2195 = vadd.f32 %v2106, %v2194
        %v2196 = vpop.f32.mrf.mxu0
        %v2197 = vadd.f32 %v2108, %v2196
        %2198 = vmatmul.bf16.gmra.mxu0 %v1459
        %v2199 = vpop.f32.mrf.mxu0
        %v2200 = vadd.f32 %v2111, %v2199
        %v2201 = vpop.f32.mrf.mxu0
        %v2202 = vadd.f32 %v2113, %v2201
        %2203 = vmatmul.bf16.gmra.mxu0 %v1461
        %v2204 = vpop.f32.mrf.mxu0
        %v2205 = vadd.f32 %v2116, %v2204
        %v2206 = vpop.f32.mrf.mxu0
        %v2207 = vadd.f32 %v2118, %v2206
        %2208 = vmatmul.bf16.gmra.mxu0 %v1463
        %v2209 = vpop.f32.mrf.mxu0
        %v2210 = vadd.f32 %v2121, %v2209
        %v2211 = vpop.f32.mrf.mxu0
        %v2212 = vadd.f32 %v2123, %v2211
        %2213 = vdwg.mxu0
        %2214 = vmatpush.bf16.msra.mxu0 %v1760
        %2215 = vmatpush.bf16.msra.mxu0 %v1756
        %2216 = vmatpush.bf16.msra.mxu0 %v1752
        %2217 = vmatpush.bf16.msra.mxu0 %v1748
        %2218 = vmatpush.bf16.msra.mxu0 %v1744
        %2219 = vmatpush.bf16.msra.mxu0 %v1740
        %2220 = vmatpush.bf16.msra.mxu0 %v1736
        %2221 = vmatpush.bf16.msra.mxu0 %v1732
        %2222 = vmatmul.bf16.gmra.mxu0 %v1432
        %v2223 = vpop.f32.mrf.mxu0
        %v2224 = vadd.f32 %v1532, %v2223
        %v2225 = vpop.f32.mrf.mxu0
        %v2226 = vadd.f32 %v1532, %v2225
        %2227 = vmatmul.bf16.gmra.mxu0 %v1434
        %v2228 = vpop.f32.mrf.mxu0
        %v2229 = vadd.f32 %v1532, %v2228
        %v2230 = vpop.f32.mrf.mxu0
        %v2231 = vadd.f32 %v1532, %v2230
        %2232 = vmatmul.bf16.gmra.mxu0 %v1436
        %v2233 = vpop.f32.mrf.mxu0
        %v2234 = vadd.f32 %v1532, %v2233
        %v2235 = vpop.f32.mrf.mxu0
        %v2236 = vadd.f32 %v1532, %v2235
        %2237 = vmatmul.bf16.gmra.mxu0 %v1438
        %v2238 = vpop.f32.mrf.mxu0
        %v2239 = vadd.f32 %v1532, %v2238
        %v2240 = vpop.f32.mrf.mxu0
        %v2241 = vadd.f32 %v1532, %v2240
        %2242 = vmatmul.bf16.gmra.mxu0 %v1440
        %v2243 = vpop.f32.mrf.mxu0
        %v2244 = vadd.f32 %v1532, %v2243
        %v2245 = vpop.f32.mrf.mxu0
        %v2246 = vadd.f32 %v1532, %v2245
        %2247 = vmatmul.bf16.gmra.mxu0 %v1442
        %v2248 = vpop.f32.mrf.mxu0
        %v2249 = vadd.f32 %v1532, %v2248
        %v2250 = vpop.f32.mrf.mxu0
        %v2251 = vadd.f32 %v1532, %v2250
        %2252 = vmatmul.bf16.gmra.mxu0 %v1444
        %v2253 = vpop.f32.mrf.mxu0
        %v2254 = vadd.f32 %v1532, %v2253
        %v2255 = vpop.f32.mrf.mxu0
        %v2256 = vadd.f32 %v1532, %v2255
        %2257 = vmatmul.bf16.gmra.mxu0 %v1446
        %v2258 = vpop.f32.mrf.mxu0
        %v2259 = vadd.f32 %v1532, %v2258
        %v2260 = vpop.f32.mrf.mxu0
        %v2261 = vadd.f32 %v1532, %v2260
        %2262 = vmatmul.bf16.gmra.mxu0 %v1448
        %v2263 = vpop.f32.mrf.mxu0
        %v2264 = vadd.f32 %v1532, %v2263
        %v2265 = vpop.f32.mrf.mxu0
        %v2266 = vadd.f32 %v1532, %v2265
        %2267 = vmatmul.bf16.gmra.mxu0 %v1450
        %v2268 = vpop.f32.mrf.mxu0
        %v2269 = vadd.f32 %v1532, %v2268
        %v2270 = vpop.f32.mrf.mxu0
        %v2271 = vadd.f32 %v1532, %v2270
        %2272 = vmatmul.bf16.gmra.mxu0 %v1452
        %v2273 = vpop.f32.mrf.mxu0
        %v2274 = vadd.f32 %v1532, %v2273
        %v2275 = vpop.f32.mrf.mxu0
        %v2276 = vadd.f32 %v1532, %v2275
        %2277 = vmatmul.bf16.gmra.mxu0 %v1454
        %v2278 = vpop.f32.mrf.mxu0
        %v2279 = vadd.f32 %v1532, %v2278
        %v2280 = vpop.f32.mrf.mxu0
        %v2281 = vadd.f32 %v1532, %v2280
        %2282 = vmatmul.bf16.gmra.mxu0 %v1456
        %v2283 = vpop.f32.mrf.mxu0
        %v2284 = vadd.f32 %v1532, %v2283
        %v2285 = vpop.f32.mrf.mxu0
        %v2286 = vadd.f32 %v1532, %v2285
        %2287 = vmatmul.bf16.gmra.mxu0 %v1458
        %v2288 = vpop.f32.mrf.mxu0
        %v2289 = vadd.f32 %v1532, %v2288
        %v2290 = vpop.f32.mrf.mxu0
        %v2291 = vadd.f32 %v1532, %v2290
        %2292 = vmatmul.bf16.gmra.mxu0 %v1460
        %v2293 = vpop.f32.mrf.mxu0
        %v2294 = vadd.f32 %v1532, %v2293
        %v2295 = vpop.f32.mrf.mxu0
        %v2296 = vadd.f32 %v1532, %v2295
        %2297 = vmatmul.bf16.gmra.mxu0 %v1462
        %v2298 = vpop.f32.mrf.mxu0
        %v2299 = vadd.f32 %v1532, %v2298
        %v2300 = vpop.f32.mrf.mxu0
        %v2301 = vadd.f32 %v1532, %v2300
        %2302 = vdwg.mxu0
        %2303 = vmatpush.bf16.msra.mxu0 %v1792
        %2304 = vmatpush.bf16.msra.mxu0 %v1788
        %2305 = vmatpush.bf16.msra.mxu0 %v1784
        %2306 = vmatpush.bf16.msra.mxu0 %v1780
        %2307 = vmatpush.bf16.msra.mxu0 %v1776
        %2308 = vmatpush.bf16.msra.mxu0 %v1772
        %2309 = vmatpush.bf16.msra.mxu0 %v1768
        %2310 = vmatpush.bf16.msra.mxu0 %v1764
        %2311 = vmatmul.bf16.gmra.mxu0 %v1433
        %v2312 = vpop.f32.mrf.mxu0
        %v2313 = vadd.f32 %v2224, %v2312
        %v2314 = vpop.f32.mrf.mxu0
        %v2315 = vadd.f32 %v2226, %v2314
        %2316 = vmatmul.bf16.gmra.mxu0 %v1435
        %v2317 = vpop.f32.mrf.mxu0
        %v2318 = vadd.f32 %v2229, %v2317
        %v2319 = vpop.f32.mrf.mxu0
        %v2320 = vadd.f32 %v2231, %v2319
        %2321 = vmatmul.bf16.gmra.mxu0 %v1437
        %v2322 = vpop.f32.mrf.mxu0
        %v2323 = vadd.f32 %v2234, %v2322
        %v2324 = vpop.f32.mrf.mxu0
        %v2325 = vadd.f32 %v2236, %v2324
        %2326 = vmatmul.bf16.gmra.mxu0 %v1439
        %v2327 = vpop.f32.mrf.mxu0
        %v2328 = vadd.f32 %v2239, %v2327
        %v2329 = vpop.f32.mrf.mxu0
        %v2330 = vadd.f32 %v2241, %v2329
        %2331 = vmatmul.bf16.gmra.mxu0 %v1441
        %v2332 = vpop.f32.mrf.mxu0
        %v2333 = vadd.f32 %v2244, %v2332
        %v2334 = vpop.f32.mrf.mxu0
        %v2335 = vadd.f32 %v2246, %v2334
        %2336 = vmatmul.bf16.gmra.mxu0 %v1443
        %v2337 = vpop.f32.mrf.mxu0
        %v2338 = vadd.f32 %v2249, %v2337
        %v2339 = vpop.f32.mrf.mxu0
        %v2340 = vadd.f32 %v2251, %v2339
        %2341 = vmatmul.bf16.gmra.mxu0 %v1445
        %v2342 = vpop.f32.mrf.mxu0
        %v2343 = vadd.f32 %v2254, %v2342
        %v2344 = vpop.f32.mrf.mxu0
        %v2345 = vadd.f32 %v2256, %v2344
        %2346 = vmatmul.bf16.gmra.mxu0 %v1447
        %v2347 = vpop.f32.mrf.mxu0
        %v2348 = vadd.f32 %v2259, %v2347
        %v2349 = vpop.f32.mrf.mxu0
        %v2350 = vadd.f32 %v2261, %v2349
        %2351 = vmatmul.bf16.gmra.mxu0 %v1449
        %v2352 = vpop.f32.mrf.mxu0
        %v2353 = vadd.f32 %v2264, %v2352
        %v2354 = vpop.f32.mrf.mxu0
        %v2355 = vadd.f32 %v2266, %v2354
        %2356 = vmatmul.bf16.gmra.mxu0 %v1451
        %v2357 = vpop.f32.mrf.mxu0
        %v2358 = vadd.f32 %v2269, %v2357
        %v2359 = vpop.f32.mrf.mxu0
        %v2360 = vadd.f32 %v2271, %v2359
        %2361 = vmatmul.bf16.gmra.mxu0 %v1453
        %v2362 = vpop.f32.mrf.mxu0
        %v2363 = vadd.f32 %v2274, %v2362
        %v2364 = vpop.f32.mrf.mxu0
        %v2365 = vadd.f32 %v2276, %v2364
        %2366 = vmatmul.bf16.gmra.mxu0 %v1455
        %v2367 = vpop.f32.mrf.mxu0
        %v2368 = vadd.f32 %v2279, %v2367
        %v2369 = vpop.f32.mrf.mxu0
        %v2370 = vadd.f32 %v2281, %v2369
        %2371 = vmatmul.bf16.gmra.mxu0 %v1457
        %v2372 = vpop.f32.mrf.mxu0
        %v2373 = vadd.f32 %v2284, %v2372
        %v2374 = vpop.f32.mrf.mxu0
        %v2375 = vadd.f32 %v2286, %v2374
        %2376 = vmatmul.bf16.gmra.mxu0 %v1459
        %v2377 = vpop.f32.mrf.mxu0
        %v2378 = vadd.f32 %v2289, %v2377
        %v2379 = vpop.f32.mrf.mxu0
        %v2380 = vadd.f32 %v2291, %v2379
        %2381 = vmatmul.bf16.gmra.mxu0 %v1461
        %v2382 = vpop.f32.mrf.mxu0
        %v2383 = vadd.f32 %v2294, %v2382
        %v2384 = vpop.f32.mrf.mxu0
        %v2385 = vadd.f32 %v2296, %v2384
        %2386 = vmatmul.bf16.gmra.mxu0 %v1463
        %v2387 = vpop.f32.mrf.mxu0
        %v2388 = vadd.f32 %v2299, %v2387
        %v2389 = vpop.f32.mrf.mxu0
        %v2390 = vadd.f32 %v2301, %v2389
        %2391 = vdwg.mxu0
        %2392 = vmatpush.bf16.msra.mxu0 %v1761
        %2393 = vmatpush.bf16.msra.mxu0 %v1757
        %2394 = vmatpush.bf16.msra.mxu0 %v1753
        %2395 = vmatpush.bf16.msra.mxu0 %v1749
        %2396 = vmatpush.bf16.msra.mxu0 %v1745
        %2397 = vmatpush.bf16.msra.mxu0 %v1741
        %2398 = vmatpush.bf16.msra.mxu0 %v1737
        %2399 = vmatpush.bf16.msra.mxu0 %v1733
        %2400 = vmatmul.bf16.gmra.mxu0 %v1432
        %v2401 = vpop.f32.mrf.mxu0
        %v2402 = vadd.f32 %v1533, %v2401
        %v2403 = vpop.f32.mrf.mxu0
        %v2404 = vadd.f32 %v1533, %v2403
        %2405 = vmatmul.bf16.gmra.mxu0 %v1434
        %v2406 = vpop.f32.mrf.mxu0
        %v2407 = vadd.f32 %v1533, %v2406
        %v2408 = vpop.f32.mrf.mxu0
        %v2409 = vadd.f32 %v1533, %v2408
        %2410 = vmatmul.bf16.gmra.mxu0 %v1436
        %v2411 = vpop.f32.mrf.mxu0
        %v2412 = vadd.f32 %v1533, %v2411
        %v2413 = vpop.f32.mrf.mxu0
        %v2414 = vadd.f32 %v1533, %v2413
        %2415 = vmatmul.bf16.gmra.mxu0 %v1438
        %v2416 = vpop.f32.mrf.mxu0
        %v2417 = vadd.f32 %v1533, %v2416
        %v2418 = vpop.f32.mrf.mxu0
        %v2419 = vadd.f32 %v1533, %v2418
        %2420 = vmatmul.bf16.gmra.mxu0 %v1440
        %v2421 = vpop.f32.mrf.mxu0
        %v2422 = vadd.f32 %v1533, %v2421
        %v2423 = vpop.f32.mrf.mxu0
        %v2424 = vadd.f32 %v1533, %v2423
        %2425 = vmatmul.bf16.gmra.mxu0 %v1442
        %v2426 = vpop.f32.mrf.mxu0
        %v2427 = vadd.f32 %v1533, %v2426
        %v2428 = vpop.f32.mrf.mxu0
        %v2429 = vadd.f32 %v1533, %v2428
        %2430 = vmatmul.bf16.gmra.mxu0 %v1444
        %v2431 = vpop.f32.mrf.mxu0
        %v2432 = vadd.f32 %v1533, %v2431
        %v2433 = vpop.f32.mrf.mxu0
        %v2434 = vadd.f32 %v1533, %v2433
        %2435 = vmatmul.bf16.gmra.mxu0 %v1446
        %v2436 = vpop.f32.mrf.mxu0
        %v2437 = vadd.f32 %v1533, %v2436
        %v2438 = vpop.f32.mrf.mxu0
        %v2439 = vadd.f32 %v1533, %v2438
        %2440 = vmatmul.bf16.gmra.mxu0 %v1448
        %v2441 = vpop.f32.mrf.mxu0
        %v2442 = vadd.f32 %v1533, %v2441
        %v2443 = vpop.f32.mrf.mxu0
        %v2444 = vadd.f32 %v1533, %v2443
        %2445 = vmatmul.bf16.gmra.mxu0 %v1450
        %v2446 = vpop.f32.mrf.mxu0
        %v2447 = vadd.f32 %v1533, %v2446
        %v2448 = vpop.f32.mrf.mxu0
        %v2449 = vadd.f32 %v1533, %v2448
        %2450 = vmatmul.bf16.gmra.mxu0 %v1452
        %v2451 = vpop.f32.mrf.mxu0
        %v2452 = vadd.f32 %v1533, %v2451
        %v2453 = vpop.f32.mrf.mxu0
        %v2454 = vadd.f32 %v1533, %v2453
        %2455 = vmatmul.bf16.gmra.mxu0 %v1454
        %v2456 = vpop.f32.mrf.mxu0
        %v2457 = vadd.f32 %v1533, %v2456
        %v2458 = vpop.f32.mrf.mxu0
        %v2459 = vadd.f32 %v1533, %v2458
        %2460 = vmatmul.bf16.gmra.mxu0 %v1456
        %v2461 = vpop.f32.mrf.mxu0
        %v2462 = vadd.f32 %v1533, %v2461
        %v2463 = vpop.f32.mrf.mxu0
        %v2464 = vadd.f32 %v1533, %v2463
        %2465 = vmatmul.bf16.gmra.mxu0 %v1458
        %v2466 = vpop.f32.mrf.mxu0
        %v2467 = vadd.f32 %v1533, %v2466
        %v2468 = vpop.f32.mrf.mxu0
        %v2469 = vadd.f32 %v1533, %v2468
        %2470 = vmatmul.bf16.gmra.mxu0 %v1460
        %v2471 = vpop.f32.mrf.mxu0
        %v2472 = vadd.f32 %v1533, %v2471
        %v2473 = vpop.f32.mrf.mxu0
        %v2474 = vadd.f32 %v1533, %v2473
        %2475 = vmatmul.bf16.gmra.mxu0 %v1462
        %v2476 = vpop.f32.mrf.mxu0
        %v2477 = vadd.f32 %v1533, %v2476
        %v2478 = vpop.f32.mrf.mxu0
        %v2479 = vadd.f32 %v1533, %v2478
        %2480 = vdwg.mxu0
        %2481 = vmatpush.bf16.msra.mxu0 %v1793
        %2482 = vmatpush.bf16.msra.mxu0 %v1789
        %2483 = vmatpush.bf16.msra.mxu0 %v1785
        %2484 = vmatpush.bf16.msra.mxu0 %v1781
        %2485 = vmatpush.bf16.msra.mxu0 %v1777
        %2486 = vmatpush.bf16.msra.mxu0 %v1773
        %2487 = vmatpush.bf16.msra.mxu0 %v1769
        %2488 = vmatpush.bf16.msra.mxu0 %v1765
        %2489 = vmatmul.bf16.gmra.mxu0 %v1433
        %v2490 = vpop.f32.mrf.mxu0
        %v2491 = vadd.f32 %v2402, %v2490
        %v2492 = vpop.f32.mrf.mxu0
        %v2493 = vadd.f32 %v2404, %v2492
        %2494 = vmatmul.bf16.gmra.mxu0 %v1435
        %v2495 = vpop.f32.mrf.mxu0
        %v2496 = vadd.f32 %v2407, %v2495
        %v2497 = vpop.f32.mrf.mxu0
        %v2498 = vadd.f32 %v2409, %v2497
        %2499 = vmatmul.bf16.gmra.mxu0 %v1437
        %v2500 = vpop.f32.mrf.mxu0
        %v2501 = vadd.f32 %v2412, %v2500
        %v2502 = vpop.f32.mrf.mxu0
        %v2503 = vadd.f32 %v2414, %v2502
        %2504 = vmatmul.bf16.gmra.mxu0 %v1439
        %v2505 = vpop.f32.mrf.mxu0
        %v2506 = vadd.f32 %v2417, %v2505
        %v2507 = vpop.f32.mrf.mxu0
        %v2508 = vadd.f32 %v2419, %v2507
        %2509 = vmatmul.bf16.gmra.mxu0 %v1441
        %v2510 = vpop.f32.mrf.mxu0
        %v2511 = vadd.f32 %v2422, %v2510
        %v2512 = vpop.f32.mrf.mxu0
        %v2513 = vadd.f32 %v2424, %v2512
        %2514 = vmatmul.bf16.gmra.mxu0 %v1443
        %v2515 = vpop.f32.mrf.mxu0
        %v2516 = vadd.f32 %v2427, %v2515
        %v2517 = vpop.f32.mrf.mxu0
        %v2518 = vadd.f32 %v2429, %v2517
        %2519 = vmatmul.bf16.gmra.mxu0 %v1445
        %v2520 = vpop.f32.mrf.mxu0
        %v2521 = vadd.f32 %v2432, %v2520
        %v2522 = vpop.f32.mrf.mxu0
        %v2523 = vadd.f32 %v2434, %v2522
        %2524 = vmatmul.bf16.gmra.mxu0 %v1447
        %v2525 = vpop.f32.mrf.mxu0
        %v2526 = vadd.f32 %v2437, %v2525
        %v2527 = vpop.f32.mrf.mxu0
        %v2528 = vadd.f32 %v2439, %v2527
        %2529 = vmatmul.bf16.gmra.mxu0 %v1449
        %v2530 = vpop.f32.mrf.mxu0
        %v2531 = vadd.f32 %v2442, %v2530
        %v2532 = vpop.f32.mrf.mxu0
        %v2533 = vadd.f32 %v2444, %v2532
        %2534 = vmatmul.bf16.gmra.mxu0 %v1451
        %v2535 = vpop.f32.mrf.mxu0
        %v2536 = vadd.f32 %v2447, %v2535
        %v2537 = vpop.f32.mrf.mxu0
        %v2538 = vadd.f32 %v2449, %v2537
        %2539 = vmatmul.bf16.gmra.mxu0 %v1453
        %v2540 = vpop.f32.mrf.mxu0
        %v2541 = vadd.f32 %v2452, %v2540
        %v2542 = vpop.f32.mrf.mxu0
        %v2543 = vadd.f32 %v2454, %v2542
        %2544 = vmatmul.bf16.gmra.mxu0 %v1455
        %v2545 = vpop.f32.mrf.mxu0
        %v2546 = vadd.f32 %v2457, %v2545
        %v2547 = vpop.f32.mrf.mxu0
        %v2548 = vadd.f32 %v2459, %v2547
        %2549 = vmatmul.bf16.gmra.mxu0 %v1457
        %v2550 = vpop.f32.mrf.mxu0
        %v2551 = vadd.f32 %v2462, %v2550
        %v2552 = vpop.f32.mrf.mxu0
        %v2553 = vadd.f32 %v2464, %v2552
        %2554 = vmatmul.bf16.gmra.mxu0 %v1459
        %v2555 = vpop.f32.mrf.mxu0
        %v2556 = vadd.f32 %v2467, %v2555
        %v2557 = vpop.f32.mrf.mxu0
        %v2558 = vadd.f32 %v2469, %v2557
        %2559 = vmatmul.bf16.gmra.mxu0 %v1461
        %v2560 = vpop.f32.mrf.mxu0
        %v2561 = vadd.f32 %v2472, %v2560
        %v2562 = vpop.f32.mrf.mxu0
        %v2563 = vadd.f32 %v2474, %v2562
        %2564 = vmatmul.bf16.gmra.mxu0 %v1463
        %v2565 = vpop.f32.mrf.mxu0
        %v2566 = vadd.f32 %v2477, %v2565
        %v2567 = vpop.f32.mrf.mxu0
        %v2568 = vadd.f32 %v2479, %v2567
        %2569 = vdwg.mxu0
        %v2570 = vmax.f32 %v1957, 0.0
        %v2571 = vmax.f32 %v2135, 0.0
        %v2572 = vmax.f32 %v2313, 0.0
        %v2573 = vmax.f32 %v2491, 0.0
        %v2574 = vmax.f32 %v1959, 0.0
        %v2575 = vmax.f32 %v2137, 0.0
        %v2576 = vmax.f32 %v2315, 0.0
        %v2577 = vmax.f32 %v2493, 0.0
        %v2578 = vmax.f32 %v1962, 0.0
        %v2579 = vmax.f32 %v2140, 0.0
        %v2580 = vmax.f32 %v2318, 0.0
        %v2581 = vmax.f32 %v2496, 0.0
        %v2582 = vmax.f32 %v1964, 0.0
        %v2583 = vmax.f32 %v2142, 0.0
        %v2584 = vmax.f32 %v2320, 0.0
        %v2585 = vmax.f32 %v2498, 0.0
        %v2586 = vmax.f32 %v1967, 0.0
        %v2587 = vmax.f32 %v2145, 0.0
        %v2588 = vmax.f32 %v2323, 0.0
        %v2589 = vmax.f32 %v2501, 0.0
        %v2590 = vmax.f32 %v1969, 0.0
        %v2591 = vmax.f32 %v2147, 0.0
        %v2592 = vmax.f32 %v2325, 0.0
        %v2593 = vmax.f32 %v2503, 0.0
        %v2594 = vmax.f32 %v1972, 0.0
        %v2595 = vmax.f32 %v2150, 0.0
        %v2596 = vmax.f32 %v2328, 0.0
        %v2597 = vmax.f32 %v2506, 0.0
        %v2598 = vmax.f32 %v1974, 0.0
        %v2599 = vmax.f32 %v2152, 0.0
        %v2600 = vmax.f32 %v2330, 0.0
        %v2601 = vmax.f32 %v2508, 0.0
        %v2602 = vmax.f32 %v1977, 0.0
        %v2603 = vmax.f32 %v2155, 0.0
        %v2604 = vmax.f32 %v2333, 0.0
        %v2605 = vmax.f32 %v2511, 0.0
        %v2606 = vmax.f32 %v1979, 0.0
        %v2607 = vmax.f32 %v2157, 0.0
        %v2608 = vmax.f32 %v2335, 0.0
        %v2609 = vmax.f32 %v2513, 0.0
        %v2610 = vmax.f32 %v1982, 0.0
        %v2611 = vmax.f32 %v2160, 0.0
        %v2612 = vmax.f32 %v2338, 0.0
        %v2613 = vmax.f32 %v2516, 0.0
        %v2614 = vmax.f32 %v1984, 0.0
        %v2615 = vmax.f32 %v2162, 0.0
        %v2616 = vmax.f32 %v2340, 0.0
        %v2617 = vmax.f32 %v2518, 0.0
        %v2618 = vmax.f32 %v1987, 0.0
        %v2619 = vmax.f32 %v2165, 0.0
        %v2620 = vmax.f32 %v2343, 0.0
        %v2621 = vmax.f32 %v2521, 0.0
        %v2622 = vmax.f32 %v1989, 0.0
        %v2623 = vmax.f32 %v2167, 0.0
        %v2624 = vmax.f32 %v2345, 0.0
        %v2625 = vmax.f32 %v2523, 0.0
        %v2626 = vmax.f32 %v1992, 0.0
        %v2627 = vmax.f32 %v2170, 0.0
        %v2628 = vmax.f32 %v2348, 0.0
        %v2629 = vmax.f32 %v2526, 0.0
        %v2630 = vmax.f32 %v1994, 0.0
        %v2631 = vmax.f32 %v2172, 0.0
        %v2632 = vmax.f32 %v2350, 0.0
        %v2633 = vmax.f32 %v2528, 0.0
        %v2634 = vmax.f32 %v1997, 0.0
        %v2635 = vmax.f32 %v2175, 0.0
        %v2636 = vmax.f32 %v2353, 0.0
        %v2637 = vmax.f32 %v2531, 0.0
        %v2638 = vmax.f32 %v1999, 0.0
        %v2639 = vmax.f32 %v2177, 0.0
        %v2640 = vmax.f32 %v2355, 0.0
        %v2641 = vmax.f32 %v2533, 0.0
        %v2642 = vmax.f32 %v2002, 0.0
        %v2643 = vmax.f32 %v2180, 0.0
        %v2644 = vmax.f32 %v2358, 0.0
        %v2645 = vmax.f32 %v2536, 0.0
        %v2646 = vmax.f32 %v2004, 0.0
        %v2647 = vmax.f32 %v2182, 0.0
        %v2648 = vmax.f32 %v2360, 0.0
        %v2649 = vmax.f32 %v2538, 0.0
        %v2650 = vmax.f32 %v2007, 0.0
        %v2651 = vmax.f32 %v2185, 0.0
        %v2652 = vmax.f32 %v2363, 0.0
        %v2653 = vmax.f32 %v2541, 0.0
        %v2654 = vmax.f32 %v2009, 0.0
        %v2655 = vmax.f32 %v2187, 0.0
        %v2656 = vmax.f32 %v2365, 0.0
        %v2657 = vmax.f32 %v2543, 0.0
        %v2658 = vmax.f32 %v2012, 0.0
        %v2659 = vmax.f32 %v2190, 0.0
        %v2660 = vmax.f32 %v2368, 0.0
        %v2661 = vmax.f32 %v2546, 0.0
        %v2662 = vmax.f32 %v2014, 0.0
        %v2663 = vmax.f32 %v2192, 0.0
        %v2664 = vmax.f32 %v2370, 0.0
        %v2665 = vmax.f32 %v2548, 0.0
        %v2666 = vmax.f32 %v2017, 0.0
        %v2667 = vmax.f32 %v2195, 0.0
        %v2668 = vmax.f32 %v2373, 0.0
        %v2669 = vmax.f32 %v2551, 0.0
        %v2670 = vmax.f32 %v2019, 0.0
        %v2671 = vmax.f32 %v2197, 0.0
        %v2672 = vmax.f32 %v2375, 0.0
        %v2673 = vmax.f32 %v2553, 0.0
        %v2674 = vmax.f32 %v2022, 0.0
        %v2675 = vmax.f32 %v2200, 0.0
        %v2676 = vmax.f32 %v2378, 0.0
        %v2677 = vmax.f32 %v2556, 0.0
        %v2678 = vmax.f32 %v2024, 0.0
        %v2679 = vmax.f32 %v2202, 0.0
        %v2680 = vmax.f32 %v2380, 0.0
        %v2681 = vmax.f32 %v2558, 0.0
        %v2682 = vmax.f32 %v2027, 0.0
        %v2683 = vmax.f32 %v2205, 0.0
        %v2684 = vmax.f32 %v2383, 0.0
        %v2685 = vmax.f32 %v2561, 0.0
        %v2686 = vmax.f32 %v2029, 0.0
        %v2687 = vmax.f32 %v2207, 0.0
        %v2688 = vmax.f32 %v2385, 0.0
        %v2689 = vmax.f32 %v2563, 0.0
        %v2690 = vmax.f32 %v2032, 0.0
        %v2691 = vmax.f32 %v2210, 0.0
        %v2692 = vmax.f32 %v2388, 0.0
        %v2693 = vmax.f32 %v2566, 0.0
        %v2694 = vmax.f32 %v2034, 0.0
        %v2695 = vmax.f32 %v2212, 0.0
        %v2696 = vmax.f32 %v2390, 0.0
        %v2697 = vmax.f32 %v2568, 0.0
        %v2698 = vpack.c.bf16 %v2574, %v2570
        %v2699 = vpack.c.bf16 %v2575, %v2571
        %v2700 = vpack.c.bf16 %v2576, %v2572
        %v2701 = vpack.c.bf16 %v2577, %v2573
        %v2702 = vpack.c.bf16 %v2582, %v2578
        %v2703 = vpack.c.bf16 %v2583, %v2579
        %v2704 = vpack.c.bf16 %v2584, %v2580
        %v2705 = vpack.c.bf16 %v2585, %v2581
        %v2706 = vpack.c.bf16 %v2590, %v2586
        %v2707 = vpack.c.bf16 %v2591, %v2587
        %v2708 = vpack.c.bf16 %v2592, %v2588
        %v2709 = vpack.c.bf16 %v2593, %v2589
        %v2710 = vpack.c.bf16 %v2598, %v2594
        %v2711 = vpack.c.bf16 %v2599, %v2595
        %v2712 = vpack.c.bf16 %v2600, %v2596
        %v2713 = vpack.c.bf16 %v2601, %v2597
        %v2714 = vpack.c.bf16 %v2606, %v2602
        %v2715 = vpack.c.bf16 %v2607, %v2603
        %v2716 = vpack.c.bf16 %v2608, %v2604
        %v2717 = vpack.c.bf16 %v2609, %v2605
        %v2718 = vpack.c.bf16 %v2614, %v2610
        %v2719 = vpack.c.bf16 %v2615, %v2611
        %v2720 = vpack.c.bf16 %v2616, %v2612
        %v2721 = vpack.c.bf16 %v2617, %v2613
        %v2722 = vpack.c.bf16 %v2622, %v2618
        %v2723 = vpack.c.bf16 %v2623, %v2619
        %v2724 = vpack.c.bf16 %v2624, %v2620
        %v2725 = vpack.c.bf16 %v2625, %v2621
        %v2726 = vpack.c.bf16 %v2630, %v2626
        %v2727 = vpack.c.bf16 %v2631, %v2627
        %v2728 = vpack.c.bf16 %v2632, %v2628
        %v2729 = vpack.c.bf16 %v2633, %v2629
        %v2730 = vpack.c.bf16 %v2638, %v2634
        %v2731 = vpack.c.bf16 %v2639, %v2635
        %v2732 = vpack.c.bf16 %v2640, %v2636
        %v2733 = vpack.c.bf16 %v2641, %v2637
        %v2734 = vpack.c.bf16 %v2646, %v2642
        %v2735 = vpack.c.bf16 %v2647, %v2643
        %v2736 = vpack.c.bf16 %v2648, %v2644
        %v2737 = vpack.c.bf16 %v2649, %v2645
        %v2738 = vpack.c.bf16 %v2654, %v2650
        %v2739 = vpack.c.bf16 %v2655, %v2651
        %v2740 = vpack.c.bf16 %v2656, %v2652
        %v2741 = vpack.c.bf16 %v2657, %v2653
        %v2742 = vpack.c.bf16 %v2662, %v2658
        %v2743 = vpack.c.bf16 %v2663, %v2659
        %v2744 = vpack.c.bf16 %v2664, %v2660
        %v2745 = vpack.c.bf16 %v2665, %v2661
        %v2746 = vpack.c.bf16 %v2670, %v2666
        %v2747 = vpack.c.bf16 %v2671, %v2667
        %v2748 = vpack.c.bf16 %v2672, %v2668
        %v2749 = vpack.c.bf16 %v2673, %v2669
        %v2750 = vpack.c.bf16 %v2678, %v2674
        %v2751 = vpack.c.bf16 %v2679, %v2675
        %v2752 = vpack.c.bf16 %v2680, %v2676
        %v2753 = vpack.c.bf16 %v2681, %v2677
        %v2754 = vpack.c.bf16 %v2686, %v2682
        %v2755 = vpack.c.bf16 %v2687, %v2683
        %v2756 = vpack.c.bf16 %v2688, %v2684
        %v2757 = vpack.c.bf16 %v2689, %v2685
        %v2758 = vpack.c.bf16 %v2694, %v2690
        %v2759 = vpack.c.bf16 %v2695, %v2691
        %v2760 = vpack.c.bf16 %v2696, %v2692
        %v2761 = vpack.c.bf16 %v2697, %v2693
        %v2762 = vld [vmem:[#allocation2] sm:$0xf]
        %v2763 = vld [vmem:[#allocation2 + $0x4] sm:$0xf]
        %v2764 = vld [vmem:[#allocation2 + $0x8] sm:$0xf]
        %v2765 = vld [vmem:[#allocation2 + $0xc] sm:$0xf]
        %v2766 = vld [vmem:[#allocation2 + $0x10] sm:$0xf]
        %v2767 = vld [vmem:[#allocation2 + $0x14] sm:$0xf]
        %v2768 = vld [vmem:[#allocation2 + $0x18] sm:$0xf]
        %v2769 = vld [vmem:[#allocation2 + $0x1c] sm:$0xf]
        %v2770 = vld [vmem:[#allocation2 + $0x20] sm:$0xf]
        %v2771 = vld [vmem:[#allocation2 + $0x24] sm:$0xf]
        %v2772 = vld [vmem:[#allocation2 + $0x28] sm:$0xf]
        %v2773 = vld [vmem:[#allocation2 + $0x2c] sm:$0xf]
        %v2774 = vld [vmem:[#allocation2 + $0x30] sm:$0xf]
        %v2775 = vld [vmem:[#allocation2 + $0x34] sm:$0xf]
        %v2776 = vld [vmem:[#allocation2 + $0x38] sm:$0xf]
        %v2777 = vld [vmem:[#allocation2 + $0x3c] sm:$0xf]
        %v2778 = vld [vmem:[#allocation2 + $0x40] sm:$0xf]
        %v2779 = vld [vmem:[#allocation2 + $0x44] sm:$0xf]
        %v2780 = vld [vmem:[#allocation2 + $0x48] sm:$0xf]
        %v2781 = vld [vmem:[#allocation2 + $0x4c] sm:$0xf]
        %v2782 = vld [vmem:[#allocation2 + $0x50] sm:$0xf]
        %v2783 = vld [vmem:[#allocation2 + $0x54] sm:$0xf]
        %v2784 = vld [vmem:[#allocation2 + $0x58] sm:$0xf]
        %v2785 = vld [vmem:[#allocation2 + $0x5c] sm:$0xf]
        %v2786 = vld [vmem:[#allocation2 + $0x60] sm:$0xf]
        %v2787 = vld [vmem:[#allocation2 + $0x64] sm:$0xf]
        %v2788 = vld [vmem:[#allocation2 + $0x68] sm:$0xf]
        %v2789 = vld [vmem:[#allocation2 + $0x6c] sm:$0xf]
        %v2790 = vld [vmem:[#allocation2 + $0x70] sm:$0xf]
        %v2791 = vld [vmem:[#allocation2 + $0x74] sm:$0xf]
        %v2792 = vld [vmem:[#allocation2 + $0x78] sm:$0xf]
        %v2793 = vld [vmem:[#allocation2 + $0x7c] sm:$0xf]
        %v2794 = vld [vmem:[#allocation2 + $0x80] sm:$0xf]
        %v2795 = vld [vmem:[#allocation2 + $0x84] sm:$0xf]
        %v2796 = vld [vmem:[#allocation2 + $0x88] sm:$0xf]
        %v2797 = vld [vmem:[#allocation2 + $0x8c] sm:$0xf]
        %v2798 = vld [vmem:[#allocation2 + $0x90] sm:$0xf]
        %v2799 = vld [vmem:[#allocation2 + $0x94] sm:$0xf]
        %v2800 = vld [vmem:[#allocation2 + $0x98] sm:$0xf]
        %v2801 = vld [vmem:[#allocation2 + $0x9c] sm:$0xf]
        %v2802 = vld [vmem:[#allocation2 + $0xa0] sm:$0xf]
        %v2803 = vld [vmem:[#allocation2 + $0xa4] sm:$0xf]
        %v2804 = vld [vmem:[#allocation2 + $0xa8] sm:$0xf]
        %v2805 = vld [vmem:[#allocation2 + $0xac] sm:$0xf]
        %v2806 = vld [vmem:[#allocation2 + $0xb0] sm:$0xf]
        %v2807 = vld [vmem:[#allocation2 + $0xb4] sm:$0xf]
        %v2808 = vld [vmem:[#allocation2 + $0xb8] sm:$0xf]
        %v2809 = vld [vmem:[#allocation2 + $0xbc] sm:$0xf]
        %v2810 = vld [vmem:[#allocation2 + $0xc0] sm:$0xf]
        %v2811 = vld [vmem:[#allocation2 + $0xc4] sm:$0xf]
        %v2812 = vld [vmem:[#allocation2 + $0xc8] sm:$0xf]
        %v2813 = vld [vmem:[#allocation2 + $0xcc] sm:$0xf]
        %v2814 = vld [vmem:[#allocation2 + $0xd0] sm:$0xf]
        %v2815 = vld [vmem:[#allocation2 + $0xd4] sm:$0xf]
        %v2816 = vld [vmem:[#allocation2 + $0xd8] sm:$0xf]
        %v2817 = vld [vmem:[#allocation2 + $0xdc] sm:$0xf]
        %v2818 = vld [vmem:[#allocation2 + $0xe0] sm:$0xf]
        %v2819 = vld [vmem:[#allocation2 + $0xe4] sm:$0xf]
        %v2820 = vld [vmem:[#allocation2 + $0xe8] sm:$0xf]
        %v2821 = vld [vmem:[#allocation2 + $0xec] sm:$0xf]
        %v2822 = vld [vmem:[#allocation2 + $0xf0] sm:$0xf]
        %v2823 = vld [vmem:[#allocation2 + $0xf4] sm:$0xf]
        %v2824 = vld [vmem:[#allocation2 + $0xf8] sm:$0xf]
        %v2825 = vld [vmem:[#allocation2 + $0xfc] sm:$0xf]
        %v2826 = vld [vmem:[%s8] sm:$0x1]
        %v2828 = vperm.slane %v2826, 0
        %v2894 = vunpack.c.l.b16 %v2762
        %v2895 = vunpack.c.l.b16 %v2763
        %v2896 = vunpack.c.l.b16 %v2764
        %v2897 = vunpack.c.l.b16 %v2765
        %v2898 = vunpack.c.l.b16 %v2766
        %v2899 = vunpack.c.l.b16 %v2767
        %v2900 = vunpack.c.l.b16 %v2768
        %v2901 = vunpack.c.l.b16 %v2769
        %v2902 = vunpack.c.l.b16 %v2770
        %v2903 = vunpack.c.l.b16 %v2771
        %v2904 = vunpack.c.l.b16 %v2772
        %v2905 = vunpack.c.l.b16 %v2773
        %v2906 = vunpack.c.l.b16 %v2774
        %v2907 = vunpack.c.l.b16 %v2775
        %v2908 = vunpack.c.l.b16 %v2776
        %v2909 = vunpack.c.l.b16 %v2777
        %v2910 = vunpack.c.l.b16 %v2778
        %v2911 = vunpack.c.l.b16 %v2779
        %v2912 = vunpack.c.l.b16 %v2780
        %v2913 = vunpack.c.l.b16 %v2781
        %v2914 = vunpack.c.l.b16 %v2782
        %v2915 = vunpack.c.l.b16 %v2783
        %v2916 = vunpack.c.l.b16 %v2784
        %v2917 = vunpack.c.l.b16 %v2785
        %v2918 = vunpack.c.l.b16 %v2786
        %v2919 = vunpack.c.l.b16 %v2787
        %v2920 = vunpack.c.l.b16 %v2788
        %v2921 = vunpack.c.l.b16 %v2789
        %v2922 = vunpack.c.l.b16 %v2790
        %v2923 = vunpack.c.l.b16 %v2791
        %v2924 = vunpack.c.l.b16 %v2792
        %v2925 = vunpack.c.l.b16 %v2793
        %v2926 = vunpack.c.l.b16 %v2794
        %v2927 = vunpack.c.l.b16 %v2795
        %v2928 = vunpack.c.l.b16 %v2796
        %v2929 = vunpack.c.l.b16 %v2797
        %v2930 = vunpack.c.l.b16 %v2798
        %v2931 = vunpack.c.l.b16 %v2799
        %v2932 = vunpack.c.l.b16 %v2800
        %v2933 = vunpack.c.l.b16 %v2801
        %v2934 = vunpack.c.l.b16 %v2802
        %v2935 = vunpack.c.l.b16 %v2803
        %v2936 = vunpack.c.l.b16 %v2804
        %v2937 = vunpack.c.l.b16 %v2805
        %v2938 = vunpack.c.l.b16 %v2806
        %v2939 = vunpack.c.l.b16 %v2807
        %v2940 = vunpack.c.l.b16 %v2808
        %v2941 = vunpack.c.l.b16 %v2809
        %v2942 = vunpack.c.l.b16 %v2810
        %v2943 = vunpack.c.l.b16 %v2811
        %v2944 = vunpack.c.l.b16 %v2812
        %v2945 = vunpack.c.l.b16 %v2813
        %v2946 = vunpack.c.l.b16 %v2814
        %v2947 = vunpack.c.l.b16 %v2815
        %v2948 = vunpack.c.l.b16 %v2816
        %v2949 = vunpack.c.l.b16 %v2817
        %v2950 = vunpack.c.l.b16 %v2818
        %v2951 = vunpack.c.l.b16 %v2819
        %v2952 = vunpack.c.l.b16 %v2820
        %v2953 = vunpack.c.l.b16 %v2821
        %v2954 = vunpack.c.l.b16 %v2822
        %v2955 = vunpack.c.l.b16 %v2823
        %v2956 = vunpack.c.l.b16 %v2824
        %v2957 = vunpack.c.l.b16 %v2825
        %v2958 = vpack.c.b16 %v2895, %v2894
        %v2959 = vpack.c.b16 %v2897, %v2896
        %v2960 = vpack.c.b16 %v2899, %v2898
        %v2961 = vpack.c.b16 %v2901, %v2900
        %v2962 = vpack.c.b16 %v2903, %v2902
        %v2963 = vpack.c.b16 %v2905, %v2904
        %v2964 = vpack.c.b16 %v2907, %v2906
        %v2965 = vpack.c.b16 %v2909, %v2908
        %v2966 = vpack.c.b16 %v2911, %v2910
        %v2967 = vpack.c.b16 %v2913, %v2912
        %v2968 = vpack.c.b16 %v2915, %v2914
        %v2969 = vpack.c.b16 %v2917, %v2916
        %v2970 = vpack.c.b16 %v2919, %v2918
        %v2971 = vpack.c.b16 %v2921, %v2920
        %v2972 = vpack.c.b16 %v2923, %v2922
        %v2973 = vpack.c.b16 %v2925, %v2924
        %v2974 = vpack.c.b16 %v2927, %v2926
        %v2975 = vpack.c.b16 %v2929, %v2928
        %v2976 = vpack.c.b16 %v2931, %v2930
        %v2977 = vpack.c.b16 %v2933, %v2932
        %v2978 = vpack.c.b16 %v2935, %v2934
        %v2979 = vpack.c.b16 %v2937, %v2936
        %v2980 = vpack.c.b16 %v2939, %v2938
        %v2981 = vpack.c.b16 %v2941, %v2940
        %v2982 = vpack.c.b16 %v2943, %v2942
        %v2983 = vpack.c.b16 %v2945, %v2944
        %v2984 = vpack.c.b16 %v2947, %v2946
        %v2985 = vpack.c.b16 %v2949, %v2948
        %v2986 = vpack.c.b16 %v2951, %v2950
        %v2987 = vpack.c.b16 %v2953, %v2952
        %v2988 = vpack.c.b16 %v2955, %v2954
        %v2989 = vpack.c.b16 %v2957, %v2956
        %3022 = vmatpush.bf16.msra.mxu0 %v2965
        %3023 = vmatpush.bf16.msra.mxu0 %v2964
        %3024 = vmatpush.bf16.msra.mxu0 %v2963
        %3025 = vmatpush.bf16.msra.mxu0 %v2962
        %3026 = vmatpush.bf16.msra.mxu0 %v2961
        %3027 = vmatpush.bf16.msra.mxu0 %v2960
        %3028 = vmatpush.bf16.msra.mxu0 %v2959
        %3029 = vmatpush.bf16.msra.mxu0 %v2958
        %3030 = vmatmul.bf16.gmra.mxu0 %v2698
        %v3031 = vpop.f32.mrf.mxu0
        %v3032 = vadd.f32 %v2828, %v3031
        %v3033 = vpop.f32.mrf.mxu0
        %v3034 = vadd.f32 %v2828, %v3033
        %3035 = vmatmul.bf16.gmra.mxu0 %v2702
        %v3036 = vpop.f32.mrf.mxu0
        %v3037 = vadd.f32 %v2828, %v3036
        %v3038 = vpop.f32.mrf.mxu0
        %v3039 = vadd.f32 %v2828, %v3038
        %3040 = vmatmul.bf16.gmra.mxu0 %v2706
        %v3041 = vpop.f32.mrf.mxu0
        %v3042 = vadd.f32 %v2828, %v3041
        %v3043 = vpop.f32.mrf.mxu0
        %v3044 = vadd.f32 %v2828, %v3043
        %3045 = vmatmul.bf16.gmra.mxu0 %v2710
        %v3046 = vpop.f32.mrf.mxu0
        %v3047 = vadd.f32 %v2828, %v3046
        %v3048 = vpop.f32.mrf.mxu0
        %v3049 = vadd.f32 %v2828, %v3048
        %3050 = vmatmul.bf16.gmra.mxu0 %v2714
        %v3051 = vpop.f32.mrf.mxu0
        %v3052 = vadd.f32 %v2828, %v3051
        %v3053 = vpop.f32.mrf.mxu0
        %v3054 = vadd.f32 %v2828, %v3053
        %3055 = vmatmul.bf16.gmra.mxu0 %v2718
        %v3056 = vpop.f32.mrf.mxu0
        %v3057 = vadd.f32 %v2828, %v3056
        %v3058 = vpop.f32.mrf.mxu0
        %v3059 = vadd.f32 %v2828, %v3058
        %3060 = vmatmul.bf16.gmra.mxu0 %v2722
        %v3061 = vpop.f32.mrf.mxu0
        %v3062 = vadd.f32 %v2828, %v3061
        %v3063 = vpop.f32.mrf.mxu0
        %v3064 = vadd.f32 %v2828, %v3063
        %3065 = vmatmul.bf16.gmra.mxu0 %v2726
        %v3066 = vpop.f32.mrf.mxu0
        %v3067 = vadd.f32 %v2828, %v3066
        %v3068 = vpop.f32.mrf.mxu0
        %v3069 = vadd.f32 %v2828, %v3068
        %3070 = vmatmul.bf16.gmra.mxu0 %v2730
        %v3071 = vpop.f32.mrf.mxu0
        %v3072 = vadd.f32 %v2828, %v3071
        %v3073 = vpop.f32.mrf.mxu0
        %v3074 = vadd.f32 %v2828, %v3073
        %3075 = vmatmul.bf16.gmra.mxu0 %v2734
        %v3076 = vpop.f32.mrf.mxu0
        %v3077 = vadd.f32 %v2828, %v3076
        %v3078 = vpop.f32.mrf.mxu0
        %v3079 = vadd.f32 %v2828, %v3078
        %3080 = vmatmul.bf16.gmra.mxu0 %v2738
        %v3081 = vpop.f32.mrf.mxu0
        %v3082 = vadd.f32 %v2828, %v3081
        %v3083 = vpop.f32.mrf.mxu0
        %v3084 = vadd.f32 %v2828, %v3083
        %3085 = vmatmul.bf16.gmra.mxu0 %v2742
        %v3086 = vpop.f32.mrf.mxu0
        %v3087 = vadd.f32 %v2828, %v3086
        %v3088 = vpop.f32.mrf.mxu0
        %v3089 = vadd.f32 %v2828, %v3088
        %3090 = vmatmul.bf16.gmra.mxu0 %v2746
        %v3091 = vpop.f32.mrf.mxu0
        %v3092 = vadd.f32 %v2828, %v3091
        %v3093 = vpop.f32.mrf.mxu0
        %v3094 = vadd.f32 %v2828, %v3093
        %3095 = vmatmul.bf16.gmra.mxu0 %v2750
        %v3096 = vpop.f32.mrf.mxu0
        %v3097 = vadd.f32 %v2828, %v3096
        %v3098 = vpop.f32.mrf.mxu0
        %v3099 = vadd.f32 %v2828, %v3098
        %3100 = vmatmul.bf16.gmra.mxu0 %v2754
        %v3101 = vpop.f32.mrf.mxu0
        %v3102 = vadd.f32 %v2828, %v3101
        %v3103 = vpop.f32.mrf.mxu0
        %v3104 = vadd.f32 %v2828, %v3103
        %3105 = vmatmul.bf16.gmra.mxu0 %v2758
        %v3106 = vpop.f32.mrf.mxu0
        %v3107 = vadd.f32 %v2828, %v3106
        %v3108 = vpop.f32.mrf.mxu0
        %v3109 = vadd.f32 %v2828, %v3108
        %3110 = vdwg.mxu0
        %3111 = vmatpush.bf16.msra.mxu0 %v2973
        %3112 = vmatpush.bf16.msra.mxu0 %v2972
        %3113 = vmatpush.bf16.msra.mxu0 %v2971
        %3114 = vmatpush.bf16.msra.mxu0 %v2970
        %3115 = vmatpush.bf16.msra.mxu0 %v2969
        %3116 = vmatpush.bf16.msra.mxu0 %v2968
        %3117 = vmatpush.bf16.msra.mxu0 %v2967
        %3118 = vmatpush.bf16.msra.mxu0 %v2966
        %3119 = vmatmul.bf16.gmra.mxu0 %v2699
        %v3120 = vpop.f32.mrf.mxu0
        %v3121 = vadd.f32 %v3032, %v3120
        %v3122 = vpop.f32.mrf.mxu0
        %v3123 = vadd.f32 %v3034, %v3122
        %3124 = vmatmul.bf16.gmra.mxu0 %v2703
        %v3125 = vpop.f32.mrf.mxu0
        %v3126 = vadd.f32 %v3037, %v3125
        %v3127 = vpop.f32.mrf.mxu0
        %v3128 = vadd.f32 %v3039, %v3127
        %3129 = vmatmul.bf16.gmra.mxu0 %v2707
        %v3130 = vpop.f32.mrf.mxu0
        %v3131 = vadd.f32 %v3042, %v3130
        %v3132 = vpop.f32.mrf.mxu0
        %v3133 = vadd.f32 %v3044, %v3132
        %3134 = vmatmul.bf16.gmra.mxu0 %v2711
        %v3135 = vpop.f32.mrf.mxu0
        %v3136 = vadd.f32 %v3047, %v3135
        %v3137 = vpop.f32.mrf.mxu0
        %v3138 = vadd.f32 %v3049, %v3137
        %3139 = vmatmul.bf16.gmra.mxu0 %v2715
        %v3140 = vpop.f32.mrf.mxu0
        %v3141 = vadd.f32 %v3052, %v3140
        %v3142 = vpop.f32.mrf.mxu0
        %v3143 = vadd.f32 %v3054, %v3142
        %3144 = vmatmul.bf16.gmra.mxu0 %v2719
        %v3145 = vpop.f32.mrf.mxu0
        %v3146 = vadd.f32 %v3057, %v3145
        %v3147 = vpop.f32.mrf.mxu0
        %v3148 = vadd.f32 %v3059, %v3147
        %3149 = vmatmul.bf16.gmra.mxu0 %v2723
        %v3150 = vpop.f32.mrf.mxu0
        %v3151 = vadd.f32 %v3062, %v3150
        %v3152 = vpop.f32.mrf.mxu0
        %v3153 = vadd.f32 %v3064, %v3152
        %3154 = vmatmul.bf16.gmra.mxu0 %v2727
        %v3155 = vpop.f32.mrf.mxu0
        %v3156 = vadd.f32 %v3067, %v3155
        %v3157 = vpop.f32.mrf.mxu0
        %v3158 = vadd.f32 %v3069, %v3157
        %3159 = vmatmul.bf16.gmra.mxu0 %v2731
        %v3160 = vpop.f32.mrf.mxu0
        %v3161 = vadd.f32 %v3072, %v3160
        %v3162 = vpop.f32.mrf.mxu0
        %v3163 = vadd.f32 %v3074, %v3162
        %3164 = vmatmul.bf16.gmra.mxu0 %v2735
        %v3165 = vpop.f32.mrf.mxu0
        %v3166 = vadd.f32 %v3077, %v3165
        %v3167 = vpop.f32.mrf.mxu0
        %v3168 = vadd.f32 %v3079, %v3167
        %3169 = vmatmul.bf16.gmra.mxu0 %v2739
        %v3170 = vpop.f32.mrf.mxu0
        %v3171 = vadd.f32 %v3082, %v3170
        %v3172 = vpop.f32.mrf.mxu0
        %v3173 = vadd.f32 %v3084, %v3172
        %3174 = vmatmul.bf16.gmra.mxu0 %v2743
        %v3175 = vpop.f32.mrf.mxu0
        %v3176 = vadd.f32 %v3087, %v3175
        %v3177 = vpop.f32.mrf.mxu0
        %v3178 = vadd.f32 %v3089, %v3177
        %3179 = vmatmul.bf16.gmra.mxu0 %v2747
        %v3180 = vpop.f32.mrf.mxu0
        %v3181 = vadd.f32 %v3092, %v3180
        %v3182 = vpop.f32.mrf.mxu0
        %v3183 = vadd.f32 %v3094, %v3182
        %3184 = vmatmul.bf16.gmra.mxu0 %v2751
        %v3185 = vpop.f32.mrf.mxu0
        %v3186 = vadd.f32 %v3097, %v3185
        %v3187 = vpop.f32.mrf.mxu0
        %v3188 = vadd.f32 %v3099, %v3187
        %3189 = vmatmul.bf16.gmra.mxu0 %v2755
        %v3190 = vpop.f32.mrf.mxu0
        %v3191 = vadd.f32 %v3102, %v3190
        %v3192 = vpop.f32.mrf.mxu0
        %v3193 = vadd.f32 %v3104, %v3192
        %3194 = vmatmul.bf16.gmra.mxu0 %v2759
        %v3195 = vpop.f32.mrf.mxu0
        %v3196 = vadd.f32 %v3107, %v3195
        %v3197 = vpop.f32.mrf.mxu0
        %v3198 = vadd.f32 %v3109, %v3197
        %3199 = vdwg.mxu0
        %3200 = vmatpush.bf16.msra.mxu0 %v2981
        %3201 = vmatpush.bf16.msra.mxu0 %v2980
        %3202 = vmatpush.bf16.msra.mxu0 %v2979
        %3203 = vmatpush.bf16.msra.mxu0 %v2978
        %3204 = vmatpush.bf16.msra.mxu0 %v2977
        %3205 = vmatpush.bf16.msra.mxu0 %v2976
        %3206 = vmatpush.bf16.msra.mxu0 %v2975
        %3207 = vmatpush.bf16.msra.mxu0 %v2974
        %3208 = vmatmul.bf16.gmra.mxu0 %v2700
        %v3209 = vpop.f32.mrf.mxu0
        %v3210 = vadd.f32 %v3121, %v3209
        %v3211 = vpop.f32.mrf.mxu0
        %v3212 = vadd.f32 %v3123, %v3211
        %3213 = vmatmul.bf16.gmra.mxu0 %v2704
        %v3214 = vpop.f32.mrf.mxu0
        %v3215 = vadd.f32 %v3126, %v3214
        %v3216 = vpop.f32.mrf.mxu0
        %v3217 = vadd.f32 %v3128, %v3216
        %3218 = vmatmul.bf16.gmra.mxu0 %v2708
        %v3219 = vpop.f32.mrf.mxu0
        %v3220 = vadd.f32 %v3131, %v3219
        %v3221 = vpop.f32.mrf.mxu0
        %v3222 = vadd.f32 %v3133, %v3221
        %3223 = vmatmul.bf16.gmra.mxu0 %v2712
        %v3224 = vpop.f32.mrf.mxu0
        %v3225 = vadd.f32 %v3136, %v3224
        %v3226 = vpop.f32.mrf.mxu0
        %v3227 = vadd.f32 %v3138, %v3226
        %3228 = vmatmul.bf16.gmra.mxu0 %v2716
        %v3229 = vpop.f32.mrf.mxu0
        %v3230 = vadd.f32 %v3141, %v3229
        %v3231 = vpop.f32.mrf.mxu0
        %v3232 = vadd.f32 %v3143, %v3231
        %3233 = vmatmul.bf16.gmra.mxu0 %v2720
        %v3234 = vpop.f32.mrf.mxu0
        %v3235 = vadd.f32 %v3146, %v3234
        %v3236 = vpop.f32.mrf.mxu0
        %v3237 = vadd.f32 %v3148, %v3236
        %3238 = vmatmul.bf16.gmra.mxu0 %v2724
        %v3239 = vpop.f32.mrf.mxu0
        %v3240 = vadd.f32 %v3151, %v3239
        %v3241 = vpop.f32.mrf.mxu0
        %v3242 = vadd.f32 %v3153, %v3241
        %3243 = vmatmul.bf16.gmra.mxu0 %v2728
        %v3244 = vpop.f32.mrf.mxu0
        %v3245 = vadd.f32 %v3156, %v3244
        %v3246 = vpop.f32.mrf.mxu0
        %v3247 = vadd.f32 %v3158, %v3246
        %3248 = vmatmul.bf16.gmra.mxu0 %v2732
        %v3249 = vpop.f32.mrf.mxu0
        %v3250 = vadd.f32 %v3161, %v3249
        %v3251 = vpop.f32.mrf.mxu0
        %v3252 = vadd.f32 %v3163, %v3251
        %3253 = vmatmul.bf16.gmra.mxu0 %v2736
        %v3254 = vpop.f32.mrf.mxu0
        %v3255 = vadd.f32 %v3166, %v3254
        %v3256 = vpop.f32.mrf.mxu0
        %v3257 = vadd.f32 %v3168, %v3256
        %3258 = vmatmul.bf16.gmra.mxu0 %v2740
        %v3259 = vpop.f32.mrf.mxu0
        %v3260 = vadd.f32 %v3171, %v3259
        %v3261 = vpop.f32.mrf.mxu0
        %v3262 = vadd.f32 %v3173, %v3261
        %3263 = vmatmul.bf16.gmra.mxu0 %v2744
        %v3264 = vpop.f32.mrf.mxu0
        %v3265 = vadd.f32 %v3176, %v3264
        %v3266 = vpop.f32.mrf.mxu0
        %v3267 = vadd.f32 %v3178, %v3266
        %3268 = vmatmul.bf16.gmra.mxu0 %v2748
        %v3269 = vpop.f32.mrf.mxu0
        %v3270 = vadd.f32 %v3181, %v3269
        %v3271 = vpop.f32.mrf.mxu0
        %v3272 = vadd.f32 %v3183, %v3271
        %3273 = vmatmul.bf16.gmra.mxu0 %v2752
        %v3274 = vpop.f32.mrf.mxu0
        %v3275 = vadd.f32 %v3186, %v3274
        %v3276 = vpop.f32.mrf.mxu0
        %v3277 = vadd.f32 %v3188, %v3276
        %3278 = vmatmul.bf16.gmra.mxu0 %v2756
        %v3279 = vpop.f32.mrf.mxu0
        %v3280 = vadd.f32 %v3191, %v3279
        %v3281 = vpop.f32.mrf.mxu0
        %v3282 = vadd.f32 %v3193, %v3281
        %3283 = vmatmul.bf16.gmra.mxu0 %v2760
        %v3284 = vpop.f32.mrf.mxu0
        %v3285 = vadd.f32 %v3196, %v3284
        %v3286 = vpop.f32.mrf.mxu0
        %v3287 = vadd.f32 %v3198, %v3286
        %3288 = vdwg.mxu0
        %3289 = vmatpush.bf16.msra.mxu0 %v2989
        %3290 = vmatpush.bf16.msra.mxu0 %v2988
        %3291 = vmatpush.bf16.msra.mxu0 %v2987
        %3292 = vmatpush.bf16.msra.mxu0 %v2986
        %3293 = vmatpush.bf16.msra.mxu0 %v2985
        %3294 = vmatpush.bf16.msra.mxu0 %v2984
        %3295 = vmatpush.bf16.msra.mxu0 %v2983
        %3296 = vmatpush.bf16.msra.mxu0 %v2982
        %3297 = vmatmul.bf16.gmra.mxu0 %v2701
        %v3298 = vpop.f32.mrf.mxu0
        %v3299 = vadd.f32 %v3210, %v3298
        %v3300 = vpop.f32.mrf.mxu0
        %v3301 = vadd.f32 %v3212, %v3300
        %3302 = vmatmul.bf16.gmra.mxu0 %v2705
        %v3303 = vpop.f32.mrf.mxu0
        %v3304 = vadd.f32 %v3215, %v3303
        %v3305 = vpop.f32.mrf.mxu0
        %v3306 = vadd.f32 %v3217, %v3305
        %3307 = vmatmul.bf16.gmra.mxu0 %v2709
        %v3308 = vpop.f32.mrf.mxu0
        %v3309 = vadd.f32 %v3220, %v3308
        %v3310 = vpop.f32.mrf.mxu0
        %v3311 = vadd.f32 %v3222, %v3310
        %3312 = vmatmul.bf16.gmra.mxu0 %v2713
        %v3313 = vpop.f32.mrf.mxu0
        %v3314 = vadd.f32 %v3225, %v3313
        %v3315 = vpop.f32.mrf.mxu0
        %v3316 = vadd.f32 %v3227, %v3315
        %3317 = vmatmul.bf16.gmra.mxu0 %v2717
        %v3318 = vpop.f32.mrf.mxu0
        %v3319 = vadd.f32 %v3230, %v3318
        %v3320 = vpop.f32.mrf.mxu0
        %v3321 = vadd.f32 %v3232, %v3320
        %3322 = vmatmul.bf16.gmra.mxu0 %v2721
        %v3323 = vpop.f32.mrf.mxu0
        %v3324 = vadd.f32 %v3235, %v3323
        %v3325 = vpop.f32.mrf.mxu0
        %v3326 = vadd.f32 %v3237, %v3325
        %3327 = vmatmul.bf16.gmra.mxu0 %v2725
        %v3328 = vpop.f32.mrf.mxu0
        %v3329 = vadd.f32 %v3240, %v3328
        %v3330 = vpop.f32.mrf.mxu0
        %v3331 = vadd.f32 %v3242, %v3330
        %3332 = vmatmul.bf16.gmra.mxu0 %v2729
        %v3333 = vpop.f32.mrf.mxu0
        %v3334 = vadd.f32 %v3245, %v3333
        %v3335 = vpop.f32.mrf.mxu0
        %v3336 = vadd.f32 %v3247, %v3335
        %3337 = vmatmul.bf16.gmra.mxu0 %v2733
        %v3338 = vpop.f32.mrf.mxu0
        %v3339 = vadd.f32 %v3250, %v3338
        %v3340 = vpop.f32.mrf.mxu0
        %v3341 = vadd.f32 %v3252, %v3340
        %3342 = vmatmul.bf16.gmra.mxu0 %v2737
        %v3343 = vpop.f32.mrf.mxu0
        %v3344 = vadd.f32 %v3255, %v3343
        %v3345 = vpop.f32.mrf.mxu0
        %v3346 = vadd.f32 %v3257, %v3345
        %3347 = vmatmul.bf16.gmra.mxu0 %v2741
        %v3348 = vpop.f32.mrf.mxu0
        %v3349 = vadd.f32 %v3260, %v3348
        %v3350 = vpop.f32.mrf.mxu0
        %v3351 = vadd.f32 %v3262, %v3350
        %3352 = vmatmul.bf16.gmra.mxu0 %v2745
        %v3353 = vpop.f32.mrf.mxu0
        %v3354 = vadd.f32 %v3265, %v3353
        %v3355 = vpop.f32.mrf.mxu0
        %v3356 = vadd.f32 %v3267, %v3355
        %3357 = vmatmul.bf16.gmra.mxu0 %v2749
        %v3358 = vpop.f32.mrf.mxu0
        %v3359 = vadd.f32 %v3270, %v3358
        %v3360 = vpop.f32.mrf.mxu0
        %v3361 = vadd.f32 %v3272, %v3360
        %3362 = vmatmul.bf16.gmra.mxu0 %v2753
        %v3363 = vpop.f32.mrf.mxu0
        %v3364 = vadd.f32 %v3275, %v3363
        %v3365 = vpop.f32.mrf.mxu0
        %v3366 = vadd.f32 %v3277, %v3365
        %3367 = vmatmul.bf16.gmra.mxu0 %v2757
        %v3368 = vpop.f32.mrf.mxu0
        %v3369 = vadd.f32 %v3280, %v3368
        %v3370 = vpop.f32.mrf.mxu0
        %v3371 = vadd.f32 %v3282, %v3370
        %3372 = vmatmul.bf16.gmra.mxu0 %v2761
        %v3373 = vpop.f32.mrf.mxu0
        %v3374 = vadd.f32 %v3285, %v3373
        %v3375 = vpop.f32.mrf.mxu0
        %v3376 = vadd.f32 %v3287, %v3375
        %3377 = vdwg.mxu0
        %3378 = vst [vmem:[%s343] sm:$0xff] %v3299
        %3379 = vst [vmem:[%s343 + $0x8] sm:$0xff] %v3301
        %3380 = vst [vmem:[%s343 + $0x10] sm:$0xff] %v3304
        %3381 = vst [vmem:[%s343 + $0x18] sm:$0xff] %v3306
        %3382 = vst [vmem:[%s343 + $0x20] sm:$0xff] %v3309
        %3383 = vst [vmem:[%s343 + $0x28] sm:$0xff] %v3311
        %3384 = vst [vmem:[%s343 + $0x30] sm:$0xff] %v3314
        %3385 = vst [vmem:[%s343 + $0x38] sm:$0xff] %v3316
        %3386 = vst [vmem:[%s343 + $0x40] sm:$0xff] %v3319
        %3387 = vst [vmem:[%s343 + $0x48] sm:$0xff] %v3321
        %3388 = vst [vmem:[%s343 + $0x50] sm:$0xff] %v3324
        %3389 = vst [vmem:[%s343 + $0x58] sm:$0xff] %v3326
        %3390 = vst [vmem:[%s343 + $0x60] sm:$0xff] %v3329
        %3391 = vst [vmem:[%s343 + $0x68] sm:$0xff] %v3331
        %3392 = vst [vmem:[%s343 + $0x70] sm:$0xff] %v3334
        %3393 = vst [vmem:[%s343 + $0x78] sm:$0xff] %v3336
        %3394 = vst [vmem:[%s343 + $0x80] sm:$0xff] %v3339
        %3395 = vst [vmem:[%s343 + $0x88] sm:$0xff] %v3341
        %3396 = vst [vmem:[%s343 + $0x90] sm:$0xff] %v3344
        %3397 = vst [vmem:[%s343 + $0x98] sm:$0xff] %v3346
        %3398 = vst [vmem:[%s343 + $0xa0] sm:$0xff] %v3349
        %3399 = vst [vmem:[%s343 + $0xa8] sm:$0xff] %v3351
        %3400 = vst [vmem:[%s343 + $0xb0] sm:$0xff] %v3354
        %3401 = vst [vmem:[%s343 + $0xb8] sm:$0xff] %v3356
        %3402 = vst [vmem:[%s343 + $0xc0] sm:$0xff] %v3359
        %3403 = vst [vmem:[%s343 + $0xc8] sm:$0xff] %v3361
        %3404 = vst [vmem:[%s343 + $0xd0] sm:$0xff] %v3364
        %3405 = vst [vmem:[%s343 + $0xd8] sm:$0xff] %v3366
        %3406 = vst [vmem:[%s343 + $0xe0] sm:$0xff] %v3369
        %3407 = vst [vmem:[%s343 + $0xe8] sm:$0xff] %v3371
        %3408 = vst [vmem:[%s343 + $0xf0] sm:$0xff] %v3374
        %3409 = vst [vmem:[%s343 + $0xf8] sm:$0xff] %v3376
        %s3410 = sand.u32 %s226, 1
        %s3411 = scalar_lea.sflag [#allocation4], %s3410
        %s3412 = sand.u32 %s226, 1
        %s3413 = smul.addr %s3412, 256
        %s3414 = scalar_lea.vmem [#allocation5], %s3413
        // Predicated region
        $region61: #{tpu_custom_call.1} parent=55 // pred_check
          %p3415 = pneg %p236
        $region62: #{tpu_custom_call.1} parent=55 // pred_check_branch
          %3417 = sbr.rel (%p3415) target = $region64
        $region63: #{tpu_custom_call.1} parent=55 // pred_region
          %s3418 = smul.u32 32, %s24
          %3420 = vsyncadd %s3411, 0
          %s3421 = smul.addr %s3418, 8
          %s3422 = scalar_lea.hbm %s9, %s3421
          %s3423 = sshll.u32 %s3414, 4
          %s3424 = int_to_ptr.vmem [resolvable:$true] %s3423
          %s3425 = sshll.u32 %s3422, 4
          %s3426 = int_to_ptr.hbm [resolvable:$true] %s3425
          %3431 = dma.vmem_to_hbm [thread:$0]  %s3424, 4096, %s3426, %s3411, 128, 128, 8
        $region64: #{tpu_custom_call.1} parent=55 // pred_fallthru
          _
      $region56: #{tpu_custom_call.1} parent=5 // pred_fallthru
        _
      %p3432 = scmp.le.s32.totalorder 2, %s19
      // Predicated region
      $region65: #{tpu_custom_call.1} parent=5 // pred_check
        %p3433 = pneg %p3432
      $region66: #{tpu_custom_call.1} parent=5 // pred_check_branch
        %3435 = sbr.rel (%p3433) target = $region68
      $region67: #{tpu_custom_call.1} parent=5 // pred_region
        %s3436 = ssub.s32 %s19, 2
        // Predicated region
        $region69: #{tpu_custom_call.1} parent=67 // pred_check
          %p3437 = pneg %p242
        $region70: #{tpu_custom_call.1} parent=67 // pred_check_branch
          %3439 = sbr.rel (%p3437) target = $region72
        $region71: #{tpu_custom_call.1} parent=67 // pred_region
          %s3440 = sand.u32 %s227, 1
          %s3441 = scalar_lea.sflag [#allocation4], %s3440
          %s3442 = sand.u32 %s227, 1
          %s3443 = smul.addr %s3442, 256
          %s3444 = scalar_lea.vmem [#allocation5], %s3443
          %3446 = dma.done %s3441, 4096
        $region72: #{tpu_custom_call.1} parent=67 // pred_fallthru
          _
      $region68: #{tpu_custom_call.1} parent=5 // pred_fallthru
        _
    $region6: #{tpu_custom_call.1} parent=1 // loop_footer
      %s23 = sadd.s32 1, %s19
    $region7: #{tpu_custom_call.1} parent=1 // loop_footer_branch
      %18 = sbr.rel target = $region3
    $region8: #{tpu_custom_call.1} parent=1 // loop_exit
      _
    %3447 = vsyncpa [#allocation3], 1
    %s3448 = scalar_lea.sflag [#allocation3], 1
    %3449 = vsyncpa %s3448, 1
    %3450 = vsyncpa [#allocation4], 1
    %s3451 = scalar_lea.sflag [#allocation4], 1
    %3452 = vsyncpa %s3451, 1

// kernel: tpu_custom_call.1
$region0: #{tpu_custom_call.1}
  #allocation0 [shape = 'u32[]', space=smem, size = 0x4, offset = 0x4, fixed_abs, tag = 'smem constant byte address 0x4 - core index']
  #allocation1 [shape = 'u32[72,128]{1,0:T(1,128)}', space=vmem, size = 0x9000, scoped, tag = 'internal scratch']
  %s0 = inlined_call_operand.vmem [shape: f32[512,100], index: 0, kind: input, shape index: {}]
  %s1 = inlined_call_operand.vmem [shape: bf16[100,256], index: 1, kind: input, shape index: {}]
  %s2 = inlined_call_operand.vmem [shape: f32[1,256], index: 2, kind: input, shape index: {}]
  %s3 = inlined_call_operand.vmem [shape: bf16[256,256], index: 3, kind: input, shape index: {}]
  %s4 = inlined_call_operand.vmem [shape: f32[1,256], index: 4, kind: input, shape index: {}]
  %s5 = inlined_call_operand.vmem [shape: bf16[256,512], index: 5, kind: input, shape index: {}]
  %s6 = inlined_call_operand.vmem [shape: f32[1,512], index: 6, kind: input, shape index: {}]
  %s7 = inlined_call_operand.hbm [shape: bf16[512,128], index: 7, kind: input, shape index: {}]
  %s8 = inlined_call_operand.vmem [shape: f32[1,128], index: 8, kind: input, shape index: {}]
  %s9 = inlined_call_operand.hbm [shape: f32[512,128], index: 9, kind: output, shape index: {}]
  %s10 = sld [smem:[#allocation0]]
  $region73: #{tpu_custom_call.1} parent=0
    _
  %s12 = ssub.s32 1, %s10
  %s13 = scalar_select 0, %s12, %s10
  $region1: #{tpu_custom_call.1} parent=0
    #allocation2 [shape = 'u8[131072]{0}', space=vmem, size = 0x20000, scoped, tag = 'input window, operand 7, single buffered']
    #allocation3 [shape = 's32[2]{0}', space=sflag, size = 0x8, scoped, tag = 'scoped memory for tpu_custom_call.1']
    #allocation4 [shape = 's32[2]{0}', space=sflag, size = 0x8, scoped, tag = 'scoped memory for tpu_custom_call.1']
    #allocation5 [shape = 'u8[262144]{0}', space=vmem, size = 0x40000, scoped, tag = 'output window, operand 0']
    %14 = vsyncpa [#allocation3], 0
    %15 = vsyncpa [#allocation4], 0
    %s16 = scalar_lea.sflag [#allocation4], 1
    %17 = vsyncpa %s16, 0
    loop: start=0, step=1, limit=4
    $region2: #{tpu_custom_call.1} parent=1 // loop_pre_header
      _
    $region3: #{tpu_custom_call.1} parent=1 // loop_header
      %s19 = sphi 0, %s23
      %p20 = scmp.ge.s32.totalorder %s19, 4
      %s29 = sphi 0, %s31
      %s32 = sphi 0, %s29
      %s33 = sphi 0, %s32
      %s49 = sphi 0, %s33
      %s53 = sphi 0, %s53
      %s55 = sphi 0, %s53
      %s56 = sphi 0, %s55
      %s70 = sphi 0, %s56
      %s74 = sphi 0, %s74
      %s76 = sphi 0, %s74
      %s77 = sphi 0, %s76
      %s91 = sphi 0, %s77
      %s95 = sphi 0, %s95
      %s97 = sphi 0, %s95
      %s98 = sphi 0, %s97
      %s112 = sphi 0, %s98
      %s116 = sphi 0, %s116
      %s118 = sphi 0, %s116
      %s119 = sphi 0, %s118
      %s133 = sphi 0, %s119
      %s137 = sphi 0, %s137
      %s139 = sphi 0, %s137
      %s140 = sphi 0, %s139
      %s154 = sphi 0, %s140
      %s158 = sphi 0, %s158
      %s160 = sphi 0, %s158
      %s161 = sphi 0, %s160
      %s175 = sphi 0, %s161
      %s179 = sphi 0, %s179
      %s181 = sphi 0, %s179
      %s182 = sphi 0, %s181
      %s196 = sphi 0, %s182
      %s200 = sphi 0, %s200
      %s202 = sphi 0, %s200
      %s203 = sphi 0, %s202
      %s217 = sphi 0, %s203
      %s223 = sphi 0, %s225
      %s226 = sphi 0, %s223
      %s227 = sphi 0, %s226
      %s243 = sphi 0, %s227
    $region4: #{tpu_custom_call.1} parent=1 // loop_header_branch
      %22 = sbr.rel (%p20) target = $region8
    $region5: #{tpu_custom_call.1} parent=1 // loop_body
      %s24 = ssub.s32 %s19, 1
      %s25 = ssub.s32 %s19, 2
      %s26 = sadd.s32 %s19, 1
      %s27 = ssub.s32 %s19, %s26
      %p28 = scmp.eq.s32.totalorder %s27, 0
      %s30 = sadd.s32 %s29, 1
      %s31 = scalar_select %p28, %s29, %s30
      %p34 = pneg %p28
      %p35 = scmp.eq.s32.totalorder %s19, 1
      %p36 = por %p34, %p35
      %p37 = scmp.ne.s32.totalorder %s29, %s32
      %p38 = scmp.eq.s32.totalorder %s19, 0
      %p39 = por %p37, %p38
      %p40 = scmp.ne.s32.totalorder %s29, %s32
      %p41 = scmp.eq.s32.totalorder %s24, 1
      %p42 = por %p40, %p41
      %p43 = scmp.ne.s32.totalorder %s32, %s33
      %p44 = scmp.eq.s32.totalorder %s24, 0
      %p45 = por %p43, %p44
      %p46 = scmp.ne.s32.totalorder %s32, %s33
      %p47 = scmp.eq.s32.totalorder %s25, 1
      %p48 = por %p46, %p47
      %p50 = scmp.ne.s32.totalorder %s33, %s49
      %p51 = scmp.eq.s32.totalorder %s25, 0
      %p52 = por %p50, %p51
      %s54 = sadd.s32 %s53, 1
      %p57 = scmp.eq.s32.totalorder %s19, 1
      %p58 = scmp.ne.s32.totalorder %s53, %s55
      %p59 = scmp.eq.s32.totalorder %s19, 0
      %p60 = por %p58, %p59
      %p61 = scmp.ne.s32.totalorder %s53, %s55
      %p62 = scmp.eq.s32.totalorder %s24, 1
      %p63 = por %p61, %p62
      %p64 = scmp.ne.s32.totalorder %s55, %s56
      %p65 = scmp.eq.s32.totalorder %s24, 0
      %p66 = por %p64, %p65
      %p67 = scmp.ne.s32.totalorder %s55, %s56
      %p68 = scmp.eq.s32.totalorder %s25, 1
      %p69 = por %p67, %p68
      %p71 = scmp.ne.s32.totalorder %s56, %s70
      %p72 = scmp.eq.s32.totalorder %s25, 0
      %p73 = por %p71, %p72
      %s75 = sadd.s32 %s74, 1
      %p78 = scmp.eq.s32.totalorder %s19, 1
      %p79 = scmp.ne.s32.totalorder %s74, %s76
      %p80 = scmp.eq.s32.totalorder %s19, 0
      %p81 = por %p79, %p80
      %p82 = scmp.ne.s32.totalorder %s74, %s76
      %p83 = scmp.eq.s32.totalorder %s24, 1
      %p84 = por %p82, %p83
      %p85 = scmp.ne.s32.totalorder %s76, %s77
      %p86 = scmp.eq.s32.totalorder %s24, 0
      %p87 = por %p85, %p86
      %p88 = scmp.ne.s32.totalorder %s76, %s77
      %p89 = scmp.eq.s32.totalorder %s25, 1
      %p90 = por %p88, %p89
      %p92 = scmp.ne.s32.totalorder %s77, %s91
      %p93 = scmp.eq.s32.totalorder %s25, 0
      %p94 = por %p92, %p93
      %s96 = sadd.s32 %s95, 1
      %p99 = scmp.eq.s32.totalorder %s19, 1
      %p100 = scmp.ne.s32.totalorder %s95, %s97
      %p101 = scmp.eq.s32.totalorder %s19, 0
      %p102 = por %p100, %p101
      %p103 = scmp.ne.s32.totalorder %s95, %s97
      %p104 = scmp.eq.s32.totalorder %s24, 1
      %p105 = por %p103, %p104
      %p106 = scmp.ne.s32.totalorder %s97, %s98
      %p107 = scmp.eq.s32.totalorder %s24, 0
      %p108 = por %p106, %p107
      %p109 = scmp.ne.s32.totalorder %s97, %s98
      %p110 = scmp.eq.s32.totalorder %s25, 1
      %p111 = por %p109, %p110
      %p113 = scmp.ne.s32.totalorder %s98, %s112
      %p114 = scmp.eq.s32.totalorder %s25, 0
      %p115 = por %p113, %p114
      %s117 = sadd.s32 %s116, 1
      %p120 = scmp.eq.s32.totalorder %s19, 1
      %p121 = scmp.ne.s32.totalorder %s116, %s118
      %p122 = scmp.eq.s32.totalorder %s19, 0
      %p123 = por %p121, %p122
      %p124 = scmp.ne.s32.totalorder %s116, %s118
      %p125 = scmp.eq.s32.totalorder %s24, 1
      %p126 = por %p124, %p125
      %p127 = scmp.ne.s32.totalorder %s118, %s119
      %p128 = scmp.eq.s32.totalorder %s24, 0
      %p129 = por %p127, %p128
      %p130 = scmp.ne.s32.totalorder %s118, %s119
      %p131 = scmp.eq.s32.totalorder %s25, 1
      %p132 = por %p130, %p131
      %p134 = scmp.ne.s32.totalorder %s119, %s133
      %p135 = scmp.eq.s32.totalorder %s25, 0
      %p136 = por %p134, %p135
      %s138 = sadd.s32 %s137, 1
      %p141 = scmp.eq.s32.totalorder %s19, 1
      %p142 = scmp.ne.s32.totalorder %s137, %s139
      %p143 = scmp.eq.s32.totalorder %s19, 0
      %p144 = por %p142, %p143
      %p145 = scmp.ne.s32.totalorder %s137, %s139
      %p146 = scmp.eq.s32.totalorder %s24, 1
      %p147 = por %p145, %p146
      %p148 = scmp.ne.s32.totalorder %s139, %s140
      %p149 = scmp.eq.s32.totalorder %s24, 0
      %p150 = por %p148, %p149
      %p151 = scmp.ne.s32.totalorder %s139, %s140
      %p152 = scmp.eq.s32.totalorder %s25, 1
      %p153 = por %p151, %p152
      %p155 = scmp.ne.s32.totalorder %s140, %s154
      %p156 = scmp.eq.s32.totalorder %s25, 0
      %p157 = por %p155, %p156
      %s159 = sadd.s32 %s158, 1
      %p162 = scmp.eq.s32.totalorder %s19, 1
      %p163 = scmp.ne.s32.totalorder %s158, %s160
      %p164 = scmp.eq.s32.totalorder %s19, 0
      %p165 = por %p163, %p164
      %p166 = scmp.ne.s32.totalorder %s158, %s160
      %p167 = scmp.eq.s32.totalorder %s24, 1
      %p168 = por %p166, %p167
      %p169 = scmp.ne.s32.totalorder %s160, %s161
      %p170 = scmp.eq.s32.totalorder %s24, 0
      %p171 = por %p169, %p170
      %p172 = scmp.ne.s32.totalorder %s160, %s161
      %p173 = scmp.eq.s32.totalorder %s25, 1
      %p174 = por %p172, %p173
      %p176 = scmp.ne.s32.totalorder %s161, %s175
      %p177 = scmp.eq.s32.totalorder %s25, 0
      %p178 = por %p176, %p177
      %s180 = sadd.s32 %s179, 1
      %p183 = scmp.eq.s32.totalorder %s19, 1
      %p184 = scmp.ne.s32.totalorder %s179, %s181
      %p185 = scmp.eq.s32.totalorder %s19, 0
      %p186 = por %p184, %p185
      %p187 = scmp.ne.s32.totalorder %s179, %s181
      %p188 = scmp.eq.s32.totalorder %s24, 1
      %p189 = por %p187, %p188
      %p190 = scmp.ne.s32.totalorder %s181, %s182
      %p191 = scmp.eq.s32.totalorder %s24, 0
      %p192 = por %p190, %p191
      %p193 = scmp.ne.s32.totalorder %s181, %s182
      %p194 = scmp.eq.s32.totalorder %s25, 1
      %p195 = por %p193, %p194
      %p197 = scmp.ne.s32.totalorder %s182, %s196
      %p198 = scmp.eq.s32.totalorder %s25, 0
      %p199 = por %p197, %p198
      %s201 = sadd.s32 %s200, 1
      %p204 = scmp.eq.s32.totalorder %s19, 1
      %p205 = scmp.ne.s32.totalorder %s200, %s202
      %p206 = scmp.eq.s32.totalorder %s19, 0
      %p207 = por %p205, %p206
      %p208 = scmp.ne.s32.totalorder %s200, %s202
      %p209 = scmp.eq.s32.totalorder %s24, 1
      %p210 = por %p208, %p209
      %p211 = scmp.ne.s32.totalorder %s202, %s203
      %p212 = scmp.eq.s32.totalorder %s24, 0
      %p213 = por %p211, %p212
      %p214 = scmp.ne.s32.totalorder %s202, %s203
      %p215 = scmp.eq.s32.totalorder %s25, 1
      %p216 = por %p214, %p215
      %p218 = scmp.ne.s32.totalorder %s203, %s217
      %p219 = scmp.eq.s32.totalorder %s25, 0
      %p220 = por %p218, %p219
      %s221 = ssub.s32 %s19, %s26
      %p222 = scmp.eq.s32.totalorder %s221, 0
      %s224 = sadd.s32 %s223, 1
      %s225 = scalar_select %p222, %s223, %s224
      %p228 = pneg %p222
      %p229 = scmp.eq.s32.totalorder %s19, 1
      %p230 = por %p228, %p229
      %p231 = scmp.ne.s32.totalorder %s223, %s226
      %p232 = scmp.eq.s32.totalorder %s19, 0
      %p233 = por %p231, %p232
      %p234 = scmp.ne.s32.totalorder %s223, %s226
      %p235 = scmp.eq.s32.totalorder %s24, 1
      %p236 = por %p234, %p235
      %p237 = scmp.ne.s32.totalorder %s226, %s227
      %p238 = scmp.eq.s32.totalorder %s24, 0
      %p239 = por %p237, %p238
      %p240 = scmp.ne.s32.totalorder %s226, %s227
      %p241 = scmp.eq.s32.totalorder %s25, 1
      %p242 = por %p240, %p241
      %p244 = scmp.ne.s32.totalorder %s227, %s243
      %p245 = scmp.eq.s32.totalorder %s25, 0
      %p246 = por %p244, %p245
      %p247 = scmp.le.s32.totalorder 1, %s19
      %p248 = scmp.lt.s32.totalorder %s19, 3
      %p249 = pnand %p247, %p248
      %p250 = pneg %p249
      // Predicated region
      $region9: #{tpu_custom_call.1} parent=5 // pred_check
        _
      $region10: #{tpu_custom_call.1} parent=5 // pred_check_branch
        %252 = sbr.rel (%p249) target = $region12
      $region11: #{tpu_custom_call.1} parent=5 // pred_region
        %s253 = ssub.s32 %s19, 1
        // Predicated region
        $region13: #{tpu_custom_call.1} parent=11 // pred_check
          %p254 = pneg %p66
        $region14: #{tpu_custom_call.1} parent=11 // pred_check_branch
          %256 = sbr.rel (%p254) target = $region16
        $region15: #{tpu_custom_call.1} parent=11 // pred_region
          _
        $region16: #{tpu_custom_call.1} parent=11 // pred_fallthru
          _
        // Predicated region
        $region17: #{tpu_custom_call.1} parent=11 // pred_check
          %p257 = pneg %p87
        $region18: #{tpu_custom_call.1} parent=11 // pred_check_branch
          %259 = sbr.rel (%p257) target = $region20
        $region19: #{tpu_custom_call.1} parent=11 // pred_region
          _
        $region20: #{tpu_custom_call.1} parent=11 // pred_fallthru
          _
        // Predicated region
        $region21: #{tpu_custom_call.1} parent=11 // pred_check
          %p260 = pneg %p108
        $region22: #{tpu_custom_call.1} parent=11 // pred_check_branch
          %262 = sbr.rel (%p260) target = $region24
        $region23: #{tpu_custom_call.1} parent=11 // pred_region
          _
        $region24: #{tpu_custom_call.1} parent=11 // pred_fallthru
          _
        // Predicated region
        $region25: #{tpu_custom_call.1} parent=11 // pred_check
          %p263 = pneg %p129
        $region26: #{tpu_custom_call.1} parent=11 // pred_check_branch
          %265 = sbr.rel (%p263) target = $region28
        $region27: #{tpu_custom_call.1} parent=11 // pred_region
          _
        $region28: #{tpu_custom_call.1} parent=11 // pred_fallthru
          _
        // Predicated region
        $region29: #{tpu_custom_call.1} parent=11 // pred_check
          %p266 = pneg %p150
        $region30: #{tpu_custom_call.1} parent=11 // pred_check_branch
          %268 = sbr.rel (%p266) target = $region32
        $region31: #{tpu_custom_call.1} parent=11 // pred_region
          _
        $region32: #{tpu_custom_call.1} parent=11 // pred_fallthru
          _
        // Predicated region
        $region33: #{tpu_custom_call.1} parent=11 // pred_check
          %p269 = pneg %p171
        $region34: #{tpu_custom_call.1} parent=11 // pred_check_branch
          %271 = sbr.rel (%p269) target = $region36
        $region35: #{tpu_custom_call.1} parent=11 // pred_region
          _
        $region36: #{tpu_custom_call.1} parent=11 // pred_fallthru
          _
        // Predicated region
        $region37: #{tpu_custom_call.1} parent=11 // pred_check
          %p272 = pneg %p192
        $region38: #{tpu_custom_call.1} parent=11 // pred_check_branch
          %274 = sbr.rel (%p272) target = $region40
        $region39: #{tpu_custom_call.1} parent=11 // pred_region
          %276 = vsyncadd [#allocation3], 0
          %s277 = sshll.u32 %s7, 4
          %s278 = int_to_ptr.hbm [resolvable:$true] %s277
          %s279 = sshll.u32 [#allocation2], 4
          %s280 = int_to_ptr.vmem [resolvable:$true] %s279
          %285 = dma.hbm_to_vmem [thread:$0]  %s278, 4096, %s280, [#allocation3], 64, 64, 4
        $region40: #{tpu_custom_call.1} parent=11 // pred_fallthru
          _
        // Predicated region
        $region41: #{tpu_custom_call.1} parent=11 // pred_check
          %p286 = pneg %p213
        $region42: #{tpu_custom_call.1} parent=11 // pred_check_branch
          %288 = sbr.rel (%p286) target = $region44
        $region43: #{tpu_custom_call.1} parent=11 // pred_region
          _
        $region44: #{tpu_custom_call.1} parent=11 // pred_fallthru
          _
      $region12: #{tpu_custom_call.1} parent=5 // pred_fallthru
        _
      %p289 = scmp.lt.s32.totalorder %s19, 2
      // Predicated region
      $region45: #{tpu_custom_call.1} parent=5 // pred_check
        %p290 = pneg %p289
      $region46: #{tpu_custom_call.1} parent=5 // pred_check_branch
        %292 = sbr.rel (%p290) target = $region48
      $region47: #{tpu_custom_call.1} parent=5 // pred_region
        // Predicated region
        $region49: #{tpu_custom_call.1} parent=47 // pred_check
          %p293 = pneg %p39
        $region50: #{tpu_custom_call.1} parent=47 // pred_check_branch
          %295 = sbr.rel (%p293) target = $region52
        $region51: #{tpu_custom_call.1} parent=47 // pred_region
          %s296 = smul.u32 32, %s19
          %p297 = scmp.lt.s32.totalorder %s296, 63
          %s298 = scalar_select %p297, %s296, 63
          %s299 = smul.addr %s298, 8
          %s300 = scalar_lea.vmem %s0, %s299
          %s301 = smul.u32 32, %s19
        $region52: #{tpu_custom_call.1} parent=47 // pred_fallthru
          _
      $region48: #{tpu_custom_call.1} parent=5 // pred_fallthru
        _
      %p302 = scmp.le.s32.totalorder 1, %s19
      %p303 = scmp.lt.s32.totalorder %s19, 3
      %p304 = pnand %p302, %p303
      %p305 = pneg %p304
      // Predicated region
      $region53: #{tpu_custom_call.1} parent=5 // pred_check
        _
      $region54: #{tpu_custom_call.1} parent=5 // pred_check_branch
        %307 = sbr.rel (%p304) target = $region56
      $region55: #{tpu_custom_call.1} parent=5 // pred_region
        %s308 = ssub.s32 %s19, 1
        // Predicated region
        $region57: #{tpu_custom_call.1} parent=55 // pred_check
          %p309 = pneg %p192
        $region58: #{tpu_custom_call.1} parent=55 // pred_check_branch
          %311 = sbr.rel (%p309) target = $region60
        $region59: #{tpu_custom_call.1} parent=55 // pred_region
          %313 = dma.done [#allocation3], 4096
        $region60: #{tpu_custom_call.1} parent=55 // pred_fallthru
          _
        %s314 = smul.u32 32, %s24
        %p315 = scmp.lt.s32.totalorder %s314, 63
        %s316 = scalar_select %p315, %s314, 63
        %s317 = smul.addr %s316, 8
        %s318 = scalar_lea.vmem %s0, %s317
        %p319 = pneg %p45
        %p320 = pneg %p42
        %p321 = pneg %p66
        %p322 = pneg %p63
        %p323 = pneg %p87
        %p324 = pneg %p84
        %p325 = pneg %p108
        %p326 = pneg %p105
        %p327 = pneg %p129
        %p328 = pneg %p126
        %p329 = pneg %p150
        %p330 = pneg %p147
        %p331 = pneg %p171
        %p332 = pneg %p168
        %p333 = pneg %p192
        %p334 = pneg %p189
        %p335 = pneg %p213
        %p336 = pneg %p210
        %p337 = pneg %p239
        %p338 = pneg %p236
        %s339 = sand.u32 %s226, 1
        %s340 = scalar_lea.sflag [#allocation4], %s339
        %s341 = sand.u32 %s226, 1
        %s342 = smul.addr %s341, 256
        %s343 = scalar_lea.vmem [#allocation5], %s342
        %s344 = smul.u32 32, %s24
        %p345 = scmp.lt.s32.totalorder %s344, 63
        %s346 = scalar_select %p345, %s344, 63
        %s347 = smul.addr %s346, 8
        %s348 = scalar_lea.vmem %s0, %s347
        %s349 = smul.u32 32, %s24
        %s350 = smul.u32 32, %s24
        %v352 = vld [vmem:[%s348] sm:$0xff]
        %v353 = vld [vmem:[%s348 + $0x8] sm:$0xff]
        %v354 = vld [vmem:[%s348 + $0x10] sm:$0xff]
        %v355 = vld [vmem:[%s348 + $0x18] sm:$0xff]
        %v356 = vld [vmem:[%s348 + $0x20] sm:$0xff]
        %v357 = vld [vmem:[%s348 + $0x28] sm:$0xff]
        %v358 = vld [vmem:[%s348 + $0x30] sm:$0xff]
        %v359 = vld [vmem:[%s348 + $0x38] sm:$0xff]
        %v360 = vld [vmem:[%s348 + $0x40] sm:$0xff]
        %v361 = vld [vmem:[%s348 + $0x48] sm:$0xff]
        %v362 = vld [vmem:[%s348 + $0x50] sm:$0xff]
        %v363 = vld [vmem:[%s348 + $0x58] sm:$0xff]
        %v364 = vld [vmem:[%s348 + $0x60] sm:$0xff]
        %v365 = vld [vmem:[%s348 + $0x68] sm:$0xff]
        %v366 = vld [vmem:[%s348 + $0x70] sm:$0xff]
        %v367 = vld [vmem:[%s348 + $0x78] sm:$0xff]
        %v368 = vld [vmem:[%s348 + $0x80] sm:$0xff]
        %v369 = vld [vmem:[%s348 + $0x88] sm:$0xff]
        %v370 = vld [vmem:[%s348 + $0x90] sm:$0xff]
        %v371 = vld [vmem:[%s348 + $0x98] sm:$0xff]
        %v372 = vld [vmem:[%s348 + $0xa0] sm:$0xff]
        %v373 = vld [vmem:[%s348 + $0xa8] sm:$0xff]
        %v374 = vld [vmem:[%s348 + $0xb0] sm:$0xff]
        %v375 = vld [vmem:[%s348 + $0xb8] sm:$0xff]
        %v376 = vld [vmem:[%s348 + $0xc0] sm:$0xff]
        %v377 = vld [vmem:[%s348 + $0xc8] sm:$0xff]
        %v378 = vld [vmem:[%s348 + $0xd0] sm:$0xff]
        %v379 = vld [vmem:[%s348 + $0xd8] sm:$0xff]
        %v380 = vld [vmem:[%s348 + $0xe0] sm:$0xff]
        %v381 = vld [vmem:[%s348 + $0xe8] sm:$0xff]
        %v382 = vld [vmem:[%s348 + $0xf0] sm:$0xff]
        %v383 = vld [vmem:[%s348 + $0xf8] sm:$0xff]
        %v384 = vpack.c.bf16 %v353, %v352
        %v385 = vpack.c.bf16 %v355, %v354
        %v386 = vpack.c.bf16 %v357, %v356
        %v387 = vpack.c.bf16 %v359, %v358
        %v388 = vpack.c.bf16 %v361, %v360
        %v389 = vpack.c.bf16 %v363, %v362
        %v390 = vpack.c.bf16 %v365, %v364
        %v391 = vpack.c.bf16 %v367, %v366
        %v392 = vpack.c.bf16 %v369, %v368
        %v393 = vpack.c.bf16 %v371, %v370
        %v394 = vpack.c.bf16 %v373, %v372
        %v395 = vpack.c.bf16 %v375, %v374
        %v396 = vpack.c.bf16 %v377, %v376
        %v397 = vpack.c.bf16 %v379, %v378
        %v398 = vpack.c.bf16 %v381, %v380
        %v399 = vpack.c.bf16 %v383, %v382
        %v400 = vld [vmem:[%s1] sm:$0xff]
        %v401 = vld [vmem:[%s1 + $0x8] sm:$0xff]
        %v402 = vld [vmem:[%s1 + $0x10] sm:$0xff]
        %v403 = vld [vmem:[%s1 + $0x18] sm:$0xff]
        %v404 = vld [vmem:[%s1 + $0x20] sm:$0xff]
        %v405 = vld [vmem:[%s1 + $0x28] sm:$0xff]
        %v406 = vld [vmem:[%s1 + $0x30] sm:$0xff]
        %v407 = vld [vmem:[%s1 + $0x38] sm:$0xff]
        %v408 = vld [vmem:[%s1 + $0x40] sm:$0xff]
        %v409 = vld [vmem:[%s1 + $0x48] sm:$0xff]
        %v410 = vld [vmem:[%s1 + $0x50] sm:$0xff]
        %v411 = vld [vmem:[%s1 + $0x58] sm:$0xff]
        %v412 = vld [vmem:[%s1 + $0x60] sm:$0x33]
        %v413 = vld [vmem:[%s2] sm:$0x3]
        %v415 = vperm.slane %v413, 0
        %v416 = vperm.slane %v413, 1
        %v432 = vunpack.c.l.b16 %v400
        %v433 = vunpack.c.h.b16 %v400
        %v434 = vunpack.c.l.b16 %v401
        %v435 = vunpack.c.h.b16 %v401
        %v436 = vunpack.c.l.b16 %v402
        %v437 = vunpack.c.h.b16 %v402
        %v438 = vunpack.c.l.b16 %v403
        %v439 = vunpack.c.h.b16 %v403
        %v440 = vunpack.c.l.b16 %v404
        %v441 = vunpack.c.h.b16 %v404
        %v442 = vunpack.c.l.b16 %v405
        %v443 = vunpack.c.h.b16 %v405
        %v444 = vunpack.c.l.b16 %v406
        %v445 = vunpack.c.h.b16 %v406
        %v446 = vunpack.c.l.b16 %v407
        %v447 = vunpack.c.h.b16 %v407
        %v448 = vunpack.c.l.b16 %v408
        %v449 = vunpack.c.h.b16 %v408
        %v450 = vunpack.c.l.b16 %v409
        %v451 = vunpack.c.h.b16 %v409
        %v452 = vunpack.c.l.b16 %v410
        %v453 = vunpack.c.h.b16 %v410
        %v454 = vunpack.c.l.b16 %v411
        %v455 = vunpack.c.h.b16 %v411
        %v456 = vunpack.c.l.b16 %v412
        %v457 = vunpack.c.h.b16 %v412
        %v458 = vpack.c.b16 %v434, %v432
        %v459 = vpack.c.b16 %v435, %v433
        %v460 = vpack.c.b16 %v438, %v436
        %v461 = vpack.c.b16 %v439, %v437
        %v462 = vpack.c.b16 %v442, %v440
        %v463 = vpack.c.b16 %v443, %v441
        %v464 = vpack.c.b16 %v446, %v444
        %v465 = vpack.c.b16 %v447, %v445
        %v466 = vpack.c.b16 %v450, %v448
        %v467 = vpack.c.b16 %v451, %v449
        %v468 = vpack.c.b16 %v454, %v452
        %v469 = vpack.c.b16 %v455, %v453
        %v470 = vpack.c.b16 %v456, %v456
        %v471 = vpack.c.b16 %v457, %v457
        %vm484 = vcmask 818176
        %v486 = vsel %vm484, %v384, 0
        %v489 = vsel %vm484, %v385, 0
        %v492 = vsel %vm484, %v386, 0
        %v495 = vsel %vm484, %v387, 0
        %v498 = vsel %vm484, %v388, 0
        %v501 = vsel %vm484, %v389, 0
        %v504 = vsel %vm484, %v390, 0
        %v507 = vsel %vm484, %v391, 0
        %v510 = vsel %vm484, %v392, 0
        %v513 = vsel %vm484, %v393, 0
        %v516 = vsel %vm484, %v394, 0
        %v519 = vsel %vm484, %v395, 0
        %v522 = vsel %vm484, %v396, 0
        %v525 = vsel %vm484, %v397, 0
        %v528 = vsel %vm484, %v398, 0
        %v531 = vsel %vm484, %v399, 0
        %vm533 = vcmask 1041408
        %v535 = vsel %vm533, %v470, 0
        %v538 = vsel %vm533, %v471, 0
        %540 = vmatpush.bf16.msra.mxu0 0
        %541 = vmatpush.bf16.msra.mxu0 %v535
        %542 = vmatpush.bf16.msra.mxu0 %v468
        %543 = vmatpush.bf16.msra.mxu0 %v466
        %544 = vmatpush.bf16.msra.mxu0 %v464
        %545 = vmatpush.bf16.msra.mxu0 %v462
        %546 = vmatpush.bf16.msra.mxu0 %v460
        %547 = vmatpush.bf16.msra.mxu0 %v458
        %548 = vmatmul.bf16.gmra.mxu0 %v486
        %v549 = vpop.f32.mrf.mxu0
        %v550 = vadd.f32 %v415, %v549
        %v551 = vpop.f32.mrf.mxu0
        %v552 = vadd.f32 %v415, %v551
        %553 = vmatmul.bf16.gmra.mxu0 %v489
        %v554 = vpop.f32.mrf.mxu0
        %v555 = vadd.f32 %v415, %v554
        %v556 = vpop.f32.mrf.mxu0
        %v557 = vadd.f32 %v415, %v556
        %558 = vmatmul.bf16.gmra.mxu0 %v492
        %v559 = vpop.f32.mrf.mxu0
        %v560 = vadd.f32 %v415, %v559
        %v561 = vpop.f32.mrf.mxu0
        %v562 = vadd.f32 %v415, %v561
        %563 = vmatmul.bf16.gmra.mxu0 %v495
        %v564 = vpop.f32.mrf.mxu0
        %v565 = vadd.f32 %v415, %v564
        %v566 = vpop.f32.mrf.mxu0
        %v567 = vadd.f32 %v415, %v566
        %568 = vmatmul.bf16.gmra.mxu0 %v498
        %v569 = vpop.f32.mrf.mxu0
        %v570 = vadd.f32 %v415, %v569
        %v571 = vpop.f32.mrf.mxu0
        %v572 = vadd.f32 %v415, %v571
        %573 = vmatmul.bf16.gmra.mxu0 %v501
        %v574 = vpop.f32.mrf.mxu0
        %v575 = vadd.f32 %v415, %v574
        %v576 = vpop.f32.mrf.mxu0
        %v577 = vadd.f32 %v415, %v576
        %578 = vmatmul.bf16.gmra.mxu0 %v504
        %v579 = vpop.f32.mrf.mxu0
        %v580 = vadd.f32 %v415, %v579
        %v581 = vpop.f32.mrf.mxu0
        %v582 = vadd.f32 %v415, %v581
        %583 = vmatmul.bf16.gmra.mxu0 %v507
        %v584 = vpop.f32.mrf.mxu0
        %v585 = vadd.f32 %v415, %v584
        %v586 = vpop.f32.mrf.mxu0
        %v587 = vadd.f32 %v415, %v586
        %588 = vmatmul.bf16.gmra.mxu0 %v510
        %v589 = vpop.f32.mrf.mxu0
        %v590 = vadd.f32 %v415, %v589
        %v591 = vpop.f32.mrf.mxu0
        %v592 = vadd.f32 %v415, %v591
        %593 = vmatmul.bf16.gmra.mxu0 %v513
        %v594 = vpop.f32.mrf.mxu0
        %v595 = vadd.f32 %v415, %v594
        %v596 = vpop.f32.mrf.mxu0
        %v597 = vadd.f32 %v415, %v596
        %598 = vmatmul.bf16.gmra.mxu0 %v516
        %v599 = vpop.f32.mrf.mxu0
        %v600 = vadd.f32 %v415, %v599
        %v601 = vpop.f32.mrf.mxu0
        %v602 = vadd.f32 %v415, %v601
        %603 = vmatmul.bf16.gmra.mxu0 %v519
        %v604 = vpop.f32.mrf.mxu0
        %v605 = vadd.f32 %v415, %v604
        %v606 = vpop.f32.mrf.mxu0
        %v607 = vadd.f32 %v415, %v606
        %608 = vmatmul.bf16.gmra.mxu0 %v522
        %v609 = vpop.f32.mrf.mxu0
        %v610 = vadd.f32 %v415, %v609
        %v611 = vpop.f32.mrf.mxu0
        %v612 = vadd.f32 %v415, %v611
        %613 = vmatmul.bf16.gmra.mxu0 %v525
        %v614 = vpop.f32.mrf.mxu0
        %v615 = vadd.f32 %v415, %v614
        %v616 = vpop.f32.mrf.mxu0
        %v617 = vadd.f32 %v415, %v616
        %618 = vmatmul.bf16.gmra.mxu0 %v528
        %v619 = vpop.f32.mrf.mxu0
        %v620 = vadd.f32 %v415, %v619
        %v621 = vpop.f32.mrf.mxu0
        %v622 = vadd.f32 %v415, %v621
        %623 = vmatmul.bf16.gmra.mxu0 %v531
        %v624 = vpop.f32.mrf.mxu0
        %v625 = vadd.f32 %v415, %v624
        %v626 = vpop.f32.mrf.mxu0
        %v627 = vadd.f32 %v415, %v626
        %628 = vdwg.mxu0
        %629 = vmatpush.bf16.msra.mxu0 0
        %630 = vmatpush.bf16.msra.mxu0 %v538
        %631 = vmatpush.bf16.msra.mxu0 %v469
        %632 = vmatpush.bf16.msra.mxu0 %v467
        %633 = vmatpush.bf16.msra.mxu0 %v465
        %634 = vmatpush.bf16.msra.mxu0 %v463
        %635 = vmatpush.bf16.msra.mxu0 %v461
        %636 = vmatpush.bf16.msra.mxu0 %v459
        %637 = vmatmul.bf16.gmra.mxu0 %v486
        %v638 = vpop.f32.mrf.mxu0
        %v639 = vadd.f32 %v416, %v638
        %v640 = vpop.f32.mrf.mxu0
        %v641 = vadd.f32 %v416, %v640
        %642 = vmatmul.bf16.gmra.mxu0 %v489
        %v643 = vpop.f32.mrf.mxu0
        %v644 = vadd.f32 %v416, %v643
        %v645 = vpop.f32.mrf.mxu0
        %v646 = vadd.f32 %v416, %v645
        %647 = vmatmul.bf16.gmra.mxu0 %v492
        %v648 = vpop.f32.mrf.mxu0
        %v649 = vadd.f32 %v416, %v648
        %v650 = vpop.f32.mrf.mxu0
        %v651 = vadd.f32 %v416, %v650
        %652 = vmatmul.bf16.gmra.mxu0 %v495
        %v653 = vpop.f32.mrf.mxu0
        %v654 = vadd.f32 %v416, %v653
        %v655 = vpop.f32.mrf.mxu0
        %v656 = vadd.f32 %v416, %v655
        %657 = vmatmul.bf16.gmra.mxu0 %v498
        %v658 = vpop.f32.mrf.mxu0
        %v659 = vadd.f32 %v416, %v658
        %v660 = vpop.f32.mrf.mxu0
        %v661 = vadd.f32 %v416, %v660
        %662 = vmatmul.bf16.gmra.mxu0 %v501
        %v663 = vpop.f32.mrf.mxu0
        %v664 = vadd.f32 %v416, %v663
        %v665 = vpop.f32.mrf.mxu0
        %v666 = vadd.f32 %v416, %v665
        %667 = vmatmul.bf16.gmra.mxu0 %v504
        %v668 = vpop.f32.mrf.mxu0
        %v669 = vadd.f32 %v416, %v668
        %v670 = vpop.f32.mrf.mxu0
        %v671 = vadd.f32 %v416, %v670
        %672 = vmatmul.bf16.gmra.mxu0 %v507
        %v673 = vpop.f32.mrf.mxu0
        %v674 = vadd.f32 %v416, %v673
        %v675 = vpop.f32.mrf.mxu0
        %v676 = vadd.f32 %v416, %v675
        %677 = vmatmul.bf16.gmra.mxu0 %v510
        %v678 = vpop.f32.mrf.mxu0
        %v679 = vadd.f32 %v416, %v678
        %v680 = vpop.f32.mrf.mxu0
        %v681 = vadd.f32 %v416, %v680
        %682 = vmatmul.bf16.gmra.mxu0 %v513
        %v683 = vpop.f32.mrf.mxu0
        %v684 = vadd.f32 %v416, %v683
        %v685 = vpop.f32.mrf.mxu0
        %v686 = vadd.f32 %v416, %v685
        %687 = vmatmul.bf16.gmra.mxu0 %v516
        %v688 = vpop.f32.mrf.mxu0
        %v689 = vadd.f32 %v416, %v688
        %v690 = vpop.f32.mrf.mxu0
        %v691 = vadd.f32 %v416, %v690
        %692 = vmatmul.bf16.gmra.mxu0 %v519
        %v693 = vpop.f32.mrf.mxu0
        %v694 = vadd.f32 %v416, %v693
        %v695 = vpop.f32.mrf.mxu0
        %v696 = vadd.f32 %v416, %v695
        %697 = vmatmul.bf16.gmra.mxu0 %v522
        %v698 = vpop.f32.mrf.mxu0
        %v699 = vadd.f32 %v416, %v698
        %v700 = vpop.f32.mrf.mxu0
        %v701 = vadd.f32 %v416, %v700
        %702 = vmatmul.bf16.gmra.mxu0 %v525
        %v703 = vpop.f32.mrf.mxu0
        %v704 = vadd.f32 %v416, %v703
        %v705 = vpop.f32.mrf.mxu0
        %v706 = vadd.f32 %v416, %v705
        %707 = vmatmul.bf16.gmra.mxu0 %v528
        %v708 = vpop.f32.mrf.mxu0
        %v709 = vadd.f32 %v416, %v708
        %v710 = vpop.f32.mrf.mxu0
        %v711 = vadd.f32 %v416, %v710
        %712 = vmatmul.bf16.gmra.mxu0 %v531
        %v713 = vpop.f32.mrf.mxu0
        %v714 = vadd.f32 %v416, %v713
        %v715 = vpop.f32.mrf.mxu0
        %v716 = vadd.f32 %v416, %v715
        %717 = vdwg.mxu0
        %v718 = vmax.f32 %v550, 0.0
        %v719 = vmax.f32 %v639, 0.0
        %v720 = vmax.f32 %v552, 0.0
        %v721 = vmax.f32 %v641, 0.0
        %v722 = vmax.f32 %v555, 0.0
        %v723 = vmax.f32 %v644, 0.0
        %v724 = vmax.f32 %v557, 0.0
        %v725 = vmax.f32 %v646, 0.0
        %v726 = vmax.f32 %v560, 0.0
        %v727 = vmax.f32 %v649, 0.0
        %v728 = vmax.f32 %v562, 0.0
        %v729 = vmax.f32 %v651, 0.0
        %v730 = vmax.f32 %v565, 0.0
        %v731 = vmax.f32 %v654, 0.0
        %v732 = vmax.f32 %v567, 0.0
        %v733 = vmax.f32 %v656, 0.0
        %v734 = vmax.f32 %v570, 0.0
        %v735 = vmax.f32 %v659, 0.0
        %v736 = vmax.f32 %v572, 0.0
        %v737 = vmax.f32 %v661, 0.0
        %v738 = vmax.f32 %v575, 0.0
        %v739 = vmax.f32 %v664, 0.0
        %v740 = vmax.f32 %v577, 0.0
        %v741 = vmax.f32 %v666, 0.0
        %v742 = vmax.f32 %v580, 0.0
        %v743 = vmax.f32 %v669, 0.0
        %v744 = vmax.f32 %v582, 0.0
        %v745 = vmax.f32 %v671, 0.0
        %v746 = vmax.f32 %v585, 0.0
        %v747 = vmax.f32 %v674, 0.0
        %v748 = vmax.f32 %v587, 0.0
        %v749 = vmax.f32 %v676, 0.0
        %v750 = vmax.f32 %v590, 0.0
        %v751 = vmax.f32 %v679, 0.0
        %v752 = vmax.f32 %v592, 0.0
        %v753 = vmax.f32 %v681, 0.0
        %v754 = vmax.f32 %v595, 0.0
        %v755 = vmax.f32 %v684, 0.0
        %v756 = vmax.f32 %v597, 0.0
        %v757 = vmax.f32 %v686, 0.0
        %v758 = vmax.f32 %v600, 0.0
        %v759 = vmax.f32 %v689, 0.0
        %v760 = vmax.f32 %v602, 0.0
        %v761 = vmax.f32 %v691, 0.0
        %v762 = vmax.f32 %v605, 0.0
        %v763 = vmax.f32 %v694, 0.0
        %v764 = vmax.f32 %v607, 0.0
        %v765 = vmax.f32 %v696, 0.0
        %v766 = vmax.f32 %v610, 0.0
        %v767 = vmax.f32 %v699, 0.0
        %v768 = vmax.f32 %v612, 0.0
        %v769 = vmax.f32 %v701, 0.0
        %v770 = vmax.f32 %v615, 0.0
        %v771 = vmax.f32 %v704, 0.0
        %v772 = vmax.f32 %v617, 0.0
        %v773 = vmax.f32 %v706, 0.0
        %v774 = vmax.f32 %v620, 0.0
        %v775 = vmax.f32 %v709, 0.0
        %v776 = vmax.f32 %v622, 0.0
        %v777 = vmax.f32 %v711, 0.0
        %v778 = vmax.f32 %v625, 0.0
        %v779 = vmax.f32 %v714, 0.0
        %v780 = vmax.f32 %v627, 0.0
        %v781 = vmax.f32 %v716, 0.0
        %v782 = vpack.c.bf16 %v720, %v718
        %v783 = vpack.c.bf16 %v721, %v719
        %v784 = vpack.c.bf16 %v724, %v722
        %v785 = vpack.c.bf16 %v725, %v723
        %v786 = vpack.c.bf16 %v728, %v726
        %v787 = vpack.c.bf16 %v729, %v727
        %v788 = vpack.c.bf16 %v732, %v730
        %v789 = vpack.c.bf16 %v733, %v731
        %v790 = vpack.c.bf16 %v736, %v734
        %v791 = vpack.c.bf16 %v737, %v735
        %v792 = vpack.c.bf16 %v740, %v738
        %v793 = vpack.c.bf16 %v741, %v739
        %v794 = vpack.c.bf16 %v744, %v742
        %v795 = vpack.c.bf16 %v745, %v743
        %v796 = vpack.c.bf16 %v748, %v746
        %v797 = vpack.c.bf16 %v749, %v747
        %v798 = vpack.c.bf16 %v752, %v750
        %v799 = vpack.c.bf16 %v753, %v751
        %v800 = vpack.c.bf16 %v756, %v754
        %v801 = vpack.c.bf16 %v757, %v755
        %v802 = vpack.c.bf16 %v760, %v758
        %v803 = vpack.c.bf16 %v761, %v759
        %v804 = vpack.c.bf16 %v764, %v762
        %v805 = vpack.c.bf16 %v765, %v763
        %v806 = vpack.c.bf16 %v768, %v766
        %v807 = vpack.c.bf16 %v769, %v767
        %v808 = vpack.c.bf16 %v772, %v770
        %v809 = vpack.c.bf16 %v773, %v771
        %v810 = vpack.c.bf16 %v776, %v774
        %v811 = vpack.c.bf16 %v777, %v775
        %v812 = vpack.c.bf16 %v780, %v778
        %v813 = vpack.c.bf16 %v781, %v779
        %v814 = vld [vmem:[%s3] sm:$0xff]
        %v815 = vld [vmem:[%s3 + $0x8] sm:$0xff]
        %v816 = vld [vmem:[%s3 + $0x10] sm:$0xff]
        %v817 = vld [vmem:[%s3 + $0x18] sm:$0xff]
        %v818 = vld [vmem:[%s3 + $0x20] sm:$0xff]
        %v819 = vld [vmem:[%s3 + $0x28] sm:$0xff]
        %v820 = vld [vmem:[%s3 + $0x30] sm:$0xff]
        %v821 = vld [vmem:[%s3 + $0x38] sm:$0xff]
        %v822 = vld [vmem:[%s3 + $0x40] sm:$0xff]
        %v823 = vld [vmem:[%s3 + $0x48] sm:$0xff]
        %v824 = vld [vmem:[%s3 + $0x50] sm:$0xff]
        %v825 = vld [vmem:[%s3 + $0x58] sm:$0xff]
        %v826 = vld [vmem:[%s3 + $0x60] sm:$0xff]
        %v827 = vld [vmem:[%s3 + $0x68] sm:$0xff]
        %v828 = vld [vmem:[%s3 + $0x70] sm:$0xff]
        %v829 = vld [vmem:[%s3 + $0x78] sm:$0xff]
        %v830 = vld [vmem:[%s3 + $0x80] sm:$0xff]
        %v831 = vld [vmem:[%s3 + $0x88] sm:$0xff]
        %v832 = vld [vmem:[%s3 + $0x90] sm:$0xff]
        %v833 = vld [vmem:[%s3 + $0x98] sm:$0xff]
        %v834 = vld [vmem:[%s3 + $0xa0] sm:$0xff]
        %v835 = vld [vmem:[%s3 + $0xa8] sm:$0xff]
        %v836 = vld [vmem:[%s3 + $0xb0] sm:$0xff]
        %v837 = vld [vmem:[%s3 + $0xb8] sm:$0xff]
        %v838 = vld [vmem:[%s3 + $0xc0] sm:$0xff]
        %v839 = vld [vmem:[%s3 + $0xc8] sm:$0xff]
        %v840 = vld [vmem:[%s3 + $0xd0] sm:$0xff]
        %v841 = vld [vmem:[%s3 + $0xd8] sm:$0xff]
        %v842 = vld [vmem:[%s3 + $0xe0] sm:$0xff]
        %v843 = vld [vmem:[%s3 + $0xe8] sm:$0xff]
        %v844 = vld [vmem:[%s3 + $0xf0] sm:$0xff]
        %v845 = vld [vmem:[%s3 + $0xf8] sm:$0xff]
        %v846 = vld [vmem:[%s4] sm:$0x3]
        %v848 = vperm.slane %v846, 0
        %v849 = vperm.slane %v846, 1
        %v884 = vunpack.c.l.b16 %v814
        %v885 = vunpack.c.h.b16 %v814
        %v886 = vunpack.c.l.b16 %v815
        %v887 = vunpack.c.h.b16 %v815
        %v888 = vunpack.c.l.b16 %v816
        %v889 = vunpack.c.h.b16 %v816
        %v890 = vunpack.c.l.b16 %v817
        %v891 = vunpack.c.h.b16 %v817
        %v892 = vunpack.c.l.b16 %v818
        %v893 = vunpack.c.h.b16 %v818
        %v894 = vunpack.c.l.b16 %v819
        %v895 = vunpack.c.h.b16 %v819
        %v896 = vunpack.c.l.b16 %v820
        %v897 = vunpack.c.h.b16 %v820
        %v898 = vunpack.c.l.b16 %v821
        %v899 = vunpack.c.h.b16 %v821
        %v900 = vunpack.c.l.b16 %v822
        %v901 = vunpack.c.h.b16 %v822
        %v902 = vunpack.c.l.b16 %v823
        %v903 = vunpack.c.h.b16 %v823
        %v904 = vunpack.c.l.b16 %v824
        %v905 = vunpack.c.h.b16 %v824
        %v906 = vunpack.c.l.b16 %v825
        %v907 = vunpack.c.h.b16 %v825
        %v908 = vunpack.c.l.b16 %v826
        %v909 = vunpack.c.h.b16 %v826
        %v910 = vunpack.c.l.b16 %v827
        %v911 = vunpack.c.h.b16 %v827
        %v912 = vunpack.c.l.b16 %v828
        %v913 = vunpack.c.h.b16 %v828
        %v914 = vunpack.c.l.b16 %v829
        %v915 = vunpack.c.h.b16 %v829
        %v916 = vunpack.c.l.b16 %v830
        %v917 = vunpack.c.h.b16 %v830
        %v918 = vunpack.c.l.b16 %v831
        %v919 = vunpack.c.h.b16 %v831
        %v920 = vunpack.c.l.b16 %v832
        %v921 = vunpack.c.h.b16 %v832
        %v922 = vunpack.c.l.b16 %v833
        %v923 = vunpack.c.h.b16 %v833
        %v924 = vunpack.c.l.b16 %v834
        %v925 = vunpack.c.h.b16 %v834
        %v926 = vunpack.c.l.b16 %v835
        %v927 = vunpack.c.h.b16 %v835
        %v928 = vunpack.c.l.b16 %v836
        %v929 = vunpack.c.h.b16 %v836
        %v930 = vunpack.c.l.b16 %v837
        %v931 = vunpack.c.h.b16 %v837
        %v932 = vunpack.c.l.b16 %v838
        %v933 = vunpack.c.h.b16 %v838
        %v934 = vunpack.c.l.b16 %v839
        %v935 = vunpack.c.h.b16 %v839
        %v936 = vunpack.c.l.b16 %v840
        %v937 = vunpack.c.h.b16 %v840
        %v938 = vunpack.c.l.b16 %v841
        %v939 = vunpack.c.h.b16 %v841
        %v940 = vunpack.c.l.b16 %v842
        %v941 = vunpack.c.h.b16 %v842
        %v942 = vunpack.c.l.b16 %v843
        %v943 = vunpack.c.h.b16 %v843
        %v944 = vunpack.c.l.b16 %v844
        %v945 = vunpack.c.h.b16 %v844
        %v946 = vunpack.c.l.b16 %v845
        %v947 = vunpack.c.h.b16 %v845
        %v948 = vpack.c.b16 %v886, %v884
        %v949 = vpack.c.b16 %v887, %v885
        %v950 = vpack.c.b16 %v890, %v888
        %v951 = vpack.c.b16 %v891, %v889
        %v952 = vpack.c.b16 %v894, %v892
        %v953 = vpack.c.b16 %v895, %v893
        %v954 = vpack.c.b16 %v898, %v896
        %v955 = vpack.c.b16 %v899, %v897
        %v956 = vpack.c.b16 %v902, %v900
        %v957 = vpack.c.b16 %v903, %v901
        %v958 = vpack.c.b16 %v906, %v904
        %v959 = vpack.c.b16 %v907, %v905
        %v960 = vpack.c.b16 %v910, %v908
        %v961 = vpack.c.b16 %v911, %v909
        %v962 = vpack.c.b16 %v914, %v912
        %v963 = vpack.c.b16 %v915, %v913
        %v964 = vpack.c.b16 %v918, %v916
        %v965 = vpack.c.b16 %v919, %v917
        %v966 = vpack.c.b16 %v922, %v920
        %v967 = vpack.c.b16 %v923, %v921
        %v968 = vpack.c.b16 %v926, %v924
        %v969 = vpack.c.b16 %v927, %v925
        %v970 = vpack.c.b16 %v930, %v928
        %v971 = vpack.c.b16 %v931, %v929
        %v972 = vpack.c.b16 %v934, %v932
        %v973 = vpack.c.b16 %v935, %v933
        %v974 = vpack.c.b16 %v938, %v936
        %v975 = vpack.c.b16 %v939, %v937
        %v976 = vpack.c.b16 %v942, %v940
        %v977 = vpack.c.b16 %v943, %v941
        %v978 = vpack.c.b16 %v946, %v944
        %v979 = vpack.c.b16 %v947, %v945
        %1012 = vmatpush.bf16.msra.mxu0 %v962
        %1013 = vmatpush.bf16.msra.mxu0 %v960
        %1014 = vmatpush.bf16.msra.mxu0 %v958
        %1015 = vmatpush.bf16.msra.mxu0 %v956
        %1016 = vmatpush.bf16.msra.mxu0 %v954
        %1017 = vmatpush.bf16.msra.mxu0 %v952
        %1018 = vmatpush.bf16.msra.mxu0 %v950
        %1019 = vmatpush.bf16.msra.mxu0 %v948
        %1020 = vmatmul.bf16.gmra.mxu0 %v782
        %v1021 = vpop.f32.mrf.mxu0
        %v1022 = vadd.f32 %v848, %v1021
        %v1023 = vpop.f32.mrf.mxu0
        %v1024 = vadd.f32 %v848, %v1023
        %1025 = vmatmul.bf16.gmra.mxu0 %v784
        %v1026 = vpop.f32.mrf.mxu0
        %v1027 = vadd.f32 %v848, %v1026
        %v1028 = vpop.f32.mrf.mxu0
        %v1029 = vadd.f32 %v848, %v1028
        %1030 = vmatmul.bf16.gmra.mxu0 %v786
        %v1031 = vpop.f32.mrf.mxu0
        %v1032 = vadd.f32 %v848, %v1031
        %v1033 = vpop.f32.mrf.mxu0
        %v1034 = vadd.f32 %v848, %v1033
        %1035 = vmatmul.bf16.gmra.mxu0 %v788
        %v1036 = vpop.f32.mrf.mxu0
        %v1037 = vadd.f32 %v848, %v1036
        %v1038 = vpop.f32.mrf.mxu0
        %v1039 = vadd.f32 %v848, %v1038
        %1040 = vmatmul.bf16.gmra.mxu0 %v790
        %v1041 = vpop.f32.mrf.mxu0
        %v1042 = vadd.f32 %v848, %v1041
        %v1043 = vpop.f32.mrf.mxu0
        %v1044 = vadd.f32 %v848, %v1043
        %1045 = vmatmul.bf16.gmra.mxu0 %v792
        %v1046 = vpop.f32.mrf.mxu0
        %v1047 = vadd.f32 %v848, %v1046
        %v1048 = vpop.f32.mrf.mxu0
        %v1049 = vadd.f32 %v848, %v1048
        %1050 = vmatmul.bf16.gmra.mxu0 %v794
        %v1051 = vpop.f32.mrf.mxu0
        %v1052 = vadd.f32 %v848, %v1051
        %v1053 = vpop.f32.mrf.mxu0
        %v1054 = vadd.f32 %v848, %v1053
        %1055 = vmatmul.bf16.gmra.mxu0 %v796
        %v1056 = vpop.f32.mrf.mxu0
        %v1057 = vadd.f32 %v848, %v1056
        %v1058 = vpop.f32.mrf.mxu0
        %v1059 = vadd.f32 %v848, %v1058
        %1060 = vmatmul.bf16.gmra.mxu0 %v798
        %v1061 = vpop.f32.mrf.mxu0
        %v1062 = vadd.f32 %v848, %v1061
        %v1063 = vpop.f32.mrf.mxu0
        %v1064 = vadd.f32 %v848, %v1063
        %1065 = vmatmul.bf16.gmra.mxu0 %v800
        %v1066 = vpop.f32.mrf.mxu0
        %v1067 = vadd.f32 %v848, %v1066
        %v1068 = vpop.f32.mrf.mxu0
        %v1069 = vadd.f32 %v848, %v1068
        %1070 = vmatmul.bf16.gmra.mxu0 %v802
        %v1071 = vpop.f32.mrf.mxu0
        %v1072 = vadd.f32 %v848, %v1071
        %v1073 = vpop.f32.mrf.mxu0
        %v1074 = vadd.f32 %v848, %v1073
        %1075 = vmatmul.bf16.gmra.mxu0 %v804
        %v1076 = vpop.f32.mrf.mxu0
        %v1077 = vadd.f32 %v848, %v1076
        %v1078 = vpop.f32.mrf.mxu0
        %v1079 = vadd.f32 %v848, %v1078
        %1080 = vmatmul.bf16.gmra.mxu0 %v806
        %v1081 = vpop.f32.mrf.mxu0
        %v1082 = vadd.f32 %v848, %v1081
        %v1083 = vpop.f32.mrf.mxu0
        %v1084 = vadd.f32 %v848, %v1083
        %1085 = vmatmul.bf16.gmra.mxu0 %v808
        %v1086 = vpop.f32.mrf.mxu0
        %v1087 = vadd.f32 %v848, %v1086
        %v1088 = vpop.f32.mrf.mxu0
        %v1089 = vadd.f32 %v848, %v1088
        %1090 = vmatmul.bf16.gmra.mxu0 %v810
        %v1091 = vpop.f32.mrf.mxu0
        %v1092 = vadd.f32 %v848, %v1091
        %v1093 = vpop.f32.mrf.mxu0
        %v1094 = vadd.f32 %v848, %v1093
        %1095 = vmatmul.bf16.gmra.mxu0 %v812
        %v1096 = vpop.f32.mrf.mxu0
        %v1097 = vadd.f32 %v848, %v1096
        %v1098 = vpop.f32.mrf.mxu0
        %v1099 = vadd.f32 %v848, %v1098
        %1100 = vdwg.mxu0
        %1101 = vmatpush.bf16.msra.mxu0 %v978
        %1102 = vmatpush.bf16.msra.mxu0 %v976
        %1103 = vmatpush.bf16.msra.mxu0 %v974
        %1104 = vmatpush.bf16.msra.mxu0 %v972
        %1105 = vmatpush.bf16.msra.mxu0 %v970
        %1106 = vmatpush.bf16.msra.mxu0 %v968
        %1107 = vmatpush.bf16.msra.mxu0 %v966
        %1108 = vmatpush.bf16.msra.mxu0 %v964
        %1109 = vmatmul.bf16.gmra.mxu0 %v783
        %v1110 = vpop.f32.mrf.mxu0
        %v1111 = vadd.f32 %v1022, %v1110
        %v1112 = vpop.f32.mrf.mxu0
        %v1113 = vadd.f32 %v1024, %v1112
        %1114 = vmatmul.bf16.gmra.mxu0 %v785
        %v1115 = vpop.f32.mrf.mxu0
        %v1116 = vadd.f32 %v1027, %v1115
        %v1117 = vpop.f32.mrf.mxu0
        %v1118 = vadd.f32 %v1029, %v1117
        %1119 = vmatmul.bf16.gmra.mxu0 %v787
        %v1120 = vpop.f32.mrf.mxu0
        %v1121 = vadd.f32 %v1032, %v1120
        %v1122 = vpop.f32.mrf.mxu0
        %v1123 = vadd.f32 %v1034, %v1122
        %1124 = vmatmul.bf16.gmra.mxu0 %v789
        %v1125 = vpop.f32.mrf.mxu0
        %v1126 = vadd.f32 %v1037, %v1125
        %v1127 = vpop.f32.mrf.mxu0
        %v1128 = vadd.f32 %v1039, %v1127
        %1129 = vmatmul.bf16.gmra.mxu0 %v791
        %v1130 = vpop.f32.mrf.mxu0
        %v1131 = vadd.f32 %v1042, %v1130
        %v1132 = vpop.f32.mrf.mxu0
        %v1133 = vadd.f32 %v1044, %v1132
        %1134 = vmatmul.bf16.gmra.mxu0 %v793
        %v1135 = vpop.f32.mrf.mxu0
        %v1136 = vadd.f32 %v1047, %v1135
        %v1137 = vpop.f32.mrf.mxu0
        %v1138 = vadd.f32 %v1049, %v1137
        %1139 = vmatmul.bf16.gmra.mxu0 %v795
        %v1140 = vpop.f32.mrf.mxu0
        %v1141 = vadd.f32 %v1052, %v1140
        %v1142 = vpop.f32.mrf.mxu0
        %v1143 = vadd.f32 %v1054, %v1142
        %1144 = vmatmul.bf16.gmra.mxu0 %v797
        %v1145 = vpop.f32.mrf.mxu0
        %v1146 = vadd.f32 %v1057, %v1145
        %v1147 = vpop.f32.mrf.mxu0
        %v1148 = vadd.f32 %v1059, %v1147
        %1149 = vmatmul.bf16.gmra.mxu0 %v799
        %v1150 = vpop.f32.mrf.mxu0
        %v1151 = vadd.f32 %v1062, %v1150
        %v1152 = vpop.f32.mrf.mxu0
        %v1153 = vadd.f32 %v1064, %v1152
        %1154 = vmatmul.bf16.gmra.mxu0 %v801
        %v1155 = vpop.f32.mrf.mxu0
        %v1156 = vadd.f32 %v1067, %v1155
        %v1157 = vpop.f32.mrf.mxu0
        %v1158 = vadd.f32 %v1069, %v1157
        %1159 = vmatmul.bf16.gmra.mxu0 %v803
        %v1160 = vpop.f32.mrf.mxu0
        %v1161 = vadd.f32 %v1072, %v1160
        %v1162 = vpop.f32.mrf.mxu0
        %v1163 = vadd.f32 %v1074, %v1162
        %1164 = vmatmul.bf16.gmra.mxu0 %v805
        %v1165 = vpop.f32.mrf.mxu0
        %v1166 = vadd.f32 %v1077, %v1165
        %v1167 = vpop.f32.mrf.mxu0
        %v1168 = vadd.f32 %v1079, %v1167
        %1169 = vmatmul.bf16.gmra.mxu0 %v807
        %v1170 = vpop.f32.mrf.mxu0
        %v1171 = vadd.f32 %v1082, %v1170
        %v1172 = vpop.f32.mrf.mxu0
        %v1173 = vadd.f32 %v1084, %v1172
        %1174 = vmatmul.bf16.gmra.mxu0 %v809
        %v1175 = vpop.f32.mrf.mxu0
        %v1176 = vadd.f32 %v1087, %v1175
        %v1177 = vpop.f32.mrf.mxu0
        %v1178 = vadd.f32 %v1089, %v1177
        %1179 = vmatmul.bf16.gmra.mxu0 %v811
        %v1180 = vpop.f32.mrf.mxu0
        %v1181 = vadd.f32 %v1092, %v1180
        %v1182 = vpop.f32.mrf.mxu0
        %v1183 = vadd.f32 %v1094, %v1182
        %1184 = vmatmul.bf16.gmra.mxu0 %v813
        %v1185 = vpop.f32.mrf.mxu0
        %v1186 = vadd.f32 %v1097, %v1185
        %v1187 = vpop.f32.mrf.mxu0
        %v1188 = vadd.f32 %v1099, %v1187
        %1189 = vdwg.mxu0
        %1190 = vmatpush.bf16.msra.mxu0 %v963
        %1191 = vmatpush.bf16.msra.mxu0 %v961
        %1192 = vmatpush.bf16.msra.mxu0 %v959
        %1193 = vmatpush.bf16.msra.mxu0 %v957
        %1194 = vmatpush.bf16.msra.mxu0 %v955
        %1195 = vmatpush.bf16.msra.mxu0 %v953
        %1196 = vmatpush.bf16.msra.mxu0 %v951
        %1197 = vmatpush.bf16.msra.mxu0 %v949
        %1198 = vmatmul.bf16.gmra.mxu0 %v782
        %v1199 = vpop.f32.mrf.mxu0
        %v1200 = vadd.f32 %v849, %v1199
        %v1201 = vpop.f32.mrf.mxu0
        %v1202 = vadd.f32 %v849, %v1201
        %1203 = vmatmul.bf16.gmra.mxu0 %v784
        %v1204 = vpop.f32.mrf.mxu0
        %v1205 = vadd.f32 %v849, %v1204
        %v1206 = vpop.f32.mrf.mxu0
        %v1207 = vadd.f32 %v849, %v1206
        %1208 = vmatmul.bf16.gmra.mxu0 %v786
        %v1209 = vpop.f32.mrf.mxu0
        %v1210 = vadd.f32 %v849, %v1209
        %v1211 = vpop.f32.mrf.mxu0
        %v1212 = vadd.f32 %v849, %v1211
        %1213 = vmatmul.bf16.gmra.mxu0 %v788
        %v1214 = vpop.f32.mrf.mxu0
        %v1215 = vadd.f32 %v849, %v1214
        %v1216 = vpop.f32.mrf.mxu0
        %v1217 = vadd.f32 %v849, %v1216
        %1218 = vmatmul.bf16.gmra.mxu0 %v790
        %v1219 = vpop.f32.mrf.mxu0
        %v1220 = vadd.f32 %v849, %v1219
        %v1221 = vpop.f32.mrf.mxu0
        %v1222 = vadd.f32 %v849, %v1221
        %1223 = vmatmul.bf16.gmra.mxu0 %v792
        %v1224 = vpop.f32.mrf.mxu0
        %v1225 = vadd.f32 %v849, %v1224
        %v1226 = vpop.f32.mrf.mxu0
        %v1227 = vadd.f32 %v849, %v1226
        %1228 = vmatmul.bf16.gmra.mxu0 %v794
        %v1229 = vpop.f32.mrf.mxu0
        %v1230 = vadd.f32 %v849, %v1229
        %v1231 = vpop.f32.mrf.mxu0
        %v1232 = vadd.f32 %v849, %v1231
        %1233 = vmatmul.bf16.gmra.mxu0 %v796
        %v1234 = vpop.f32.mrf.mxu0
        %v1235 = vadd.f32 %v849, %v1234
        %v1236 = vpop.f32.mrf.mxu0
        %v1237 = vadd.f32 %v849, %v1236
        %1238 = vmatmul.bf16.gmra.mxu0 %v798
        %v1239 = vpop.f32.mrf.mxu0
        %v1240 = vadd.f32 %v849, %v1239
        %v1241 = vpop.f32.mrf.mxu0
        %v1242 = vadd.f32 %v849, %v1241
        %1243 = vmatmul.bf16.gmra.mxu0 %v800
        %v1244 = vpop.f32.mrf.mxu0
        %v1245 = vadd.f32 %v849, %v1244
        %v1246 = vpop.f32.mrf.mxu0
        %v1247 = vadd.f32 %v849, %v1246
        %1248 = vmatmul.bf16.gmra.mxu0 %v802
        %v1249 = vpop.f32.mrf.mxu0
        %v1250 = vadd.f32 %v849, %v1249
        %v1251 = vpop.f32.mrf.mxu0
        %v1252 = vadd.f32 %v849, %v1251
        %1253 = vmatmul.bf16.gmra.mxu0 %v804
        %v1254 = vpop.f32.mrf.mxu0
        %v1255 = vadd.f32 %v849, %v1254
        %v1256 = vpop.f32.mrf.mxu0
        %v1257 = vadd.f32 %v849, %v1256
        %1258 = vmatmul.bf16.gmra.mxu0 %v806
        %v1259 = vpop.f32.mrf.mxu0
        %v1260 = vadd.f32 %v849, %v1259
        %v1261 = vpop.f32.mrf.mxu0
        %v1262 = vadd.f32 %v849, %v1261
        %1263 = vmatmul.bf16.gmra.mxu0 %v808
        %v1264 = vpop.f32.mrf.mxu0
        %v1265 = vadd.f32 %v849, %v1264
        %v1266 = vpop.f32.mrf.mxu0
        %v1267 = vadd.f32 %v849, %v1266
        %1268 = vmatmul.bf16.gmra.mxu0 %v810
        %v1269 = vpop.f32.mrf.mxu0
        %v1270 = vadd.f32 %v849, %v1269
        %v1271 = vpop.f32.mrf.mxu0
        %v1272 = vadd.f32 %v849, %v1271
        %1273 = vmatmul.bf16.gmra.mxu0 %v812
        %v1274 = vpop.f32.mrf.mxu0
        %v1275 = vadd.f32 %v849, %v1274
        %v1276 = vpop.f32.mrf.mxu0
        %v1277 = vadd.f32 %v849, %v1276
        %1278 = vdwg.mxu0
        %1279 = vmatpush.bf16.msra.mxu0 %v979
        %1280 = vmatpush.bf16.msra.mxu0 %v977
        %1281 = vmatpush.bf16.msra.mxu0 %v975
        %1282 = vmatpush.bf16.msra.mxu0 %v973
        %1283 = vmatpush.bf16.msra.mxu0 %v971
        %1284 = vmatpush.bf16.msra.mxu0 %v969
        %1285 = vmatpush.bf16.msra.mxu0 %v967
        %1286 = vmatpush.bf16.msra.mxu0 %v965
        %1287 = vmatmul.bf16.gmra.mxu0 %v783
        %v1288 = vpop.f32.mrf.mxu0
        %v1289 = vadd.f32 %v1200, %v1288
        %v1290 = vpop.f32.mrf.mxu0
        %v1291 = vadd.f32 %v1202, %v1290
        %1292 = vmatmul.bf16.gmra.mxu0 %v785
        %v1293 = vpop.f32.mrf.mxu0
        %v1294 = vadd.f32 %v1205, %v1293
        %v1295 = vpop.f32.mrf.mxu0
        %v1296 = vadd.f32 %v1207, %v1295
        %1297 = vmatmul.bf16.gmra.mxu0 %v787
        %v1298 = vpop.f32.mrf.mxu0
        %v1299 = vadd.f32 %v1210, %v1298
        %v1300 = vpop.f32.mrf.mxu0
        %v1301 = vadd.f32 %v1212, %v1300
        %1302 = vmatmul.bf16.gmra.mxu0 %v789
        %v1303 = vpop.f32.mrf.mxu0
        %v1304 = vadd.f32 %v1215, %v1303
        %v1305 = vpop.f32.mrf.mxu0
        %v1306 = vadd.f32 %v1217, %v1305
        %1307 = vmatmul.bf16.gmra.mxu0 %v791
        %v1308 = vpop.f32.mrf.mxu0
        %v1309 = vadd.f32 %v1220, %v1308
        %v1310 = vpop.f32.mrf.mxu0
        %v1311 = vadd.f32 %v1222, %v1310
        %1312 = vmatmul.bf16.gmra.mxu0 %v793
        %v1313 = vpop.f32.mrf.mxu0
        %v1314 = vadd.f32 %v1225, %v1313
        %v1315 = vpop.f32.mrf.mxu0
        %v1316 = vadd.f32 %v1227, %v1315
        %1317 = vmatmul.bf16.gmra.mxu0 %v795
        %v1318 = vpop.f32.mrf.mxu0
        %v1319 = vadd.f32 %v1230, %v1318
        %v1320 = vpop.f32.mrf.mxu0
        %v1321 = vadd.f32 %v1232, %v1320
        %1322 = vmatmul.bf16.gmra.mxu0 %v797
        %v1323 = vpop.f32.mrf.mxu0
        %v1324 = vadd.f32 %v1235, %v1323
        %v1325 = vpop.f32.mrf.mxu0
        %v1326 = vadd.f32 %v1237, %v1325
        %1327 = vmatmul.bf16.gmra.mxu0 %v799
        %v1328 = vpop.f32.mrf.mxu0
        %v1329 = vadd.f32 %v1240, %v1328
        %v1330 = vpop.f32.mrf.mxu0
        %v1331 = vadd.f32 %v1242, %v1330
        %1332 = vmatmul.bf16.gmra.mxu0 %v801
        %v1333 = vpop.f32.mrf.mxu0
        %v1334 = vadd.f32 %v1245, %v1333
        %v1335 = vpop.f32.mrf.mxu0
        %v1336 = vadd.f32 %v1247, %v1335
        %1337 = vmatmul.bf16.gmra.mxu0 %v803
        %v1338 = vpop.f32.mrf.mxu0
        %v1339 = vadd.f32 %v1250, %v1338
        %v1340 = vpop.f32.mrf.mxu0
        %v1341 = vadd.f32 %v1252, %v1340
        %1342 = vmatmul.bf16.gmra.mxu0 %v805
        %v1343 = vpop.f32.mrf.mxu0
        %v1344 = vadd.f32 %v1255, %v1343
        %v1345 = vpop.f32.mrf.mxu0
        %v1346 = vadd.f32 %v1257, %v1345
        %1347 = vmatmul.bf16.gmra.mxu0 %v807
        %v1348 = vpop.f32.mrf.mxu0
        %v1349 = vadd.f32 %v1260, %v1348
        %v1350 = vpop.f32.mrf.mxu0
        %v1351 = vadd.f32 %v1262, %v1350
        %1352 = vmatmul.bf16.gmra.mxu0 %v809
        %v1353 = vpop.f32.mrf.mxu0
        %v1354 = vadd.f32 %v1265, %v1353
        %v1355 = vpop.f32.mrf.mxu0
        %v1356 = vadd.f32 %v1267, %v1355
        %1357 = vmatmul.bf16.gmra.mxu0 %v811
        %v1358 = vpop.f32.mrf.mxu0
        %v1359 = vadd.f32 %v1270, %v1358
        %v1360 = vpop.f32.mrf.mxu0
        %v1361 = vadd.f32 %v1272, %v1360
        %1362 = vmatmul.bf16.gmra.mxu0 %v813
        %v1363 = vpop.f32.mrf.mxu0
        %v1364 = vadd.f32 %v1275, %v1363
        %v1365 = vpop.f32.mrf.mxu0
        %v1366 = vadd.f32 %v1277, %v1365
        %1367 = vdwg.mxu0
        %v1368 = vmax.f32 %v1111, 0.0
        %v1369 = vmax.f32 %v1289, 0.0
        %v1370 = vmax.f32 %v1113, 0.0
        %v1371 = vmax.f32 %v1291, 0.0
        %v1372 = vmax.f32 %v1116, 0.0
        %v1373 = vmax.f32 %v1294, 0.0
        %v1374 = vmax.f32 %v1118, 0.0
        %v1375 = vmax.f32 %v1296, 0.0
        %v1376 = vmax.f32 %v1121, 0.0
        %v1377 = vmax.f32 %v1299, 0.0
        %v1378 = vmax.f32 %v1123, 0.0
        %v1379 = vmax.f32 %v1301, 0.0
        %v1380 = vmax.f32 %v1126, 0.0
        %v1381 = vmax.f32 %v1304, 0.0
        %v1382 = vmax.f32 %v1128, 0.0
        %v1383 = vmax.f32 %v1306, 0.0
        %v1384 = vmax.f32 %v1131, 0.0
        %v1385 = vmax.f32 %v1309, 0.0
        %v1386 = vmax.f32 %v1133, 0.0
        %v1387 = vmax.f32 %v1311, 0.0
        %v1388 = vmax.f32 %v1136, 0.0
        %v1389 = vmax.f32 %v1314, 0.0
        %v1390 = vmax.f32 %v1138, 0.0
        %v1391 = vmax.f32 %v1316, 0.0
        %v1392 = vmax.f32 %v1141, 0.0
        %v1393 = vmax.f32 %v1319, 0.0
        %v1394 = vmax.f32 %v1143, 0.0
        %v1395 = vmax.f32 %v1321, 0.0
        %v1396 = vmax.f32 %v1146, 0.0
        %v1397 = vmax.f32 %v1324, 0.0
        %v1398 = vmax.f32 %v1148, 0.0
        %v1399 = vmax.f32 %v1326, 0.0
        %v1400 = vmax.f32 %v1151, 0.0
        %v1401 = vmax.f32 %v1329, 0.0
        %v1402 = vmax.f32 %v1153, 0.0
        %v1403 = vmax.f32 %v1331, 0.0
        %v1404 = vmax.f32 %v1156, 0.0
        %v1405 = vmax.f32 %v1334, 0.0
        %v1406 = vmax.f32 %v1158, 0.0
        %v1407 = vmax.f32 %v1336, 0.0
        %v1408 = vmax.f32 %v1161, 0.0
        %v1409 = vmax.f32 %v1339, 0.0
        %v1410 = vmax.f32 %v1163, 0.0
        %v1411 = vmax.f32 %v1341, 0.0
        %v1412 = vmax.f32 %v1166, 0.0
        %v1413 = vmax.f32 %v1344, 0.0
        %v1414 = vmax.f32 %v1168, 0.0
        %v1415 = vmax.f32 %v1346, 0.0
        %v1416 = vmax.f32 %v1171, 0.0
        %v1417 = vmax.f32 %v1349, 0.0
        %v1418 = vmax.f32 %v1173, 0.0
        %v1419 = vmax.f32 %v1351, 0.0
        %v1420 = vmax.f32 %v1176, 0.0
        %v1421 = vmax.f32 %v1354, 0.0
        %v1422 = vmax.f32 %v1178, 0.0
        %v1423 = vmax.f32 %v1356, 0.0
        %v1424 = vmax.f32 %v1181, 0.0
        %v1425 = vmax.f32 %v1359, 0.0
        %v1426 = vmax.f32 %v1183, 0.0
        %v1427 = vmax.f32 %v1361, 0.0
        %v1428 = vmax.f32 %v1186, 0.0
        %v1429 = vmax.f32 %v1364, 0.0
        %v1430 = vmax.f32 %v1188, 0.0
        %v1431 = vmax.f32 %v1366, 0.0
        %v1432 = vpack.c.bf16 %v1370, %v1368
        %v1433 = vpack.c.bf16 %v1371, %v1369
        %v1434 = vpack.c.bf16 %v1374, %v1372
        %v1435 = vpack.c.bf16 %v1375, %v1373
        %v1436 = vpack.c.bf16 %v1378, %v1376
        %v1437 = vpack.c.bf16 %v1379, %v1377
        %v1438 = vpack.c.bf16 %v1382, %v1380
        %v1439 = vpack.c.bf16 %v1383, %v1381
        %v1440 = vpack.c.bf16 %v1386, %v1384
        %v1441 = vpack.c.bf16 %v1387, %v1385
        %v1442 = vpack.c.bf16 %v1390, %v1388
        %v1443 = vpack.c.bf16 %v1391, %v1389
        %v1444 = vpack.c.bf16 %v1394, %v1392
        %v1445 = vpack.c.bf16 %v1395, %v1393
        %v1446 = vpack.c.bf16 %v1398, %v1396
        %v1447 = vpack.c.bf16 %v1399, %v1397
        %v1448 = vpack.c.bf16 %v1402, %v1400
        %v1449 = vpack.c.bf16 %v1403, %v1401
        %v1450 = vpack.c.bf16 %v1406, %v1404
        %v1451 = vpack.c.bf16 %v1407, %v1405
        %v1452 = vpack.c.bf16 %v1410, %v1408
        %v1453 = vpack.c.bf16 %v1411, %v1409
        %v1454 = vpack.c.bf16 %v1414, %v1412
        %v1455 = vpack.c.bf16 %v1415, %v1413
        %v1456 = vpack.c.bf16 %v1418, %v1416
        %v1457 = vpack.c.bf16 %v1419, %v1417
        %v1458 = vpack.c.bf16 %v1422, %v1420
        %v1459 = vpack.c.bf16 %v1423, %v1421
        %v1460 = vpack.c.bf16 %v1426, %v1424
        %v1461 = vpack.c.bf16 %v1427, %v1425
        %v1462 = vpack.c.bf16 %v1430, %v1428
        %v1463 = vpack.c.bf16 %v1431, %v1429
        %v1464 = vld [vmem:[%s5] sm:$0xff]
        %v1465 = vld [vmem:[%s5 + $0x8] sm:$0xff]
        %v1466 = vld [vmem:[%s5 + $0x10] sm:$0xff]
        %v1467 = vld [vmem:[%s5 + $0x18] sm:$0xff]
        %v1468 = vld [vmem:[%s5 + $0x20] sm:$0xff]
        %v1469 = vld [vmem:[%s5 + $0x28] sm:$0xff]
        %v1470 = vld [vmem:[%s5 + $0x30] sm:$0xff]
        %v1471 = vld [vmem:[%s5 + $0x38] sm:$0xff]
        %v1472 = vld [vmem:[%s5 + $0x40] sm:$0xff]
        %v1473 = vld [vmem:[%s5 + $0x48] sm:$0xff]
        %v1474 = vld [vmem:[%s5 + $0x50] sm:$0xff]
        %v1475 = vld [vmem:[%s5 + $0x58] sm:$0xff]
        %v1476 = vld [vmem:[%s5 + $0x60] sm:$0xff]
        %v1477 = vld [vmem:[%s5 + $0x68] sm:$0xff]
        %v1478 = vld [vmem:[%s5 + $0x70] sm:$0xff]
        %v1479 = vld [vmem:[%s5 + $0x78] sm:$0xff]
        %v1480 = vld [vmem:[%s5 + $0x80] sm:$0xff]
        %v1481 = vld [vmem:[%s5 + $0x88] sm:$0xff]
        %v1482 = vld [vmem:[%s5 + $0x90] sm:$0xff]
        %v1483 = vld [vmem:[%s5 + $0x98] sm:$0xff]
        %v1484 = vld [vmem:[%s5 + $0xa0] sm:$0xff]
        %v1485 = vld [vmem:[%s5 + $0xa8] sm:$0xff]
        %v1486 = vld [vmem:[%s5 + $0xb0] sm:$0xff]
        %v1487 = vld [vmem:[%s5 + $0xb8] sm:$0xff]
        %v1488 = vld [vmem:[%s5 + $0xc0] sm:$0xff]
        %v1489 = vld [vmem:[%s5 + $0xc8] sm:$0xff]
        %v1490 = vld [vmem:[%s5 + $0xd0] sm:$0xff]
        %v1491 = vld [vmem:[%s5 + $0xd8] sm:$0xff]
        %v1492 = vld [vmem:[%s5 + $0xe0] sm:$0xff]
        %v1493 = vld [vmem:[%s5 + $0xe8] sm:$0xff]
        %v1494 = vld [vmem:[%s5 + $0xf0] sm:$0xff]
        %v1495 = vld [vmem:[%s5 + $0xf8] sm:$0xff]
        %v1496 = vld [vmem:[%s5 + $0x100] sm:$0xff]
        %v1497 = vld [vmem:[%s5 + $0x108] sm:$0xff]
        %v1498 = vld [vmem:[%s5 + $0x110] sm:$0xff]
        %v1499 = vld [vmem:[%s5 + $0x118] sm:$0xff]
        %v1500 = vld [vmem:[%s5 + $0x120] sm:$0xff]
        %v1501 = vld [vmem:[%s5 + $0x128] sm:$0xff]
        %v1502 = vld [vmem:[%s5 + $0x130] sm:$0xff]
        %v1503 = vld [vmem:[%s5 + $0x138] sm:$0xff]
        %v1504 = vld [vmem:[%s5 + $0x140] sm:$0xff]
        %v1505 = vld [vmem:[%s5 + $0x148] sm:$0xff]
        %v1506 = vld [vmem:[%s5 + $0x150] sm:$0xff]
        %v1507 = vld [vmem:[%s5 + $0x158] sm:$0xff]
        %v1508 = vld [vmem:[%s5 + $0x160] sm:$0xff]
        %v1509 = vld [vmem:[%s5 + $0x168] sm:$0xff]
        %v1510 = vld [vmem:[%s5 + $0x170] sm:$0xff]
        %v1511 = vld [vmem:[%s5 + $0x178] sm:$0xff]
        %v1512 = vld [vmem:[%s5 + $0x180] sm:$0xff]
        %v1513 = vld [vmem:[%s5 + $0x188] sm:$0xff]
        %v1514 = vld [vmem:[%s5 + $0x190] sm:$0xff]
        %v1515 = vld [vmem:[%s5 + $0x198] sm:$0xff]
        %v1516 = vld [vmem:[%s5 + $0x1a0] sm:$0xff]
        %v1517 = vld [vmem:[%s5 + $0x1a8] sm:$0xff]
        %v1518 = vld [vmem:[%s5 + $0x1b0] sm:$0xff]
        %v1519 = vld [vmem:[%s5 + $0x1b8] sm:$0xff]
        %v1520 = vld [vmem:[%s5 + $0x1c0] sm:$0xff]
        %v1521 = vld [vmem:[%s5 + $0x1c8] sm:$0xff]
        %v1522 = vld [vmem:[%s5 + $0x1d0] sm:$0xff]
        %v1523 = vld [vmem:[%s5 + $0x1d8] sm:$0xff]
        %v1524 = vld [vmem:[%s5 + $0x1e0] sm:$0xff]
        %v1525 = vld [vmem:[%s5 + $0x1e8] sm:$0xff]
        %v1526 = vld [vmem:[%s5 + $0x1f0] sm:$0xff]
        %v1527 = vld [vmem:[%s5 + $0x1f8] sm:$0xff]
        %v1528 = vld [vmem:[%s6] sm:$0xf]
        %v1530 = vperm.slane %v1528, 0
        %v1531 = vperm.slane %v1528, 1
        %v1532 = vperm.slane %v1528, 2
        %v1533 = vperm.slane %v1528, 3
        %v1602 = vunpack.c.l.b16 %v1464
        %v1603 = vunpack.c.h.b16 %v1464
        %v1604 = vunpack.c.l.b16 %v1465
        %v1605 = vunpack.c.h.b16 %v1465
        %v1606 = vunpack.c.l.b16 %v1466
        %v1607 = vunpack.c.h.b16 %v1466
        %v1608 = vunpack.c.l.b16 %v1467
        %v1609 = vunpack.c.h.b16 %v1467
        %v1610 = vunpack.c.l.b16 %v1468
        %v1611 = vunpack.c.h.b16 %v1468
        %v1612 = vunpack.c.l.b16 %v1469
        %v1613 = vunpack.c.h.b16 %v1469
        %v1614 = vunpack.c.l.b16 %v1470
        %v1615 = vunpack.c.h.b16 %v1470
        %v1616 = vunpack.c.l.b16 %v1471
        %v1617 = vunpack.c.h.b16 %v1471
        %v1618 = vunpack.c.l.b16 %v1472
        %v1619 = vunpack.c.h.b16 %v1472
        %v1620 = vunpack.c.l.b16 %v1473
        %v1621 = vunpack.c.h.b16 %v1473
        %v1622 = vunpack.c.l.b16 %v1474
        %v1623 = vunpack.c.h.b16 %v1474
        %v1624 = vunpack.c.l.b16 %v1475
        %v1625 = vunpack.c.h.b16 %v1475
        %v1626 = vunpack.c.l.b16 %v1476
        %v1627 = vunpack.c.h.b16 %v1476
        %v1628 = vunpack.c.l.b16 %v1477
        %v1629 = vunpack.c.h.b16 %v1477
        %v1630 = vunpack.c.l.b16 %v1478
        %v1631 = vunpack.c.h.b16 %v1478
        %v1632 = vunpack.c.l.b16 %v1479
        %v1633 = vunpack.c.h.b16 %v1479
        %v1634 = vunpack.c.l.b16 %v1480
        %v1635 = vunpack.c.h.b16 %v1480
        %v1636 = vunpack.c.l.b16 %v1481
        %v1637 = vunpack.c.h.b16 %v1481
        %v1638 = vunpack.c.l.b16 %v1482
        %v1639 = vunpack.c.h.b16 %v1482
        %v1640 = vunpack.c.l.b16 %v1483
        %v1641 = vunpack.c.h.b16 %v1483
        %v1642 = vunpack.c.l.b16 %v1484
        %v1643 = vunpack.c.h.b16 %v1484
        %v1644 = vunpack.c.l.b16 %v1485
        %v1645 = vunpack.c.h.b16 %v1485
        %v1646 = vunpack.c.l.b16 %v1486
        %v1647 = vunpack.c.h.b16 %v1486
        %v1648 = vunpack.c.l.b16 %v1487
        %v1649 = vunpack.c.h.b16 %v1487
        %v1650 = vunpack.c.l.b16 %v1488
        %v1651 = vunpack.c.h.b16 %v1488
        %v1652 = vunpack.c.l.b16 %v1489
        %v1653 = vunpack.c.h.b16 %v1489
        %v1654 = vunpack.c.l.b16 %v1490
        %v1655 = vunpack.c.h.b16 %v1490
        %v1656 = vunpack.c.l.b16 %v1491
        %v1657 = vunpack.c.h.b16 %v1491
        %v1658 = vunpack.c.l.b16 %v1492
        %v1659 = vunpack.c.h.b16 %v1492
        %v1660 = vunpack.c.l.b16 %v1493
        %v1661 = vunpack.c.h.b16 %v1493
        %v1662 = vunpack.c.l.b16 %v1494
        %v1663 = vunpack.c.h.b16 %v1494
        %v1664 = vunpack.c.l.b16 %v1495
        %v1665 = vunpack.c.h.b16 %v1495
        %v1666 = vunpack.c.l.b16 %v1496
        %v1667 = vunpack.c.h.b16 %v1496
        %v1668 = vunpack.c.l.b16 %v1497
        %v1669 = vunpack.c.h.b16 %v1497
        %v1670 = vunpack.c.l.b16 %v1498
        %v1671 = vunpack.c.h.b16 %v1498
        %v1672 = vunpack.c.l.b16 %v1499
        %v1673 = vunpack.c.h.b16 %v1499
        %v1674 = vunpack.c.l.b16 %v1500
        %v1675 = vunpack.c.h.b16 %v1500
        %v1676 = vunpack.c.l.b16 %v1501
        %v1677 = vunpack.c.h.b16 %v1501
        %v1678 = vunpack.c.l.b16 %v1502
        %v1679 = vunpack.c.h.b16 %v1502
        %v1680 = vunpack.c.l.b16 %v1503
        %v1681 = vunpack.c.h.b16 %v1503
        %v1682 = vunpack.c.l.b16 %v1504
        %v1683 = vunpack.c.h.b16 %v1504
        %v1684 = vunpack.c.l.b16 %v1505
        %v1685 = vunpack.c.h.b16 %v1505
        %v1686 = vunpack.c.l.b16 %v1506
        %v1687 = vunpack.c.h.b16 %v1506
        %v1688 = vunpack.c.l.b16 %v1507
        %v1689 = vunpack.c.h.b16 %v1507
        %v1690 = vunpack.c.l.b16 %v1508
        %v1691 = vunpack.c.h.b16 %v1508
        %v1692 = vunpack.c.l.b16 %v1509
        %v1693 = vunpack.c.h.b16 %v1509
        %v1694 = vunpack.c.l.b16 %v1510
        %v1695 = vunpack.c.h.b16 %v1510
        %v1696 = vunpack.c.l.b16 %v1511
        %v1697 = vunpack.c.h.b16 %v1511
        %v1698 = vunpack.c.l.b16 %v1512
        %v1699 = vunpack.c.h.b16 %v1512
        %v1700 = vunpack.c.l.b16 %v1513
        %v1701 = vunpack.c.h.b16 %v1513
        %v1702 = vunpack.c.l.b16 %v1514
        %v1703 = vunpack.c.h.b16 %v1514
        %v1704 = vunpack.c.l.b16 %v1515
        %v1705 = vunpack.c.h.b16 %v1515
        %v1706 = vunpack.c.l.b16 %v1516
        %v1707 = vunpack.c.h.b16 %v1516
        %v1708 = vunpack.c.l.b16 %v1517
        %v1709 = vunpack.c.h.b16 %v1517
        %v1710 = vunpack.c.l.b16 %v1518
        %v1711 = vunpack.c.h.b16 %v1518
        %v1712 = vunpack.c.l.b16 %v1519
        %v1713 = vunpack.c.h.b16 %v1519
        %v1714 = vunpack.c.l.b16 %v1520
        %v1715 = vunpack.c.h.b16 %v1520
        %v1716 = vunpack.c.l.b16 %v1521
        %v1717 = vunpack.c.h.b16 %v1521
        %v1718 = vunpack.c.l.b16 %v1522
        %v1719 = vunpack.c.h.b16 %v1522
        %v1720 = vunpack.c.l.b16 %v1523
        %v1721 = vunpack.c.h.b16 %v1523
        %v1722 = vunpack.c.l.b16 %v1524
        %v1723 = vunpack.c.h.b16 %v1524
        %v1724 = vunpack.c.l.b16 %v1525
        %v1725 = vunpack.c.h.b16 %v1525
        %v1726 = vunpack.c.l.b16 %v1526
        %v1727 = vunpack.c.h.b16 %v1526
        %v1728 = vunpack.c.l.b16 %v1527
        %v1729 = vunpack.c.h.b16 %v1527
        %v1730 = vpack.c.b16 %v1606, %v1602
        %v1731 = vpack.c.b16 %v1607, %v1603
        %v1732 = vpack.c.b16 %v1608, %v1604
        %v1733 = vpack.c.b16 %v1609, %v1605
        %v1734 = vpack.c.b16 %v1614, %v1610
        %v1735 = vpack.c.b16 %v1615, %v1611
        %v1736 = vpack.c.b16 %v1616, %v1612
        %v1737 = vpack.c.b16 %v1617, %v1613
        %v1738 = vpack.c.b16 %v1622, %v1618
        %v1739 = vpack.c.b16 %v1623, %v1619
        %v1740 = vpack.c.b16 %v1624, %v1620
        %v1741 = vpack.c.b16 %v1625, %v1621
        %v1742 = vpack.c.b16 %v1630, %v1626
        %v1743 = vpack.c.b16 %v1631, %v1627
        %v1744 = vpack.c.b16 %v1632, %v1628
        %v1745 = vpack.c.b16 %v1633, %v1629
        %v1746 = vpack.c.b16 %v1638, %v1634
        %v1747 = vpack.c.b16 %v1639, %v1635
        %v1748 = vpack.c.b16 %v1640, %v1636
        %v1749 = vpack.c.b16 %v1641, %v1637
        %v1750 = vpack.c.b16 %v1646, %v1642
        %v1751 = vpack.c.b16 %v1647, %v1643
        %v1752 = vpack.c.b16 %v1648, %v1644
        %v1753 = vpack.c.b16 %v1649, %v1645
        %v1754 = vpack.c.b16 %v1654, %v1650
        %v1755 = vpack.c.b16 %v1655, %v1651
        %v1756 = vpack.c.b16 %v1656, %v1652
        %v1757 = vpack.c.b16 %v1657, %v1653
        %v1758 = vpack.c.b16 %v1662, %v1658
        %v1759 = vpack.c.b16 %v1663, %v1659
        %v1760 = vpack.c.b16 %v1664, %v1660
        %v1761 = vpack.c.b16 %v1665, %v1661
        %v1762 = vpack.c.b16 %v1670, %v1666
        %v1763 = vpack.c.b16 %v1671, %v1667
        %v1764 = vpack.c.b16 %v1672, %v1668
        %v1765 = vpack.c.b16 %v1673, %v1669
        %v1766 = vpack.c.b16 %v1678, %v1674
        %v1767 = vpack.c.b16 %v1679, %v1675
        %v1768 = vpack.c.b16 %v1680, %v1676
        %v1769 = vpack.c.b16 %v1681, %v1677
        %v1770 = vpack.c.b16 %v1686, %v1682
        %v1771 = vpack.c.b16 %v1687, %v1683
        %v1772 = vpack.c.b16 %v1688, %v1684
        %v1773 = vpack.c.b16 %v1689, %v1685
        %v1774 = vpack.c.b16 %v1694, %v1690
        %v1775 = vpack.c.b16 %v1695, %v1691
        %v1776 = vpack.c.b16 %v1696, %v1692
        %v1777 = vpack.c.b16 %v1697, %v1693
        %v1778 = vpack.c.b16 %v1702, %v1698
        %v1779 = vpack.c.b16 %v1703, %v1699
        %v1780 = vpack.c.b16 %v1704, %v1700
        %v1781 = vpack.c.b16 %v1705, %v1701
        %v1782 = vpack.c.b16 %v1710, %v1706
        %v1783 = vpack.c.b16 %v1711, %v1707
        %v1784 = vpack.c.b16 %v1712, %v1708
        %v1785 = vpack.c.b16 %v1713, %v1709
        %v1786 = vpack.c.b16 %v1718, %v1714
        %v1787 = vpack.c.b16 %v1719, %v1715
        %v1788 = vpack.c.b16 %v1720, %v1716
        %v1789 = vpack.c.b16 %v1721, %v1717
        %v1790 = vpack.c.b16 %v1726, %v1722
        %v1791 = vpack.c.b16 %v1727, %v1723
        %v1792 = vpack.c.b16 %v1728, %v1724
        %v1793 = vpack.c.b16 %v1729, %v1725
        %1858 = vmatpush.bf16.msra.mxu0 %v1758
        %1859 = vmatpush.bf16.msra.mxu0 %v1754
        %1860 = vmatpush.bf16.msra.mxu0 %v1750
        %1861 = vmatpush.bf16.msra.mxu0 %v1746
        %1862 = vmatpush.bf16.msra.mxu0 %v1742
        %1863 = vmatpush.bf16.msra.mxu0 %v1738
        %1864 = vmatpush.bf16.msra.mxu0 %v1734
        %1865 = vmatpush.bf16.msra.mxu0 %v1730
        %1866 = vmatmul.bf16.gmra.mxu0 %v1432
        %v1867 = vpop.f32.mrf.mxu0
        %v1868 = vadd.f32 %v1530, %v1867
        %v1869 = vpop.f32.mrf.mxu0
        %v1870 = vadd.f32 %v1530, %v1869
        %1871 = vmatmul.bf16.gmra.mxu0 %v1434
        %v1872 = vpop.f32.mrf.mxu0
        %v1873 = vadd.f32 %v1530, %v1872
        %v1874 = vpop.f32.mrf.mxu0
        %v1875 = vadd.f32 %v1530, %v1874
        %1876 = vmatmul.bf16.gmra.mxu0 %v1436
        %v1877 = vpop.f32.mrf.mxu0
        %v1878 = vadd.f32 %v1530, %v1877
        %v1879 = vpop.f32.mrf.mxu0
        %v1880 = vadd.f32 %v1530, %v1879
        %1881 = vmatmul.bf16.gmra.mxu0 %v1438
        %v1882 = vpop.f32.mrf.mxu0
        %v1883 = vadd.f32 %v1530, %v1882
        %v1884 = vpop.f32.mrf.mxu0
        %v1885 = vadd.f32 %v1530, %v1884
        %1886 = vmatmul.bf16.gmra.mxu0 %v1440
        %v1887 = vpop.f32.mrf.mxu0
        %v1888 = vadd.f32 %v1530, %v1887
        %v1889 = vpop.f32.mrf.mxu0
        %v1890 = vadd.f32 %v1530, %v1889
        %1891 = vmatmul.bf16.gmra.mxu0 %v1442
        %v1892 = vpop.f32.mrf.mxu0
        %v1893 = vadd.f32 %v1530, %v1892
        %v1894 = vpop.f32.mrf.mxu0
        %v1895 = vadd.f32 %v1530, %v1894
        %1896 = vmatmul.bf16.gmra.mxu0 %v1444
        %v1897 = vpop.f32.mrf.mxu0
        %v1898 = vadd.f32 %v1530, %v1897
        %v1899 = vpop.f32.mrf.mxu0
        %v1900 = vadd.f32 %v1530, %v1899
        %1901 = vmatmul.bf16.gmra.mxu0 %v1446
        %v1902 = vpop.f32.mrf.mxu0
        %v1903 = vadd.f32 %v1530, %v1902
        %v1904 = vpop.f32.mrf.mxu0
        %v1905 = vadd.f32 %v1530, %v1904
        %1906 = vmatmul.bf16.gmra.mxu0 %v1448
        %v1907 = vpop.f32.mrf.mxu0
        %v1908 = vadd.f32 %v1530, %v1907
        %v1909 = vpop.f32.mrf.mxu0
        %v1910 = vadd.f32 %v1530, %v1909
        %1911 = vmatmul.bf16.gmra.mxu0 %v1450
        %v1912 = vpop.f32.mrf.mxu0
        %v1913 = vadd.f32 %v1530, %v1912
        %v1914 = vpop.f32.mrf.mxu0
        %v1915 = vadd.f32 %v1530, %v1914
        %1916 = vmatmul.bf16.gmra.mxu0 %v1452
        %v1917 = vpop.f32.mrf.mxu0
        %v1918 = vadd.f32 %v1530, %v1917
        %v1919 = vpop.f32.mrf.mxu0
        %v1920 = vadd.f32 %v1530, %v1919
        %1921 = vmatmul.bf16.gmra.mxu0 %v1454
        %v1922 = vpop.f32.mrf.mxu0
        %v1923 = vadd.f32 %v1530, %v1922
        %v1924 = vpop.f32.mrf.mxu0
        %v1925 = vadd.f32 %v1530, %v1924
        %1926 = vmatmul.bf16.gmra.mxu0 %v1456
        %v1927 = vpop.f32.mrf.mxu0
        %v1928 = vadd.f32 %v1530, %v1927
        %v1929 = vpop.f32.mrf.mxu0
        %v1930 = vadd.f32 %v1530, %v1929
        %1931 = vmatmul.bf16.gmra.mxu0 %v1458
        %v1932 = vpop.f32.mrf.mxu0
        %v1933 = vadd.f32 %v1530, %v1932
        %v1934 = vpop.f32.mrf.mxu0
        %v1935 = vadd.f32 %v1530, %v1934
        %1936 = vmatmul.bf16.gmra.mxu0 %v1460
        %v1937 = vpop.f32.mrf.mxu0
        %v1938 = vadd.f32 %v1530, %v1937
        %v1939 = vpop.f32.mrf.mxu0
        %v1940 = vadd.f32 %v1530, %v1939
        %1941 = vmatmul.bf16.gmra.mxu0 %v1462
        %v1942 = vpop.f32.mrf.mxu0
        %v1943 = vadd.f32 %v1530, %v1942
        %v1944 = vpop.f32.mrf.mxu0
        %v1945 = vadd.f32 %v1530, %v1944
        %1946 = vdwg.mxu0
        %1947 = vmatpush.bf16.msra.mxu0 %v1790
        %1948 = vmatpush.bf16.msra.mxu0 %v1786
        %1949 = vmatpush.bf16.msra.mxu0 %v1782
        %1950 = vmatpush.bf16.msra.mxu0 %v1778
        %1951 = vmatpush.bf16.msra.mxu0 %v1774
        %1952 = vmatpush.bf16.msra.mxu0 %v1770
        %1953 = vmatpush.bf16.msra.mxu0 %v1766
        %1954 = vmatpush.bf16.msra.mxu0 %v1762
        %1955 = vmatmul.bf16.gmra.mxu0 %v1433
        %v1956 = vpop.f32.mrf.mxu0
        %v1957 = vadd.f32 %v1868, %v1956
        %v1958 = vpop.f32.mrf.mxu0
        %v1959 = vadd.f32 %v1870, %v1958
        %1960 = vmatmul.bf16.gmra.mxu0 %v1435
        %v1961 = vpop.f32.mrf.mxu0
        %v1962 = vadd.f32 %v1873, %v1961
        %v1963 = vpop.f32.mrf.mxu0
        %v1964 = vadd.f32 %v1875, %v1963
        %1965 = vmatmul.bf16.gmra.mxu0 %v1437
        %v1966 = vpop.f32.mrf.mxu0
        %v1967 = vadd.f32 %v1878, %v1966
        %v1968 = vpop.f32.mrf.mxu0
        %v1969 = vadd.f32 %v1880, %v1968
        %1970 = vmatmul.bf16.gmra.mxu0 %v1439
        %v1971 = vpop.f32.mrf.mxu0
        %v1972 = vadd.f32 %v1883, %v1971
        %v1973 = vpop.f32.mrf.mxu0
        %v1974 = vadd.f32 %v1885, %v1973
        %1975 = vmatmul.bf16.gmra.mxu0 %v1441
        %v1976 = vpop.f32.mrf.mxu0
        %v1977 = vadd.f32 %v1888, %v1976
        %v1978 = vpop.f32.mrf.mxu0
        %v1979 = vadd.f32 %v1890, %v1978
        %1980 = vmatmul.bf16.gmra.mxu0 %v1443
        %v1981 = vpop.f32.mrf.mxu0
        %v1982 = vadd.f32 %v1893, %v1981
        %v1983 = vpop.f32.mrf.mxu0
        %v1984 = vadd.f32 %v1895, %v1983
        %1985 = vmatmul.bf16.gmra.mxu0 %v1445
        %v1986 = vpop.f32.mrf.mxu0
        %v1987 = vadd.f32 %v1898, %v1986
        %v1988 = vpop.f32.mrf.mxu0
        %v1989 = vadd.f32 %v1900, %v1988
        %1990 = vmatmul.bf16.gmra.mxu0 %v1447
        %v1991 = vpop.f32.mrf.mxu0
        %v1992 = vadd.f32 %v1903, %v1991
        %v1993 = vpop.f32.mrf.mxu0
        %v1994 = vadd.f32 %v1905, %v1993
        %1995 = vmatmul.bf16.gmra.mxu0 %v1449
        %v1996 = vpop.f32.mrf.mxu0
        %v1997 = vadd.f32 %v1908, %v1996
        %v1998 = vpop.f32.mrf.mxu0
        %v1999 = vadd.f32 %v1910, %v1998
        %2000 = vmatmul.bf16.gmra.mxu0 %v1451
        %v2001 = vpop.f32.mrf.mxu0
        %v2002 = vadd.f32 %v1913, %v2001
        %v2003 = vpop.f32.mrf.mxu0
        %v2004 = vadd.f32 %v1915, %v2003
        %2005 = vmatmul.bf16.gmra.mxu0 %v1453
        %v2006 = vpop.f32.mrf.mxu0
        %v2007 = vadd.f32 %v1918, %v2006
        %v2008 = vpop.f32.mrf.mxu0
        %v2009 = vadd.f32 %v1920, %v2008
        %2010 = vmatmul.bf16.gmra.mxu0 %v1455
        %v2011 = vpop.f32.mrf.mxu0
        %v2012 = vadd.f32 %v1923, %v2011
        %v2013 = vpop.f32.mrf.mxu0
        %v2014 = vadd.f32 %v1925, %v2013
        %2015 = vmatmul.bf16.gmra.mxu0 %v1457
        %v2016 = vpop.f32.mrf.mxu0
        %v2017 = vadd.f32 %v1928, %v2016
        %v2018 = vpop.f32.mrf.mxu0
        %v2019 = vadd.f32 %v1930, %v2018
        %2020 = vmatmul.bf16.gmra.mxu0 %v1459
        %v2021 = vpop.f32.mrf.mxu0
        %v2022 = vadd.f32 %v1933, %v2021
        %v2023 = vpop.f32.mrf.mxu0
        %v2024 = vadd.f32 %v1935, %v2023
        %2025 = vmatmul.bf16.gmra.mxu0 %v1461
        %v2026 = vpop.f32.mrf.mxu0
        %v2027 = vadd.f32 %v1938, %v2026
        %v2028 = vpop.f32.mrf.mxu0
        %v2029 = vadd.f32 %v1940, %v2028
        %2030 = vmatmul.bf16.gmra.mxu0 %v1463
        %v2031 = vpop.f32.mrf.mxu0
        %v2032 = vadd.f32 %v1943, %v2031
        %v2033 = vpop.f32.mrf.mxu0
        %v2034 = vadd.f32 %v1945, %v2033
        %2035 = vdwg.mxu0
        %2036 = vmatpush.bf16.msra.mxu0 %v1759
        %2037 = vmatpush.bf16.msra.mxu0 %v1755
        %2038 = vmatpush.bf16.msra.mxu0 %v1751
        %2039 = vmatpush.bf16.msra.mxu0 %v1747
        %2040 = vmatpush.bf16.msra.mxu0 %v1743
        %2041 = vmatpush.bf16.msra.mxu0 %v1739
        %2042 = vmatpush.bf16.msra.mxu0 %v1735
        %2043 = vmatpush.bf16.msra.mxu0 %v1731
        %2044 = vmatmul.bf16.gmra.mxu0 %v1432
        %v2045 = vpop.f32.mrf.mxu0
        %v2046 = vadd.f32 %v1531, %v2045
        %v2047 = vpop.f32.mrf.mxu0
        %v2048 = vadd.f32 %v1531, %v2047
        %2049 = vmatmul.bf16.gmra.mxu0 %v1434
        %v2050 = vpop.f32.mrf.mxu0
        %v2051 = vadd.f32 %v1531, %v2050
        %v2052 = vpop.f32.mrf.mxu0
        %v2053 = vadd.f32 %v1531, %v2052
        %2054 = vmatmul.bf16.gmra.mxu0 %v1436
        %v2055 = vpop.f32.mrf.mxu0
        %v2056 = vadd.f32 %v1531, %v2055
        %v2057 = vpop.f32.mrf.mxu0
        %v2058 = vadd.f32 %v1531, %v2057
        %2059 = vmatmul.bf16.gmra.mxu0 %v1438
        %v2060 = vpop.f32.mrf.mxu0
        %v2061 = vadd.f32 %v1531, %v2060
        %v2062 = vpop.f32.mrf.mxu0
        %v2063 = vadd.f32 %v1531, %v2062
        %2064 = vmatmul.bf16.gmra.mxu0 %v1440
        %v2065 = vpop.f32.mrf.mxu0
        %v2066 = vadd.f32 %v1531, %v2065
        %v2067 = vpop.f32.mrf.mxu0
        %v2068 = vadd.f32 %v1531, %v2067
        %2069 = vmatmul.bf16.gmra.mxu0 %v1442
        %v2070 = vpop.f32.mrf.mxu0
        %v2071 = vadd.f32 %v1531, %v2070
        %v2072 = vpop.f32.mrf.mxu0
        %v2073 = vadd.f32 %v1531, %v2072
        %2074 = vmatmul.bf16.gmra.mxu0 %v1444
        %v2075 = vpop.f32.mrf.mxu0
        %v2076 = vadd.f32 %v1531, %v2075
        %v2077 = vpop.f32.mrf.mxu0
        %v2078 = vadd.f32 %v1531, %v2077
        %2079 = vmatmul.bf16.gmra.mxu0 %v1446
        %v2080 = vpop.f32.mrf.mxu0
        %v2081 = vadd.f32 %v1531, %v2080
        %v2082 = vpop.f32.mrf.mxu0
        %v2083 = vadd.f32 %v1531, %v2082
        %2084 = vmatmul.bf16.gmra.mxu0 %v1448
        %v2085 = vpop.f32.mrf.mxu0
        %v2086 = vadd.f32 %v1531, %v2085
        %v2087 = vpop.f32.mrf.mxu0
        %v2088 = vadd.f32 %v1531, %v2087
        %2089 = vmatmul.bf16.gmra.mxu0 %v1450
        %v2090 = vpop.f32.mrf.mxu0
        %v2091 = vadd.f32 %v1531, %v2090
        %v2092 = vpop.f32.mrf.mxu0
        %v2093 = vadd.f32 %v1531, %v2092
        %2094 = vmatmul.bf16.gmra.mxu0 %v1452
        %v2095 = vpop.f32.mrf.mxu0
        %v2096 = vadd.f32 %v1531, %v2095
        %v2097 = vpop.f32.mrf.mxu0
        %v2098 = vadd.f32 %v1531, %v2097
        %2099 = vmatmul.bf16.gmra.mxu0 %v1454
        %v2100 = vpop.f32.mrf.mxu0
        %v2101 = vadd.f32 %v1531, %v2100
        %v2102 = vpop.f32.mrf.mxu0
        %v2103 = vadd.f32 %v1531, %v2102
        %2104 = vmatmul.bf16.gmra.mxu0 %v1456
        %v2105 = vpop.f32.mrf.mxu0
        %v2106 = vadd.f32 %v1531, %v2105
        %v2107 = vpop.f32.mrf.mxu0
        %v2108 = vadd.f32 %v1531, %v2107
        %2109 = vmatmul.bf16.gmra.mxu0 %v1458
        %v2110 = vpop.f32.mrf.mxu0
        %v2111 = vadd.f32 %v1531, %v2110
        %v2112 = vpop.f32.mrf.mxu0
        %v2113 = vadd.f32 %v1531, %v2112
        %2114 = vmatmul.bf16.gmra.mxu0 %v1460
        %v2115 = vpop.f32.mrf.mxu0
        %v2116 = vadd.f32 %v1531, %v2115
        %v2117 = vpop.f32.mrf.mxu0
        %v2118 = vadd.f32 %v1531, %v2117
        %2119 = vmatmul.bf16.gmra.mxu0 %v1462
        %v2120 = vpop.f32.mrf.mxu0
        %v2121 = vadd.f32 %v1531, %v2120
        %v2122 = vpop.f32.mrf.mxu0
        %v2123 = vadd.f32 %v1531, %v2122
        %2124 = vdwg.mxu0
        %2125 = vmatpush.bf16.msra.mxu0 %v1791
        %2126 = vmatpush.bf16.msra.mxu0 %v1787
        %2127 = vmatpush.bf16.msra.mxu0 %v1783
        %2128 = vmatpush.bf16.msra.mxu0 %v1779
        %2129 = vmatpush.bf16.msra.mxu0 %v1775
        %2130 = vmatpush.bf16.msra.mxu0 %v1771
        %2131 = vmatpush.bf16.msra.mxu0 %v1767
        %2132 = vmatpush.bf16.msra.mxu0 %v1763
        %2133 = vmatmul.bf16.gmra.mxu0 %v1433
        %v2134 = vpop.f32.mrf.mxu0
        %v2135 = vadd.f32 %v2046, %v2134
        %v2136 = vpop.f32.mrf.mxu0
        %v2137 = vadd.f32 %v2048, %v2136
        %2138 = vmatmul.bf16.gmra.mxu0 %v1435
        %v2139 = vpop.f32.mrf.mxu0
        %v2140 = vadd.f32 %v2051, %v2139
        %v2141 = vpop.f32.mrf.mxu0
        %v2142 = vadd.f32 %v2053, %v2141
        %2143 = vmatmul.bf16.gmra.mxu0 %v1437
        %v2144 = vpop.f32.mrf.mxu0
        %v2145 = vadd.f32 %v2056, %v2144
        %v2146 = vpop.f32.mrf.mxu0
        %v2147 = vadd.f32 %v2058, %v2146
        %2148 = vmatmul.bf16.gmra.mxu0 %v1439
        %v2149 = vpop.f32.mrf.mxu0
        %v2150 = vadd.f32 %v2061, %v2149
        %v2151 = vpop.f32.mrf.mxu0
        %v2152 = vadd.f32 %v2063, %v2151
        %2153 = vmatmul.bf16.gmra.mxu0 %v1441
        %v2154 = vpop.f32.mrf.mxu0
        %v2155 = vadd.f32 %v2066, %v2154
        %v2156 = vpop.f32.mrf.mxu0
        %v2157 = vadd.f32 %v2068, %v2156
        %2158 = vmatmul.bf16.gmra.mxu0 %v1443
        %v2159 = vpop.f32.mrf.mxu0
        %v2160 = vadd.f32 %v2071, %v2159
        %v2161 = vpop.f32.mrf.mxu0
        %v2162 = vadd.f32 %v2073, %v2161
        %2163 = vmatmul.bf16.gmra.mxu0 %v1445
        %v2164 = vpop.f32.mrf.mxu0
        %v2165 = vadd.f32 %v2076, %v2164
        %v2166 = vpop.f32.mrf.mxu0
        %v2167 = vadd.f32 %v2078, %v2166
        %2168 = vmatmul.bf16.gmra.mxu0 %v1447
        %v2169 = vpop.f32.mrf.mxu0
        %v2170 = vadd.f32 %v2081, %v2169
        %v2171 = vpop.f32.mrf.mxu0
        %v2172 = vadd.f32 %v2083, %v2171
        %2173 = vmatmul.bf16.gmra.mxu0 %v1449
        %v2174 = vpop.f32.mrf.mxu0
        %v2175 = vadd.f32 %v2086, %v2174
        %v2176 = vpop.f32.mrf.mxu0
        %v2177 = vadd.f32 %v2088, %v2176
        %2178 = vmatmul.bf16.gmra.mxu0 %v1451
        %v2179 = vpop.f32.mrf.mxu0
        %v2180 = vadd.f32 %v2091, %v2179
        %v2181 = vpop.f32.mrf.mxu0
        %v2182 = vadd.f32 %v2093, %v2181
        %2183 = vmatmul.bf16.gmra.mxu0 %v1453
        %v2184 = vpop.f32.mrf.mxu0
        %v2185 = vadd.f32 %v2096, %v2184
        %v2186 = vpop.f32.mrf.mxu0
        %v2187 = vadd.f32 %v2098, %v2186
        %2188 = vmatmul.bf16.gmra.mxu0 %v1455
        %v2189 = vpop.f32.mrf.mxu0
        %v2190 = vadd.f32 %v2101, %v2189
        %v2191 = vpop.f32.mrf.mxu0
        %v2192 = vadd.f32 %v2103, %v2191
        %2193 = vmatmul.bf16.gmra.mxu0 %v1457
        %v2194 = vpop.f32.mrf.mxu0
        %v2195 = vadd.f32 %v2106, %v2194
        %v2196 = vpop.f32.mrf.mxu0
        %v2197 = vadd.f32 %v2108, %v2196
        %2198 = vmatmul.bf16.gmra.mxu0 %v1459
        %v2199 = vpop.f32.mrf.mxu0
        %v2200 = vadd.f32 %v2111, %v2199
        %v2201 = vpop.f32.mrf.mxu0
        %v2202 = vadd.f32 %v2113, %v2201
        %2203 = vmatmul.bf16.gmra.mxu0 %v1461
        %v2204 = vpop.f32.mrf.mxu0
        %v2205 = vadd.f32 %v2116, %v2204
        %v2206 = vpop.f32.mrf.mxu0
        %v2207 = vadd.f32 %v2118, %v2206
        %2208 = vmatmul.bf16.gmra.mxu0 %v1463
        %v2209 = vpop.f32.mrf.mxu0
        %v2210 = vadd.f32 %v2121, %v2209
        %v2211 = vpop.f32.mrf.mxu0
        %v2212 = vadd.f32 %v2123, %v2211
        %2213 = vdwg.mxu0
        %2214 = vmatpush.bf16.msra.mxu0 %v1760
        %2215 = vmatpush.bf16.msra.mxu0 %v1756
        %2216 = vmatpush.bf16.msra.mxu0 %v1752
        %2217 = vmatpush.bf16.msra.mxu0 %v1748
        %2218 = vmatpush.bf16.msra.mxu0 %v1744
        %2219 = vmatpush.bf16.msra.mxu0 %v1740
        %2220 = vmatpush.bf16.msra.mxu0 %v1736
        %2221 = vmatpush.bf16.msra.mxu0 %v1732
        %2222 = vmatmul.bf16.gmra.mxu0 %v1432
        %v2223 = vpop.f32.mrf.mxu0
        %v2224 = vadd.f32 %v1532, %v2223
        %v2225 = vpop.f32.mrf.mxu0
        %v2226 = vadd.f32 %v1532, %v2225
        %2227 = vmatmul.bf16.gmra.mxu0 %v1434
        %v2228 = vpop.f32.mrf.mxu0
        %v2229 = vadd.f32 %v1532, %v2228
        %v2230 = vpop.f32.mrf.mxu0
        %v2231 = vadd.f32 %v1532, %v2230
        %2232 = vmatmul.bf16.gmra.mxu0 %v1436
        %v2233 = vpop.f32.mrf.mxu0
        %v2234 = vadd.f32 %v1532, %v2233
        %v2235 = vpop.f32.mrf.mxu0
        %v2236 = vadd.f32 %v1532, %v2235
        %2237 = vmatmul.bf16.gmra.mxu0 %v1438
        %v2238 = vpop.f32.mrf.mxu0
        %v2239 = vadd.f32 %v1532, %v2238
        %v2240 = vpop.f32.mrf.mxu0
        %v2241 = vadd.f32 %v1532, %v2240
        %2242 = vmatmul.bf16.gmra.mxu0 %v1440
        %v2243 = vpop.f32.mrf.mxu0
        %v2244 = vadd.f32 %v1532, %v2243
        %v2245 = vpop.f32.mrf.mxu0
        %v2246 = vadd.f32 %v1532, %v2245
        %2247 = vmatmul.bf16.gmra.mxu0 %v1442
        %v2248 = vpop.f32.mrf.mxu0
        %v2249 = vadd.f32 %v1532, %v2248
        %v2250 = vpop.f32.mrf.mxu0
        %v2251 = vadd.f32 %v1532, %v2250
        %2252 = vmatmul.bf16.gmra.mxu0 %v1444
        %v2253 = vpop.f32.mrf.mxu0
        %v2254 = vadd.f32 %v1532, %v2253
        %v2255 = vpop.f32.mrf.mxu0
        %v2256 = vadd.f32 %v1532, %v2255
        %2257 = vmatmul.bf16.gmra.mxu0 %v1446
        %v2258 = vpop.f32.mrf.mxu0
        %v2259 = vadd.f32 %v1532, %v2258
        %v2260 = vpop.f32.mrf.mxu0
        %v2261 = vadd.f32 %v1532, %v2260
        %2262 = vmatmul.bf16.gmra.mxu0 %v1448
        %v2263 = vpop.f32.mrf.mxu0
        %v2264 = vadd.f32 %v1532, %v2263
        %v2265 = vpop.f32.mrf.mxu0
        %v2266 = vadd.f32 %v1532, %v2265
        %2267 = vmatmul.bf16.gmra.mxu0 %v1450
        %v2268 = vpop.f32.mrf.mxu0
        %v2269 = vadd.f32 %v1532, %v2268
        %v2270 = vpop.f32.mrf.mxu0
        %v2271 = vadd.f32 %v1532, %v2270
        %2272 = vmatmul.bf16.gmra.mxu0 %v1452
        %v2273 = vpop.f32.mrf.mxu0
        %v2274 = vadd.f32 %v1532, %v2273
        %v2275 = vpop.f32.mrf.mxu0
        %v2276 = vadd.f32 %v1532, %v2275
        %2277 = vmatmul.bf16.gmra.mxu0 %v1454
        %v2278 = vpop.f32.mrf.mxu0
        %v2279 = vadd.f32 %v1532, %v2278
        %v2280 = vpop.f32.mrf.mxu0
        %v2281 = vadd.f32 %v1532, %v2280
        %2282 = vmatmul.bf16.gmra.mxu0 %v1456
        %v2283 = vpop.f32.mrf.mxu0
        %v2284 = vadd.f32 %v1532, %v2283
        %v2285 = vpop.f32.mrf.mxu0
        %v2286 = vadd.f32 %v1532, %v2285
        %2287 = vmatmul.bf16.gmra.mxu0 %v1458
        %v2288 = vpop.f32.mrf.mxu0
        %v2289 = vadd.f32 %v1532, %v2288
        %v2290 = vpop.f32.mrf.mxu0
        %v2291 = vadd.f32 %v1532, %v2290
        %2292 = vmatmul.bf16.gmra.mxu0 %v1460
        %v2293 = vpop.f32.mrf.mxu0
        %v2294 = vadd.f32 %v1532, %v2293
        %v2295 = vpop.f32.mrf.mxu0
        %v2296 = vadd.f32 %v1532, %v2295
        %2297 = vmatmul.bf16.gmra.mxu0 %v1462
        %v2298 = vpop.f32.mrf.mxu0
        %v2299 = vadd.f32 %v1532, %v2298
        %v2300 = vpop.f32.mrf.mxu0
        %v2301 = vadd.f32 %v1532, %v2300
        %2302 = vdwg.mxu0
        %2303 = vmatpush.bf16.msra.mxu0 %v1792
        %2304 = vmatpush.bf16.msra.mxu0 %v1788
        %2305 = vmatpush.bf16.msra.mxu0 %v1784
        %2306 = vmatpush.bf16.msra.mxu0 %v1780
        %2307 = vmatpush.bf16.msra.mxu0 %v1776
        %2308 = vmatpush.bf16.msra.mxu0 %v1772
        %2309 = vmatpush.bf16.msra.mxu0 %v1768
        %2310 = vmatpush.bf16.msra.mxu0 %v1764
        %2311 = vmatmul.bf16.gmra.mxu0 %v1433
        %v2312 = vpop.f32.mrf.mxu0
        %v2313 = vadd.f32 %v2224, %v2312
        %v2314 = vpop.f32.mrf.mxu0
        %v2315 = vadd.f32 %v2226, %v2314
        %2316 = vmatmul.bf16.gmra.mxu0 %v1435
        %v2317 = vpop.f32.mrf.mxu0
        %v2318 = vadd.f32 %v2229, %v2317
        %v2319 = vpop.f32.mrf.mxu0
        %v2320 = vadd.f32 %v2231, %v2319
        %2321 = vmatmul.bf16.gmra.mxu0 %v1437
        %v2322 = vpop.f32.mrf.mxu0
        %v2323 = vadd.f32 %v2234, %v2322
        %v2324 = vpop.f32.mrf.mxu0
        %v2325 = vadd.f32 %v2236, %v2324
        %2326 = vmatmul.bf16.gmra.mxu0 %v1439
        %v2327 = vpop.f32.mrf.mxu0
        %v2328 = vadd.f32 %v2239, %v2327
        %v2329 = vpop.f32.mrf.mxu0
        %v2330 = vadd.f32 %v2241, %v2329
        %2331 = vmatmul.bf16.gmra.mxu0 %v1441
        %v2332 = vpop.f32.mrf.mxu0
        %v2333 = vadd.f32 %v2244, %v2332
        %v2334 = vpop.f32.mrf.mxu0
        %v2335 = vadd.f32 %v2246, %v2334
        %2336 = vmatmul.bf16.gmra.mxu0 %v1443
        %v2337 = vpop.f32.mrf.mxu0
        %v2338 = vadd.f32 %v2249, %v2337
        %v2339 = vpop.f32.mrf.mxu0
        %v2340 = vadd.f32 %v2251, %v2339
        %2341 = vmatmul.bf16.gmra.mxu0 %v1445
        %v2342 = vpop.f32.mrf.mxu0
        %v2343 = vadd.f32 %v2254, %v2342
        %v2344 = vpop.f32.mrf.mxu0
        %v2345 = vadd.f32 %v2256, %v2344
        %2346 = vmatmul.bf16.gmra.mxu0 %v1447
        %v2347 = vpop.f32.mrf.mxu0
        %v2348 = vadd.f32 %v2259, %v2347
        %v2349 = vpop.f32.mrf.mxu0
        %v2350 = vadd.f32 %v2261, %v2349
        %2351 = vmatmul.bf16.gmra.mxu0 %v1449
        %v2352 = vpop.f32.mrf.mxu0
        %v2353 = vadd.f32 %v2264, %v2352
        %v2354 = vpop.f32.mrf.mxu0
        %v2355 = vadd.f32 %v2266, %v2354
        %2356 = vmatmul.bf16.gmra.mxu0 %v1451
        %v2357 = vpop.f32.mrf.mxu0
        %v2358 = vadd.f32 %v2269, %v2357
        %v2359 = vpop.f32.mrf.mxu0
        %v2360 = vadd.f32 %v2271, %v2359
        %2361 = vmatmul.bf16.gmra.mxu0 %v1453
        %v2362 = vpop.f32.mrf.mxu0
        %v2363 = vadd.f32 %v2274, %v2362
        %v2364 = vpop.f32.mrf.mxu0
        %v2365 = vadd.f32 %v2276, %v2364
        %2366 = vmatmul.bf16.gmra.mxu0 %v1455
        %v2367 = vpop.f32.mrf.mxu0
        %v2368 = vadd.f32 %v2279, %v2367
        %v2369 = vpop.f32.mrf.mxu0
        %v2370 = vadd.f32 %v2281, %v2369
        %2371 = vmatmul.bf16.gmra.mxu0 %v1457
        %v2372 = vpop.f32.mrf.mxu0
        %v2373 = vadd.f32 %v2284, %v2372
        %v2374 = vpop.f32.mrf.mxu0
        %v2375 = vadd.f32 %v2286, %v2374
        %2376 = vmatmul.bf16.gmra.mxu0 %v1459
        %v2377 = vpop.f32.mrf.mxu0
        %v2378 = vadd.f32 %v2289, %v2377
        %v2379 = vpop.f32.mrf.mxu0
        %v2380 = vadd.f32 %v2291, %v2379
        %2381 = vmatmul.bf16.gmra.mxu0 %v1461
        %v2382 = vpop.f32.mrf.mxu0
        %v2383 = vadd.f32 %v2294, %v2382
        %v2384 = vpop.f32.mrf.mxu0
        %v2385 = vadd.f32 %v2296, %v2384
        %2386 = vmatmul.bf16.gmra.mxu0 %v1463
        %v2387 = vpop.f32.mrf.mxu0
        %v2388 = vadd.f32 %v2299, %v2387
        %v2389 = vpop.f32.mrf.mxu0
        %v2390 = vadd.f32 %v2301, %v2389
        %2391 = vdwg.mxu0
        %2392 = vmatpush.bf16.msra.mxu0 %v1761
        %2393 = vmatpush.bf16.msra.mxu0 %v1757
        %2394 = vmatpush.bf16.msra.mxu0 %v1753
        %2395 = vmatpush.bf16.msra.mxu0 %v1749
        %2396 = vmatpush.bf16.msra.mxu0 %v1745
        %2397 = vmatpush.bf16.msra.mxu0 %v1741
        %2398 = vmatpush.bf16.msra.mxu0 %v1737
        %2399 = vmatpush.bf16.msra.mxu0 %v1733
        %2400 = vmatmul.bf16.gmra.mxu0 %v1432
        %v2401 = vpop.f32.mrf.mxu0
        %v2402 = vadd.f32 %v1533, %v2401
        %v2403 = vpop.f32.mrf.mxu0
        %v2404 = vadd.f32 %v1533, %v2403
        %2405 = vmatmul.bf16.gmra.mxu0 %v1434
        %v2406 = vpop.f32.mrf.mxu0
        %v2407 = vadd.f32 %v1533, %v2406
        %v2408 = vpop.f32.mrf.mxu0
        %v2409 = vadd.f32 %v1533, %v2408
        %2410 = vmatmul.bf16.gmra.mxu0 %v1436
        %v2411 = vpop.f32.mrf.mxu0
        %v2412 = vadd.f32 %v1533, %v2411
        %v2413 = vpop.f32.mrf.mxu0
        %v2414 = vadd.f32 %v1533, %v2413
        %2415 = vmatmul.bf16.gmra.mxu0 %v1438
        %v2416 = vpop.f32.mrf.mxu0
        %v2417 = vadd.f32 %v1533, %v2416
        %v2418 = vpop.f32.mrf.mxu0
        %v2419 = vadd.f32 %v1533, %v2418
        %2420 = vmatmul.bf16.gmra.mxu0 %v1440
        %v2421 = vpop.f32.mrf.mxu0
        %v2422 = vadd.f32 %v1533, %v2421
        %v2423 = vpop.f32.mrf.mxu0
        %v2424 = vadd.f32 %v1533, %v2423
        %2425 = vmatmul.bf16.gmra.mxu0 %v1442
        %v2426 = vpop.f32.mrf.mxu0
        %v2427 = vadd.f32 %v1533, %v2426
        %v2428 = vpop.f32.mrf.mxu0
        %v2429 = vadd.f32 %v1533, %v2428
        %2430 = vmatmul.bf16.gmra.mxu0 %v1444
        %v2431 = vpop.f32.mrf.mxu0
        %v2432 = vadd.f32 %v1533, %v2431
        %v2433 = vpop.f32.mrf.mxu0
        %v2434 = vadd.f32 %v1533, %v2433
        %2435 = vmatmul.bf16.gmra.mxu0 %v1446
        %v2436 = vpop.f32.mrf.mxu0
        %v2437 = vadd.f32 %v1533, %v2436
        %v2438 = vpop.f32.mrf.mxu0
        %v2439 = vadd.f32 %v1533, %v2438
        %2440 = vmatmul.bf16.gmra.mxu0 %v1448
        %v2441 = vpop.f32.mrf.mxu0
        %v2442 = vadd.f32 %v1533, %v2441
        %v2443 = vpop.f32.mrf.mxu0
        %v2444 = vadd.f32 %v1533, %v2443
        %2445 = vmatmul.bf16.gmra.mxu0 %v1450
        %v2446 = vpop.f32.mrf.mxu0
        %v2447 = vadd.f32 %v1533, %v2446
        %v2448 = vpop.f32.mrf.mxu0
        %v2449 = vadd.f32 %v1533, %v2448
        %2450 = vmatmul.bf16.gmra.mxu0 %v1452
        %v2451 = vpop.f32.mrf.mxu0
        %v2452 = vadd.f32 %v1533, %v2451
        %v2453 = vpop.f32.mrf.mxu0
        %v2454 = vadd.f32 %v1533, %v2453
        %2455 = vmatmul.bf16.gmra.mxu0 %v1454
        %v2456 = vpop.f32.mrf.mxu0
        %v2457 = vadd.f32 %v1533, %v2456
        %v2458 = vpop.f32.mrf.mxu0
        %v2459 = vadd.f32 %v1533, %v2458
        %2460 = vmatmul.bf16.gmra.mxu0 %v1456
        %v2461 = vpop.f32.mrf.mxu0
        %v2462 = vadd.f32 %v1533, %v2461
        %v2463 = vpop.f32.mrf.mxu0
        %v2464 = vadd.f32 %v1533, %v2463
        %2465 = vmatmul.bf16.gmra.mxu0 %v1458
        %v2466 = vpop.f32.mrf.mxu0
        %v2467 = vadd.f32 %v1533, %v2466
        %v2468 = vpop.f32.mrf.mxu0
        %v2469 = vadd.f32 %v1533, %v2468
        %2470 = vmatmul.bf16.gmra.mxu0 %v1460
        %v2471 = vpop.f32.mrf.mxu0
        %v2472 = vadd.f32 %v1533, %v2471
        %v2473 = vpop.f32.mrf.mxu0
        %v2474 = vadd.f32 %v1533, %v2473
        %2475 = vmatmul.bf16.gmra.mxu0 %v1462
        %v2476 = vpop.f32.mrf.mxu0
        %v2477 = vadd.f32 %v1533, %v2476
        %v2478 = vpop.f32.mrf.mxu0
        %v2479 = vadd.f32 %v1533, %v2478
        %2480 = vdwg.mxu0
        %2481 = vmatpush.bf16.msra.mxu0 %v1793
        %2482 = vmatpush.bf16.msra.mxu0 %v1789
        %2483 = vmatpush.bf16.msra.mxu0 %v1785
        %2484 = vmatpush.bf16.msra.mxu0 %v1781
        %2485 = vmatpush.bf16.msra.mxu0 %v1777
        %2486 = vmatpush.bf16.msra.mxu0 %v1773
        %2487 = vmatpush.bf16.msra.mxu0 %v1769
        %2488 = vmatpush.bf16.msra.mxu0 %v1765
        %2489 = vmatmul.bf16.gmra.mxu0 %v1433
        %v2490 = vpop.f32.mrf.mxu0
        %v2491 = vadd.f32 %v2402, %v2490
        %v2492 = vpop.f32.mrf.mxu0
        %v2493 = vadd.f32 %v2404, %v2492
        %2494 = vmatmul.bf16.gmra.mxu0 %v1435
        %v2495 = vpop.f32.mrf.mxu0
        %v2496 = vadd.f32 %v2407, %v2495
        %v2497 = vpop.f32.mrf.mxu0
        %v2498 = vadd.f32 %v2409, %v2497
        %2499 = vmatmul.bf16.gmra.mxu0 %v1437
        %v2500 = vpop.f32.mrf.mxu0
        %v2501 = vadd.f32 %v2412, %v2500
        %v2502 = vpop.f32.mrf.mxu0
        %v2503 = vadd.f32 %v2414, %v2502
        %2504 = vmatmul.bf16.gmra.mxu0 %v1439
        %v2505 = vpop.f32.mrf.mxu0
        %v2506 = vadd.f32 %v2417, %v2505
        %v2507 = vpop.f32.mrf.mxu0
        %v2508 = vadd.f32 %v2419, %v2507
        %2509 = vmatmul.bf16.gmra.mxu0 %v1441
        %v2510 = vpop.f32.mrf.mxu0
        %v2511 = vadd.f32 %v2422, %v2510
        %v2512 = vpop.f32.mrf.mxu0
        %v2513 = vadd.f32 %v2424, %v2512
        %2514 = vmatmul.bf16.gmra.mxu0 %v1443
        %v2515 = vpop.f32.mrf.mxu0
        %v2516 = vadd.f32 %v2427, %v2515
        %v2517 = vpop.f32.mrf.mxu0
        %v2518 = vadd.f32 %v2429, %v2517
        %2519 = vmatmul.bf16.gmra.mxu0 %v1445
        %v2520 = vpop.f32.mrf.mxu0
        %v2521 = vadd.f32 %v2432, %v2520
        %v2522 = vpop.f32.mrf.mxu0
        %v2523 = vadd.f32 %v2434, %v2522
        %2524 = vmatmul.bf16.gmra.mxu0 %v1447
        %v2525 = vpop.f32.mrf.mxu0
        %v2526 = vadd.f32 %v2437, %v2525
        %v2527 = vpop.f32.mrf.mxu0
        %v2528 = vadd.f32 %v2439, %v2527
        %2529 = vmatmul.bf16.gmra.mxu0 %v1449
        %v2530 = vpop.f32.mrf.mxu0
        %v2531 = vadd.f32 %v2442, %v2530
        %v2532 = vpop.f32.mrf.mxu0
        %v2533 = vadd.f32 %v2444, %v2532
        %2534 = vmatmul.bf16.gmra.mxu0 %v1451
        %v2535 = vpop.f32.mrf.mxu0
        %v2536 = vadd.f32 %v2447, %v2535
        %v2537 = vpop.f32.mrf.mxu0
        %v2538 = vadd.f32 %v2449, %v2537
        %2539 = vmatmul.bf16.gmra.mxu0 %v1453
        %v2540 = vpop.f32.mrf.mxu0
        %v2541 = vadd.f32 %v2452, %v2540
        %v2542 = vpop.f32.mrf.mxu0
        %v2543 = vadd.f32 %v2454, %v2542
        %2544 = vmatmul.bf16.gmra.mxu0 %v1455
        %v2545 = vpop.f32.mrf.mxu0
        %v2546 = vadd.f32 %v2457, %v2545
        %v2547 = vpop.f32.mrf.mxu0
        %v2548 = vadd.f32 %v2459, %v2547
        %2549 = vmatmul.bf16.gmra.mxu0 %v1457
        %v2550 = vpop.f32.mrf.mxu0
        %v2551 = vadd.f32 %v2462, %v2550
        %v2552 = vpop.f32.mrf.mxu0
        %v2553 = vadd.f32 %v2464, %v2552
        %2554 = vmatmul.bf16.gmra.mxu0 %v1459
        %v2555 = vpop.f32.mrf.mxu0
        %v2556 = vadd.f32 %v2467, %v2555
        %v2557 = vpop.f32.mrf.mxu0
        %v2558 = vadd.f32 %v2469, %v2557
        %2559 = vmatmul.bf16.gmra.mxu0 %v1461
        %v2560 = vpop.f32.mrf.mxu0
        %v2561 = vadd.f32 %v2472, %v2560
        %v2562 = vpop.f32.mrf.mxu0
        %v2563 = vadd.f32 %v2474, %v2562
        %2564 = vmatmul.bf16.gmra.mxu0 %v1463
        %v2565 = vpop.f32.mrf.mxu0
        %v2566 = vadd.f32 %v2477, %v2565
        %v2567 = vpop.f32.mrf.mxu0
        %v2568 = vadd.f32 %v2479, %v2567
        %2569 = vdwg.mxu0
        %v2570 = vmax.f32 %v1957, 0.0
        %v2571 = vmax.f32 %v2135, 0.0
        %v2572 = vmax.f32 %v2313, 0.0
        %v2573 = vmax.f32 %v2491, 0.0
        %v2574 = vmax.f32 %v1959, 0.0
        %v2575 = vmax.f32 %v2137, 0.0
        %v2576 = vmax.f32 %v2315, 0.0
        %v2577 = vmax.f32 %v2493, 0.0
        %v2578 = vmax.f32 %v1962, 0.0
        %v2579 = vmax.f32 %v2140, 0.0
        %v2580 = vmax.f32 %v2318, 0.0
        %v2581 = vmax.f32 %v2496, 0.0
        %v2582 = vmax.f32 %v1964, 0.0
        %v2583 = vmax.f32 %v2142, 0.0
        %v2584 = vmax.f32 %v2320, 0.0
        %v2585 = vmax.f32 %v2498, 0.0
        %v2586 = vmax.f32 %v1967, 0.0
        %v2587 = vmax.f32 %v2145, 0.0
        %v2588 = vmax.f32 %v2323, 0.0
        %v2589 = vmax.f32 %v2501, 0.0
        %v2590 = vmax.f32 %v1969, 0.0
        %v2591 = vmax.f32 %v2147, 0.0
        %v2592 = vmax.f32 %v2325, 0.0
        %v2593 = vmax.f32 %v2503, 0.0
        %v2594 = vmax.f32 %v1972, 0.0
        %v2595 = vmax.f32 %v2150, 0.0
        %v2596 = vmax.f32 %v2328, 0.0
        %v2597 = vmax.f32 %v2506, 0.0
        %v2598 = vmax.f32 %v1974, 0.0
        %v2599 = vmax.f32 %v2152, 0.0
        %v2600 = vmax.f32 %v2330, 0.0
        %v2601 = vmax.f32 %v2508, 0.0
        %v2602 = vmax.f32 %v1977, 0.0
        %v2603 = vmax.f32 %v2155, 0.0
        %v2604 = vmax.f32 %v2333, 0.0
        %v2605 = vmax.f32 %v2511, 0.0
        %v2606 = vmax.f32 %v1979, 0.0
        %v2607 = vmax.f32 %v2157, 0.0
        %v2608 = vmax.f32 %v2335, 0.0
        %v2609 = vmax.f32 %v2513, 0.0
        %v2610 = vmax.f32 %v1982, 0.0
        %v2611 = vmax.f32 %v2160, 0.0
        %v2612 = vmax.f32 %v2338, 0.0
        %v2613 = vmax.f32 %v2516, 0.0
        %v2614 = vmax.f32 %v1984, 0.0
        %v2615 = vmax.f32 %v2162, 0.0
        %v2616 = vmax.f32 %v2340, 0.0
        %v2617 = vmax.f32 %v2518, 0.0
        %v2618 = vmax.f32 %v1987, 0.0
        %v2619 = vmax.f32 %v2165, 0.0
        %v2620 = vmax.f32 %v2343, 0.0
        %v2621 = vmax.f32 %v2521, 0.0
        %v2622 = vmax.f32 %v1989, 0.0
        %v2623 = vmax.f32 %v2167, 0.0
        %v2624 = vmax.f32 %v2345, 0.0
        %v2625 = vmax.f32 %v2523, 0.0
        %v2626 = vmax.f32 %v1992, 0.0
        %v2627 = vmax.f32 %v2170, 0.0
        %v2628 = vmax.f32 %v2348, 0.0
        %v2629 = vmax.f32 %v2526, 0.0
        %v2630 = vmax.f32 %v1994, 0.0
        %v2631 = vmax.f32 %v2172, 0.0
        %v2632 = vmax.f32 %v2350, 0.0
        %v2633 = vmax.f32 %v2528, 0.0
        %v2634 = vmax.f32 %v1997, 0.0
        %v2635 = vmax.f32 %v2175, 0.0
        %v2636 = vmax.f32 %v2353, 0.0
        %v2637 = vmax.f32 %v2531, 0.0
        %v2638 = vmax.f32 %v1999, 0.0
        %v2639 = vmax.f32 %v2177, 0.0
        %v2640 = vmax.f32 %v2355, 0.0
        %v2641 = vmax.f32 %v2533, 0.0
        %v2642 = vmax.f32 %v2002, 0.0
        %v2643 = vmax.f32 %v2180, 0.0
        %v2644 = vmax.f32 %v2358, 0.0
        %v2645 = vmax.f32 %v2536, 0.0
        %v2646 = vmax.f32 %v2004, 0.0
        %v2647 = vmax.f32 %v2182, 0.0
        %v2648 = vmax.f32 %v2360, 0.0
        %v2649 = vmax.f32 %v2538, 0.0
        %v2650 = vmax.f32 %v2007, 0.0
        %v2651 = vmax.f32 %v2185, 0.0
        %v2652 = vmax.f32 %v2363, 0.0
        %v2653 = vmax.f32 %v2541, 0.0
        %v2654 = vmax.f32 %v2009, 0.0
        %v2655 = vmax.f32 %v2187, 0.0
        %v2656 = vmax.f32 %v2365, 0.0
        %v2657 = vmax.f32 %v2543, 0.0
        %v2658 = vmax.f32 %v2012, 0.0
        %v2659 = vmax.f32 %v2190, 0.0
        %v2660 = vmax.f32 %v2368, 0.0
        %v2661 = vmax.f32 %v2546, 0.0
        %v2662 = vmax.f32 %v2014, 0.0
        %v2663 = vmax.f32 %v2192, 0.0
        %v2664 = vmax.f32 %v2370, 0.0
        %v2665 = vmax.f32 %v2548, 0.0
        %v2666 = vmax.f32 %v2017, 0.0
        %v2667 = vmax.f32 %v2195, 0.0
        %v2668 = vmax.f32 %v2373, 0.0
        %v2669 = vmax.f32 %v2551, 0.0
        %v2670 = vmax.f32 %v2019, 0.0
        %v2671 = vmax.f32 %v2197, 0.0
        %v2672 = vmax.f32 %v2375, 0.0
        %v2673 = vmax.f32 %v2553, 0.0
        %v2674 = vmax.f32 %v2022, 0.0
        %v2675 = vmax.f32 %v2200, 0.0
        %v2676 = vmax.f32 %v2378, 0.0
        %v2677 = vmax.f32 %v2556, 0.0
        %v2678 = vmax.f32 %v2024, 0.0
        %v2679 = vmax.f32 %v2202, 0.0
        %v2680 = vmax.f32 %v2380, 0.0
        %v2681 = vmax.f32 %v2558, 0.0
        %v2682 = vmax.f32 %v2027, 0.0
        %v2683 = vmax.f32 %v2205, 0.0
        %v2684 = vmax.f32 %v2383, 0.0
        %v2685 = vmax.f32 %v2561, 0.0
        %v2686 = vmax.f32 %v2029, 0.0
        %v2687 = vmax.f32 %v2207, 0.0
        %v2688 = vmax.f32 %v2385, 0.0
        %v2689 = vmax.f32 %v2563, 0.0
        %v2690 = vmax.f32 %v2032, 0.0
        %v2691 = vmax.f32 %v2210, 0.0
        %v2692 = vmax.f32 %v2388, 0.0
        %v2693 = vmax.f32 %v2566, 0.0
        %v2694 = vmax.f32 %v2034, 0.0
        %v2695 = vmax.f32 %v2212, 0.0
        %v2696 = vmax.f32 %v2390, 0.0
        %v2697 = vmax.f32 %v2568, 0.0
        %v2698 = vpack.c.bf16 %v2574, %v2570
        %v2699 = vpack.c.bf16 %v2575, %v2571
        %v2700 = vpack.c.bf16 %v2576, %v2572
        %v2701 = vpack.c.bf16 %v2577, %v2573
        %v2702 = vpack.c.bf16 %v2582, %v2578
        %v2703 = vpack.c.bf16 %v2583, %v2579
        %v2704 = vpack.c.bf16 %v2584, %v2580
        %v2705 = vpack.c.bf16 %v2585, %v2581
        %v2706 = vpack.c.bf16 %v2590, %v2586
        %v2707 = vpack.c.bf16 %v2591, %v2587
        %v2708 = vpack.c.bf16 %v2592, %v2588
        %v2709 = vpack.c.bf16 %v2593, %v2589
        %v2710 = vpack.c.bf16 %v2598, %v2594
        %v2711 = vpack.c.bf16 %v2599, %v2595
        %v2712 = vpack.c.bf16 %v2600, %v2596
        %v2713 = vpack.c.bf16 %v2601, %v2597
        %v2714 = vpack.c.bf16 %v2606, %v2602
        %v2715 = vpack.c.bf16 %v2607, %v2603
        %v2716 = vpack.c.bf16 %v2608, %v2604
        %v2717 = vpack.c.bf16 %v2609, %v2605
        %v2718 = vpack.c.bf16 %v2614, %v2610
        %v2719 = vpack.c.bf16 %v2615, %v2611
        %v2720 = vpack.c.bf16 %v2616, %v2612
        %v2721 = vpack.c.bf16 %v2617, %v2613
        %v2722 = vpack.c.bf16 %v2622, %v2618
        %v2723 = vpack.c.bf16 %v2623, %v2619
        %v2724 = vpack.c.bf16 %v2624, %v2620
        %v2725 = vpack.c.bf16 %v2625, %v2621
        %v2726 = vpack.c.bf16 %v2630, %v2626
        %v2727 = vpack.c.bf16 %v2631, %v2627
        %v2728 = vpack.c.bf16 %v2632, %v2628
        %v2729 = vpack.c.bf16 %v2633, %v2629
        %v2730 = vpack.c.bf16 %v2638, %v2634
        %v2731 = vpack.c.bf16 %v2639, %v2635
        %v2732 = vpack.c.bf16 %v2640, %v2636
        %v2733 = vpack.c.bf16 %v2641, %v2637
        %v2734 = vpack.c.bf16 %v2646, %v2642
        %v2735 = vpack.c.bf16 %v2647, %v2643
        %v2736 = vpack.c.bf16 %v2648, %v2644
        %v2737 = vpack.c.bf16 %v2649, %v2645
        %v2738 = vpack.c.bf16 %v2654, %v2650
        %v2739 = vpack.c.bf16 %v2655, %v2651
        %v2740 = vpack.c.bf16 %v2656, %v2652
        %v2741 = vpack.c.bf16 %v2657, %v2653
        %v2742 = vpack.c.bf16 %v2662, %v2658
        %v2743 = vpack.c.bf16 %v2663, %v2659
        %v2744 = vpack.c.bf16 %v2664, %v2660
        %v2745 = vpack.c.bf16 %v2665, %v2661
        %v2746 = vpack.c.bf16 %v2670, %v2666
        %v2747 = vpack.c.bf16 %v2671, %v2667
        %v2748 = vpack.c.bf16 %v2672, %v2668
        %v2749 = vpack.c.bf16 %v2673, %v2669
        %v2750 = vpack.c.bf16 %v2678, %v2674
        %v2751 = vpack.c.bf16 %v2679, %v2675
        %v2752 = vpack.c.bf16 %v2680, %v2676
        %v2753 = vpack.c.bf16 %v2681, %v2677
        %v2754 = vpack.c.bf16 %v2686, %v2682
        %v2755 = vpack.c.bf16 %v2687, %v2683
        %v2756 = vpack.c.bf16 %v2688, %v2684
        %v2757 = vpack.c.bf16 %v2689, %v2685
        %v2758 = vpack.c.bf16 %v2694, %v2690
        %v2759 = vpack.c.bf16 %v2695, %v2691
        %v2760 = vpack.c.bf16 %v2696, %v2692
        %v2761 = vpack.c.bf16 %v2697, %v2693
        %v2762 = vld [vmem:[#allocation2] sm:$0xf]
        %v2763 = vld [vmem:[#allocation2 + $0x4] sm:$0xf]
        %v2764 = vld [vmem:[#allocation2 + $0x8] sm:$0xf]
        %v2765 = vld [vmem:[#allocation2 + $0xc] sm:$0xf]
        %v2766 = vld [vmem:[#allocation2 + $0x10] sm:$0xf]
        %v2767 = vld [vmem:[#allocation2 + $0x14] sm:$0xf]
        %v2768 = vld [vmem:[#allocation2 + $0x18] sm:$0xf]
        %v2769 = vld [vmem:[#allocation2 + $0x1c] sm:$0xf]
        %v2770 = vld [vmem:[#allocation2 + $0x20] sm:$0xf]
        %v2771 = vld [vmem:[#allocation2 + $0x24] sm:$0xf]
        %v2772 = vld [vmem:[#allocation2 + $0x28] sm:$0xf]
        %v2773 = vld [vmem:[#allocation2 + $0x2c] sm:$0xf]
        %v2774 = vld [vmem:[#allocation2 + $0x30] sm:$0xf]
        %v2775 = vld [vmem:[#allocation2 + $0x34] sm:$0xf]
        %v2776 = vld [vmem:[#allocation2 + $0x38] sm:$0xf]
        %v2777 = vld [vmem:[#allocation2 + $0x3c] sm:$0xf]
        %v2778 = vld [vmem:[#allocation2 + $0x40] sm:$0xf]
        %v2779 = vld [vmem:[#allocation2 + $0x44] sm:$0xf]
        %v2780 = vld [vmem:[#allocation2 + $0x48] sm:$0xf]
        %v2781 = vld [vmem:[#allocation2 + $0x4c] sm:$0xf]
        %v2782 = vld [vmem:[#allocation2 + $0x50] sm:$0xf]
        %v2783 = vld [vmem:[#allocation2 + $0x54] sm:$0xf]
        %v2784 = vld [vmem:[#allocation2 + $0x58] sm:$0xf]
        %v2785 = vld [vmem:[#allocation2 + $0x5c] sm:$0xf]
        %v2786 = vld [vmem:[#allocation2 + $0x60] sm:$0xf]
        %v2787 = vld [vmem:[#allocation2 + $0x64] sm:$0xf]
        %v2788 = vld [vmem:[#allocation2 + $0x68] sm:$0xf]
        %v2789 = vld [vmem:[#allocation2 + $0x6c] sm:$0xf]
        %v2790 = vld [vmem:[#allocation2 + $0x70] sm:$0xf]
        %v2791 = vld [vmem:[#allocation2 + $0x74] sm:$0xf]
        %v2792 = vld [vmem:[#allocation2 + $0x78] sm:$0xf]
        %v2793 = vld [vmem:[#allocation2 + $0x7c] sm:$0xf]
        %v2794 = vld [vmem:[#allocation2 + $0x80] sm:$0xf]
        %v2795 = vld [vmem:[#allocation2 + $0x84] sm:$0xf]
        %v2796 = vld [vmem:[#allocation2 + $0x88] sm:$0xf]
        %v2797 = vld [vmem:[#allocation2 + $0x8c] sm:$0xf]
        %v2798 = vld [vmem:[#allocation2 + $0x90] sm:$0xf]
        %v2799 = vld [vmem:[#allocation2 + $0x94] sm:$0xf]
        %v2800 = vld [vmem:[#allocation2 + $0x98] sm:$0xf]
        %v2801 = vld [vmem:[#allocation2 + $0x9c] sm:$0xf]
        %v2802 = vld [vmem:[#allocation2 + $0xa0] sm:$0xf]
        %v2803 = vld [vmem:[#allocation2 + $0xa4] sm:$0xf]
        %v2804 = vld [vmem:[#allocation2 + $0xa8] sm:$0xf]
        %v2805 = vld [vmem:[#allocation2 + $0xac] sm:$0xf]
        %v2806 = vld [vmem:[#allocation2 + $0xb0] sm:$0xf]
        %v2807 = vld [vmem:[#allocation2 + $0xb4] sm:$0xf]
        %v2808 = vld [vmem:[#allocation2 + $0xb8] sm:$0xf]
        %v2809 = vld [vmem:[#allocation2 + $0xbc] sm:$0xf]
        %v2810 = vld [vmem:[#allocation2 + $0xc0] sm:$0xf]
        %v2811 = vld [vmem:[#allocation2 + $0xc4] sm:$0xf]
        %v2812 = vld [vmem:[#allocation2 + $0xc8] sm:$0xf]
        %v2813 = vld [vmem:[#allocation2 + $0xcc] sm:$0xf]
        %v2814 = vld [vmem:[#allocation2 + $0xd0] sm:$0xf]
        %v2815 = vld [vmem:[#allocation2 + $0xd4] sm:$0xf]
        %v2816 = vld [vmem:[#allocation2 + $0xd8] sm:$0xf]
        %v2817 = vld [vmem:[#allocation2 + $0xdc] sm:$0xf]
        %v2818 = vld [vmem:[#allocation2 + $0xe0] sm:$0xf]
        %v2819 = vld [vmem:[#allocation2 + $0xe4] sm:$0xf]
        %v2820 = vld [vmem:[#allocation2 + $0xe8] sm:$0xf]
        %v2821 = vld [vmem:[#allocation2 + $0xec] sm:$0xf]
        %v2822 = vld [vmem:[#allocation2 + $0xf0] sm:$0xf]
        %v2823 = vld [vmem:[#allocation2 + $0xf4] sm:$0xf]
        %v2824 = vld [vmem:[#allocation2 + $0xf8] sm:$0xf]
        %v2825 = vld [vmem:[#allocation2 + $0xfc] sm:$0xf]
        %v2826 = vld [vmem:[%s8] sm:$0x1]
        %v2828 = vperm.slane %v2826, 0
        %v2894 = vunpack.c.l.b16 %v2762
        %v2895 = vunpack.c.l.b16 %v2763
        %v2896 = vunpack.c.l.b16 %v2764
        %v2897 = vunpack.c.l.b16 %v2765
        %v2898 = vunpack.c.l.b16 %v2766
        %v2899 = vunpack.c.l.b16 %v2767
        %v2900 = vunpack.c.l.b16 %v2768
        %v2901 = vunpack.c.l.b16 %v2769
        %v2902 = vunpack.c.l.b16 %v2770
        %v2903 = vunpack.c.l.b16 %v2771
        %v2904 = vunpack.c.l.b16 %v2772
        %v2905 = vunpack.c.l.b16 %v2773
        %v2906 = vunpack.c.l.b16 %v2774
        %v2907 = vunpack.c.l.b16 %v2775
        %v2908 = vunpack.c.l.b16 %v2776
        %v2909 = vunpack.c.l.b16 %v2777
        %v2910 = vunpack.c.l.b16 %v2778
        %v2911 = vunpack.c.l.b16 %v2779
        %v2912 = vunpack.c.l.b16 %v2780
        %v2913 = vunpack.c.l.b16 %v2781
        %v2914 = vunpack.c.l.b16 %v2782
        %v2915 = vunpack.c.l.b16 %v2783
        %v2916 = vunpack.c.l.b16 %v2784
        %v2917 = vunpack.c.l.b16 %v2785
        %v2918 = vunpack.c.l.b16 %v2786
        %v2919 = vunpack.c.l.b16 %v2787
        %v2920 = vunpack.c.l.b16 %v2788
        %v2921 = vunpack.c.l.b16 %v2789
        %v2922 = vunpack.c.l.b16 %v2790
        %v2923 = vunpack.c.l.b16 %v2791
        %v2924 = vunpack.c.l.b16 %v2792
        %v2925 = vunpack.c.l.b16 %v2793
        %v2926 = vunpack.c.l.b16 %v2794
        %v2927 = vunpack.c.l.b16 %v2795
        %v2928 = vunpack.c.l.b16 %v2796
        %v2929 = vunpack.c.l.b16 %v2797
        %v2930 = vunpack.c.l.b16 %v2798
        %v2931 = vunpack.c.l.b16 %v2799
        %v2932 = vunpack.c.l.b16 %v2800
        %v2933 = vunpack.c.l.b16 %v2801
        %v2934 = vunpack.c.l.b16 %v2802
        %v2935 = vunpack.c.l.b16 %v2803
        %v2936 = vunpack.c.l.b16 %v2804
        %v2937 = vunpack.c.l.b16 %v2805
        %v2938 = vunpack.c.l.b16 %v2806
        %v2939 = vunpack.c.l.b16 %v2807
        %v2940 = vunpack.c.l.b16 %v2808
        %v2941 = vunpack.c.l.b16 %v2809
        %v2942 = vunpack.c.l.b16 %v2810
        %v2943 = vunpack.c.l.b16 %v2811
        %v2944 = vunpack.c.l.b16 %v2812
        %v2945 = vunpack.c.l.b16 %v2813
        %v2946 = vunpack.c.l.b16 %v2814
        %v2947 = vunpack.c.l.b16 %v2815
        %v2948 = vunpack.c.l.b16 %v2816
        %v2949 = vunpack.c.l.b16 %v2817
        %v2950 = vunpack.c.l.b16 %v2818
        %v2951 = vunpack.c.l.b16 %v2819
        %v2952 = vunpack.c.l.b16 %v2820
        %v2953 = vunpack.c.l.b16 %v2821
        %v2954 = vunpack.c.l.b16 %v2822
        %v2955 = vunpack.c.l.b16 %v2823
        %v2956 = vunpack.c.l.b16 %v2824
        %v2957 = vunpack.c.l.b16 %v2825
        %v2958 = vpack.c.b16 %v2895, %v2894
        %v2959 = vpack.c.b16 %v2897, %v2896
        %v2960 = vpack.c.b16 %v2899, %v2898
        %v2961 = vpack.c.b16 %v2901, %v2900
        %v2962 = vpack.c.b16 %v2903, %v2902
        %v2963 = vpack.c.b16 %v2905, %v2904
        %v2964 = vpack.c.b16 %v2907, %v2906
        %v2965 = vpack.c.b16 %v2909, %v2908
        %v2966 = vpack.c.b16 %v2911, %v2910
        %v2967 = vpack.c.b16 %v2913, %v2912
        %v2968 = vpack.c.b16 %v2915, %v2914
        %v2969 = vpack.c.b16 %v2917, %v2916
        %v2970 = vpack.c.b16 %v2919, %v2918
        %v2971 = vpack.c.b16 %v2921, %v2920
        %v2972 = vpack.c.b16 %v2923, %v2922
        %v2973 = vpack.c.b16 %v2925, %v2924
        %v2974 = vpack.c.b16 %v2927, %v2926
        %v2975 = vpack.c.b16 %v2929, %v2928
        %v2976 = vpack.c.b16 %v2931, %v2930
        %v2977 = vpack.c.b16 %v2933, %v2932
        %v2978 = vpack.c.b16 %v2935, %v2934
        %v2979 = vpack.c.b16 %v2937, %v2936
        %v2980 = vpack.c.b16 %v2939, %v2938
        %v2981 = vpack.c.b16 %v2941, %v2940
        %v2982 = vpack.c.b16 %v2943, %v2942
        %v2983 = vpack.c.b16 %v2945, %v2944
        %v2984 = vpack.c.b16 %v2947, %v2946
        %v2985 = vpack.c.b16 %v2949, %v2948
        %v2986 = vpack.c.b16 %v2951, %v2950
        %v2987 = vpack.c.b16 %v2953, %v2952
        %v2988 = vpack.c.b16 %v2955, %v2954
        %v2989 = vpack.c.b16 %v2957, %v2956
        %3022 = vmatpush.bf16.msra.mxu0 %v2965
        %3023 = vmatpush.bf16.msra.mxu0 %v2964
        %3024 = vmatpush.bf16.msra.mxu0 %v2963
        %3025 = vmatpush.bf16.msra.mxu0 %v2962
        %3026 = vmatpush.bf16.msra.mxu0 %v2961
        %3027 = vmatpush.bf16.msra.mxu0 %v2960
        %3028 = vmatpush.bf16.msra.mxu0 %v2959
        %3029 = vmatpush.bf16.msra.mxu0 %v2958
        %3030 = vmatmul.bf16.gmra.mxu0 %v2698
        %v3031 = vpop.f32.mrf.mxu0
        %v3032 = vadd.f32 %v2828, %v3031
        %v3033 = vpop.f32.mrf.mxu0
        %v3034 = vadd.f32 %v2828, %v3033
        %3035 = vmatmul.bf16.gmra.mxu0 %v2702
        %v3036 = vpop.f32.mrf.mxu0
        %v3037 = vadd.f32 %v2828, %v3036
        %v3038 = vpop.f32.mrf.mxu0
        %v3039 = vadd.f32 %v2828, %v3038
        %3040 = vmatmul.bf16.gmra.mxu0 %v2706
        %v3041 = vpop.f32.mrf.mxu0
        %v3042 = vadd.f32 %v2828, %v3041
        %v3043 = vpop.f32.mrf.mxu0
        %v3044 = vadd.f32 %v2828, %v3043
        %3045 = vmatmul.bf16.gmra.mxu0 %v2710
        %v3046 = vpop.f32.mrf.mxu0
        %v3047 = vadd.f32 %v2828, %v3046
        %v3048 = vpop.f32.mrf.mxu0
        %v3049 = vadd.f32 %v2828, %v3048
        %3050 = vmatmul.bf16.gmra.mxu0 %v2714
        %v3051 = vpop.f32.mrf.mxu0
        %v3052 = vadd.f32 %v2828, %v3051
        %v3053 = vpop.f32.mrf.mxu0
        %v3054 = vadd.f32 %v2828, %v3053
        %3055 = vmatmul.bf16.gmra.mxu0 %v2718
        %v3056 = vpop.f32.mrf.mxu0
        %v3057 = vadd.f32 %v2828, %v3056
        %v3058 = vpop.f32.mrf.mxu0
        %v3059 = vadd.f32 %v2828, %v3058
        %3060 = vmatmul.bf16.gmra.mxu0 %v2722
        %v3061 = vpop.f32.mrf.mxu0
        %v3062 = vadd.f32 %v2828, %v3061
        %v3063 = vpop.f32.mrf.mxu0
        %v3064 = vadd.f32 %v2828, %v3063
        %3065 = vmatmul.bf16.gmra.mxu0 %v2726
        %v3066 = vpop.f32.mrf.mxu0
        %v3067 = vadd.f32 %v2828, %v3066
        %v3068 = vpop.f32.mrf.mxu0
        %v3069 = vadd.f32 %v2828, %v3068
        %3070 = vmatmul.bf16.gmra.mxu0 %v2730
        %v3071 = vpop.f32.mrf.mxu0
        %v3072 = vadd.f32 %v2828, %v3071
        %v3073 = vpop.f32.mrf.mxu0
        %v3074 = vadd.f32 %v2828, %v3073
        %3075 = vmatmul.bf16.gmra.mxu0 %v2734
        %v3076 = vpop.f32.mrf.mxu0
        %v3077 = vadd.f32 %v2828, %v3076
        %v3078 = vpop.f32.mrf.mxu0
        %v3079 = vadd.f32 %v2828, %v3078
        %3080 = vmatmul.bf16.gmra.mxu0 %v2738
        %v3081 = vpop.f32.mrf.mxu0
        %v3082 = vadd.f32 %v2828, %v3081
        %v3083 = vpop.f32.mrf.mxu0
        %v3084 = vadd.f32 %v2828, %v3083
        %3085 = vmatmul.bf16.gmra.mxu0 %v2742
        %v3086 = vpop.f32.mrf.mxu0
        %v3087 = vadd.f32 %v2828, %v3086
        %v3088 = vpop.f32.mrf.mxu0
        %v3089 = vadd.f32 %v2828, %v3088
        %3090 = vmatmul.bf16.gmra.mxu0 %v2746
        %v3091 = vpop.f32.mrf.mxu0
        %v3092 = vadd.f32 %v2828, %v3091
        %v3093 = vpop.f32.mrf.mxu0
        %v3094 = vadd.f32 %v2828, %v3093
        %3095 = vmatmul.bf16.gmra.mxu0 %v2750
        %v3096 = vpop.f32.mrf.mxu0
        %v3097 = vadd.f32 %v2828, %v3096
        %v3098 = vpop.f32.mrf.mxu0
        %v3099 = vadd.f32 %v2828, %v3098
        %3100 = vmatmul.bf16.gmra.mxu0 %v2754
        %v3101 = vpop.f32.mrf.mxu0
        %v3102 = vadd.f32 %v2828, %v3101
        %v3103 = vpop.f32.mrf.mxu0
        %v3104 = vadd.f32 %v2828, %v3103
        %3105 = vmatmul.bf16.gmra.mxu0 %v2758
        %v3106 = vpop.f32.mrf.mxu0
        %v3107 = vadd.f32 %v2828, %v3106
        %v3108 = vpop.f32.mrf.mxu0
        %v3109 = vadd.f32 %v2828, %v3108
        %3110 = vdwg.mxu0
        %3111 = vmatpush.bf16.msra.mxu0 %v2973
        %3112 = vmatpush.bf16.msra.mxu0 %v2972
        %3113 = vmatpush.bf16.msra.mxu0 %v2971
        %3114 = vmatpush.bf16.msra.mxu0 %v2970
        %3115 = vmatpush.bf16.msra.mxu0 %v2969
        %3116 = vmatpush.bf16.msra.mxu0 %v2968
        %3117 = vmatpush.bf16.msra.mxu0 %v2967
        %3118 = vmatpush.bf16.msra.mxu0 %v2966
        %3119 = vmatmul.bf16.gmra.mxu0 %v2699
        %v3120 = vpop.f32.mrf.mxu0
        %v3121 = vadd.f32 %v3032, %v3120
        %v3122 = vpop.f32.mrf.mxu0
        %v3123 = vadd.f32 %v3034, %v3122
        %3124 = vmatmul.bf16.gmra.mxu0 %v2703
        %v3125 = vpop.f32.mrf.mxu0
        %v3126 = vadd.f32 %v3037, %v3125
        %v3127 = vpop.f32.mrf.mxu0
        %v3128 = vadd.f32 %v3039, %v3127
        %3129 = vmatmul.bf16.gmra.mxu0 %v2707
        %v3130 = vpop.f32.mrf.mxu0
        %v3131 = vadd.f32 %v3042, %v3130
        %v3132 = vpop.f32.mrf.mxu0
        %v3133 = vadd.f32 %v3044, %v3132
        %3134 = vmatmul.bf16.gmra.mxu0 %v2711
        %v3135 = vpop.f32.mrf.mxu0
        %v3136 = vadd.f32 %v3047, %v3135
        %v3137 = vpop.f32.mrf.mxu0
        %v3138 = vadd.f32 %v3049, %v3137
        %3139 = vmatmul.bf16.gmra.mxu0 %v2715
        %v3140 = vpop.f32.mrf.mxu0
        %v3141 = vadd.f32 %v3052, %v3140
        %v3142 = vpop.f32.mrf.mxu0
        %v3143 = vadd.f32 %v3054, %v3142
        %3144 = vmatmul.bf16.gmra.mxu0 %v2719
        %v3145 = vpop.f32.mrf.mxu0
        %v3146 = vadd.f32 %v3057, %v3145
        %v3147 = vpop.f32.mrf.mxu0
        %v3148 = vadd.f32 %v3059, %v3147
        %3149 = vmatmul.bf16.gmra.mxu0 %v2723
        %v3150 = vpop.f32.mrf.mxu0
        %v3151 = vadd.f32 %v3062, %v3150
        %v3152 = vpop.f32.mrf.mxu0
        %v3153 = vadd.f32 %v3064, %v3152
        %3154 = vmatmul.bf16.gmra.mxu0 %v2727
        %v3155 = vpop.f32.mrf.mxu0
        %v3156 = vadd.f32 %v3067, %v3155
        %v3157 = vpop.f32.mrf.mxu0
        %v3158 = vadd.f32 %v3069, %v3157
        %3159 = vmatmul.bf16.gmra.mxu0 %v2731
        %v3160 = vpop.f32.mrf.mxu0
        %v3161 = vadd.f32 %v3072, %v3160
        %v3162 = vpop.f32.mrf.mxu0
        %v3163 = vadd.f32 %v3074, %v3162
        %3164 = vmatmul.bf16.gmra.mxu0 %v2735
        %v3165 = vpop.f32.mrf.mxu0
        %v3166 = vadd.f32 %v3077, %v3165
        %v3167 = vpop.f32.mrf.mxu0
        %v3168 = vadd.f32 %v3079, %v3167
        %3169 = vmatmul.bf16.gmra.mxu0 %v2739
        %v3170 = vpop.f32.mrf.mxu0
        %v3171 = vadd.f32 %v3082, %v3170
        %v3172 = vpop.f32.mrf.mxu0
        %v3173 = vadd.f32 %v3084, %v3172
        %3174 = vmatmul.bf16.gmra.mxu0 %v2743
        %v3175 = vpop.f32.mrf.mxu0
        %v3176 = vadd.f32 %v3087, %v3175
        %v3177 = vpop.f32.mrf.mxu0
        %v3178 = vadd.f32 %v3089, %v3177
        %3179 = vmatmul.bf16.gmra.mxu0 %v2747
        %v3180 = vpop.f32.mrf.mxu0
        %v3181 = vadd.f32 %v3092, %v3180
        %v3182 = vpop.f32.mrf.mxu0
        %v3183 = vadd.f32 %v3094, %v3182
        %3184 = vmatmul.bf16.gmra.mxu0 %v2751
        %v3185 = vpop.f32.mrf.mxu0
        %v3186 = vadd.f32 %v3097, %v3185
        %v3187 = vpop.f32.mrf.mxu0
        %v3188 = vadd.f32 %v3099, %v3187
        %3189 = vmatmul.bf16.gmra.mxu0 %v2755
        %v3190 = vpop.f32.mrf.mxu0
        %v3191 = vadd.f32 %v3102, %v3190
        %v3192 = vpop.f32.mrf.mxu0
        %v3193 = vadd.f32 %v3104, %v3192
        %3194 = vmatmul.bf16.gmra.mxu0 %v2759
        %v3195 = vpop.f32.mrf.mxu0
        %v3196 = vadd.f32 %v3107, %v3195
        %v3197 = vpop.f32.mrf.mxu0
        %v3198 = vadd.f32 %v3109, %v3197
        %3199 = vdwg.mxu0
        %3200 = vmatpush.bf16.msra.mxu0 %v2981
        %3201 = vmatpush.bf16.msra.mxu0 %v2980
        %3202 = vmatpush.bf16.msra.mxu0 %v2979
        %3203 = vmatpush.bf16.msra.mxu0 %v2978
        %3204 = vmatpush.bf16.msra.mxu0 %v2977
        %3205 = vmatpush.bf16.msra.mxu0 %v2976
        %3206 = vmatpush.bf16.msra.mxu0 %v2975
        %3207 = vmatpush.bf16.msra.mxu0 %v2974
        %3208 = vmatmul.bf16.gmra.mxu0 %v2700
        %v3209 = vpop.f32.mrf.mxu0
        %v3210 = vadd.f32 %v3121, %v3209
        %v3211 = vpop.f32.mrf.mxu0
        %v3212 = vadd.f32 %v3123, %v3211
        %3213 = vmatmul.bf16.gmra.mxu0 %v2704
        %v3214 = vpop.f32.mrf.mxu0
        %v3215 = vadd.f32 %v3126, %v3214
        %v3216 = vpop.f32.mrf.mxu0
        %v3217 = vadd.f32 %v3128, %v3216
        %3218 = vmatmul.bf16.gmra.mxu0 %v2708
        %v3219 = vpop.f32.mrf.mxu0
        %v3220 = vadd.f32 %v3131, %v3219
        %v3221 = vpop.f32.mrf.mxu0
        %v3222 = vadd.f32 %v3133, %v3221
        %3223 = vmatmul.bf16.gmra.mxu0 %v2712
        %v3224 = vpop.f32.mrf.mxu0
        %v3225 = vadd.f32 %v3136, %v3224
        %v3226 = vpop.f32.mrf.mxu0
        %v3227 = vadd.f32 %v3138, %v3226
        %3228 = vmatmul.bf16.gmra.mxu0 %v2716
        %v3229 = vpop.f32.mrf.mxu0
        %v3230 = vadd.f32 %v3141, %v3229
        %v3231 = vpop.f32.mrf.mxu0
        %v3232 = vadd.f32 %v3143, %v3231
        %3233 = vmatmul.bf16.gmra.mxu0 %v2720
        %v3234 = vpop.f32.mrf.mxu0
        %v3235 = vadd.f32 %v3146, %v3234
        %v3236 = vpop.f32.mrf.mxu0
        %v3237 = vadd.f32 %v3148, %v3236
        %3238 = vmatmul.bf16.gmra.mxu0 %v2724
        %v3239 = vpop.f32.mrf.mxu0
        %v3240 = vadd.f32 %v3151, %v3239
        %v3241 = vpop.f32.mrf.mxu0
        %v3242 = vadd.f32 %v3153, %v3241
        %3243 = vmatmul.bf16.gmra.mxu0 %v2728
        %v3244 = vpop.f32.mrf.mxu0
        %v3245 = vadd.f32 %v3156, %v3244
        %v3246 = vpop.f32.mrf.mxu0
        %v3247 = vadd.f32 %v3158, %v3246
        %3248 = vmatmul.bf16.gmra.mxu0 %v2732
        %v3249 = vpop.f32.mrf.mxu0
        %v3250 = vadd.f32 %v3161, %v3249
        %v3251 = vpop.f32.mrf.mxu0
        %v3252 = vadd.f32 %v3163, %v3251
        %3253 = vmatmul.bf16.gmra.mxu0 %v2736
        %v3254 = vpop.f32.mrf.mxu0
        %v3255 = vadd.f32 %v3166, %v3254
        %v3256 = vpop.f32.mrf.mxu0
        %v3257 = vadd.f32 %v3168, %v3256
        %3258 = vmatmul.bf16.gmra.mxu0 %v2740
        %v3259 = vpop.f32.mrf.mxu0
        %v3260 = vadd.f32 %v3171, %v3259
        %v3261 = vpop.f32.mrf.mxu0
        %v3262 = vadd.f32 %v3173, %v3261
        %3263 = vmatmul.bf16.gmra.mxu0 %v2744
        %v3264 = vpop.f32.mrf.mxu0
        %v3265 = vadd.f32 %v3176, %v3264
        %v3266 = vpop.f32.mrf.mxu0
        %v3267 = vadd.f32 %v3178, %v3266
        %3268 = vmatmul.bf16.gmra.mxu0 %v2748
        %v3269 = vpop.f32.mrf.mxu0
        %v3270 = vadd.f32 %v3181, %v3269
        %v3271 = vpop.f32.mrf.mxu0
        %v3272 = vadd.f32 %v3183, %v3271
        %3273 = vmatmul.bf16.gmra.mxu0 %v2752
        %v3274 = vpop.f32.mrf.mxu0
        %v3275 = vadd.f32 %v3186, %v3274
        %v3276 = vpop.f32.mrf.mxu0
        %v3277 = vadd.f32 %v3188, %v3276
        %3278 = vmatmul.bf16.gmra.mxu0 %v2756
        %v3279 = vpop.f32.mrf.mxu0
        %v3280 = vadd.f32 %v3191, %v3279
        %v3281 = vpop.f32.mrf.mxu0
        %v3282 = vadd.f32 %v3193, %v3281
        %3283 = vmatmul.bf16.gmra.mxu0 %v2760
        %v3284 = vpop.f32.mrf.mxu0
        %v3285 = vadd.f32 %v3196, %v3284
        %v3286 = vpop.f32.mrf.mxu0
        %v3287 = vadd.f32 %v3198, %v3286
        %3288 = vdwg.mxu0
        %3289 = vmatpush.bf16.msra.mxu0 %v2989
        %3290 = vmatpush.bf16.msra.mxu0 %v2988
        %3291 = vmatpush.bf16.msra.mxu0 %v2987
        %3292 = vmatpush.bf16.msra.mxu0 %v2986
        %3293 = vmatpush.bf16.msra.mxu0 %v2985
        %3294 = vmatpush.bf16.msra.mxu0 %v2984
        %3295 = vmatpush.bf16.msra.mxu0 %v2983
        %3296 = vmatpush.bf16.msra.mxu0 %v2982
        %3297 = vmatmul.bf16.gmra.mxu0 %v2701
        %v3298 = vpop.f32.mrf.mxu0
        %v3299 = vadd.f32 %v3210, %v3298
        %v3300 = vpop.f32.mrf.mxu0
        %v3301 = vadd.f32 %v3212, %v3300
        %3302 = vmatmul.bf16.gmra.mxu0 %v2705
        %v3303 = vpop.f32.mrf.mxu0
        %v3304 = vadd.f32 %v3215, %v3303
        %v3305 = vpop.f32.mrf.mxu0
        %v3306 = vadd.f32 %v3217, %v3305
        %3307 = vmatmul.bf16.gmra.mxu0 %v2709
        %v3308 = vpop.f32.mrf.mxu0
        %v3309 = vadd.f32 %v3220, %v3308
        %v3310 = vpop.f32.mrf.mxu0
        %v3311 = vadd.f32 %v3222, %v3310
        %3312 = vmatmul.bf16.gmra.mxu0 %v2713
        %v3313 = vpop.f32.mrf.mxu0
        %v3314 = vadd.f32 %v3225, %v3313
        %v3315 = vpop.f32.mrf.mxu0
        %v3316 = vadd.f32 %v3227, %v3315
        %3317 = vmatmul.bf16.gmra.mxu0 %v2717
        %v3318 = vpop.f32.mrf.mxu0
        %v3319 = vadd.f32 %v3230, %v3318
        %v3320 = vpop.f32.mrf.mxu0
        %v3321 = vadd.f32 %v3232, %v3320
        %3322 = vmatmul.bf16.gmra.mxu0 %v2721
        %v3323 = vpop.f32.mrf.mxu0
        %v3324 = vadd.f32 %v3235, %v3323
        %v3325 = vpop.f32.mrf.mxu0
        %v3326 = vadd.f32 %v3237, %v3325
        %3327 = vmatmul.bf16.gmra.mxu0 %v2725
        %v3328 = vpop.f32.mrf.mxu0
        %v3329 = vadd.f32 %v3240, %v3328
        %v3330 = vpop.f32.mrf.mxu0
        %v3331 = vadd.f32 %v3242, %v3330
        %3332 = vmatmul.bf16.gmra.mxu0 %v2729
        %v3333 = vpop.f32.mrf.mxu0
        %v3334 = vadd.f32 %v3245, %v3333
        %v3335 = vpop.f32.mrf.mxu0
        %v3336 = vadd.f32 %v3247, %v3335
        %3337 = vmatmul.bf16.gmra.mxu0 %v2733
        %v3338 = vpop.f32.mrf.mxu0
        %v3339 = vadd.f32 %v3250, %v3338
        %v3340 = vpop.f32.mrf.mxu0
        %v3341 = vadd.f32 %v3252, %v3340
        %3342 = vmatmul.bf16.gmra.mxu0 %v2737
        %v3343 = vpop.f32.mrf.mxu0
        %v3344 = vadd.f32 %v3255, %v3343
        %v3345 = vpop.f32.mrf.mxu0
        %v3346 = vadd.f32 %v3257, %v3345
        %3347 = vmatmul.bf16.gmra.mxu0 %v2741
        %v3348 = vpop.f32.mrf.mxu0
        %v3349 = vadd.f32 %v3260, %v3348
        %v3350 = vpop.f32.mrf.mxu0
        %v3351 = vadd.f32 %v3262, %v3350
        %3352 = vmatmul.bf16.gmra.mxu0 %v2745
        %v3353 = vpop.f32.mrf.mxu0
        %v3354 = vadd.f32 %v3265, %v3353
        %v3355 = vpop.f32.mrf.mxu0
        %v3356 = vadd.f32 %v3267, %v3355
        %3357 = vmatmul.bf16.gmra.mxu0 %v2749
        %v3358 = vpop.f32.mrf.mxu0
        %v3359 = vadd.f32 %v3270, %v3358
        %v3360 = vpop.f32.mrf.mxu0
        %v3361 = vadd.f32 %v3272, %v3360
        %3362 = vmatmul.bf16.gmra.mxu0 %v2753
        %v3363 = vpop.f32.mrf.mxu0
        %v3364 = vadd.f32 %v3275, %v3363
        %v3365 = vpop.f32.mrf.mxu0
        %v3366 = vadd.f32 %v3277, %v3365
        %3367 = vmatmul.bf16.gmra.mxu0 %v2757
        %v3368 = vpop.f32.mrf.mxu0
        %v3369 = vadd.f32 %v3280, %v3368
        %v3370 = vpop.f32.mrf.mxu0
        %v3371 = vadd.f32 %v3282, %v3370
        %3372 = vmatmul.bf16.gmra.mxu0 %v2761
        %v3373 = vpop.f32.mrf.mxu0
        %v3374 = vadd.f32 %v3285, %v3373
        %v3375 = vpop.f32.mrf.mxu0
        %v3376 = vadd.f32 %v3287, %v3375
        %3377 = vdwg.mxu0
        %3378 = vst [vmem:[%s343] sm:$0xff] %v3299
        %3379 = vst [vmem:[%s343 + $0x8] sm:$0xff] %v3301
        %3380 = vst [vmem:[%s343 + $0x10] sm:$0xff] %v3304
        %3381 = vst [vmem:[%s343 + $0x18] sm:$0xff] %v3306
        %3382 = vst [vmem:[%s343 + $0x20] sm:$0xff] %v3309
        %3383 = vst [vmem:[%s343 + $0x28] sm:$0xff] %v3311
        %3384 = vst [vmem:[%s343 + $0x30] sm:$0xff] %v3314
        %3385 = vst [vmem:[%s343 + $0x38] sm:$0xff] %v3316
        %3386 = vst [vmem:[%s343 + $0x40] sm:$0xff] %v3319
        %3387 = vst [vmem:[%s343 + $0x48] sm:$0xff] %v3321
        %3388 = vst [vmem:[%s343 + $0x50] sm:$0xff] %v3324
        %3389 = vst [vmem:[%s343 + $0x58] sm:$0xff] %v3326
        %3390 = vst [vmem:[%s343 + $0x60] sm:$0xff] %v3329
        %3391 = vst [vmem:[%s343 + $0x68] sm:$0xff] %v3331
        %3392 = vst [vmem:[%s343 + $0x70] sm:$0xff] %v3334
        %3393 = vst [vmem:[%s343 + $0x78] sm:$0xff] %v3336
        %3394 = vst [vmem:[%s343 + $0x80] sm:$0xff] %v3339
        %3395 = vst [vmem:[%s343 + $0x88] sm:$0xff] %v3341
        %3396 = vst [vmem:[%s343 + $0x90] sm:$0xff] %v3344
        %3397 = vst [vmem:[%s343 + $0x98] sm:$0xff] %v3346
        %3398 = vst [vmem:[%s343 + $0xa0] sm:$0xff] %v3349
        %3399 = vst [vmem:[%s343 + $0xa8] sm:$0xff] %v3351
        %3400 = vst [vmem:[%s343 + $0xb0] sm:$0xff] %v3354
        %3401 = vst [vmem:[%s343 + $0xb8] sm:$0xff] %v3356
        %3402 = vst [vmem:[%s343 + $0xc0] sm:$0xff] %v3359
        %3403 = vst [vmem:[%s343 + $0xc8] sm:$0xff] %v3361
        %3404 = vst [vmem:[%s343 + $0xd0] sm:$0xff] %v3364
        %3405 = vst [vmem:[%s343 + $0xd8] sm:$0xff] %v3366
        %3406 = vst [vmem:[%s343 + $0xe0] sm:$0xff] %v3369
        %3407 = vst [vmem:[%s343 + $0xe8] sm:$0xff] %v3371
        %3408 = vst [vmem:[%s343 + $0xf0] sm:$0xff] %v3374
        %3409 = vst [vmem:[%s343 + $0xf8] sm:$0xff] %v3376
        %s3410 = sand.u32 %s226, 1
        %s3411 = scalar_lea.sflag [#allocation4], %s3410
        %s3412 = sand.u32 %s226, 1
        %s3413 = smul.addr %s3412, 256
        %s3414 = scalar_lea.vmem [#allocation5], %s3413
        // Predicated region
        $region61: #{tpu_custom_call.1} parent=55 // pred_check
          %p3415 = pneg %p236
        $region62: #{tpu_custom_call.1} parent=55 // pred_check_branch
          %3417 = sbr.rel (%p3415) target = $region64
        $region63: #{tpu_custom_call.1} parent=55 // pred_region
          %s3418 = smul.u32 32, %s24
          %3420 = vsyncadd %s3411, 0
          %s3421 = smul.addr %s3418, 8
          %s3422 = scalar_lea.hbm %s9, %s3421
          %s3423 = sshll.u32 %s3414, 4
          %s3424 = int_to_ptr.vmem [resolvable:$true] %s3423
          %s3425 = sshll.u32 %s3422, 4
          %s3426 = int_to_ptr.hbm [resolvable:$true] %s3425
          %3431 = dma.vmem_to_hbm [thread:$0]  %s3424, 4096, %s3426, %s3411, 128, 128, 8
        $region64: #{tpu_custom_call.1} parent=55 // pred_fallthru
          _
      $region56: #{tpu_custom_call.1} parent=5 // pred_fallthru
        _
      %p3432 = scmp.le.s32.totalorder 2, %s19
      // Predicated region
      $region65: #{tpu_custom_call.1} parent=5 // pred_check
        %p3433 = pneg %p3432
      $region66: #{tpu_custom_call.1} parent=5 // pred_check_branch
        %3435 = sbr.rel (%p3433) target = $region68
      $region67: #{tpu_custom_call.1} parent=5 // pred_region
        %s3436 = ssub.s32 %s19, 2
        // Predicated region
        $region69: #{tpu_custom_call.1} parent=67 // pred_check
          %p3437 = pneg %p242
        $region70: #{tpu_custom_call.1} parent=67 // pred_check_branch
          %3439 = sbr.rel (%p3437) target = $region72
        $region71: #{tpu_custom_call.1} parent=67 // pred_region
          %s3440 = sand.u32 %s227, 1
          %s3441 = scalar_lea.sflag [#allocation4], %s3440
          %s3442 = sand.u32 %s227, 1
          %s3443 = smul.addr %s3442, 256
          %s3444 = scalar_lea.vmem [#allocation5], %s3443
          %3446 = dma.done %s3441, 4096
        $region72: #{tpu_custom_call.1} parent=67 // pred_fallthru
          _
      $region68: #{tpu_custom_call.1} parent=5 // pred_fallthru
        _
    $region6: #{tpu_custom_call.1} parent=1 // loop_footer
      %s23 = sadd.s32 1, %s19
    $region7: #{tpu_custom_call.1} parent=1 // loop_footer_branch
      %18 = sbr.rel target = $region3
    $region8: #{tpu_custom_call.1} parent=1 // loop_exit
      _
    %3447 = vsyncpa [#allocation3], 1
    %s3448 = scalar_lea.sflag [#allocation3], 1
    %3449 = vsyncpa %s3448, 1
    %3450 = vsyncpa [#allocation4], 1
    %s3451 = scalar_lea.sflag [#allocation4], 1
    %3452 = vsyncpa %s3451, 1

</llo_original>
